<compile_context>
chip_gen: v7x
topology: tpu7x:2x2x1
jax: 0.10.0
libtpu: 0.0.40
codegen_flags: <defaults>
</compile_context>

<pallas_src>
import jax
import jax.numpy as jnp
from jax.experimental import pallas as pl
from jax.experimental.pallas import tpu as pltpu

LANE = 128                      # lane width of the logits output (10 real classes)
C1P = 32                        # conv1 output channels 20 -> 32
C2P = 64                        # conv2 output channels 50 -> 64
H1P = 512                       # fc1 width 500 -> 512
NEG = -1e30                     # "-inf" bias for padded logit lanes
TB_MAX = 32                     # images per grid step (keeps VMEM well under 32 MiB)
VMEM_LIMIT = 32 * 1024 * 1024   # safe on v5e/v6e (128 MiB) and v7x (64 MiB physical)


def _round_up(x, m):
    return (x + m - 1) // m * m


# ----------------------------------------------------------------------------
# Fused Pallas kernel: conv1+pool -> conv2+pool -> fc1 -> fc2 -> log-softmax
# Layouts inside the kernel: batch on sublanes, channels on lanes.
# ----------------------------------------------------------------------------
def _lenet_fused_kernel(p1_ref, w1_ref, b1_ref, w2_ref, b2_ref,
                        fw1_ref, fb1_ref, fw2_ref, fb2_ref, o_ref):
    tb = p1_ref.shape[2]

    # ---- conv1: one im2col matmul over all 24x24 output positions ----
    p1 = p1_ref[...]                                            # (24,24,TB,25) bf16
    z1 = jnp.dot(p1.reshape(24 * 24 * tb, 25), w1_ref[...],
                 preferred_element_type=jnp.float32)            # (576*TB, 32) f32
    z1 = z1.reshape(24, 24, tb, C1P)
    # 2x2 / stride-2 max pool via leading-dim reshape splits (no strided slicing)
    z1 = z1.reshape(12, 2, 24, tb, C1P)
    z1 = jnp.maximum(z1[:, 0], z1[:, 1])                        # pool in y
    z1 = z1.reshape(12, 12, 2, tb, C1P)
    z1 = jnp.maximum(z1[:, :, 0], z1[:, :, 1])                  # pool in x -> (12,12,TB,32)
    # relu(max_pool(z) + b) == max_pool(relu(z + b))
    a1 = jnp.maximum(z1 + b1_ref[...], 0.0).astype(jnp.bfloat16)

    # ---- conv2: im2col patches built in VMEM, single matmul, fused pool ----
    pieces = [a1[i:i + 8, j:j + 8] for i in range(5) for j in range(5)]
    p2 = jnp.concatenate(pieces, axis=-1)                       # (8,8,TB,800) bf16
    z2 = jnp.dot(p2.reshape(8 * 8 * tb, 25 * C1P), w2_ref[...],
                 preferred_element_type=jnp.float32)            # (64*TB, 64) f32
    z2 = z2.reshape(8, 8, tb, C2P)
    z2 = z2.reshape(4, 2, 8, tb, C2P)
    z2 = jnp.maximum(z2[:, 0], z2[:, 1])                        # pool in y
    z2 = z2.reshape(4, 4, 2, tb, C2P)
    z2 = jnp.maximum(z2[:, :, 0], z2[:, :, 1])                  # pool in x -> (4,4,TB,64)
    a2 = jnp.maximum(z2 + b2_ref[...], 0.0).astype(jnp.bfloat16)

    # ---- fc1 (+relu): contract the 16 carried (y,x) feature blocks (800 real) ----
    h = jnp.zeros((tb, H1P), jnp.float32)
    for yy in range(4):
        for xx in range(4):
            h = h + jnp.dot(a2[yy, xx], fw1_ref[yy * 4 + xx],
                            preferred_element_type=jnp.float32)
    h = jnp.maximum(h + fb1_ref[...], 0.0).astype(jnp.bfloat16)

    # ---- fc2 + log-softmax (padded logit lanes carry a -1e30 bias) ----
    z = jnp.dot(h, fw2_ref[...], preferred_element_type=jnp.float32) + fb2_ref[...]
    m = jnp.max(z, axis=-1, keepdims=True)
    s = z - m
    lse = jnp.log(jnp.sum(jnp.exp(s), axis=-1, keepdims=True))
    o_ref[...] = (s - lse).astype(o_ref.dtype)


# ----------------------------------------------------------------------------
# Forward pass wrapper (thin XLA glue + one pallas_call)
# ----------------------------------------------------------------------------
def lenet5caffe_forward(params, img_nchw):
    N, C, H, W = img_nchw.shape
    # LeNet5Caffe requires 1x28x28 input so the flattened conv output is 800.
    assert (C, H, W) == (1, 28, 28), (C, H, W)
    OH = OW = 24

    # conv1 im2col in the wrapper (tiny, single input channel); rows laid out as
    # (oy, ox, n) so the batch lands on the sublane dim inside the kernel.
    xs = img_nchw[:, 0]                                              # (N,28,28)
    cols = [xs[:, i:i + OH, j:j + OW] for i in range(5) for j in range(5)]
    p1 = jnp.stack(cols, axis=-1)                                    # (N,24,24,25)
    p1 = jnp.transpose(p1, (1, 2, 0, 3)).astype(jnp.bfloat16)        # (24,24,N,25)

    # Batch tile: multiple of 8 (sublane), >= 2 grid steps when batch allows (v7x).
    TB = min(TB_MAX, max(8, _round_up(pl.cdiv(N, 2), 8)))
    G = pl.cdiv(N, TB)
    Np = G * TB
    if Np != N:
        p1 = jnp.pad(p1, ((0, 0), (0, 0), (0, Np - N), (0, 0)))

    out = pl.pallas_call(
        _lenet_fused_kernel,
        out_shape=jax.ShapeDtypeStruct((Np, LANE), jnp.float32),
        grid=(G,),
        in_specs=[
            pl.BlockSpec((OH, OW, TB, 25), lambda g: (0, 0, g, 0)),   # conv1 patches
            pl.BlockSpec((25, C1P), lambda g: (0, 0)),                # w1
            pl.BlockSpec((1, C1P), lambda g: (0, 0)),                 # b1
            pl.BlockSpec((25 * C1P, C2P), lambda g: (0, 0)),          # w2
            pl.BlockSpec((1, C2P), lambda g: (0, 0)),                 # b2
            pl.BlockSpec((16, C2P, H1P), lambda g: (0, 0, 0)),        # fw1
            pl.BlockSpec((1, H1P), lambda g: (0, 0)),                 # fb1
            pl.BlockSpec((H1P, LANE), lambda g: (0, 0)),              # fw2
            pl.BlockSpec((1, LANE), lambda g: (0, 0)),                # fb2
        ],
        out_specs=pl.BlockSpec((TB, LANE), lambda g: (g, 0)),
        compiler_params=pltpu.CompilerParams(
            dimension_semantics=("parallel",),
            vmem_limit_bytes=VMEM_LIMIT),
    )(p1, params["w1"], params["b1"], params["w2"], params["b2"],
      params["fw1"], params["fb1"], params["fw2"], params["fb2"])
    return out[:N, :10]


# ----------------------------------------------------------------------------
# Parameters
# ----------------------------------------------------------------------------
def init_raw_params(key):
    """Random parameters in the PyTorch layouts of LeNet5Caffe."""
    ks = jax.random.split(key, 8)
    return {
        "w1": jax.random.normal(ks[0], (20, 1, 5, 5), jnp.float32) * 0.1,
        "b1": jax.random.normal(ks[1], (20,), jnp.float32) * 0.01,
        "w2": jax.random.normal(ks[2], (50, 20, 5, 5), jnp.float32) * 0.05,
        "b2": jax.random.normal(ks[3], (50,), jnp.float32) * 0.01,
        "fw1": jax.random.normal(ks[4], (500, 800), jnp.float32) * 0.02,
        "fb1": jax.random.normal(ks[5], (500,), jnp.float32) * 0.01,
        "fw2": jax.random.normal(ks[6], (10, 500), jnp.float32) * 0.02,
        "fb2": jax.random.normal(ks[7], (10,), jnp.float32) * 0.01,
    }


def prepare_params(p):
    """One-time repack of PyTorch-layout params into kernel layouts: all transposes,
    reshapes, zero padding and bf16 casts happen here, never in the forward pass."""
    # conv1: (20,1,5,5) -> (25, 32), rows ordered (i, j)
    w1 = jnp.transpose(p["w1"][:, 0], (1, 2, 0)).reshape(25, 20)
    w1 = jnp.pad(w1, ((0, 0), (0, C1P - 20))).astype(jnp.bfloat16)
    b1 = jnp.pad(p["b1"], (0, C1P - 20)).reshape(1, C1P).astype(jnp.float32)

    # conv2: (50,20,5,5) -> (800, 64), rows ordered ((i*5+j)*32 + cin)
    w2 = jnp.transpose(p["w2"], (2, 3, 1, 0))                        # (i, j, cin, cout)
    w2 = jnp.pad(w2, ((0, 0), (0, 0), (0, C1P - 20), (0, C2P - 50)))
    w2 = w2.reshape(25 * C1P, C2P).astype(jnp.bfloat16)
    b2 = jnp.pad(p["b2"], (0, C2P - 50)).reshape(1, C2P).astype(jnp.float32)

    # fc1: PyTorch flattens (N,50,4,4) as (c,y,x); kernel contracts per (y,x) block.
    fw1 = p["fw1"].T.reshape(50, 4, 4, 500)                          # (c, y, x, out)
    fw1 = jnp.transpose(fw1, (1, 2, 0, 3))                           # (y, x, c, out)
    fw1 = jnp.pad(fw1, ((0, 0), (0, 0), (0, C2P - 50), (0, H1P - 500)))
    fw1 = fw1.reshape(16, C2P, H1P).astype(jnp.bfloat16)             # (16, 64, 512)
    fb1 = jnp.pad(p["fb1"], (0, H1P - 500)).reshape(1, H1P).astype(jnp.float32)

    # fc2: (10,500) -> (512, 128); padded logit lanes get a -1e30 bias.
    fw2 = jnp.pad(p["fw2"].T, ((0, H1P - 500), (0, LANE - 10))).astype(jnp.bfloat16)
    fb2 = jnp.pad(p["fb2"], (0, LANE - 10),
                  constant_values=NEG).reshape(1, LANE).astype(jnp.float32)

    return {"w1": w1, "b1": b1, "w2": w2, "b2": b2,
            "fw1": fw1, "fb1": fb1, "fw2": fw2, "fb2": fb2}


# ----------------------------------------------------------------------------
# Pure-JAX (XLA, f32) reference matching PyTorch LeNet5Caffe semantics
# ----------------------------------------------------------------------------
def reference_forward(raw, img):
    x = jax.lax.conv_general_dilated(
        img, raw["w1"], (1, 1), "VALID", dimension_numbers=("NCHW", "OIHW", "NCHW"))
    x = jax.nn.relu(x + raw["b1"][None, :, None, None])
    x = jax.lax.reduce_window(x, -jnp.inf, jax.lax.max, (1, 1, 2, 2), (1, 1, 2, 2), "VALID")
    x = jax.lax.conv_general_dilated(
        x, raw["w2"], (1, 1), "VALID", dimension_numbers=("NCHW", "OIHW", "NCHW"))
    x = jax.nn.relu(x + raw["b2"][None, :, None, None])
    x = jax.lax.reduce_window(x, -jnp.inf, jax.lax.max, (1, 1, 2, 2), (1, 1, 2, 2), "VALID")
    x = x.reshape(img.shape[0], -1)
    x = jax.nn.relu(x @ raw["fw1"].T + raw["fb1"])
    x = x @ raw["fw2"].T + raw["fb2"]
    return jax.nn.log_softmax(x, axis=-1)


if __name__ == "__main__":
    key = jax.random.PRNGKey(0)
    pkey, xkey = jax.random.split(key)
    raw = init_raw_params(pkey)
    params = prepare_params(raw)

    # LeNet5Caffe requires 28x28 single-channel input so the flattened size is 800.
    img = jax.random.normal(xkey, (2, 1, 28, 28), jnp.float32)

    out = jax.jit(lenet5caffe_forward)(params, img)
    out = jax.block_until_ready(out)
    assert out.shape == (2, 10), out.shape

    # log-softmax rows must sum (in prob space) to ~1
    rowsum = jnp.sum(jnp.exp(out), axis=-1)
    assert jnp.allclose(rowsum, 1.0, atol=1e-3), rowsum

    # cross-check against a pure-JAX f32 reference (kernel matmuls run in bf16)
    ref = jax.block_until_ready(jax.jit(reference_forward)(raw, img))
    err = float(jnp.max(jnp.abs(out - ref)))
    assert jnp.allclose(out, ref, atol=2e-2, rtol=2e-2), err

    print("KERNEL_OK")
</pallas_src>

<mosaic_0001>
module attributes {stable_mosaic.version = 11 : i64} {
  func.func @_lenet_fused_kernel(%arg0: i32, %arg1: memref<24x24x8x25xbf16, #tpu.memory_space<vmem>>, %arg2: memref<25x32xbf16, #tpu.memory_space<vmem>>, %arg3: memref<1x32xf32, #tpu.memory_space<vmem>>, %arg4: memref<800x64xbf16, #tpu.memory_space<vmem>>, %arg5: memref<1x64xf32, #tpu.memory_space<vmem>>, %arg6: memref<16x64x512xbf16, #tpu.memory_space<vmem>>, %arg7: memref<1x512xf32, #tpu.memory_space<vmem>>, %arg8: memref<512x128xbf16, #tpu.memory_space<vmem>>, %arg9: memref<1x128xf32, #tpu.memory_space<vmem>>, %arg10: memref<8x128xf32, #tpu.memory_space<vmem>>) attributes {dimension_semantics = [#tpu.dimension_semantics<parallel>], iteration_bounds = array<i64: 1>, scalar_prefetch = 0 : i64, scratch_operands = 0 : i64, tpu.core_type = #tpu.core_type<tc>, window_params = [{transform_indices = @transform_0, window_bounds = array<i64: 24, 24, 8, 25>}, {pipeline_mode = #tpu.pipeline_mode<synchronous>, transform_indices = @transform_1, window_bounds = array<i64: 25, 32>}, {pipeline_mode = #tpu.pipeline_mode<synchronous>, transform_indices = @transform_2, window_bounds = array<i64: 1, 32>}, {pipeline_mode = #tpu.pipeline_mode<synchronous>, transform_indices = @transform_3, window_bounds = array<i64: 800, 64>}, {pipeline_mode = #tpu.pipeline_mode<synchronous>, transform_indices = @transform_4, window_bounds = array<i64: 1, 64>}, {pipeline_mode = #tpu.pipeline_mode<synchronous>, transform_indices = @transform_5, window_bounds = array<i64: 16, 64, 512>}, {pipeline_mode = #tpu.pipeline_mode<synchronous>, transform_indices = @transform_6, window_bounds = array<i64: 1, 512>}, {pipeline_mode = #tpu.pipeline_mode<synchronous>, transform_indices = @transform_7, window_bounds = array<i64: 512, 128>}, {pipeline_mode = #tpu.pipeline_mode<synchronous>, transform_indices = @transform_8, window_bounds = array<i64: 1, 128>}, {transform_indices = @transform_9, window_bounds = array<i64: 8, 128>}]} {
    %c0 = arith.constant 0 : index
    %c0_0 = arith.constant 0 : index
    %c0_1 = arith.constant 0 : index
    %c0_2 = arith.constant 0 : index
    %0 = vector.load %arg1[%c0, %c0_0, %c0_1, %c0_2] : memref<24x24x8x25xbf16, #tpu.memory_space<vmem>>, vector<24x24x8x25xbf16>
    %1 = vector.shape_cast %0 : vector<24x24x8x25xbf16> to vector<4608x25xbf16>
    %c0_3 = arith.constant 0 : index
    %c0_4 = arith.constant 0 : index
    %2 = vector.load %arg2[%c0_3, %c0_4] : memref<25x32xbf16, #tpu.memory_space<vmem>>, vector<25x32xbf16>
    %cst = arith.constant dense<0.000000e+00> : vector<4608x32xf32>
    %3 = tpu.matmul %1, %2, %cst {dimension_numbers = #tpu.dot_dimension_numbers<[1], [0], [0], [1], [0, 0, 1, 1], [], []>} : vector<4608x25xbf16>, vector<25x32xbf16>, vector<4608x32xf32> -> vector<4608x32xf32>
    %4 = vector.shape_cast %3 : vector<4608x32xf32> to vector<24x24x8x32xf32>
    %5 = vector.shape_cast %4 : vector<24x24x8x32xf32> to vector<12x2x24x8x32xf32>
    %6 = vector.extract_strided_slice %5 {offsets = [0, 0, 0, 0, 0], sizes = [12, 1, 24, 8, 32], strides = [1, 1, 1, 1, 1]} : vector<12x2x24x8x32xf32> to vector<12x1x24x8x32xf32>
    %7 = vector.shape_cast %6 : vector<12x1x24x8x32xf32> to vector<12x24x8x32xf32>
    %8 = vector.extract_strided_slice %5 {offsets = [0, 1, 0, 0, 0], sizes = [12, 1, 24, 8, 32], strides = [1, 1, 1, 1, 1]} : vector<12x2x24x8x32xf32> to vector<12x1x24x8x32xf32>
    %9 = vector.shape_cast %8 : vector<12x1x24x8x32xf32> to vector<12x24x8x32xf32>
    %10 = arith.maximumf %7, %9 : vector<12x24x8x32xf32>
    %11 = vector.shape_cast %10 : vector<12x24x8x32xf32> to vector<12x12x2x8x32xf32>
    %12 = vector.extract_strided_slice %11 {offsets = [0, 0, 0, 0, 0], sizes = [12, 12, 1, 8, 32], strides = [1, 1, 1, 1, 1]} : vector<12x12x2x8x32xf32> to vector<12x12x1x8x32xf32>
    %13 = vector.shape_cast %12 : vector<12x12x1x8x32xf32> to vector<12x12x8x32xf32>
    %14 = vector.extract_strided_slice %11 {offsets = [0, 0, 1, 0, 0], sizes = [12, 12, 1, 8, 32], strides = [1, 1, 1, 1, 1]} : vector<12x12x2x8x32xf32> to vector<12x12x1x8x32xf32>
    %15 = vector.shape_cast %14 : vector<12x12x1x8x32xf32> to vector<12x12x8x32xf32>
    %16 = arith.maximumf %13, %15 : vector<12x12x8x32xf32>
    %c0_5 = arith.constant 0 : index
    %c0_6 = arith.constant 0 : index
    %17 = vector.load %arg3[%c0_5, %c0_6] : memref<1x32xf32, #tpu.memory_space<vmem>>, vector<1x32xf32>
    %18 = vector.shape_cast %17 : vector<1x32xf32> to vector<1x1x1x32xf32>
    %19 = vector.broadcast %18 : vector<1x1x1x32xf32> to vector<12x12x8x32xf32>
    %20 = arith.addf %16, %19 : vector<12x12x8x32xf32>
    %cst_7 = arith.constant 0.000000e+00 : f32
    %21 = vector.broadcast %cst_7 : f32 to vector<12x12x8x32xf32>
    %22 = arith.maximumf %20, %21 : vector<12x12x8x32xf32>
    %23 = arith.truncf %22 : vector<12x12x8x32xf32> to vector<12x12x8x32xbf16>
    %24 = vector.extract_strided_slice %23 {offsets = [0, 0, 0, 0], sizes = [8, 8, 8, 32], strides = [1, 1, 1, 1]} : vector<12x12x8x32xbf16> to vector<8x8x8x32xbf16>
    %25 = vector.extract_strided_slice %23 {offsets = [0, 1, 0, 0], sizes = [8, 8, 8, 32], strides = [1, 1, 1, 1]} : vector<12x12x8x32xbf16> to vector<8x8x8x32xbf16>
    %26 = vector.extract_strided_slice %23 {offsets = [0, 2, 0, 0], sizes = [8, 8, 8, 32], strides = [1, 1, 1, 1]} : vector<12x12x8x32xbf16> to vector<8x8x8x32xbf16>
    %27 = vector.extract_strided_slice %23 {offsets = [0, 3, 0, 0], sizes = [8, 8, 8, 32], strides = [1, 1, 1, 1]} : vector<12x12x8x32xbf16> to vector<8x8x8x32xbf16>
    %28 = vector.extract_strided_slice %23 {offsets = [0, 4, 0, 0], sizes = [8, 8, 8, 32], strides = [1, 1, 1, 1]} : vector<12x12x8x32xbf16> to vector<8x8x8x32xbf16>
    %29 = vector.extract_strided_slice %23 {offsets = [1, 0, 0, 0], sizes = [8, 8, 8, 32], strides = [1, 1, 1, 1]} : vector<12x12x8x32xbf16> to vector<8x8x8x32xbf16>
    %30 = vector.extract_strided_slice %23 {offsets = [1, 1, 0, 0], sizes = [8, 8, 8, 32], strides = [1, 1, 1, 1]} : vector<12x12x8x32xbf16> to vector<8x8x8x32xbf16>
    %31 = vector.extract_strided_slice %23 {offsets = [1, 2, 0, 0], sizes = [8, 8, 8, 32], strides = [1, 1, 1, 1]} : vector<12x12x8x32xbf16> to vector<8x8x8x32xbf16>
    %32 = vector.extract_strided_slice %23 {offsets = [1, 3, 0, 0], sizes = [8, 8, 8, 32], strides = [1, 1, 1, 1]} : vector<12x12x8x32xbf16> to vector<8x8x8x32xbf16>
    %33 = vector.extract_strided_slice %23 {offsets = [1, 4, 0, 0], sizes = [8, 8, 8, 32], strides = [1, 1, 1, 1]} : vector<12x12x8x32xbf16> to vector<8x8x8x32xbf16>
    %34 = vector.extract_strided_slice %23 {offsets = [2, 0, 0, 0], sizes = [8, 8, 8, 32], strides = [1, 1, 1, 1]} : vector<12x12x8x32xbf16> to vector<8x8x8x32xbf16>
    %35 = vector.extract_strided_slice %23 {offsets = [2, 1, 0, 0], sizes = [8, 8, 8, 32], strides = [1, 1, 1, 1]} : vector<12x12x8x32xbf16> to vector<8x8x8x32xbf16>
    %36 = vector.extract_strided_slice %23 {offsets = [2, 2, 0, 0], sizes = [8, 8, 8, 32], strides = [1, 1, 1, 1]} : vector<12x12x8x32xbf16> to vector<8x8x8x32xbf16>
    %37 = vector.extract_strided_slice %23 {offsets = [2, 3, 0, 0], sizes = [8, 8, 8, 32], strides = [1, 1, 1, 1]} : vector<12x12x8x32xbf16> to vector<8x8x8x32xbf16>
    %38 = vector.extract_strided_slice %23 {offsets = [2, 4, 0, 0], sizes = [8, 8, 8, 32], strides = [1, 1, 1, 1]} : vector<12x12x8x32xbf16> to vector<8x8x8x32xbf16>
    %39 = vector.extract_strided_slice %23 {offsets = [3, 0, 0, 0], sizes = [8, 8, 8, 32], strides = [1, 1, 1, 1]} : vector<12x12x8x32xbf16> to vector<8x8x8x32xbf16>
    %40 = vector.extract_strided_slice %23 {offsets = [3, 1, 0, 0], sizes = [8, 8, 8, 32], strides = [1, 1, 1, 1]} : vector<12x12x8x32xbf16> to vector<8x8x8x32xbf16>
    %41 = vector.extract_strided_slice %23 {offsets = [3, 2, 0, 0], sizes = [8, 8, 8, 32], strides = [1, 1, 1, 1]} : vector<12x12x8x32xbf16> to vector<8x8x8x32xbf16>
    %42 = vector.extract_strided_slice %23 {offsets = [3, 3, 0, 0], sizes = [8, 8, 8, 32], strides = [1, 1, 1, 1]} : vector<12x12x8x32xbf16> to vector<8x8x8x32xbf16>
    %43 = vector.extract_strided_slice %23 {offsets = [3, 4, 0, 0], sizes = [8, 8, 8, 32], strides = [1, 1, 1, 1]} : vector<12x12x8x32xbf16> to vector<8x8x8x32xbf16>
    %44 = vector.extract_strided_slice %23 {offsets = [4, 0, 0, 0], sizes = [8, 8, 8, 32], strides = [1, 1, 1, 1]} : vector<12x12x8x32xbf16> to vector<8x8x8x32xbf16>
    %45 = vector.extract_strided_slice %23 {offsets = [4, 1, 0, 0], sizes = [8, 8, 8, 32], strides = [1, 1, 1, 1]} : vector<12x12x8x32xbf16> to vector<8x8x8x32xbf16>
    %46 = vector.extract_strided_slice %23 {offsets = [4, 2, 0, 0], sizes = [8, 8, 8, 32], strides = [1, 1, 1, 1]} : vector<12x12x8x32xbf16> to vector<8x8x8x32xbf16>
    %47 = vector.extract_strided_slice %23 {offsets = [4, 3, 0, 0], sizes = [8, 8, 8, 32], strides = [1, 1, 1, 1]} : vector<12x12x8x32xbf16> to vector<8x8x8x32xbf16>
    %48 = vector.extract_strided_slice %23 {offsets = [4, 4, 0, 0], sizes = [8, 8, 8, 32], strides = [1, 1, 1, 1]} : vector<12x12x8x32xbf16> to vector<8x8x8x32xbf16>
    %49 = tpu.concatenate %24, %25, %26, %27, %28, %29, %30, %31, %32, %33, %34, %35, %36, %37, %38, %39 in 3 : vector<8x8x8x32xbf16>, vector<8x8x8x32xbf16>, vector<8x8x8x32xbf16>, vector<8x8x8x32xbf16>, vector<8x8x8x32xbf16>, vector<8x8x8x32xbf16>, vector<8x8x8x32xbf16>, vector<8x8x8x32xbf16>, vector<8x8x8x32xbf16>, vector<8x8x8x32xbf16>, vector<8x8x8x32xbf16>, vector<8x8x8x32xbf16>, vector<8x8x8x32xbf16>, vector<8x8x8x32xbf16>, vector<8x8x8x32xbf16>, vector<8x8x8x32xbf16> -> vector<8x8x8x512xbf16>
    %50 = tpu.concatenate %40, %41, %42, %43, %44, %45, %46, %47, %48 in 3 : vector<8x8x8x32xbf16>, vector<8x8x8x32xbf16>, vector<8x8x8x32xbf16>, vector<8x8x8x32xbf16>, vector<8x8x8x32xbf16>, vector<8x8x8x32xbf16>, vector<8x8x8x32xbf16>, vector<8x8x8x32xbf16>, vector<8x8x8x32xbf16> -> vector<8x8x8x288xbf16>
    %51 = tpu.concatenate %49, %50 in 3 : vector<8x8x8x512xbf16>, vector<8x8x8x288xbf16> -> vector<8x8x8x800xbf16>
    %52 = vector.shape_cast %51 : vector<8x8x8x800xbf16> to vector<512x800xbf16>
    %c0_8 = arith.constant 0 : index
    %c0_9 = arith.constant 0 : index
    %53 = vector.load %arg4[%c0_8, %c0_9] : memref<800x64xbf16, #tpu.memory_space<vmem>>, vector<800x64xbf16>
    %cst_10 = arith.constant dense<0.000000e+00> : vector<512x64xf32>
    %54 = tpu.matmul %52, %53, %cst_10 {dimension_numbers = #tpu.dot_dimension_numbers<[1], [0], [0], [1], [0, 0, 1, 1], [], []>} : vector<512x800xbf16>, vector<800x64xbf16>, vector<512x64xf32> -> vector<512x64xf32>
    %55 = vector.shape_cast %54 : vector<512x64xf32> to vector<8x8x8x64xf32>
    %56 = vector.shape_cast %55 : vector<8x8x8x64xf32> to vector<4x2x8x8x64xf32>
    %57 = vector.extract_strided_slice %56 {offsets = [0, 0, 0, 0, 0], sizes = [4, 1, 8, 8, 64], strides = [1, 1, 1, 1, 1]} : vector<4x2x8x8x64xf32> to vector<4x1x8x8x64xf32>
    %58 = vector.shape_cast %57 : vector<4x1x8x8x64xf32> to vector<4x8x8x64xf32>
    %59 = vector.extract_strided_slice %56 {offsets = [0, 1, 0, 0, 0], sizes = [4, 1, 8, 8, 64], strides = [1, 1, 1, 1, 1]} : vector<4x2x8x8x64xf32> to vector<4x1x8x8x64xf32>
    %60 = vector.shape_cast %59 : vector<4x1x8x8x64xf32> to vector<4x8x8x64xf32>
    %61 = arith.maximumf %58, %60 : vector<4x8x8x64xf32>
    %62 = vector.shape_cast %61 : vector<4x8x8x64xf32> to vector<4x4x2x8x64xf32>
    %63 = vector.extract_strided_slice %62 {offsets = [0, 0, 0, 0, 0], sizes = [4, 4, 1, 8, 64], strides = [1, 1, 1, 1, 1]} : vector<4x4x2x8x64xf32> to vector<4x4x1x8x64xf32>
    %64 = vector.shape_cast %63 : vector<4x4x1x8x64xf32> to vector<4x4x8x64xf32>
    %65 = vector.extract_strided_slice %62 {offsets = [0, 0, 1, 0, 0], sizes = [4, 4, 1, 8, 64], strides = [1, 1, 1, 1, 1]} : vector<4x4x2x8x64xf32> to vector<4x4x1x8x64xf32>
    %66 = vector.shape_cast %65 : vector<4x4x1x8x64xf32> to vector<4x4x8x64xf32>
    %67 = arith.maximumf %64, %66 : vector<4x4x8x64xf32>
    %c0_11 = arith.constant 0 : index
    %c0_12 = arith.constant 0 : index
    %68 = vector.load %arg5[%c0_11, %c0_12] : memref<1x64xf32, #tpu.memory_space<vmem>>, vector<1x64xf32>
    %69 = vector.shape_cast %68 : vector<1x64xf32> to vector<1x1x1x64xf32>
    %70 = vector.broadcast %69 : vector<1x1x1x64xf32> to vector<4x4x8x64xf32>
    %71 = arith.addf %67, %70 : vector<4x4x8x64xf32>
    %cst_13 = arith.constant 0.000000e+00 : f32
    %72 = vector.broadcast %cst_13 : f32 to vector<4x4x8x64xf32>
    %73 = arith.maximumf %71, %72 : vector<4x4x8x64xf32>
    %74 = arith.truncf %73 : vector<4x4x8x64xf32> to vector<4x4x8x64xbf16>
    %cst_14 = arith.constant 0.000000e+00 : f32
    %75 = vector.broadcast %cst_14 : f32 to vector<8x512xf32>
    %76 = vector.extract_strided_slice %74 {offsets = [0, 0, 0, 0], sizes = [1, 1, 8, 64], strides = [1, 1, 1, 1]} : vector<4x4x8x64xbf16> to vector<1x1x8x64xbf16>
    %77 = vector.shape_cast %76 : vector<1x1x8x64xbf16> to vector<8x64xbf16>
    %c0_15 = arith.constant 0 : index
    %c0_16 = arith.constant 0 : index
    %c0_17 = arith.constant 0 : index
    %78 = vector.load %arg6[%c0_15, %c0_16, %c0_17] : memref<16x64x512xbf16, #tpu.memory_space<vmem>>, vector<1x64x512xbf16>
    %79 = vector.shape_cast %78 : vector<1x64x512xbf16> to vector<64x512xbf16>
    %cst_18 = arith.constant dense<0.000000e+00> : vector<8x512xf32>
    %80 = tpu.matmul %77, %79, %cst_18 {dimension_numbers = #tpu.dot_dimension_numbers<[1], [0], [0], [1], [0, 0, 1, 1], [], []>} : vector<8x64xbf16>, vector<64x512xbf16>, vector<8x512xf32> -> vector<8x512xf32>
    %81 = arith.addf %75, %80 : vector<8x512xf32>
    %82 = vector.extract_strided_slice %74 {offsets = [0, 1, 0, 0], sizes = [1, 1, 8, 64], strides = [1, 1, 1, 1]} : vector<4x4x8x64xbf16> to vector<1x1x8x64xbf16>
    %83 = vector.shape_cast %82 : vector<1x1x8x64xbf16> to vector<8x64xbf16>
    %c1 = arith.constant 1 : index
    %c0_19 = arith.constant 0 : index
    %c0_20 = arith.constant 0 : index
    %84 = vector.load %arg6[%c1, %c0_19, %c0_20] : memref<16x64x512xbf16, #tpu.memory_space<vmem>>, vector<1x64x512xbf16>
    %85 = vector.shape_cast %84 : vector<1x64x512xbf16> to vector<64x512xbf16>
    %cst_21 = arith.constant dense<0.000000e+00> : vector<8x512xf32>
    %86 = tpu.matmul %83, %85, %cst_21 {dimension_numbers = #tpu.dot_dimension_numbers<[1], [0], [0], [1], [0, 0, 1, 1], [], []>} : vector<8x64xbf16>, vector<64x512xbf16>, vector<8x512xf32> -> vector<8x512xf32>
    %87 = arith.addf %81, %86 : vector<8x512xf32>
    %88 = vector.extract_strided_slice %74 {offsets = [0, 2, 0, 0], sizes = [1, 1, 8, 64], strides = [1, 1, 1, 1]} : vector<4x4x8x64xbf16> to vector<1x1x8x64xbf16>
    %89 = vector.shape_cast %88 : vector<1x1x8x64xbf16> to vector<8x64xbf16>
    %c2 = arith.constant 2 : index
    %c0_22 = arith.constant 0 : index
    %c0_23 = arith.constant 0 : index
    %90 = vector.load %arg6[%c2, %c0_22, %c0_23] : memref<16x64x512xbf16, #tpu.memory_space<vmem>>, vector<1x64x512xbf16>
    %91 = vector.shape_cast %90 : vector<1x64x512xbf16> to vector<64x512xbf16>
    %cst_24 = arith.constant dense<0.000000e+00> : vector<8x512xf32>
    %92 = tpu.matmul %89, %91, %cst_24 {dimension_numbers = #tpu.dot_dimension_numbers<[1], [0], [0], [1], [0, 0, 1, 1], [], []>} : vector<8x64xbf16>, vector<64x512xbf16>, vector<8x512xf32> -> vector<8x512xf32>
    %93 = arith.addf %87, %92 : vector<8x512xf32>
    %94 = vector.extract_strided_slice %74 {offsets = [0, 3, 0, 0], sizes = [1, 1, 8, 64], strides = [1, 1, 1, 1]} : vector<4x4x8x64xbf16> to vector<1x1x8x64xbf16>
    %95 = vector.shape_cast %94 : vector<1x1x8x64xbf16> to vector<8x64xbf16>
    %c3 = arith.constant 3 : index
    %c0_25 = arith.constant 0 : index
    %c0_26 = arith.constant 0 : index
    %96 = vector.load %arg6[%c3, %c0_25, %c0_26] : memref<16x64x512xbf16, #tpu.memory_space<vmem>>, vector<1x64x512xbf16>
    %97 = vector.shape_cast %96 : vector<1x64x512xbf16> to vector<64x512xbf16>
    %cst_27 = arith.constant dense<0.000000e+00> : vector<8x512xf32>
    %98 = tpu.matmul %95, %97, %cst_27 {dimension_numbers = #tpu.dot_dimension_numbers<[1], [0], [0], [1], [0, 0, 1, 1], [], []>} : vector<8x64xbf16>, vector<64x512xbf16>, vector<8x512xf32> -> vector<8x512xf32>
    %99 = arith.addf %93, %98 : vector<8x512xf32>
    %100 = vector.extract_strided_slice %74 {offsets = [1, 0, 0, 0], sizes = [1, 1, 8, 64], strides = [1, 1, 1, 1]} : vector<4x4x8x64xbf16> to vector<1x1x8x64xbf16>
    %101 = vector.shape_cast %100 : vector<1x1x8x64xbf16> to vector<8x64xbf16>
    %c4 = arith.constant 4 : index
    %c0_28 = arith.constant 0 : index
    %c0_29 = arith.constant 0 : index
    %102 = vector.load %arg6[%c4, %c0_28, %c0_29] : memref<16x64x512xbf16, #tpu.memory_space<vmem>>, vector<1x64x512xbf16>
    %103 = vector.shape_cast %102 : vector<1x64x512xbf16> to vector<64x512xbf16>
    %cst_30 = arith.constant dense<0.000000e+00> : vector<8x512xf32>
    %104 = tpu.matmul %101, %103, %cst_30 {dimension_numbers = #tpu.dot_dimension_numbers<[1], [0], [0], [1], [0, 0, 1, 1], [], []>} : vector<8x64xbf16>, vector<64x512xbf16>, vector<8x512xf32> -> vector<8x512xf32>
    %105 = arith.addf %99, %104 : vector<8x512xf32>
    %106 = vector.extract_strided_slice %74 {offsets = [1, 1, 0, 0], sizes = [1, 1, 8, 64], strides = [1, 1, 1, 1]} : vector<4x4x8x64xbf16> to vector<1x1x8x64xbf16>
    %107 = vector.shape_cast %106 : vector<1x1x8x64xbf16> to vector<8x64xbf16>
    %c5 = arith.constant 5 : index
    %c0_31 = arith.constant 0 : index
    %c0_32 = arith.constant 0 : index
    %108 = vector.load %arg6[%c5, %c0_31, %c0_32] : memref<16x64x512xbf16, #tpu.memory_space<vmem>>, vector<1x64x512xbf16>
    %109 = vector.shape_cast %108 : vector<1x64x512xbf16> to vector<64x512xbf16>
    %cst_33 = arith.constant dense<0.000000e+00> : vector<8x512xf32>
    %110 = tpu.matmul %107, %109, %cst_33 {dimension_numbers = #tpu.dot_dimension_numbers<[1], [0], [0], [1], [0, 0, 1, 1], [], []>} : vector<8x64xbf16>, vector<64x512xbf16>, vector<8x512xf32> -> vector<8x512xf32>
    %111 = arith.addf %105, %110 : vector<8x512xf32>
    %112 = vector.extract_strided_slice %74 {offsets = [1, 2, 0, 0], sizes = [1, 1, 8, 64], strides = [1, 1, 1, 1]} : vector<4x4x8x64xbf16> to vector<1x1x8x64xbf16>
    %113 = vector.shape_cast %112 : vector<1x1x8x64xbf16> to vector<8x64xbf16>
    %c6 = arith.constant 6 : index
    %c0_34 = arith.constant 0 : index
    %c0_35 = arith.constant 0 : index
    %114 = vector.load %arg6[%c6, %c0_34, %c0_35] : memref<16x64x512xbf16, #tpu.memory_space<vmem>>, vector<1x64x512xbf16>
    %115 = vector.shape_cast %114 : vector<1x64x512xbf16> to vector<64x512xbf16>
    %cst_36 = arith.constant dense<0.000000e+00> : vector<8x512xf32>
    %116 = tpu.matmul %113, %115, %cst_36 {dimension_numbers = #tpu.dot_dimension_numbers<[1], [0], [0], [1], [0, 0, 1, 1], [], []>} : vector<8x64xbf16>, vector<64x512xbf16>, vector<8x512xf32> -> vector<8x512xf32>
    %117 = arith.addf %111, %116 : vector<8x512xf32>
    %118 = vector.extract_strided_slice %74 {offsets = [1, 3, 0, 0], sizes = [1, 1, 8, 64], strides = [1, 1, 1, 1]} : vector<4x4x8x64xbf16> to vector<1x1x8x64xbf16>
    %119 = vector.shape_cast %118 : vector<1x1x8x64xbf16> to vector<8x64xbf16>
    %c7 = arith.constant 7 : index
    %c0_37 = arith.constant 0 : index
    %c0_38 = arith.constant 0 : index
    %120 = vector.load %arg6[%c7, %c0_37, %c0_38] : memref<16x64x512xbf16, #tpu.memory_space<vmem>>, vector<1x64x512xbf16>
    %121 = vector.shape_cast %120 : vector<1x64x512xbf16> to vector<64x512xbf16>
    %cst_39 = arith.constant dense<0.000000e+00> : vector<8x512xf32>
    %122 = tpu.matmul %119, %121, %cst_39 {dimension_numbers = #tpu.dot_dimension_numbers<[1], [0], [0], [1], [0, 0, 1, 1], [], []>} : vector<8x64xbf16>, vector<64x512xbf16>, vector<8x512xf32> -> vector<8x512xf32>
    %123 = arith.addf %117, %122 : vector<8x512xf32>
    %124 = vector.extract_strided_slice %74 {offsets = [2, 0, 0, 0], sizes = [1, 1, 8, 64], strides = [1, 1, 1, 1]} : vector<4x4x8x64xbf16> to vector<1x1x8x64xbf16>
    %125 = vector.shape_cast %124 : vector<1x1x8x64xbf16> to vector<8x64xbf16>
    %c8 = arith.constant 8 : index
    %c0_40 = arith.constant 0 : index
    %c0_41 = arith.constant 0 : index
    %126 = vector.load %arg6[%c8, %c0_40, %c0_41] : memref<16x64x512xbf16, #tpu.memory_space<vmem>>, vector<1x64x512xbf16>
    %127 = vector.shape_cast %126 : vector<1x64x512xbf16> to vector<64x512xbf16>
    %cst_42 = arith.constant dense<0.000000e+00> : vector<8x512xf32>
    %128 = tpu.matmul %125, %127, %cst_42 {dimension_numbers = #tpu.dot_dimension_numbers<[1], [0], [0], [1], [0, 0, 1, 1], [], []>} : vector<8x64xbf16>, vector<64x512xbf16>, vector<8x512xf32> -> vector<8x512xf32>
    %129 = arith.addf %123, %128 : vector<8x512xf32>
    %130 = vector.extract_strided_slice %74 {offsets = [2, 1, 0, 0], sizes = [1, 1, 8, 64], strides = [1, 1, 1, 1]} : vector<4x4x8x64xbf16> to vector<1x1x8x64xbf16>
    %131 = vector.shape_cast %130 : vector<1x1x8x64xbf16> to vector<8x64xbf16>
    %c9 = arith.constant 9 : index
    %c0_43 = arith.constant 0 : index
    %c0_44 = arith.constant 0 : index
    %132 = vector.load %arg6[%c9, %c0_43, %c0_44] : memref<16x64x512xbf16, #tpu.memory_space<vmem>>, vector<1x64x512xbf16>
    %133 = vector.shape_cast %132 : vector<1x64x512xbf16> to vector<64x512xbf16>
    %cst_45 = arith.constant dense<0.000000e+00> : vector<8x512xf32>
    %134 = tpu.matmul %131, %133, %cst_45 {dimension_numbers = #tpu.dot_dimension_numbers<[1], [0], [0], [1], [0, 0, 1, 1], [], []>} : vector<8x64xbf16>, vector<64x512xbf16>, vector<8x512xf32> -> vector<8x512xf32>
    %135 = arith.addf %129, %134 : vector<8x512xf32>
    %136 = vector.extract_strided_slice %74 {offsets = [2, 2, 0, 0], sizes = [1, 1, 8, 64], strides = [1, 1, 1, 1]} : vector<4x4x8x64xbf16> to vector<1x1x8x64xbf16>
    %137 = vector.shape_cast %136 : vector<1x1x8x64xbf16> to vector<8x64xbf16>
    %c10 = arith.constant 10 : index
    %c0_46 = arith.constant 0 : index
    %c0_47 = arith.constant 0 : index
    %138 = vector.load %arg6[%c10, %c0_46, %c0_47] : memref<16x64x512xbf16, #tpu.memory_space<vmem>>, vector<1x64x512xbf16>
    %139 = vector.shape_cast %138 : vector<1x64x512xbf16> to vector<64x512xbf16>
    %cst_48 = arith.constant dense<0.000000e+00> : vector<8x512xf32>
    %140 = tpu.matmul %137, %139, %cst_48 {dimension_numbers = #tpu.dot_dimension_numbers<[1], [0], [0], [1], [0, 0, 1, 1], [], []>} : vector<8x64xbf16>, vector<64x512xbf16>, vector<8x512xf32> -> vector<8x512xf32>
    %141 = arith.addf %135, %140 : vector<8x512xf32>
    %142 = vector.extract_strided_slice %74 {offsets = [2, 3, 0, 0], sizes = [1, 1, 8, 64], strides = [1, 1, 1, 1]} : vector<4x4x8x64xbf16> to vector<1x1x8x64xbf16>
    %143 = vector.shape_cast %142 : vector<1x1x8x64xbf16> to vector<8x64xbf16>
    %c11 = arith.constant 11 : index
    %c0_49 = arith.constant 0 : index
    %c0_50 = arith.constant 0 : index
    %144 = vector.load %arg6[%c11, %c0_49, %c0_50] : memref<16x64x512xbf16, #tpu.memory_space<vmem>>, vector<1x64x512xbf16>
    %145 = vector.shape_cast %144 : vector<1x64x512xbf16> to vector<64x512xbf16>
    %cst_51 = arith.constant dense<0.000000e+00> : vector<8x512xf32>
    %146 = tpu.matmul %143, %145, %cst_51 {dimension_numbers = #tpu.dot_dimension_numbers<[1], [0], [0], [1], [0, 0, 1, 1], [], []>} : vector<8x64xbf16>, vector<64x512xbf16>, vector<8x512xf32> -> vector<8x512xf32>
    %147 = arith.addf %141, %146 : vector<8x512xf32>
    %148 = vector.extract_strided_slice %74 {offsets = [3, 0, 0, 0], sizes = [1, 1, 8, 64], strides = [1, 1, 1, 1]} : vector<4x4x8x64xbf16> to vector<1x1x8x64xbf16>
    %149 = vector.shape_cast %148 : vector<1x1x8x64xbf16> to vector<8x64xbf16>
    %c12 = arith.constant 12 : index
    %c0_52 = arith.constant 0 : index
    %c0_53 = arith.constant 0 : index
    %150 = vector.load %arg6[%c12, %c0_52, %c0_53] : memref<16x64x512xbf16, #tpu.memory_space<vmem>>, vector<1x64x512xbf16>
    %151 = vector.shape_cast %150 : vector<1x64x512xbf16> to vector<64x512xbf16>
    %cst_54 = arith.constant dense<0.000000e+00> : vector<8x512xf32>
    %152 = tpu.matmul %149, %151, %cst_54 {dimension_numbers = #tpu.dot_dimension_numbers<[1], [0], [0], [1], [0, 0, 1, 1], [], []>} : vector<8x64xbf16>, vector<64x512xbf16>, vector<8x512xf32> -> vector<8x512xf32>
    %153 = arith.addf %147, %152 : vector<8x512xf32>
    %154 = vector.extract_strided_slice %74 {offsets = [3, 1, 0, 0], sizes = [1, 1, 8, 64], strides = [1, 1, 1, 1]} : vector<4x4x8x64xbf16> to vector<1x1x8x64xbf16>
    %155 = vector.shape_cast %154 : vector<1x1x8x64xbf16> to vector<8x64xbf16>
    %c13 = arith.constant 13 : index
    %c0_55 = arith.constant 0 : index
    %c0_56 = arith.constant 0 : index
    %156 = vector.load %arg6[%c13, %c0_55, %c0_56] : memref<16x64x512xbf16, #tpu.memory_space<vmem>>, vector<1x64x512xbf16>
    %157 = vector.shape_cast %156 : vector<1x64x512xbf16> to vector<64x512xbf16>
    %cst_57 = arith.constant dense<0.000000e+00> : vector<8x512xf32>
    %158 = tpu.matmul %155, %157, %cst_57 {dimension_numbers = #tpu.dot_dimension_numbers<[1], [0], [0], [1], [0, 0, 1, 1], [], []>} : vector<8x64xbf16>, vector<64x512xbf16>, vector<8x512xf32> -> vector<8x512xf32>
    %159 = arith.addf %153, %158 : vector<8x512xf32>
    %160 = vector.extract_strided_slice %74 {offsets = [3, 2, 0, 0], sizes = [1, 1, 8, 64], strides = [1, 1, 1, 1]} : vector<4x4x8x64xbf16> to vector<1x1x8x64xbf16>
    %161 = vector.shape_cast %160 : vector<1x1x8x64xbf16> to vector<8x64xbf16>
    %c14 = arith.constant 14 : index
    %c0_58 = arith.constant 0 : index
    %c0_59 = arith.constant 0 : index
    %162 = vector.load %arg6[%c14, %c0_58, %c0_59] : memref<16x64x512xbf16, #tpu.memory_space<vmem>>, vector<1x64x512xbf16>
    %163 = vector.shape_cast %162 : vector<1x64x512xbf16> to vector<64x512xbf16>
    %cst_60 = arith.constant dense<0.000000e+00> : vector<8x512xf32>
    %164 = tpu.matmul %161, %163, %cst_60 {dimension_numbers = #tpu.dot_dimension_numbers<[1], [0], [0], [1], [0, 0, 1, 1], [], []>} : vector<8x64xbf16>, vector<64x512xbf16>, vector<8x512xf32> -> vector<8x512xf32>
    %165 = arith.addf %159, %164 : vector<8x512xf32>
    %166 = vector.extract_strided_slice %74 {offsets = [3, 3, 0, 0], sizes = [1, 1, 8, 64], strides = [1, 1, 1, 1]} : vector<4x4x8x64xbf16> to vector<1x1x8x64xbf16>
    %167 = vector.shape_cast %166 : vector<1x1x8x64xbf16> to vector<8x64xbf16>
    %c15 = arith.constant 15 : index
    %c0_61 = arith.constant 0 : index
    %c0_62 = arith.constant 0 : index
    %168 = vector.load %arg6[%c15, %c0_61, %c0_62] : memref<16x64x512xbf16, #tpu.memory_space<vmem>>, vector<1x64x512xbf16>
    %169 = vector.shape_cast %168 : vector<1x64x512xbf16> to vector<64x512xbf16>
    %cst_63 = arith.constant dense<0.000000e+00> : vector<8x512xf32>
    %170 = tpu.matmul %167, %169, %cst_63 {dimension_numbers = #tpu.dot_dimension_numbers<[1], [0], [0], [1], [0, 0, 1, 1], [], []>} : vector<8x64xbf16>, vector<64x512xbf16>, vector<8x512xf32> -> vector<8x512xf32>
    %171 = arith.addf %165, %170 : vector<8x512xf32>
    %c0_64 = arith.constant 0 : index
    %c0_65 = arith.constant 0 : index
    %172 = vector.load %arg7[%c0_64, %c0_65] : memref<1x512xf32, #tpu.memory_space<vmem>>, vector<1x512xf32>
    %173 = vector.broadcast %172 : vector<1x512xf32> to vector<8x512xf32>
    %174 = arith.addf %171, %173 : vector<8x512xf32>
    %cst_66 = arith.constant 0.000000e+00 : f32
    %175 = vector.broadcast %cst_66 : f32 to vector<8x512xf32>
    %176 = arith.maximumf %174, %175 : vector<8x512xf32>
    %177 = arith.truncf %176 : vector<8x512xf32> to vector<8x512xbf16>
    %c0_67 = arith.constant 0 : index
    %c0_68 = arith.constant 0 : index
    %178 = vector.load %arg8[%c0_67, %c0_68] : memref<512x128xbf16, #tpu.memory_space<vmem>>, vector<512x128xbf16>
    %cst_69 = arith.constant dense<0.000000e+00> : vector<8x128xf32>
    %179 = tpu.matmul %177, %178, %cst_69 {dimension_numbers = #tpu.dot_dimension_numbers<[1], [0], [0], [1], [0, 0, 1, 1], [], []>} : vector<8x512xbf16>, vector<512x128xbf16>, vector<8x128xf32> -> vector<8x128xf32>
    %c0_70 = arith.constant 0 : index
    %c0_71 = arith.constant 0 : index
    %180 = vector.load %arg9[%c0_70, %c0_71] : memref<1x128xf32, #tpu.memory_space<vmem>>, vector<1x128xf32>
    %181 = vector.broadcast %180 : vector<1x128xf32> to vector<8x128xf32>
    %182 = arith.addf %179, %181 : vector<8x128xf32>
    %cst_72 = arith.constant dense<0xFF800000> : vector<8xf32>
    %183 = vector.multi_reduction <maximumf>, %182, %cst_72 [1] : vector<8x128xf32> to vector<8xf32>
    %184 = vector.shape_cast %183 : vector<8xf32> to vector<8x1xf32>
    %185 = vector.broadcast %184 : vector<8x1xf32> to vector<8x128xf32>
    %186 = arith.subf %182, %185 : vector<8x128xf32>
    %187 = math.exp %186 : vector<8x128xf32>
    %cst_73 = arith.constant dense<0.000000e+00> : vector<8xf32>
    %188 = vector.multi_reduction <add>, %187, %cst_73 [1] : vector<8x128xf32> to vector<8xf32>
    %189 = vector.shape_cast %188 : vector<8xf32> to vector<8x1xf32>
    %190 = math.log %189 : vector<8x1xf32>
    %191 = vector.broadcast %190 : vector<8x1xf32> to vector<8x128xf32>
    %192 = arith.subf %186, %191 : vector<8x128xf32>
    %c0_74 = arith.constant 0 : index
    %c0_75 = arith.constant 0 : index
    %193 = vector.load %arg10[%c0_74, %c0_75] : memref<8x128xf32, #tpu.memory_space<vmem>>, vector<8x128xf32>
    tpu.vector_store %arg10[%c0_74, %c0_75], %192 {strides = array<i32>} : memref<8x128xf32, #tpu.memory_space<vmem>>, vector<8x128xf32>,
    return
  }
  func.func @transform_0(%arg0: i32) -> (i32, i32, i32, i32) {
    %c0_i32 = arith.constant 0 : i32
    %c0_i32_0 = arith.constant 0 : i32
    %c0_i32_1 = arith.constant 0 : i32
    %c0_i32_2 = arith.constant 0 : i32
    return %c0_i32, %c0_i32_0, %arg0, %c0_i32_1 : i32, i32, i32, i32
  }
  func.func @transform_1(%arg0: i32) -> (i32, i32) {
    %c0_i32 = arith.constant 0 : i32
    %c0_i32_0 = arith.constant 0 : i32
    %c0_i32_1 = arith.constant 0 : i32
    return %c0_i32, %c0_i32_0 : i32, i32
  }
  func.func @transform_2(%arg0: i32) -> (i32, i32) {
    %c0_i32 = arith.constant 0 : i32
    %c0_i32_0 = arith.constant 0 : i32
    %c0_i32_1 = arith.constant 0 : i32
    return %c0_i32, %c0_i32_0 : i32, i32
  }
  func.func @transform_3(%arg0: i32) -> (i32, i32) {
    %c0_i32 = arith.constant 0 : i32
    %c0_i32_0 = arith.constant 0 : i32
    %c0_i32_1 = arith.constant 0 : i32
    return %c0_i32, %c0_i32_0 : i32, i32
  }
  func.func @transform_4(%arg0: i32) -> (i32, i32) {
    %c0_i32 = arith.constant 0 : i32
    %c0_i32_0 = arith.constant 0 : i32
    %c0_i32_1 = arith.constant 0 : i32
    return %c0_i32, %c0_i32_0 : i32, i32
  }
  func.func @transform_5(%arg0: i32) -> (i32, i32, i32) {
    %c0_i32 = arith.constant 0 : i32
    %c0_i32_0 = arith.constant 0 : i32
    %c0_i32_1 = arith.constant 0 : i32
    %c0_i32_2 = arith.constant 0 : i32
    return %c0_i32, %c0_i32_0, %c0_i32_1 : i32, i32, i32
  }
  func.func @transform_6(%arg0: i32) -> (i32, i32) {
    %c0_i32 = arith.constant 0 : i32
    %c0_i32_0 = arith.constant 0 : i32
    %c0_i32_1 = arith.constant 0 : i32
    return %c0_i32, %c0_i32_0 : i32, i32
  }
  func.func @transform_7(%arg0: i32) -> (i32, i32) {
    %c0_i32 = arith.constant 0 : i32
    %c0_i32_0 = arith.constant 0 : i32
    %c0_i32_1 = arith.constant 0 : i32
    return %c0_i32, %c0_i32_0 : i32, i32
  }
  func.func @transform_8(%arg0: i32) -> (i32, i32) {
    %c0_i32 = arith.constant 0 : i32
    %c0_i32_0 = arith.constant 0 : i32
    %c0_i32_1 = arith.constant 0 : i32
    return %c0_i32, %c0_i32_0 : i32, i32
  }
  func.func @transform_9(%arg0: i32) -> (i32, i32) {
    %c0_i32 = arith.constant 0 : i32
    %c0_i32_0 = arith.constant 0 : i32
    return %arg0, %c0_i32 : i32, i32
  }
}

</mosaic_0001>

<llo_original>
// kernel: lenet5caffe_forward.1
$region0: #{lenet5caffe_forward.1}
  #allocation0 [shape = 'u32[]', space=smem, size = 0x4, offset = 0x4, fixed_abs, tag = 'smem constant byte address 0x4 - core index']
  #allocation1 [shape = 'u32[144,128]{1,0:T(1,128)}', space=vmem, size = 0x12000, scoped, tag = 'internal scratch']
  %s0 = inlined_call_operand.vmem [shape: bf16[24,24,8,25], index: 0, kind: input, shape index: {}]
  %s1 = inlined_call_operand.vmem [shape: bf16[25,32], index: 1, kind: input, shape index: {}]
  %s2 = inlined_call_operand.vmem [shape: f32[1,32], index: 2, kind: input, shape index: {}]
  %s3 = inlined_call_operand.vmem [shape: bf16[800,64], index: 3, kind: input, shape index: {}]
  %s4 = inlined_call_operand.vmem [shape: f32[1,64], index: 4, kind: input, shape index: {}]
  %s5 = inlined_call_operand.vmem [shape: bf16[16,64,512], index: 5, kind: input, shape index: {}]
  %s6 = inlined_call_operand.vmem [shape: f32[1,512], index: 6, kind: input, shape index: {}]
  %s7 = inlined_call_operand.vmem [shape: bf16[512,128], index: 7, kind: input, shape index: {}]
  %s8 = inlined_call_operand.vmem [shape: f32[1,128], index: 8, kind: input, shape index: {}]
  %s9 = inlined_call_operand.vmem [shape: f32[8,128], index: 9, kind: output, shape index: {}]
  %s10 = sld [smem:[#allocation0]]
  $region46: #{lenet5caffe_forward.1} parent=0
    _
  %s12 = ssub.s32 1, %s10
  %s13 = scalar_select 0, %s12, %s10
  // Predicated region
  $region2: #{lenet5caffe_forward.1} parent=0 // pred_check
    _
  $region3: #{lenet5caffe_forward.1} parent=0 // pred_check_branch
    %15 = sbr.rel (0) target = $region5
  $region4: #{lenet5caffe_forward.1} parent=0 // pred_region
    _
  $region5: #{lenet5caffe_forward.1} parent=0 // pred_fallthru
    _
  // Predicated region
  $region6: #{lenet5caffe_forward.1} parent=0 // pred_check
    _
  $region7: #{lenet5caffe_forward.1} parent=0 // pred_check_branch
    %17 = sbr.rel (0) target = $region9
  $region8: #{lenet5caffe_forward.1} parent=0 // pred_region
    _
  $region9: #{lenet5caffe_forward.1} parent=0 // pred_fallthru
    _
  // Predicated region
  $region10: #{lenet5caffe_forward.1} parent=0 // pred_check
    _
  $region11: #{lenet5caffe_forward.1} parent=0 // pred_check_branch
    %19 = sbr.rel (0) target = $region13
  $region12: #{lenet5caffe_forward.1} parent=0 // pred_region
    _
  $region13: #{lenet5caffe_forward.1} parent=0 // pred_fallthru
    _
  // Predicated region
  $region14: #{lenet5caffe_forward.1} parent=0 // pred_check
    _
  $region15: #{lenet5caffe_forward.1} parent=0 // pred_check_branch
    %21 = sbr.rel (0) target = $region17
  $region16: #{lenet5caffe_forward.1} parent=0 // pred_region
    _
  $region17: #{lenet5caffe_forward.1} parent=0 // pred_fallthru
    _
  // Predicated region
  $region18: #{lenet5caffe_forward.1} parent=0 // pred_check
    _
  $region19: #{lenet5caffe_forward.1} parent=0 // pred_check_branch
    %23 = sbr.rel (0) target = $region21
  $region20: #{lenet5caffe_forward.1} parent=0 // pred_region
    _
  $region21: #{lenet5caffe_forward.1} parent=0 // pred_fallthru
    _
  // Predicated region
  $region22: #{lenet5caffe_forward.1} parent=0 // pred_check
    _
  $region23: #{lenet5caffe_forward.1} parent=0 // pred_check_branch
    %25 = sbr.rel (0) target = $region25
  $region24: #{lenet5caffe_forward.1} parent=0 // pred_region
    _
  $region25: #{lenet5caffe_forward.1} parent=0 // pred_fallthru
    _
  // Predicated region
  $region26: #{lenet5caffe_forward.1} parent=0 // pred_check
    _
  $region27: #{lenet5caffe_forward.1} parent=0 // pred_check_branch
    %27 = sbr.rel (0) target = $region29
  $region28: #{lenet5caffe_forward.1} parent=0 // pred_region
    _
  $region29: #{lenet5caffe_forward.1} parent=0 // pred_fallthru
    _
  // Predicated region
  $region30: #{lenet5caffe_forward.1} parent=0 // pred_check
    _
  $region31: #{lenet5caffe_forward.1} parent=0 // pred_check_branch
    %29 = sbr.rel (0) target = $region33
  $region32: #{lenet5caffe_forward.1} parent=0 // pred_region
    _
  $region33: #{lenet5caffe_forward.1} parent=0 // pred_fallthru
    _
  // Predicated region
  $region34: #{lenet5caffe_forward.1} parent=0 // pred_check
    _
  $region35: #{lenet5caffe_forward.1} parent=0 // pred_check_branch
    %31 = sbr.rel (0) target = $region37
  $region36: #{lenet5caffe_forward.1} parent=0 // pred_region
    _
  $region37: #{lenet5caffe_forward.1} parent=0 // pred_fallthru
    _
  %v33 = vld [vmem:[%s0] sm:$0xf]
  %v34 = vld [vmem:[%s0 + $0x4] sm:$0xf]
  %v35 = vld [vmem:[%s0 + $0x8] sm:$0xf]
  %v36 = vld [vmem:[%s0 + $0xc] sm:$0xf]
  %v37 = vld [vmem:[%s0 + $0x10] sm:$0xf]
  %v38 = vld [vmem:[%s0 + $0x14] sm:$0xf]
  %v39 = vld [vmem:[%s0 + $0x18] sm:$0xf]
  %v40 = vld [vmem:[%s0 + $0x1c] sm:$0xf]
  %v41 = vld [vmem:[%s0 + $0x20] sm:$0xf]
  %v42 = vld [vmem:[%s0 + $0x24] sm:$0xf]
  %v43 = vld [vmem:[%s0 + $0x28] sm:$0xf]
  %v44 = vld [vmem:[%s0 + $0x2c] sm:$0xf]
  %v45 = vld [vmem:[%s0 + $0x30] sm:$0xf]
  %v46 = vld [vmem:[%s0 + $0x34] sm:$0xf]
  %v47 = vld [vmem:[%s0 + $0x38] sm:$0xf]
  %v48 = vld [vmem:[%s0 + $0x3c] sm:$0xf]
  %v49 = vld [vmem:[%s0 + $0x40] sm:$0xf]
  %v50 = vld [vmem:[%s0 + $0x44] sm:$0xf]
  %v51 = vld [vmem:[%s0 + $0x48] sm:$0xf]
  %v52 = vld [vmem:[%s0 + $0x4c] sm:$0xf]
  %v53 = vld [vmem:[%s0 + $0x50] sm:$0xf]
  %v54 = vld [vmem:[%s0 + $0x54] sm:$0xf]
  %v55 = vld [vmem:[%s0 + $0x58] sm:$0xf]
  %v56 = vld [vmem:[%s0 + $0x5c] sm:$0xf]
  %v57 = vld [vmem:[%s0 + $0x60] sm:$0xf]
  %v58 = vld [vmem:[%s0 + $0x64] sm:$0xf]
  %v59 = vld [vmem:[%s0 + $0x68] sm:$0xf]
  %v60 = vld [vmem:[%s0 + $0x6c] sm:$0xf]
  %v61 = vld [vmem:[%s0 + $0x70] sm:$0xf]
  %v62 = vld [vmem:[%s0 + $0x74] sm:$0xf]
  %v63 = vld [vmem:[%s0 + $0x78] sm:$0xf]
  %v64 = vld [vmem:[%s0 + $0x7c] sm:$0xf]
  %v65 = vld [vmem:[%s0 + $0x80] sm:$0xf]
  %v66 = vld [vmem:[%s0 + $0x84] sm:$0xf]
  %v67 = vld [vmem:[%s0 + $0x88] sm:$0xf]
  %v68 = vld [vmem:[%s0 + $0x8c] sm:$0xf]
  %v69 = vld [vmem:[%s0 + $0x90] sm:$0xf]
  %v70 = vld [vmem:[%s0 + $0x94] sm:$0xf]
  %v71 = vld [vmem:[%s0 + $0x98] sm:$0xf]
  %v72 = vld [vmem:[%s0 + $0x9c] sm:$0xf]
  %v73 = vld [vmem:[%s0 + $0xa0] sm:$0xf]
  %v74 = vld [vmem:[%s0 + $0xa4] sm:$0xf]
  %v75 = vld [vmem:[%s0 + $0xa8] sm:$0xf]
  %v76 = vld [vmem:[%s0 + $0xac] sm:$0xf]
  %v77 = vld [vmem:[%s0 + $0xb0] sm:$0xf]
  %v78 = vld [vmem:[%s0 + $0xb4] sm:$0xf]
  %v79 = vld [vmem:[%s0 + $0xb8] sm:$0xf]
  %v80 = vld [vmem:[%s0 + $0xbc] sm:$0xf]
  %v81 = vld [vmem:[%s0 + $0xc0] sm:$0xf]
  %v82 = vld [vmem:[%s0 + $0xc4] sm:$0xf]
  %v83 = vld [vmem:[%s0 + $0xc8] sm:$0xf]
  %v84 = vld [vmem:[%s0 + $0xcc] sm:$0xf]
  %v85 = vld [vmem:[%s0 + $0xd0] sm:$0xf]
  %v86 = vld [vmem:[%s0 + $0xd4] sm:$0xf]
  %v87 = vld [vmem:[%s0 + $0xd8] sm:$0xf]
  %v88 = vld [vmem:[%s0 + $0xdc] sm:$0xf]
  %v89 = vld [vmem:[%s0 + $0xe0] sm:$0xf]
  %v90 = vld [vmem:[%s0 + $0xe4] sm:$0xf]
  %v91 = vld [vmem:[%s0 + $0xe8] sm:$0xf]
  %v92 = vld [vmem:[%s0 + $0xec] sm:$0xf]
  %v93 = vld [vmem:[%s0 + $0xf0] sm:$0xf]
  %v94 = vld [vmem:[%s0 + $0xf4] sm:$0xf]
  %v95 = vld [vmem:[%s0 + $0xf8] sm:$0xf]
  %v96 = vld [vmem:[%s0 + $0xfc] sm:$0xf]
  %v97 = vld [vmem:[%s0 + $0x100] sm:$0xf]
  %v98 = vld [vmem:[%s0 + $0x104] sm:$0xf]
  %v99 = vld [vmem:[%s0 + $0x108] sm:$0xf]
  %v100 = vld [vmem:[%s0 + $0x10c] sm:$0xf]
  %v101 = vld [vmem:[%s0 + $0x110] sm:$0xf]
  %v102 = vld [vmem:[%s0 + $0x114] sm:$0xf]
  %v103 = vld [vmem:[%s0 + $0x118] sm:$0xf]
  %v104 = vld [vmem:[%s0 + $0x11c] sm:$0xf]
  %v105 = vld [vmem:[%s0 + $0x120] sm:$0xf]
  %v106 = vld [vmem:[%s0 + $0x124] sm:$0xf]
  %v107 = vld [vmem:[%s0 + $0x128] sm:$0xf]
  %v108 = vld [vmem:[%s0 + $0x12c] sm:$0xf]
  %v109 = vld [vmem:[%s0 + $0x130] sm:$0xf]
  %v110 = vld [vmem:[%s0 + $0x134] sm:$0xf]
  %v111 = vld [vmem:[%s0 + $0x138] sm:$0xf]
  %v112 = vld [vmem:[%s0 + $0x13c] sm:$0xf]
  %v113 = vld [vmem:[%s0 + $0x140] sm:$0xf]
  %v114 = vld [vmem:[%s0 + $0x144] sm:$0xf]
  %v115 = vld [vmem:[%s0 + $0x148] sm:$0xf]
  %v116 = vld [vmem:[%s0 + $0x14c] sm:$0xf]
  %v117 = vld [vmem:[%s0 + $0x150] sm:$0xf]
  %v118 = vld [vmem:[%s0 + $0x154] sm:$0xf]
  %v119 = vld [vmem:[%s0 + $0x158] sm:$0xf]
  %v120 = vld [vmem:[%s0 + $0x15c] sm:$0xf]
  %v121 = vld [vmem:[%s0 + $0x160] sm:$0xf]
  %v122 = vld [vmem:[%s0 + $0x164] sm:$0xf]
  %v123 = vld [vmem:[%s0 + $0x168] sm:$0xf]
  %v124 = vld [vmem:[%s0 + $0x16c] sm:$0xf]
  %v125 = vld [vmem:[%s0 + $0x170] sm:$0xf]
  %v126 = vld [vmem:[%s0 + $0x174] sm:$0xf]
  %v127 = vld [vmem:[%s0 + $0x178] sm:$0xf]
  %v128 = vld [vmem:[%s0 + $0x17c] sm:$0xf]
  %v129 = vld [vmem:[%s0 + $0x180] sm:$0xf]
  %v130 = vld [vmem:[%s0 + $0x184] sm:$0xf]
  %v131 = vld [vmem:[%s0 + $0x188] sm:$0xf]
  %v132 = vld [vmem:[%s0 + $0x18c] sm:$0xf]
  %v133 = vld [vmem:[%s0 + $0x190] sm:$0xf]
  %v134 = vld [vmem:[%s0 + $0x194] sm:$0xf]
  %v135 = vld [vmem:[%s0 + $0x198] sm:$0xf]
  %v136 = vld [vmem:[%s0 + $0x19c] sm:$0xf]
  %v137 = vld [vmem:[%s0 + $0x1a0] sm:$0xf]
  %v138 = vld [vmem:[%s0 + $0x1a4] sm:$0xf]
  %v139 = vld [vmem:[%s0 + $0x1a8] sm:$0xf]
  %v140 = vld [vmem:[%s0 + $0x1ac] sm:$0xf]
  %v141 = vld [vmem:[%s0 + $0x1b0] sm:$0xf]
  %v142 = vld [vmem:[%s0 + $0x1b4] sm:$0xf]
  %v143 = vld [vmem:[%s0 + $0x1b8] sm:$0xf]
  %v144 = vld [vmem:[%s0 + $0x1bc] sm:$0xf]
  %v145 = vld [vmem:[%s0 + $0x1c0] sm:$0xf]
  %v146 = vld [vmem:[%s0 + $0x1c4] sm:$0xf]
  %v147 = vld [vmem:[%s0 + $0x1c8] sm:$0xf]
  %v148 = vld [vmem:[%s0 + $0x1cc] sm:$0xf]
  %v149 = vld [vmem:[%s0 + $0x1d0] sm:$0xf]
  %v150 = vld [vmem:[%s0 + $0x1d4] sm:$0xf]
  %v151 = vld [vmem:[%s0 + $0x1d8] sm:$0xf]
  %v152 = vld [vmem:[%s0 + $0x1dc] sm:$0xf]
  %v153 = vld [vmem:[%s0 + $0x1e0] sm:$0xf]
  %v154 = vld [vmem:[%s0 + $0x1e4] sm:$0xf]
  %v155 = vld [vmem:[%s0 + $0x1e8] sm:$0xf]
  %v156 = vld [vmem:[%s0 + $0x1ec] sm:$0xf]
  %v157 = vld [vmem:[%s0 + $0x1f0] sm:$0xf]
  %v158 = vld [vmem:[%s0 + $0x1f4] sm:$0xf]
  %v159 = vld [vmem:[%s0 + $0x1f8] sm:$0xf]
  %v160 = vld [vmem:[%s0 + $0x1fc] sm:$0xf]
  %v161 = vld [vmem:[%s0 + $0x200] sm:$0xf]
  %v162 = vld [vmem:[%s0 + $0x204] sm:$0xf]
  %v163 = vld [vmem:[%s0 + $0x208] sm:$0xf]
  %v164 = vld [vmem:[%s0 + $0x20c] sm:$0xf]
  %v165 = vld [vmem:[%s0 + $0x210] sm:$0xf]
  %v166 = vld [vmem:[%s0 + $0x214] sm:$0xf]
  %v167 = vld [vmem:[%s0 + $0x218] sm:$0xf]
  %v168 = vld [vmem:[%s0 + $0x21c] sm:$0xf]
  %v169 = vld [vmem:[%s0 + $0x220] sm:$0xf]
  %v170 = vld [vmem:[%s0 + $0x224] sm:$0xf]
  %v171 = vld [vmem:[%s0 + $0x228] sm:$0xf]
  %v172 = vld [vmem:[%s0 + $0x22c] sm:$0xf]
  %v173 = vld [vmem:[%s0 + $0x230] sm:$0xf]
  %v174 = vld [vmem:[%s0 + $0x234] sm:$0xf]
  %v175 = vld [vmem:[%s0 + $0x238] sm:$0xf]
  %v176 = vld [vmem:[%s0 + $0x23c] sm:$0xf]
  %v177 = vld [vmem:[%s0 + $0x240] sm:$0xf]
  %v178 = vld [vmem:[%s0 + $0x244] sm:$0xf]
  %v179 = vld [vmem:[%s0 + $0x248] sm:$0xf]
  %v180 = vld [vmem:[%s0 + $0x24c] sm:$0xf]
  %v181 = vld [vmem:[%s0 + $0x250] sm:$0xf]
  %v182 = vld [vmem:[%s0 + $0x254] sm:$0xf]
  %v183 = vld [vmem:[%s0 + $0x258] sm:$0xf]
  %v184 = vld [vmem:[%s0 + $0x25c] sm:$0xf]
  %v185 = vld [vmem:[%s0 + $0x260] sm:$0xf]
  %v186 = vld [vmem:[%s0 + $0x264] sm:$0xf]
  %v187 = vld [vmem:[%s0 + $0x268] sm:$0xf]
  %v188 = vld [vmem:[%s0 + $0x26c] sm:$0xf]
  %v189 = vld [vmem:[%s0 + $0x270] sm:$0xf]
  %v190 = vld [vmem:[%s0 + $0x274] sm:$0xf]
  %v191 = vld [vmem:[%s0 + $0x278] sm:$0xf]
  %v192 = vld [vmem:[%s0 + $0x27c] sm:$0xf]
  %v193 = vld [vmem:[%s0 + $0x280] sm:$0xf]
  %v194 = vld [vmem:[%s0 + $0x284] sm:$0xf]
  %v195 = vld [vmem:[%s0 + $0x288] sm:$0xf]
  %v196 = vld [vmem:[%s0 + $0x28c] sm:$0xf]
  %v197 = vld [vmem:[%s0 + $0x290] sm:$0xf]
  %v198 = vld [vmem:[%s0 + $0x294] sm:$0xf]
  %v199 = vld [vmem:[%s0 + $0x298] sm:$0xf]
  %v200 = vld [vmem:[%s0 + $0x29c] sm:$0xf]
  %v201 = vld [vmem:[%s0 + $0x2a0] sm:$0xf]
  %v202 = vld [vmem:[%s0 + $0x2a4] sm:$0xf]
  %v203 = vld [vmem:[%s0 + $0x2a8] sm:$0xf]
  %v204 = vld [vmem:[%s0 + $0x2ac] sm:$0xf]
  %v205 = vld [vmem:[%s0 + $0x2b0] sm:$0xf]
  %v206 = vld [vmem:[%s0 + $0x2b4] sm:$0xf]
  %v207 = vld [vmem:[%s0 + $0x2b8] sm:$0xf]
  %v208 = vld [vmem:[%s0 + $0x2bc] sm:$0xf]
  %v209 = vld [vmem:[%s0 + $0x2c0] sm:$0xf]
  %v210 = vld [vmem:[%s0 + $0x2c4] sm:$0xf]
  %v211 = vld [vmem:[%s0 + $0x2c8] sm:$0xf]
  %v212 = vld [vmem:[%s0 + $0x2cc] sm:$0xf]
  %v213 = vld [vmem:[%s0 + $0x2d0] sm:$0xf]
  %v214 = vld [vmem:[%s0 + $0x2d4] sm:$0xf]
  %v215 = vld [vmem:[%s0 + $0x2d8] sm:$0xf]
  %v216 = vld [vmem:[%s0 + $0x2dc] sm:$0xf]
  %v217 = vld [vmem:[%s0 + $0x2e0] sm:$0xf]
  %v218 = vld [vmem:[%s0 + $0x2e4] sm:$0xf]
  %v219 = vld [vmem:[%s0 + $0x2e8] sm:$0xf]
  %v220 = vld [vmem:[%s0 + $0x2ec] sm:$0xf]
  %v221 = vld [vmem:[%s0 + $0x2f0] sm:$0xf]
  %v222 = vld [vmem:[%s0 + $0x2f4] sm:$0xf]
  %v223 = vld [vmem:[%s0 + $0x2f8] sm:$0xf]
  %v224 = vld [vmem:[%s0 + $0x2fc] sm:$0xf]
  %v225 = vld [vmem:[%s0 + $0x300] sm:$0xf]
  %v226 = vld [vmem:[%s0 + $0x304] sm:$0xf]
  %v227 = vld [vmem:[%s0 + $0x308] sm:$0xf]
  %v228 = vld [vmem:[%s0 + $0x30c] sm:$0xf]
  %v229 = vld [vmem:[%s0 + $0x310] sm:$0xf]
  %v230 = vld [vmem:[%s0 + $0x314] sm:$0xf]
  %v231 = vld [vmem:[%s0 + $0x318] sm:$0xf]
  %v232 = vld [vmem:[%s0 + $0x31c] sm:$0xf]
  %v233 = vld [vmem:[%s0 + $0x320] sm:$0xf]
  %v234 = vld [vmem:[%s0 + $0x324] sm:$0xf]
  %v235 = vld [vmem:[%s0 + $0x328] sm:$0xf]
  %v236 = vld [vmem:[%s0 + $0x32c] sm:$0xf]
  %v237 = vld [vmem:[%s0 + $0x330] sm:$0xf]
  %v238 = vld [vmem:[%s0 + $0x334] sm:$0xf]
  %v239 = vld [vmem:[%s0 + $0x338] sm:$0xf]
  %v240 = vld [vmem:[%s0 + $0x33c] sm:$0xf]
  %v241 = vld [vmem:[%s0 + $0x340] sm:$0xf]
  %v242 = vld [vmem:[%s0 + $0x344] sm:$0xf]
  %v243 = vld [vmem:[%s0 + $0x348] sm:$0xf]
  %v244 = vld [vmem:[%s0 + $0x34c] sm:$0xf]
  %v245 = vld [vmem:[%s0 + $0x350] sm:$0xf]
  %v246 = vld [vmem:[%s0 + $0x354] sm:$0xf]
  %v247 = vld [vmem:[%s0 + $0x358] sm:$0xf]
  %v248 = vld [vmem:[%s0 + $0x35c] sm:$0xf]
  %v249 = vld [vmem:[%s0 + $0x360] sm:$0xf]
  %v250 = vld [vmem:[%s0 + $0x364] sm:$0xf]
  %v251 = vld [vmem:[%s0 + $0x368] sm:$0xf]
  %v252 = vld [vmem:[%s0 + $0x36c] sm:$0xf]
  %v253 = vld [vmem:[%s0 + $0x370] sm:$0xf]
  %v254 = vld [vmem:[%s0 + $0x374] sm:$0xf]
  %v255 = vld [vmem:[%s0 + $0x378] sm:$0xf]
  %v256 = vld [vmem:[%s0 + $0x37c] sm:$0xf]
  %v257 = vld [vmem:[%s0 + $0x380] sm:$0xf]
  %v258 = vld [vmem:[%s0 + $0x384] sm:$0xf]
  %v259 = vld [vmem:[%s0 + $0x388] sm:$0xf]
  %v260 = vld [vmem:[%s0 + $0x38c] sm:$0xf]
  %v261 = vld [vmem:[%s0 + $0x390] sm:$0xf]
  %v262 = vld [vmem:[%s0 + $0x394] sm:$0xf]
  %v263 = vld [vmem:[%s0 + $0x398] sm:$0xf]
  %v264 = vld [vmem:[%s0 + $0x39c] sm:$0xf]
  %v265 = vld [vmem:[%s0 + $0x3a0] sm:$0xf]
  %v266 = vld [vmem:[%s0 + $0x3a4] sm:$0xf]
  %v267 = vld [vmem:[%s0 + $0x3a8] sm:$0xf]
  %v268 = vld [vmem:[%s0 + $0x3ac] sm:$0xf]
  %v269 = vld [vmem:[%s0 + $0x3b0] sm:$0xf]
  %v270 = vld [vmem:[%s0 + $0x3b4] sm:$0xf]
  %v271 = vld [vmem:[%s0 + $0x3b8] sm:$0xf]
  %v272 = vld [vmem:[%s0 + $0x3bc] sm:$0xf]
  %v273 = vld [vmem:[%s0 + $0x3c0] sm:$0xf]
  %v274 = vld [vmem:[%s0 + $0x3c4] sm:$0xf]
  %v275 = vld [vmem:[%s0 + $0x3c8] sm:$0xf]
  %v276 = vld [vmem:[%s0 + $0x3cc] sm:$0xf]
  %v277 = vld [vmem:[%s0 + $0x3d0] sm:$0xf]
  %v278 = vld [vmem:[%s0 + $0x3d4] sm:$0xf]
  %v279 = vld [vmem:[%s0 + $0x3d8] sm:$0xf]
  %v280 = vld [vmem:[%s0 + $0x3dc] sm:$0xf]
  %v281 = vld [vmem:[%s0 + $0x3e0] sm:$0xf]
  %v282 = vld [vmem:[%s0 + $0x3e4] sm:$0xf]
  %v283 = vld [vmem:[%s0 + $0x3e8] sm:$0xf]
  %v284 = vld [vmem:[%s0 + $0x3ec] sm:$0xf]
  %v285 = vld [vmem:[%s0 + $0x3f0] sm:$0xf]
  %v286 = vld [vmem:[%s0 + $0x3f4] sm:$0xf]
  %v287 = vld [vmem:[%s0 + $0x3f8] sm:$0xf]
  %v288 = vld [vmem:[%s0 + $0x3fc] sm:$0xf]
  %v289 = vld [vmem:[%s0 + $0x400] sm:$0xf]
  %v290 = vld [vmem:[%s0 + $0x404] sm:$0xf]
  %v291 = vld [vmem:[%s0 + $0x408] sm:$0xf]
  %v292 = vld [vmem:[%s0 + $0x40c] sm:$0xf]
  %v293 = vld [vmem:[%s0 + $0x410] sm:$0xf]
  %v294 = vld [vmem:[%s0 + $0x414] sm:$0xf]
  %v295 = vld [vmem:[%s0 + $0x418] sm:$0xf]
  %v296 = vld [vmem:[%s0 + $0x41c] sm:$0xf]
  %v297 = vld [vmem:[%s0 + $0x420] sm:$0xf]
  %v298 = vld [vmem:[%s0 + $0x424] sm:$0xf]
  %v299 = vld [vmem:[%s0 + $0x428] sm:$0xf]
  %v300 = vld [vmem:[%s0 + $0x42c] sm:$0xf]
  %v301 = vld [vmem:[%s0 + $0x430] sm:$0xf]
  %v302 = vld [vmem:[%s0 + $0x434] sm:$0xf]
  %v303 = vld [vmem:[%s0 + $0x438] sm:$0xf]
  %v304 = vld [vmem:[%s0 + $0x43c] sm:$0xf]
  %v305 = vld [vmem:[%s0 + $0x440] sm:$0xf]
  %v306 = vld [vmem:[%s0 + $0x444] sm:$0xf]
  %v307 = vld [vmem:[%s0 + $0x448] sm:$0xf]
  %v308 = vld [vmem:[%s0 + $0x44c] sm:$0xf]
  %v309 = vld [vmem:[%s0 + $0x450] sm:$0xf]
  %v310 = vld [vmem:[%s0 + $0x454] sm:$0xf]
  %v311 = vld [vmem:[%s0 + $0x458] sm:$0xf]
  %v312 = vld [vmem:[%s0 + $0x45c] sm:$0xf]
  %v313 = vld [vmem:[%s0 + $0x460] sm:$0xf]
  %v314 = vld [vmem:[%s0 + $0x464] sm:$0xf]
  %v315 = vld [vmem:[%s0 + $0x468] sm:$0xf]
  %v316 = vld [vmem:[%s0 + $0x46c] sm:$0xf]
  %v317 = vld [vmem:[%s0 + $0x470] sm:$0xf]
  %v318 = vld [vmem:[%s0 + $0x474] sm:$0xf]
  %v319 = vld [vmem:[%s0 + $0x478] sm:$0xf]
  %v320 = vld [vmem:[%s0 + $0x47c] sm:$0xf]
  %v321 = vld [vmem:[%s0 + $0x480] sm:$0xf]
  %v322 = vld [vmem:[%s0 + $0x484] sm:$0xf]
  %v323 = vld [vmem:[%s0 + $0x488] sm:$0xf]
  %v324 = vld [vmem:[%s0 + $0x48c] sm:$0xf]
  %v325 = vld [vmem:[%s0 + $0x490] sm:$0xf]
  %v326 = vld [vmem:[%s0 + $0x494] sm:$0xf]
  %v327 = vld [vmem:[%s0 + $0x498] sm:$0xf]
  %v328 = vld [vmem:[%s0 + $0x49c] sm:$0xf]
  %v329 = vld [vmem:[%s0 + $0x4a0] sm:$0xf]
  %v330 = vld [vmem:[%s0 + $0x4a4] sm:$0xf]
  %v331 = vld [vmem:[%s0 + $0x4a8] sm:$0xf]
  %v332 = vld [vmem:[%s0 + $0x4ac] sm:$0xf]
  %v333 = vld [vmem:[%s0 + $0x4b0] sm:$0xf]
  %v334 = vld [vmem:[%s0 + $0x4b4] sm:$0xf]
  %v335 = vld [vmem:[%s0 + $0x4b8] sm:$0xf]
  %v336 = vld [vmem:[%s0 + $0x4bc] sm:$0xf]
  %v337 = vld [vmem:[%s0 + $0x4c0] sm:$0xf]
  %v338 = vld [vmem:[%s0 + $0x4c4] sm:$0xf]
  %v339 = vld [vmem:[%s0 + $0x4c8] sm:$0xf]
  %v340 = vld [vmem:[%s0 + $0x4cc] sm:$0xf]
  %v341 = vld [vmem:[%s0 + $0x4d0] sm:$0xf]
  %v342 = vld [vmem:[%s0 + $0x4d4] sm:$0xf]
  %v343 = vld [vmem:[%s0 + $0x4d8] sm:$0xf]
  %v344 = vld [vmem:[%s0 + $0x4dc] sm:$0xf]
  %v345 = vld [vmem:[%s0 + $0x4e0] sm:$0xf]
  %v346 = vld [vmem:[%s0 + $0x4e4] sm:$0xf]
  %v347 = vld [vmem:[%s0 + $0x4e8] sm:$0xf]
  %v348 = vld [vmem:[%s0 + $0x4ec] sm:$0xf]
  %v349 = vld [vmem:[%s0 + $0x4f0] sm:$0xf]
  %v350 = vld [vmem:[%s0 + $0x4f4] sm:$0xf]
  %v351 = vld [vmem:[%s0 + $0x4f8] sm:$0xf]
  %v352 = vld [vmem:[%s0 + $0x4fc] sm:$0xf]
  %v353 = vld [vmem:[%s0 + $0x500] sm:$0xf]
  %v354 = vld [vmem:[%s0 + $0x504] sm:$0xf]
  %v355 = vld [vmem:[%s0 + $0x508] sm:$0xf]
  %v356 = vld [vmem:[%s0 + $0x50c] sm:$0xf]
  %v357 = vld [vmem:[%s0 + $0x510] sm:$0xf]
  %v358 = vld [vmem:[%s0 + $0x514] sm:$0xf]
  %v359 = vld [vmem:[%s0 + $0x518] sm:$0xf]
  %v360 = vld [vmem:[%s0 + $0x51c] sm:$0xf]
  %v361 = vld [vmem:[%s0 + $0x520] sm:$0xf]
  %v362 = vld [vmem:[%s0 + $0x524] sm:$0xf]
  %v363 = vld [vmem:[%s0 + $0x528] sm:$0xf]
  %v364 = vld [vmem:[%s0 + $0x52c] sm:$0xf]
  %v365 = vld [vmem:[%s0 + $0x530] sm:$0xf]
  %v366 = vld [vmem:[%s0 + $0x534] sm:$0xf]
  %v367 = vld [vmem:[%s0 + $0x538] sm:$0xf]
  %v368 = vld [vmem:[%s0 + $0x53c] sm:$0xf]
  %v369 = vld [vmem:[%s0 + $0x540] sm:$0xf]
  %v370 = vld [vmem:[%s0 + $0x544] sm:$0xf]
  %v371 = vld [vmem:[%s0 + $0x548] sm:$0xf]
  %v372 = vld [vmem:[%s0 + $0x54c] sm:$0xf]
  %v373 = vld [vmem:[%s0 + $0x550] sm:$0xf]
  %v374 = vld [vmem:[%s0 + $0x554] sm:$0xf]
  %v375 = vld [vmem:[%s0 + $0x558] sm:$0xf]
  %v376 = vld [vmem:[%s0 + $0x55c] sm:$0xf]
  %v377 = vld [vmem:[%s0 + $0x560] sm:$0xf]
  %v378 = vld [vmem:[%s0 + $0x564] sm:$0xf]
  %v379 = vld [vmem:[%s0 + $0x568] sm:$0xf]
  %v380 = vld [vmem:[%s0 + $0x56c] sm:$0xf]
  %v381 = vld [vmem:[%s0 + $0x570] sm:$0xf]
  %v382 = vld [vmem:[%s0 + $0x574] sm:$0xf]
  %v383 = vld [vmem:[%s0 + $0x578] sm:$0xf]
  %v384 = vld [vmem:[%s0 + $0x57c] sm:$0xf]
  %v385 = vld [vmem:[%s0 + $0x580] sm:$0xf]
  %v386 = vld [vmem:[%s0 + $0x584] sm:$0xf]
  %v387 = vld [vmem:[%s0 + $0x588] sm:$0xf]
  %v388 = vld [vmem:[%s0 + $0x58c] sm:$0xf]
  %v389 = vld [vmem:[%s0 + $0x590] sm:$0xf]
  %v390 = vld [vmem:[%s0 + $0x594] sm:$0xf]
  %v391 = vld [vmem:[%s0 + $0x598] sm:$0xf]
  %v392 = vld [vmem:[%s0 + $0x59c] sm:$0xf]
  %v393 = vld [vmem:[%s0 + $0x5a0] sm:$0xf]
  %v394 = vld [vmem:[%s0 + $0x5a4] sm:$0xf]
  %v395 = vld [vmem:[%s0 + $0x5a8] sm:$0xf]
  %v396 = vld [vmem:[%s0 + $0x5ac] sm:$0xf]
  %v397 = vld [vmem:[%s0 + $0x5b0] sm:$0xf]
  %v398 = vld [vmem:[%s0 + $0x5b4] sm:$0xf]
  %v399 = vld [vmem:[%s0 + $0x5b8] sm:$0xf]
  %v400 = vld [vmem:[%s0 + $0x5bc] sm:$0xf]
  %v401 = vld [vmem:[%s0 + $0x5c0] sm:$0xf]
  %v402 = vld [vmem:[%s0 + $0x5c4] sm:$0xf]
  %v403 = vld [vmem:[%s0 + $0x5c8] sm:$0xf]
  %v404 = vld [vmem:[%s0 + $0x5cc] sm:$0xf]
  %v405 = vld [vmem:[%s0 + $0x5d0] sm:$0xf]
  %v406 = vld [vmem:[%s0 + $0x5d4] sm:$0xf]
  %v407 = vld [vmem:[%s0 + $0x5d8] sm:$0xf]
  %v408 = vld [vmem:[%s0 + $0x5dc] sm:$0xf]
  %v409 = vld [vmem:[%s0 + $0x5e0] sm:$0xf]
  %v410 = vld [vmem:[%s0 + $0x5e4] sm:$0xf]
  %v411 = vld [vmem:[%s0 + $0x5e8] sm:$0xf]
  %v412 = vld [vmem:[%s0 + $0x5ec] sm:$0xf]
  %v413 = vld [vmem:[%s0 + $0x5f0] sm:$0xf]
  %v414 = vld [vmem:[%s0 + $0x5f4] sm:$0xf]
  %v415 = vld [vmem:[%s0 + $0x5f8] sm:$0xf]
  %v416 = vld [vmem:[%s0 + $0x5fc] sm:$0xf]
  %v417 = vld [vmem:[%s0 + $0x600] sm:$0xf]
  %v418 = vld [vmem:[%s0 + $0x604] sm:$0xf]
  %v419 = vld [vmem:[%s0 + $0x608] sm:$0xf]
  %v420 = vld [vmem:[%s0 + $0x60c] sm:$0xf]
  %v421 = vld [vmem:[%s0 + $0x610] sm:$0xf]
  %v422 = vld [vmem:[%s0 + $0x614] sm:$0xf]
  %v423 = vld [vmem:[%s0 + $0x618] sm:$0xf]
  %v424 = vld [vmem:[%s0 + $0x61c] sm:$0xf]
  %v425 = vld [vmem:[%s0 + $0x620] sm:$0xf]
  %v426 = vld [vmem:[%s0 + $0x624] sm:$0xf]
  %v427 = vld [vmem:[%s0 + $0x628] sm:$0xf]
  %v428 = vld [vmem:[%s0 + $0x62c] sm:$0xf]
  %v429 = vld [vmem:[%s0 + $0x630] sm:$0xf]
  %v430 = vld [vmem:[%s0 + $0x634] sm:$0xf]
  %v431 = vld [vmem:[%s0 + $0x638] sm:$0xf]
  %v432 = vld [vmem:[%s0 + $0x63c] sm:$0xf]
  %v433 = vld [vmem:[%s0 + $0x640] sm:$0xf]
  %v434 = vld [vmem:[%s0 + $0x644] sm:$0xf]
  %v435 = vld [vmem:[%s0 + $0x648] sm:$0xf]
  %v436 = vld [vmem:[%s0 + $0x64c] sm:$0xf]
  %v437 = vld [vmem:[%s0 + $0x650] sm:$0xf]
  %v438 = vld [vmem:[%s0 + $0x654] sm:$0xf]
  %v439 = vld [vmem:[%s0 + $0x658] sm:$0xf]
  %v440 = vld [vmem:[%s0 + $0x65c] sm:$0xf]
  %v441 = vld [vmem:[%s0 + $0x660] sm:$0xf]
  %v442 = vld [vmem:[%s0 + $0x664] sm:$0xf]
  %v443 = vld [vmem:[%s0 + $0x668] sm:$0xf]
  %v444 = vld [vmem:[%s0 + $0x66c] sm:$0xf]
  %v445 = vld [vmem:[%s0 + $0x670] sm:$0xf]
  %v446 = vld [vmem:[%s0 + $0x674] sm:$0xf]
  %v447 = vld [vmem:[%s0 + $0x678] sm:$0xf]
  %v448 = vld [vmem:[%s0 + $0x67c] sm:$0xf]
  %v449 = vld [vmem:[%s0 + $0x680] sm:$0xf]
  %v450 = vld [vmem:[%s0 + $0x684] sm:$0xf]
  %v451 = vld [vmem:[%s0 + $0x688] sm:$0xf]
  %v452 = vld [vmem:[%s0 + $0x68c] sm:$0xf]
  %v453 = vld [vmem:[%s0 + $0x690] sm:$0xf]
  %v454 = vld [vmem:[%s0 + $0x694] sm:$0xf]
  %v455 = vld [vmem:[%s0 + $0x698] sm:$0xf]
  %v456 = vld [vmem:[%s0 + $0x69c] sm:$0xf]
  %v457 = vld [vmem:[%s0 + $0x6a0] sm:$0xf]
  %v458 = vld [vmem:[%s0 + $0x6a4] sm:$0xf]
  %v459 = vld [vmem:[%s0 + $0x6a8] sm:$0xf]
  %v460 = vld [vmem:[%s0 + $0x6ac] sm:$0xf]
  %v461 = vld [vmem:[%s0 + $0x6b0] sm:$0xf]
  %v462 = vld [vmem:[%s0 + $0x6b4] sm:$0xf]
  %v463 = vld [vmem:[%s0 + $0x6b8] sm:$0xf]
  %v464 = vld [vmem:[%s0 + $0x6bc] sm:$0xf]
  %v465 = vld [vmem:[%s0 + $0x6c0] sm:$0xf]
  %v466 = vld [vmem:[%s0 + $0x6c4] sm:$0xf]
  %v467 = vld [vmem:[%s0 + $0x6c8] sm:$0xf]
  %v468 = vld [vmem:[%s0 + $0x6cc] sm:$0xf]
  %v469 = vld [vmem:[%s0 + $0x6d0] sm:$0xf]
  %v470 = vld [vmem:[%s0 + $0x6d4] sm:$0xf]
  %v471 = vld [vmem:[%s0 + $0x6d8] sm:$0xf]
  %v472 = vld [vmem:[%s0 + $0x6dc] sm:$0xf]
  %v473 = vld [vmem:[%s0 + $0x6e0] sm:$0xf]
  %v474 = vld [vmem:[%s0 + $0x6e4] sm:$0xf]
  %v475 = vld [vmem:[%s0 + $0x6e8] sm:$0xf]
  %v476 = vld [vmem:[%s0 + $0x6ec] sm:$0xf]
  %v477 = vld [vmem:[%s0 + $0x6f0] sm:$0xf]
  %v478 = vld [vmem:[%s0 + $0x6f4] sm:$0xf]
  %v479 = vld [vmem:[%s0 + $0x6f8] sm:$0xf]
  %v480 = vld [vmem:[%s0 + $0x6fc] sm:$0xf]
  %v481 = vld [vmem:[%s0 + $0x700] sm:$0xf]
  %v482 = vld [vmem:[%s0 + $0x704] sm:$0xf]
  %v483 = vld [vmem:[%s0 + $0x708] sm:$0xf]
  %v484 = vld [vmem:[%s0 + $0x70c] sm:$0xf]
  %v485 = vld [vmem:[%s0 + $0x710] sm:$0xf]
  %v486 = vld [vmem:[%s0 + $0x714] sm:$0xf]
  %v487 = vld [vmem:[%s0 + $0x718] sm:$0xf]
  %v488 = vld [vmem:[%s0 + $0x71c] sm:$0xf]
  %v489 = vld [vmem:[%s0 + $0x720] sm:$0xf]
  %v490 = vld [vmem:[%s0 + $0x724] sm:$0xf]
  %v491 = vld [vmem:[%s0 + $0x728] sm:$0xf]
  %v492 = vld [vmem:[%s0 + $0x72c] sm:$0xf]
  %v493 = vld [vmem:[%s0 + $0x730] sm:$0xf]
  %v494 = vld [vmem:[%s0 + $0x734] sm:$0xf]
  %v495 = vld [vmem:[%s0 + $0x738] sm:$0xf]
  %v496 = vld [vmem:[%s0 + $0x73c] sm:$0xf]
  %v497 = vld [vmem:[%s0 + $0x740] sm:$0xf]
  %v498 = vld [vmem:[%s0 + $0x744] sm:$0xf]
  %v499 = vld [vmem:[%s0 + $0x748] sm:$0xf]
  %v500 = vld [vmem:[%s0 + $0x74c] sm:$0xf]
  %v501 = vld [vmem:[%s0 + $0x750] sm:$0xf]
  %v502 = vld [vmem:[%s0 + $0x754] sm:$0xf]
  %v503 = vld [vmem:[%s0 + $0x758] sm:$0xf]
  %v504 = vld [vmem:[%s0 + $0x75c] sm:$0xf]
  %v505 = vld [vmem:[%s0 + $0x760] sm:$0xf]
  %v506 = vld [vmem:[%s0 + $0x764] sm:$0xf]
  %v507 = vld [vmem:[%s0 + $0x768] sm:$0xf]
  %v508 = vld [vmem:[%s0 + $0x76c] sm:$0xf]
  %v509 = vld [vmem:[%s0 + $0x770] sm:$0xf]
  %v510 = vld [vmem:[%s0 + $0x774] sm:$0xf]
  %v511 = vld [vmem:[%s0 + $0x778] sm:$0xf]
  %v512 = vld [vmem:[%s0 + $0x77c] sm:$0xf]
  %v513 = vld [vmem:[%s0 + $0x780] sm:$0xf]
  %v514 = vld [vmem:[%s0 + $0x784] sm:$0xf]
  %v515 = vld [vmem:[%s0 + $0x788] sm:$0xf]
  %v516 = vld [vmem:[%s0 + $0x78c] sm:$0xf]
  %v517 = vld [vmem:[%s0 + $0x790] sm:$0xf]
  %v518 = vld [vmem:[%s0 + $0x794] sm:$0xf]
  %v519 = vld [vmem:[%s0 + $0x798] sm:$0xf]
  %v520 = vld [vmem:[%s0 + $0x79c] sm:$0xf]
  %v521 = vld [vmem:[%s0 + $0x7a0] sm:$0xf]
  %v522 = vld [vmem:[%s0 + $0x7a4] sm:$0xf]
  %v523 = vld [vmem:[%s0 + $0x7a8] sm:$0xf]
  %v524 = vld [vmem:[%s0 + $0x7ac] sm:$0xf]
  %v525 = vld [vmem:[%s0 + $0x7b0] sm:$0xf]
  %v526 = vld [vmem:[%s0 + $0x7b4] sm:$0xf]
  %v527 = vld [vmem:[%s0 + $0x7b8] sm:$0xf]
  %v528 = vld [vmem:[%s0 + $0x7bc] sm:$0xf]
  %v529 = vld [vmem:[%s0 + $0x7c0] sm:$0xf]
  %v530 = vld [vmem:[%s0 + $0x7c4] sm:$0xf]
  %v531 = vld [vmem:[%s0 + $0x7c8] sm:$0xf]
  %v532 = vld [vmem:[%s0 + $0x7cc] sm:$0xf]
  %v533 = vld [vmem:[%s0 + $0x7d0] sm:$0xf]
  %v534 = vld [vmem:[%s0 + $0x7d4] sm:$0xf]
  %v535 = vld [vmem:[%s0 + $0x7d8] sm:$0xf]
  %v536 = vld [vmem:[%s0 + $0x7dc] sm:$0xf]
  %v537 = vld [vmem:[%s0 + $0x7e0] sm:$0xf]
  %v538 = vld [vmem:[%s0 + $0x7e4] sm:$0xf]
  %v539 = vld [vmem:[%s0 + $0x7e8] sm:$0xf]
  %v540 = vld [vmem:[%s0 + $0x7ec] sm:$0xf]
  %v541 = vld [vmem:[%s0 + $0x7f0] sm:$0xf]
  %v542 = vld [vmem:[%s0 + $0x7f4] sm:$0xf]
  %v543 = vld [vmem:[%s0 + $0x7f8] sm:$0xf]
  %v544 = vld [vmem:[%s0 + $0x7fc] sm:$0xf]
  %v545 = vld [vmem:[%s0 + $0x800] sm:$0xf]
  %v546 = vld [vmem:[%s0 + $0x804] sm:$0xf]
  %v547 = vld [vmem:[%s0 + $0x808] sm:$0xf]
  %v548 = vld [vmem:[%s0 + $0x80c] sm:$0xf]
  %v549 = vld [vmem:[%s0 + $0x810] sm:$0xf]
  %v550 = vld [vmem:[%s0 + $0x814] sm:$0xf]
  %v551 = vld [vmem:[%s0 + $0x818] sm:$0xf]
  %v552 = vld [vmem:[%s0 + $0x81c] sm:$0xf]
  %v553 = vld [vmem:[%s0 + $0x820] sm:$0xf]
  %v554 = vld [vmem:[%s0 + $0x824] sm:$0xf]
  %v555 = vld [vmem:[%s0 + $0x828] sm:$0xf]
  %v556 = vld [vmem:[%s0 + $0x82c] sm:$0xf]
  %v557 = vld [vmem:[%s0 + $0x830] sm:$0xf]
  %v558 = vld [vmem:[%s0 + $0x834] sm:$0xf]
  %v559 = vld [vmem:[%s0 + $0x838] sm:$0xf]
  %v560 = vld [vmem:[%s0 + $0x83c] sm:$0xf]
  %v561 = vld [vmem:[%s0 + $0x840] sm:$0xf]
  %v562 = vld [vmem:[%s0 + $0x844] sm:$0xf]
  %v563 = vld [vmem:[%s0 + $0x848] sm:$0xf]
  %v564 = vld [vmem:[%s0 + $0x84c] sm:$0xf]
  %v565 = vld [vmem:[%s0 + $0x850] sm:$0xf]
  %v566 = vld [vmem:[%s0 + $0x854] sm:$0xf]
  %v567 = vld [vmem:[%s0 + $0x858] sm:$0xf]
  %v568 = vld [vmem:[%s0 + $0x85c] sm:$0xf]
  %v569 = vld [vmem:[%s0 + $0x860] sm:$0xf]
  %v570 = vld [vmem:[%s0 + $0x864] sm:$0xf]
  %v571 = vld [vmem:[%s0 + $0x868] sm:$0xf]
  %v572 = vld [vmem:[%s0 + $0x86c] sm:$0xf]
  %v573 = vld [vmem:[%s0 + $0x870] sm:$0xf]
  %v574 = vld [vmem:[%s0 + $0x874] sm:$0xf]
  %v575 = vld [vmem:[%s0 + $0x878] sm:$0xf]
  %v576 = vld [vmem:[%s0 + $0x87c] sm:$0xf]
  %v577 = vld [vmem:[%s0 + $0x880] sm:$0xf]
  %v578 = vld [vmem:[%s0 + $0x884] sm:$0xf]
  %v579 = vld [vmem:[%s0 + $0x888] sm:$0xf]
  %v580 = vld [vmem:[%s0 + $0x88c] sm:$0xf]
  %v581 = vld [vmem:[%s0 + $0x890] sm:$0xf]
  %v582 = vld [vmem:[%s0 + $0x894] sm:$0xf]
  %v583 = vld [vmem:[%s0 + $0x898] sm:$0xf]
  %v584 = vld [vmem:[%s0 + $0x89c] sm:$0xf]
  %v585 = vld [vmem:[%s0 + $0x8a0] sm:$0xf]
  %v586 = vld [vmem:[%s0 + $0x8a4] sm:$0xf]
  %v587 = vld [vmem:[%s0 + $0x8a8] sm:$0xf]
  %v588 = vld [vmem:[%s0 + $0x8ac] sm:$0xf]
  %v589 = vld [vmem:[%s0 + $0x8b0] sm:$0xf]
  %v590 = vld [vmem:[%s0 + $0x8b4] sm:$0xf]
  %v591 = vld [vmem:[%s0 + $0x8b8] sm:$0xf]
  %v592 = vld [vmem:[%s0 + $0x8bc] sm:$0xf]
  %v593 = vld [vmem:[%s0 + $0x8c0] sm:$0xf]
  %v594 = vld [vmem:[%s0 + $0x8c4] sm:$0xf]
  %v595 = vld [vmem:[%s0 + $0x8c8] sm:$0xf]
  %v596 = vld [vmem:[%s0 + $0x8cc] sm:$0xf]
  %v597 = vld [vmem:[%s0 + $0x8d0] sm:$0xf]
  %v598 = vld [vmem:[%s0 + $0x8d4] sm:$0xf]
  %v599 = vld [vmem:[%s0 + $0x8d8] sm:$0xf]
  %v600 = vld [vmem:[%s0 + $0x8dc] sm:$0xf]
  %v601 = vld [vmem:[%s0 + $0x8e0] sm:$0xf]
  %v602 = vld [vmem:[%s0 + $0x8e4] sm:$0xf]
  %v603 = vld [vmem:[%s0 + $0x8e8] sm:$0xf]
  %v604 = vld [vmem:[%s0 + $0x8ec] sm:$0xf]
  %v605 = vld [vmem:[%s0 + $0x8f0] sm:$0xf]
  %v606 = vld [vmem:[%s0 + $0x8f4] sm:$0xf]
  %v607 = vld [vmem:[%s0 + $0x8f8] sm:$0xf]
  %v608 = vld [vmem:[%s0 + $0x8fc] sm:$0xf]
  %v609 = vld [vmem:[%s1] sm:$0xf]
  %v610 = vld [vmem:[%s1 + $0x4] sm:$0xf]
  %v611 = vld [vmem:[%s1 + $0x8] sm:$0xf]
  %v612 = vld [vmem:[%s1 + $0xc] sm:$0x1]
  %v1189 = vunpack.c.l.b16 %v33
  %v1190 = vunpack.c.l.b16 %v34
  %v1191 = vunpack.c.l.b16 %v35
  %v1192 = vunpack.c.l.b16 %v36
  %v1193 = vunpack.c.l.b16 %v37
  %v1194 = vunpack.c.l.b16 %v38
  %v1195 = vunpack.c.l.b16 %v39
  %v1196 = vunpack.c.l.b16 %v40
  %v1197 = vunpack.c.l.b16 %v41
  %v1198 = vunpack.c.l.b16 %v42
  %v1199 = vunpack.c.l.b16 %v43
  %v1200 = vunpack.c.l.b16 %v44
  %v1201 = vunpack.c.l.b16 %v45
  %v1202 = vunpack.c.l.b16 %v46
  %v1203 = vunpack.c.l.b16 %v47
  %v1204 = vunpack.c.l.b16 %v48
  %v1205 = vunpack.c.l.b16 %v49
  %v1206 = vunpack.c.l.b16 %v50
  %v1207 = vunpack.c.l.b16 %v51
  %v1208 = vunpack.c.l.b16 %v52
  %v1209 = vunpack.c.l.b16 %v53
  %v1210 = vunpack.c.l.b16 %v54
  %v1211 = vunpack.c.l.b16 %v55
  %v1212 = vunpack.c.l.b16 %v56
  %v1213 = vunpack.c.l.b16 %v57
  %v1214 = vunpack.c.l.b16 %v58
  %v1215 = vunpack.c.l.b16 %v59
  %v1216 = vunpack.c.l.b16 %v60
  %v1217 = vunpack.c.l.b16 %v61
  %v1218 = vunpack.c.l.b16 %v62
  %v1219 = vunpack.c.l.b16 %v63
  %v1220 = vunpack.c.l.b16 %v64
  %v1221 = vunpack.c.l.b16 %v65
  %v1222 = vunpack.c.l.b16 %v66
  %v1223 = vunpack.c.l.b16 %v67
  %v1224 = vunpack.c.l.b16 %v68
  %v1225 = vunpack.c.l.b16 %v69
  %v1226 = vunpack.c.l.b16 %v70
  %v1227 = vunpack.c.l.b16 %v71
  %v1228 = vunpack.c.l.b16 %v72
  %v1229 = vunpack.c.l.b16 %v73
  %v1230 = vunpack.c.l.b16 %v74
  %v1231 = vunpack.c.l.b16 %v75
  %v1232 = vunpack.c.l.b16 %v76
  %v1233 = vunpack.c.l.b16 %v77
  %v1234 = vunpack.c.l.b16 %v78
  %v1235 = vunpack.c.l.b16 %v79
  %v1236 = vunpack.c.l.b16 %v80
  %v1237 = vunpack.c.l.b16 %v81
  %v1238 = vunpack.c.l.b16 %v82
  %v1239 = vunpack.c.l.b16 %v83
  %v1240 = vunpack.c.l.b16 %v84
  %v1241 = vunpack.c.l.b16 %v85
  %v1242 = vunpack.c.l.b16 %v86
  %v1243 = vunpack.c.l.b16 %v87
  %v1244 = vunpack.c.l.b16 %v88
  %v1245 = vunpack.c.l.b16 %v89
  %v1246 = vunpack.c.l.b16 %v90
  %v1247 = vunpack.c.l.b16 %v91
  %v1248 = vunpack.c.l.b16 %v92
  %v1249 = vunpack.c.l.b16 %v93
  %v1250 = vunpack.c.l.b16 %v94
  %v1251 = vunpack.c.l.b16 %v95
  %v1252 = vunpack.c.l.b16 %v96
  %v1253 = vunpack.c.l.b16 %v97
  %v1254 = vunpack.c.l.b16 %v98
  %v1255 = vunpack.c.l.b16 %v99
  %v1256 = vunpack.c.l.b16 %v100
  %v1257 = vunpack.c.l.b16 %v101
  %v1258 = vunpack.c.l.b16 %v102
  %v1259 = vunpack.c.l.b16 %v103
  %v1260 = vunpack.c.l.b16 %v104
  %v1261 = vunpack.c.l.b16 %v105
  %v1262 = vunpack.c.l.b16 %v106
  %v1263 = vunpack.c.l.b16 %v107
  %v1264 = vunpack.c.l.b16 %v108
  %v1265 = vunpack.c.l.b16 %v109
  %v1266 = vunpack.c.l.b16 %v110
  %v1267 = vunpack.c.l.b16 %v111
  %v1268 = vunpack.c.l.b16 %v112
  %v1269 = vunpack.c.l.b16 %v113
  %v1270 = vunpack.c.l.b16 %v114
  %v1271 = vunpack.c.l.b16 %v115
  %v1272 = vunpack.c.l.b16 %v116
  %v1273 = vunpack.c.l.b16 %v117
  %v1274 = vunpack.c.l.b16 %v118
  %v1275 = vunpack.c.l.b16 %v119
  %v1276 = vunpack.c.l.b16 %v120
  %v1277 = vunpack.c.l.b16 %v121
  %v1278 = vunpack.c.l.b16 %v122
  %v1279 = vunpack.c.l.b16 %v123
  %v1280 = vunpack.c.l.b16 %v124
  %v1281 = vunpack.c.l.b16 %v125
  %v1282 = vunpack.c.l.b16 %v126
  %v1283 = vunpack.c.l.b16 %v127
  %v1284 = vunpack.c.l.b16 %v128
  %v1285 = vunpack.c.l.b16 %v129
  %v1286 = vunpack.c.l.b16 %v130
  %v1287 = vunpack.c.l.b16 %v131
  %v1288 = vunpack.c.l.b16 %v132
  %v1289 = vunpack.c.l.b16 %v133
  %v1290 = vunpack.c.l.b16 %v134
  %v1291 = vunpack.c.l.b16 %v135
  %v1292 = vunpack.c.l.b16 %v136
  %v1293 = vunpack.c.l.b16 %v137
  %v1294 = vunpack.c.l.b16 %v138
  %v1295 = vunpack.c.l.b16 %v139
  %v1296 = vunpack.c.l.b16 %v140
  %v1297 = vunpack.c.l.b16 %v141
  %v1298 = vunpack.c.l.b16 %v142
  %v1299 = vunpack.c.l.b16 %v143
  %v1300 = vunpack.c.l.b16 %v144
  %v1301 = vunpack.c.l.b16 %v145
  %v1302 = vunpack.c.l.b16 %v146
  %v1303 = vunpack.c.l.b16 %v147
  %v1304 = vunpack.c.l.b16 %v148
  %v1305 = vunpack.c.l.b16 %v149
  %v1306 = vunpack.c.l.b16 %v150
  %v1307 = vunpack.c.l.b16 %v151
  %v1308 = vunpack.c.l.b16 %v152
  %v1309 = vunpack.c.l.b16 %v153
  %v1310 = vunpack.c.l.b16 %v154
  %v1311 = vunpack.c.l.b16 %v155
  %v1312 = vunpack.c.l.b16 %v156
  %v1313 = vunpack.c.l.b16 %v157
  %v1314 = vunpack.c.l.b16 %v158
  %v1315 = vunpack.c.l.b16 %v159
  %v1316 = vunpack.c.l.b16 %v160
  %v1317 = vunpack.c.l.b16 %v161
  %v1318 = vunpack.c.l.b16 %v162
  %v1319 = vunpack.c.l.b16 %v163
  %v1320 = vunpack.c.l.b16 %v164
  %v1321 = vunpack.c.l.b16 %v165
  %v1322 = vunpack.c.l.b16 %v166
  %v1323 = vunpack.c.l.b16 %v167
  %v1324 = vunpack.c.l.b16 %v168
  %v1325 = vunpack.c.l.b16 %v169
  %v1326 = vunpack.c.l.b16 %v170
  %v1327 = vunpack.c.l.b16 %v171
  %v1328 = vunpack.c.l.b16 %v172
  %v1329 = vunpack.c.l.b16 %v173
  %v1330 = vunpack.c.l.b16 %v174
  %v1331 = vunpack.c.l.b16 %v175
  %v1332 = vunpack.c.l.b16 %v176
  %v1333 = vunpack.c.l.b16 %v177
  %v1334 = vunpack.c.l.b16 %v178
  %v1335 = vunpack.c.l.b16 %v179
  %v1336 = vunpack.c.l.b16 %v180
  %v1337 = vunpack.c.l.b16 %v181
  %v1338 = vunpack.c.l.b16 %v182
  %v1339 = vunpack.c.l.b16 %v183
  %v1340 = vunpack.c.l.b16 %v184
  %v1341 = vunpack.c.l.b16 %v185
  %v1342 = vunpack.c.l.b16 %v186
  %v1343 = vunpack.c.l.b16 %v187
  %v1344 = vunpack.c.l.b16 %v188
  %v1345 = vunpack.c.l.b16 %v189
  %v1346 = vunpack.c.l.b16 %v190
  %v1347 = vunpack.c.l.b16 %v191
  %v1348 = vunpack.c.l.b16 %v192
  %v1349 = vunpack.c.l.b16 %v193
  %v1350 = vunpack.c.l.b16 %v194
  %v1351 = vunpack.c.l.b16 %v195
  %v1352 = vunpack.c.l.b16 %v196
  %v1353 = vunpack.c.l.b16 %v197
  %v1354 = vunpack.c.l.b16 %v198
  %v1355 = vunpack.c.l.b16 %v199
  %v1356 = vunpack.c.l.b16 %v200
  %v1357 = vunpack.c.l.b16 %v201
  %v1358 = vunpack.c.l.b16 %v202
  %v1359 = vunpack.c.l.b16 %v203
  %v1360 = vunpack.c.l.b16 %v204
  %v1361 = vunpack.c.l.b16 %v205
  %v1362 = vunpack.c.l.b16 %v206
  %v1363 = vunpack.c.l.b16 %v207
  %v1364 = vunpack.c.l.b16 %v208
  %v1365 = vunpack.c.l.b16 %v209
  %v1366 = vunpack.c.l.b16 %v210
  %v1367 = vunpack.c.l.b16 %v211
  %v1368 = vunpack.c.l.b16 %v212
  %v1369 = vunpack.c.l.b16 %v213
  %v1370 = vunpack.c.l.b16 %v214
  %v1371 = vunpack.c.l.b16 %v215
  %v1372 = vunpack.c.l.b16 %v216
  %v1373 = vunpack.c.l.b16 %v217
  %v1374 = vunpack.c.l.b16 %v218
  %v1375 = vunpack.c.l.b16 %v219
  %v1376 = vunpack.c.l.b16 %v220
  %v1377 = vunpack.c.l.b16 %v221
  %v1378 = vunpack.c.l.b16 %v222
  %v1379 = vunpack.c.l.b16 %v223
  %v1380 = vunpack.c.l.b16 %v224
  %v1381 = vunpack.c.l.b16 %v225
  %v1382 = vunpack.c.l.b16 %v226
  %v1383 = vunpack.c.l.b16 %v227
  %v1384 = vunpack.c.l.b16 %v228
  %v1385 = vunpack.c.l.b16 %v229
  %v1386 = vunpack.c.l.b16 %v230
  %v1387 = vunpack.c.l.b16 %v231
  %v1388 = vunpack.c.l.b16 %v232
  %v1389 = vunpack.c.l.b16 %v233
  %v1390 = vunpack.c.l.b16 %v234
  %v1391 = vunpack.c.l.b16 %v235
  %v1392 = vunpack.c.l.b16 %v236
  %v1393 = vunpack.c.l.b16 %v237
  %v1394 = vunpack.c.l.b16 %v238
  %v1395 = vunpack.c.l.b16 %v239
  %v1396 = vunpack.c.l.b16 %v240
  %v1397 = vunpack.c.l.b16 %v241
  %v1398 = vunpack.c.l.b16 %v242
  %v1399 = vunpack.c.l.b16 %v243
  %v1400 = vunpack.c.l.b16 %v244
  %v1401 = vunpack.c.l.b16 %v245
  %v1402 = vunpack.c.l.b16 %v246
  %v1403 = vunpack.c.l.b16 %v247
  %v1404 = vunpack.c.l.b16 %v248
  %v1405 = vunpack.c.l.b16 %v249
  %v1406 = vunpack.c.l.b16 %v250
  %v1407 = vunpack.c.l.b16 %v251
  %v1408 = vunpack.c.l.b16 %v252
  %v1409 = vunpack.c.l.b16 %v253
  %v1410 = vunpack.c.l.b16 %v254
  %v1411 = vunpack.c.l.b16 %v255
  %v1412 = vunpack.c.l.b16 %v256
  %v1413 = vunpack.c.l.b16 %v257
  %v1414 = vunpack.c.l.b16 %v258
  %v1415 = vunpack.c.l.b16 %v259
  %v1416 = vunpack.c.l.b16 %v260
  %v1417 = vunpack.c.l.b16 %v261
  %v1418 = vunpack.c.l.b16 %v262
  %v1419 = vunpack.c.l.b16 %v263
  %v1420 = vunpack.c.l.b16 %v264
  %v1421 = vunpack.c.l.b16 %v265
  %v1422 = vunpack.c.l.b16 %v266
  %v1423 = vunpack.c.l.b16 %v267
  %v1424 = vunpack.c.l.b16 %v268
  %v1425 = vunpack.c.l.b16 %v269
  %v1426 = vunpack.c.l.b16 %v270
  %v1427 = vunpack.c.l.b16 %v271
  %v1428 = vunpack.c.l.b16 %v272
  %v1429 = vunpack.c.l.b16 %v273
  %v1430 = vunpack.c.l.b16 %v274
  %v1431 = vunpack.c.l.b16 %v275
  %v1432 = vunpack.c.l.b16 %v276
  %v1433 = vunpack.c.l.b16 %v277
  %v1434 = vunpack.c.l.b16 %v278
  %v1435 = vunpack.c.l.b16 %v279
  %v1436 = vunpack.c.l.b16 %v280
  %v1437 = vunpack.c.l.b16 %v281
  %v1438 = vunpack.c.l.b16 %v282
  %v1439 = vunpack.c.l.b16 %v283
  %v1440 = vunpack.c.l.b16 %v284
  %v1441 = vunpack.c.l.b16 %v285
  %v1442 = vunpack.c.l.b16 %v286
  %v1443 = vunpack.c.l.b16 %v287
  %v1444 = vunpack.c.l.b16 %v288
  %v1445 = vunpack.c.l.b16 %v289
  %v1446 = vunpack.c.l.b16 %v290
  %v1447 = vunpack.c.l.b16 %v291
  %v1448 = vunpack.c.l.b16 %v292
  %v1449 = vunpack.c.l.b16 %v293
  %v1450 = vunpack.c.l.b16 %v294
  %v1451 = vunpack.c.l.b16 %v295
  %v1452 = vunpack.c.l.b16 %v296
  %v1453 = vunpack.c.l.b16 %v297
  %v1454 = vunpack.c.l.b16 %v298
  %v1455 = vunpack.c.l.b16 %v299
  %v1456 = vunpack.c.l.b16 %v300
  %v1457 = vunpack.c.l.b16 %v301
  %v1458 = vunpack.c.l.b16 %v302
  %v1459 = vunpack.c.l.b16 %v303
  %v1460 = vunpack.c.l.b16 %v304
  %v1461 = vunpack.c.l.b16 %v305
  %v1462 = vunpack.c.l.b16 %v306
  %v1463 = vunpack.c.l.b16 %v307
  %v1464 = vunpack.c.l.b16 %v308
  %v1465 = vunpack.c.l.b16 %v309
  %v1466 = vunpack.c.l.b16 %v310
  %v1467 = vunpack.c.l.b16 %v311
  %v1468 = vunpack.c.l.b16 %v312
  %v1469 = vunpack.c.l.b16 %v313
  %v1470 = vunpack.c.l.b16 %v314
  %v1471 = vunpack.c.l.b16 %v315
  %v1472 = vunpack.c.l.b16 %v316
  %v1473 = vunpack.c.l.b16 %v317
  %v1474 = vunpack.c.l.b16 %v318
  %v1475 = vunpack.c.l.b16 %v319
  %v1476 = vunpack.c.l.b16 %v320
  %v1477 = vunpack.c.l.b16 %v321
  %v1478 = vunpack.c.l.b16 %v322
  %v1479 = vunpack.c.l.b16 %v323
  %v1480 = vunpack.c.l.b16 %v324
  %v1481 = vunpack.c.l.b16 %v325
  %v1482 = vunpack.c.l.b16 %v326
  %v1483 = vunpack.c.l.b16 %v327
  %v1484 = vunpack.c.l.b16 %v328
  %v1485 = vunpack.c.l.b16 %v329
  %v1486 = vunpack.c.l.b16 %v330
  %v1487 = vunpack.c.l.b16 %v331
  %v1488 = vunpack.c.l.b16 %v332
  %v1489 = vunpack.c.l.b16 %v333
  %v1490 = vunpack.c.l.b16 %v334
  %v1491 = vunpack.c.l.b16 %v335
  %v1492 = vunpack.c.l.b16 %v336
  %v1493 = vunpack.c.l.b16 %v337
  %v1494 = vunpack.c.l.b16 %v338
  %v1495 = vunpack.c.l.b16 %v339
  %v1496 = vunpack.c.l.b16 %v340
  %v1497 = vunpack.c.l.b16 %v341
  %v1498 = vunpack.c.l.b16 %v342
  %v1499 = vunpack.c.l.b16 %v343
  %v1500 = vunpack.c.l.b16 %v344
  %v1501 = vunpack.c.l.b16 %v345
  %v1502 = vunpack.c.l.b16 %v346
  %v1503 = vunpack.c.l.b16 %v347
  %v1504 = vunpack.c.l.b16 %v348
  %v1505 = vunpack.c.l.b16 %v349
  %v1506 = vunpack.c.l.b16 %v350
  %v1507 = vunpack.c.l.b16 %v351
  %v1508 = vunpack.c.l.b16 %v352
  %v1509 = vunpack.c.l.b16 %v353
  %v1510 = vunpack.c.l.b16 %v354
  %v1511 = vunpack.c.l.b16 %v355
  %v1512 = vunpack.c.l.b16 %v356
  %v1513 = vunpack.c.l.b16 %v357
  %v1514 = vunpack.c.l.b16 %v358
  %v1515 = vunpack.c.l.b16 %v359
  %v1516 = vunpack.c.l.b16 %v360
  %v1517 = vunpack.c.l.b16 %v361
  %v1518 = vunpack.c.l.b16 %v362
  %v1519 = vunpack.c.l.b16 %v363
  %v1520 = vunpack.c.l.b16 %v364
  %v1521 = vunpack.c.l.b16 %v365
  %v1522 = vunpack.c.l.b16 %v366
  %v1523 = vunpack.c.l.b16 %v367
  %v1524 = vunpack.c.l.b16 %v368
  %v1525 = vunpack.c.l.b16 %v369
  %v1526 = vunpack.c.l.b16 %v370
  %v1527 = vunpack.c.l.b16 %v371
  %v1528 = vunpack.c.l.b16 %v372
  %v1529 = vunpack.c.l.b16 %v373
  %v1530 = vunpack.c.l.b16 %v374
  %v1531 = vunpack.c.l.b16 %v375
  %v1532 = vunpack.c.l.b16 %v376
  %v1533 = vunpack.c.l.b16 %v377
  %v1534 = vunpack.c.l.b16 %v378
  %v1535 = vunpack.c.l.b16 %v379
  %v1536 = vunpack.c.l.b16 %v380
  %v1537 = vunpack.c.l.b16 %v381
  %v1538 = vunpack.c.l.b16 %v382
  %v1539 = vunpack.c.l.b16 %v383
  %v1540 = vunpack.c.l.b16 %v384
  %v1541 = vunpack.c.l.b16 %v385
  %v1542 = vunpack.c.l.b16 %v386
  %v1543 = vunpack.c.l.b16 %v387
  %v1544 = vunpack.c.l.b16 %v388
  %v1545 = vunpack.c.l.b16 %v389
  %v1546 = vunpack.c.l.b16 %v390
  %v1547 = vunpack.c.l.b16 %v391
  %v1548 = vunpack.c.l.b16 %v392
  %v1549 = vunpack.c.l.b16 %v393
  %v1550 = vunpack.c.l.b16 %v394
  %v1551 = vunpack.c.l.b16 %v395
  %v1552 = vunpack.c.l.b16 %v396
  %v1553 = vunpack.c.l.b16 %v397
  %v1554 = vunpack.c.l.b16 %v398
  %v1555 = vunpack.c.l.b16 %v399
  %v1556 = vunpack.c.l.b16 %v400
  %v1557 = vunpack.c.l.b16 %v401
  %v1558 = vunpack.c.l.b16 %v402
  %v1559 = vunpack.c.l.b16 %v403
  %v1560 = vunpack.c.l.b16 %v404
  %v1561 = vunpack.c.l.b16 %v405
  %v1562 = vunpack.c.l.b16 %v406
  %v1563 = vunpack.c.l.b16 %v407
  %v1564 = vunpack.c.l.b16 %v408
  %v1565 = vunpack.c.l.b16 %v409
  %v1566 = vunpack.c.l.b16 %v410
  %v1567 = vunpack.c.l.b16 %v411
  %v1568 = vunpack.c.l.b16 %v412
  %v1569 = vunpack.c.l.b16 %v413
  %v1570 = vunpack.c.l.b16 %v414
  %v1571 = vunpack.c.l.b16 %v415
  %v1572 = vunpack.c.l.b16 %v416
  %v1573 = vunpack.c.l.b16 %v417
  %v1574 = vunpack.c.l.b16 %v418
  %v1575 = vunpack.c.l.b16 %v419
  %v1576 = vunpack.c.l.b16 %v420
  %v1577 = vunpack.c.l.b16 %v421
  %v1578 = vunpack.c.l.b16 %v422
  %v1579 = vunpack.c.l.b16 %v423
  %v1580 = vunpack.c.l.b16 %v424
  %v1581 = vunpack.c.l.b16 %v425
  %v1582 = vunpack.c.l.b16 %v426
  %v1583 = vunpack.c.l.b16 %v427
  %v1584 = vunpack.c.l.b16 %v428
  %v1585 = vunpack.c.l.b16 %v429
  %v1586 = vunpack.c.l.b16 %v430
  %v1587 = vunpack.c.l.b16 %v431
  %v1588 = vunpack.c.l.b16 %v432
  %v1589 = vunpack.c.l.b16 %v433
  %v1590 = vunpack.c.l.b16 %v434
  %v1591 = vunpack.c.l.b16 %v435
  %v1592 = vunpack.c.l.b16 %v436
  %v1593 = vunpack.c.l.b16 %v437
  %v1594 = vunpack.c.l.b16 %v438
  %v1595 = vunpack.c.l.b16 %v439
  %v1596 = vunpack.c.l.b16 %v440
  %v1597 = vunpack.c.l.b16 %v441
  %v1598 = vunpack.c.l.b16 %v442
  %v1599 = vunpack.c.l.b16 %v443
  %v1600 = vunpack.c.l.b16 %v444
  %v1601 = vunpack.c.l.b16 %v445
  %v1602 = vunpack.c.l.b16 %v446
  %v1603 = vunpack.c.l.b16 %v447
  %v1604 = vunpack.c.l.b16 %v448
  %v1605 = vunpack.c.l.b16 %v449
  %v1606 = vunpack.c.l.b16 %v450
  %v1607 = vunpack.c.l.b16 %v451
  %v1608 = vunpack.c.l.b16 %v452
  %v1609 = vunpack.c.l.b16 %v453
  %v1610 = vunpack.c.l.b16 %v454
  %v1611 = vunpack.c.l.b16 %v455
  %v1612 = vunpack.c.l.b16 %v456
  %v1613 = vunpack.c.l.b16 %v457
  %v1614 = vunpack.c.l.b16 %v458
  %v1615 = vunpack.c.l.b16 %v459
  %v1616 = vunpack.c.l.b16 %v460
  %v1617 = vunpack.c.l.b16 %v461
  %v1618 = vunpack.c.l.b16 %v462
  %v1619 = vunpack.c.l.b16 %v463
  %v1620 = vunpack.c.l.b16 %v464
  %v1621 = vunpack.c.l.b16 %v465
  %v1622 = vunpack.c.l.b16 %v466
  %v1623 = vunpack.c.l.b16 %v467
  %v1624 = vunpack.c.l.b16 %v468
  %v1625 = vunpack.c.l.b16 %v469
  %v1626 = vunpack.c.l.b16 %v470
  %v1627 = vunpack.c.l.b16 %v471
  %v1628 = vunpack.c.l.b16 %v472
  %v1629 = vunpack.c.l.b16 %v473
  %v1630 = vunpack.c.l.b16 %v474
  %v1631 = vunpack.c.l.b16 %v475
  %v1632 = vunpack.c.l.b16 %v476
  %v1633 = vunpack.c.l.b16 %v477
  %v1634 = vunpack.c.l.b16 %v478
  %v1635 = vunpack.c.l.b16 %v479
  %v1636 = vunpack.c.l.b16 %v480
  %v1637 = vunpack.c.l.b16 %v481
  %v1638 = vunpack.c.l.b16 %v482
  %v1639 = vunpack.c.l.b16 %v483
  %v1640 = vunpack.c.l.b16 %v484
  %v1641 = vunpack.c.l.b16 %v485
  %v1642 = vunpack.c.l.b16 %v486
  %v1643 = vunpack.c.l.b16 %v487
  %v1644 = vunpack.c.l.b16 %v488
  %v1645 = vunpack.c.l.b16 %v489
  %v1646 = vunpack.c.l.b16 %v490
  %v1647 = vunpack.c.l.b16 %v491
  %v1648 = vunpack.c.l.b16 %v492
  %v1649 = vunpack.c.l.b16 %v493
  %v1650 = vunpack.c.l.b16 %v494
  %v1651 = vunpack.c.l.b16 %v495
  %v1652 = vunpack.c.l.b16 %v496
  %v1653 = vunpack.c.l.b16 %v497
  %v1654 = vunpack.c.l.b16 %v498
  %v1655 = vunpack.c.l.b16 %v499
  %v1656 = vunpack.c.l.b16 %v500
  %v1657 = vunpack.c.l.b16 %v501
  %v1658 = vunpack.c.l.b16 %v502
  %v1659 = vunpack.c.l.b16 %v503
  %v1660 = vunpack.c.l.b16 %v504
  %v1661 = vunpack.c.l.b16 %v505
  %v1662 = vunpack.c.l.b16 %v506
  %v1663 = vunpack.c.l.b16 %v507
  %v1664 = vunpack.c.l.b16 %v508
  %v1665 = vunpack.c.l.b16 %v509
  %v1666 = vunpack.c.l.b16 %v510
  %v1667 = vunpack.c.l.b16 %v511
  %v1668 = vunpack.c.l.b16 %v512
  %v1669 = vunpack.c.l.b16 %v513
  %v1670 = vunpack.c.l.b16 %v514
  %v1671 = vunpack.c.l.b16 %v515
  %v1672 = vunpack.c.l.b16 %v516
  %v1673 = vunpack.c.l.b16 %v517
  %v1674 = vunpack.c.l.b16 %v518
  %v1675 = vunpack.c.l.b16 %v519
  %v1676 = vunpack.c.l.b16 %v520
  %v1677 = vunpack.c.l.b16 %v521
  %v1678 = vunpack.c.l.b16 %v522
  %v1679 = vunpack.c.l.b16 %v523
  %v1680 = vunpack.c.l.b16 %v524
  %v1681 = vunpack.c.l.b16 %v525
  %v1682 = vunpack.c.l.b16 %v526
  %v1683 = vunpack.c.l.b16 %v527
  %v1684 = vunpack.c.l.b16 %v528
  %v1685 = vunpack.c.l.b16 %v529
  %v1686 = vunpack.c.l.b16 %v530
  %v1687 = vunpack.c.l.b16 %v531
  %v1688 = vunpack.c.l.b16 %v532
  %v1689 = vunpack.c.l.b16 %v533
  %v1690 = vunpack.c.l.b16 %v534
  %v1691 = vunpack.c.l.b16 %v535
  %v1692 = vunpack.c.l.b16 %v536
  %v1693 = vunpack.c.l.b16 %v537
  %v1694 = vunpack.c.l.b16 %v538
  %v1695 = vunpack.c.l.b16 %v539
  %v1696 = vunpack.c.l.b16 %v540
  %v1697 = vunpack.c.l.b16 %v541
  %v1698 = vunpack.c.l.b16 %v542
  %v1699 = vunpack.c.l.b16 %v543
  %v1700 = vunpack.c.l.b16 %v544
  %v1701 = vunpack.c.l.b16 %v545
  %v1702 = vunpack.c.l.b16 %v546
  %v1703 = vunpack.c.l.b16 %v547
  %v1704 = vunpack.c.l.b16 %v548
  %v1705 = vunpack.c.l.b16 %v549
  %v1706 = vunpack.c.l.b16 %v550
  %v1707 = vunpack.c.l.b16 %v551
  %v1708 = vunpack.c.l.b16 %v552
  %v1709 = vunpack.c.l.b16 %v553
  %v1710 = vunpack.c.l.b16 %v554
  %v1711 = vunpack.c.l.b16 %v555
  %v1712 = vunpack.c.l.b16 %v556
  %v1713 = vunpack.c.l.b16 %v557
  %v1714 = vunpack.c.l.b16 %v558
  %v1715 = vunpack.c.l.b16 %v559
  %v1716 = vunpack.c.l.b16 %v560
  %v1717 = vunpack.c.l.b16 %v561
  %v1718 = vunpack.c.l.b16 %v562
  %v1719 = vunpack.c.l.b16 %v563
  %v1720 = vunpack.c.l.b16 %v564
  %v1721 = vunpack.c.l.b16 %v565
  %v1722 = vunpack.c.l.b16 %v566
  %v1723 = vunpack.c.l.b16 %v567
  %v1724 = vunpack.c.l.b16 %v568
  %v1725 = vunpack.c.l.b16 %v569
  %v1726 = vunpack.c.l.b16 %v570
  %v1727 = vunpack.c.l.b16 %v571
  %v1728 = vunpack.c.l.b16 %v572
  %v1729 = vunpack.c.l.b16 %v573
  %v1730 = vunpack.c.l.b16 %v574
  %v1731 = vunpack.c.l.b16 %v575
  %v1732 = vunpack.c.l.b16 %v576
  %v1733 = vunpack.c.l.b16 %v577
  %v1734 = vunpack.c.l.b16 %v578
  %v1735 = vunpack.c.l.b16 %v579
  %v1736 = vunpack.c.l.b16 %v580
  %v1737 = vunpack.c.l.b16 %v581
  %v1738 = vunpack.c.l.b16 %v582
  %v1739 = vunpack.c.l.b16 %v583
  %v1740 = vunpack.c.l.b16 %v584
  %v1741 = vunpack.c.l.b16 %v585
  %v1742 = vunpack.c.l.b16 %v586
  %v1743 = vunpack.c.l.b16 %v587
  %v1744 = vunpack.c.l.b16 %v588
  %v1745 = vunpack.c.l.b16 %v589
  %v1746 = vunpack.c.l.b16 %v590
  %v1747 = vunpack.c.l.b16 %v591
  %v1748 = vunpack.c.l.b16 %v592
  %v1749 = vunpack.c.l.b16 %v593
  %v1750 = vunpack.c.l.b16 %v594
  %v1751 = vunpack.c.l.b16 %v595
  %v1752 = vunpack.c.l.b16 %v596
  %v1753 = vunpack.c.l.b16 %v597
  %v1754 = vunpack.c.l.b16 %v598
  %v1755 = vunpack.c.l.b16 %v599
  %v1756 = vunpack.c.l.b16 %v600
  %v1757 = vunpack.c.l.b16 %v601
  %v1758 = vunpack.c.l.b16 %v602
  %v1759 = vunpack.c.l.b16 %v603
  %v1760 = vunpack.c.l.b16 %v604
  %v1761 = vunpack.c.l.b16 %v605
  %v1762 = vunpack.c.l.b16 %v606
  %v1763 = vunpack.c.l.b16 %v607
  %v1764 = vunpack.c.l.b16 %v608
  %v1765 = vpack.c.b16 %v1190, %v1189
  %v1766 = vpack.c.b16 %v1192, %v1191
  %v1767 = vpack.c.b16 %v1194, %v1193
  %v1768 = vpack.c.b16 %v1196, %v1195
  %v1769 = vpack.c.b16 %v1198, %v1197
  %v1770 = vpack.c.b16 %v1200, %v1199
  %v1771 = vpack.c.b16 %v1202, %v1201
  %v1772 = vpack.c.b16 %v1204, %v1203
  %v1773 = vpack.c.b16 %v1206, %v1205
  %v1774 = vpack.c.b16 %v1208, %v1207
  %v1775 = vpack.c.b16 %v1210, %v1209
  %v1776 = vpack.c.b16 %v1212, %v1211
  %v1777 = vpack.c.b16 %v1214, %v1213
  %v1778 = vpack.c.b16 %v1216, %v1215
  %v1779 = vpack.c.b16 %v1218, %v1217
  %v1780 = vpack.c.b16 %v1220, %v1219
  %v1781 = vpack.c.b16 %v1222, %v1221
  %v1782 = vpack.c.b16 %v1224, %v1223
  %v1783 = vpack.c.b16 %v1226, %v1225
  %v1784 = vpack.c.b16 %v1228, %v1227
  %v1785 = vpack.c.b16 %v1230, %v1229
  %v1786 = vpack.c.b16 %v1232, %v1231
  %v1787 = vpack.c.b16 %v1234, %v1233
  %v1788 = vpack.c.b16 %v1236, %v1235
  %v1789 = vpack.c.b16 %v1238, %v1237
  %v1790 = vpack.c.b16 %v1240, %v1239
  %v1791 = vpack.c.b16 %v1242, %v1241
  %v1792 = vpack.c.b16 %v1244, %v1243
  %v1793 = vpack.c.b16 %v1246, %v1245
  %v1794 = vpack.c.b16 %v1248, %v1247
  %v1795 = vpack.c.b16 %v1250, %v1249
  %v1796 = vpack.c.b16 %v1252, %v1251
  %v1797 = vpack.c.b16 %v1254, %v1253
  %v1798 = vpack.c.b16 %v1256, %v1255
  %v1799 = vpack.c.b16 %v1258, %v1257
  %v1800 = vpack.c.b16 %v1260, %v1259
  %v1801 = vpack.c.b16 %v1262, %v1261
  %v1802 = vpack.c.b16 %v1264, %v1263
  %v1803 = vpack.c.b16 %v1266, %v1265
  %v1804 = vpack.c.b16 %v1268, %v1267
  %v1805 = vpack.c.b16 %v1270, %v1269
  %v1806 = vpack.c.b16 %v1272, %v1271
  %v1807 = vpack.c.b16 %v1274, %v1273
  %v1808 = vpack.c.b16 %v1276, %v1275
  %v1809 = vpack.c.b16 %v1278, %v1277
  %v1810 = vpack.c.b16 %v1280, %v1279
  %v1811 = vpack.c.b16 %v1282, %v1281
  %v1812 = vpack.c.b16 %v1284, %v1283
  %v1813 = vpack.c.b16 %v1286, %v1285
  %v1814 = vpack.c.b16 %v1288, %v1287
  %v1815 = vpack.c.b16 %v1290, %v1289
  %v1816 = vpack.c.b16 %v1292, %v1291
  %v1817 = vpack.c.b16 %v1294, %v1293
  %v1818 = vpack.c.b16 %v1296, %v1295
  %v1819 = vpack.c.b16 %v1298, %v1297
  %v1820 = vpack.c.b16 %v1300, %v1299
  %v1821 = vpack.c.b16 %v1302, %v1301
  %v1822 = vpack.c.b16 %v1304, %v1303
  %v1823 = vpack.c.b16 %v1306, %v1305
  %v1824 = vpack.c.b16 %v1308, %v1307
  %v1825 = vpack.c.b16 %v1310, %v1309
  %v1826 = vpack.c.b16 %v1312, %v1311
  %v1827 = vpack.c.b16 %v1314, %v1313
  %v1828 = vpack.c.b16 %v1316, %v1315
  %v1829 = vpack.c.b16 %v1318, %v1317
  %v1830 = vpack.c.b16 %v1320, %v1319
  %v1831 = vpack.c.b16 %v1322, %v1321
  %v1832 = vpack.c.b16 %v1324, %v1323
  %v1833 = vpack.c.b16 %v1326, %v1325
  %v1834 = vpack.c.b16 %v1328, %v1327
  %v1835 = vpack.c.b16 %v1330, %v1329
  %v1836 = vpack.c.b16 %v1332, %v1331
  %v1837 = vpack.c.b16 %v1334, %v1333
  %v1838 = vpack.c.b16 %v1336, %v1335
  %v1839 = vpack.c.b16 %v1338, %v1337
  %v1840 = vpack.c.b16 %v1340, %v1339
  %v1841 = vpack.c.b16 %v1342, %v1341
  %v1842 = vpack.c.b16 %v1344, %v1343
  %v1843 = vpack.c.b16 %v1346, %v1345
  %v1844 = vpack.c.b16 %v1348, %v1347
  %v1845 = vpack.c.b16 %v1350, %v1349
  %v1846 = vpack.c.b16 %v1352, %v1351
  %v1847 = vpack.c.b16 %v1354, %v1353
  %v1848 = vpack.c.b16 %v1356, %v1355
  %v1849 = vpack.c.b16 %v1358, %v1357
  %v1850 = vpack.c.b16 %v1360, %v1359
  %v1851 = vpack.c.b16 %v1362, %v1361
  %v1852 = vpack.c.b16 %v1364, %v1363
  %v1853 = vpack.c.b16 %v1366, %v1365
  %v1854 = vpack.c.b16 %v1368, %v1367
  %v1855 = vpack.c.b16 %v1370, %v1369
  %v1856 = vpack.c.b16 %v1372, %v1371
  %v1857 = vpack.c.b16 %v1374, %v1373
  %v1858 = vpack.c.b16 %v1376, %v1375
  %v1859 = vpack.c.b16 %v1378, %v1377
  %v1860 = vpack.c.b16 %v1380, %v1379
  %v1861 = vpack.c.b16 %v1382, %v1381
  %v1862 = vpack.c.b16 %v1384, %v1383
  %v1863 = vpack.c.b16 %v1386, %v1385
  %v1864 = vpack.c.b16 %v1388, %v1387
  %v1865 = vpack.c.b16 %v1390, %v1389
  %v1866 = vpack.c.b16 %v1392, %v1391
  %v1867 = vpack.c.b16 %v1394, %v1393
  %v1868 = vpack.c.b16 %v1396, %v1395
  %v1869 = vpack.c.b16 %v1398, %v1397
  %v1870 = vpack.c.b16 %v1400, %v1399
  %v1871 = vpack.c.b16 %v1402, %v1401
  %v1872 = vpack.c.b16 %v1404, %v1403
  %v1873 = vpack.c.b16 %v1406, %v1405
  %v1874 = vpack.c.b16 %v1408, %v1407
  %v1875 = vpack.c.b16 %v1410, %v1409
  %v1876 = vpack.c.b16 %v1412, %v1411
  %v1877 = vpack.c.b16 %v1414, %v1413
  %v1878 = vpack.c.b16 %v1416, %v1415
  %v1879 = vpack.c.b16 %v1418, %v1417
  %v1880 = vpack.c.b16 %v1420, %v1419
  %v1881 = vpack.c.b16 %v1422, %v1421
  %v1882 = vpack.c.b16 %v1424, %v1423
  %v1883 = vpack.c.b16 %v1426, %v1425
  %v1884 = vpack.c.b16 %v1428, %v1427
  %v1885 = vpack.c.b16 %v1430, %v1429
  %v1886 = vpack.c.b16 %v1432, %v1431
  %v1887 = vpack.c.b16 %v1434, %v1433
  %v1888 = vpack.c.b16 %v1436, %v1435
  %v1889 = vpack.c.b16 %v1438, %v1437
  %v1890 = vpack.c.b16 %v1440, %v1439
  %v1891 = vpack.c.b16 %v1442, %v1441
  %v1892 = vpack.c.b16 %v1444, %v1443
  %v1893 = vpack.c.b16 %v1446, %v1445
  %v1894 = vpack.c.b16 %v1448, %v1447
  %v1895 = vpack.c.b16 %v1450, %v1449
  %v1896 = vpack.c.b16 %v1452, %v1451
  %v1897 = vpack.c.b16 %v1454, %v1453
  %v1898 = vpack.c.b16 %v1456, %v1455
  %v1899 = vpack.c.b16 %v1458, %v1457
  %v1900 = vpack.c.b16 %v1460, %v1459
  %v1901 = vpack.c.b16 %v1462, %v1461
  %v1902 = vpack.c.b16 %v1464, %v1463
  %v1903 = vpack.c.b16 %v1466, %v1465
  %v1904 = vpack.c.b16 %v1468, %v1467
  %v1905 = vpack.c.b16 %v1470, %v1469
  %v1906 = vpack.c.b16 %v1472, %v1471
  %v1907 = vpack.c.b16 %v1474, %v1473
  %v1908 = vpack.c.b16 %v1476, %v1475
  %v1909 = vpack.c.b16 %v1478, %v1477
  %v1910 = vpack.c.b16 %v1480, %v1479
  %v1911 = vpack.c.b16 %v1482, %v1481
  %v1912 = vpack.c.b16 %v1484, %v1483
  %v1913 = vpack.c.b16 %v1486, %v1485
  %v1914 = vpack.c.b16 %v1488, %v1487
  %v1915 = vpack.c.b16 %v1490, %v1489
  %v1916 = vpack.c.b16 %v1492, %v1491
  %v1917 = vpack.c.b16 %v1494, %v1493
  %v1918 = vpack.c.b16 %v1496, %v1495
  %v1919 = vpack.c.b16 %v1498, %v1497
  %v1920 = vpack.c.b16 %v1500, %v1499
  %v1921 = vpack.c.b16 %v1502, %v1501
  %v1922 = vpack.c.b16 %v1504, %v1503
  %v1923 = vpack.c.b16 %v1506, %v1505
  %v1924 = vpack.c.b16 %v1508, %v1507
  %v1925 = vpack.c.b16 %v1510, %v1509
  %v1926 = vpack.c.b16 %v1512, %v1511
  %v1927 = vpack.c.b16 %v1514, %v1513
  %v1928 = vpack.c.b16 %v1516, %v1515
  %v1929 = vpack.c.b16 %v1518, %v1517
  %v1930 = vpack.c.b16 %v1520, %v1519
  %v1931 = vpack.c.b16 %v1522, %v1521
  %v1932 = vpack.c.b16 %v1524, %v1523
  %v1933 = vpack.c.b16 %v1526, %v1525
  %v1934 = vpack.c.b16 %v1528, %v1527
  %v1935 = vpack.c.b16 %v1530, %v1529
  %v1936 = vpack.c.b16 %v1532, %v1531
  %v1937 = vpack.c.b16 %v1534, %v1533
  %v1938 = vpack.c.b16 %v1536, %v1535
  %v1939 = vpack.c.b16 %v1538, %v1537
  %v1940 = vpack.c.b16 %v1540, %v1539
  %v1941 = vpack.c.b16 %v1542, %v1541
  %v1942 = vpack.c.b16 %v1544, %v1543
  %v1943 = vpack.c.b16 %v1546, %v1545
  %v1944 = vpack.c.b16 %v1548, %v1547
  %v1945 = vpack.c.b16 %v1550, %v1549
  %v1946 = vpack.c.b16 %v1552, %v1551
  %v1947 = vpack.c.b16 %v1554, %v1553
  %v1948 = vpack.c.b16 %v1556, %v1555
  %v1949 = vpack.c.b16 %v1558, %v1557
  %v1950 = vpack.c.b16 %v1560, %v1559
  %v1951 = vpack.c.b16 %v1562, %v1561
  %v1952 = vpack.c.b16 %v1564, %v1563
  %v1953 = vpack.c.b16 %v1566, %v1565
  %v1954 = vpack.c.b16 %v1568, %v1567
  %v1955 = vpack.c.b16 %v1570, %v1569
  %v1956 = vpack.c.b16 %v1572, %v1571
  %v1957 = vpack.c.b16 %v1574, %v1573
  %v1958 = vpack.c.b16 %v1576, %v1575
  %v1959 = vpack.c.b16 %v1578, %v1577
  %v1960 = vpack.c.b16 %v1580, %v1579
  %v1961 = vpack.c.b16 %v1582, %v1581
  %v1962 = vpack.c.b16 %v1584, %v1583
  %v1963 = vpack.c.b16 %v1586, %v1585
  %v1964 = vpack.c.b16 %v1588, %v1587
  %v1965 = vpack.c.b16 %v1590, %v1589
  %v1966 = vpack.c.b16 %v1592, %v1591
  %v1967 = vpack.c.b16 %v1594, %v1593
  %v1968 = vpack.c.b16 %v1596, %v1595
  %v1969 = vpack.c.b16 %v1598, %v1597
  %v1970 = vpack.c.b16 %v1600, %v1599
  %v1971 = vpack.c.b16 %v1602, %v1601
  %v1972 = vpack.c.b16 %v1604, %v1603
  %v1973 = vpack.c.b16 %v1606, %v1605
  %v1974 = vpack.c.b16 %v1608, %v1607
  %v1975 = vpack.c.b16 %v1610, %v1609
  %v1976 = vpack.c.b16 %v1612, %v1611
  %v1977 = vpack.c.b16 %v1614, %v1613
  %v1978 = vpack.c.b16 %v1616, %v1615
  %v1979 = vpack.c.b16 %v1618, %v1617
  %v1980 = vpack.c.b16 %v1620, %v1619
  %v1981 = vpack.c.b16 %v1622, %v1621
  %v1982 = vpack.c.b16 %v1624, %v1623
  %v1983 = vpack.c.b16 %v1626, %v1625
  %v1984 = vpack.c.b16 %v1628, %v1627
  %v1985 = vpack.c.b16 %v1630, %v1629
  %v1986 = vpack.c.b16 %v1632, %v1631
  %v1987 = vpack.c.b16 %v1634, %v1633
  %v1988 = vpack.c.b16 %v1636, %v1635
  %v1989 = vpack.c.b16 %v1638, %v1637
  %v1990 = vpack.c.b16 %v1640, %v1639
  %v1991 = vpack.c.b16 %v1642, %v1641
  %v1992 = vpack.c.b16 %v1644, %v1643
  %v1993 = vpack.c.b16 %v1646, %v1645
  %v1994 = vpack.c.b16 %v1648, %v1647
  %v1995 = vpack.c.b16 %v1650, %v1649
  %v1996 = vpack.c.b16 %v1652, %v1651
  %v1997 = vpack.c.b16 %v1654, %v1653
  %v1998 = vpack.c.b16 %v1656, %v1655
  %v1999 = vpack.c.b16 %v1658, %v1657
  %v2000 = vpack.c.b16 %v1660, %v1659
  %v2001 = vpack.c.b16 %v1662, %v1661
  %v2002 = vpack.c.b16 %v1664, %v1663
  %v2003 = vpack.c.b16 %v1666, %v1665
  %v2004 = vpack.c.b16 %v1668, %v1667
  %v2005 = vpack.c.b16 %v1670, %v1669
  %v2006 = vpack.c.b16 %v1672, %v1671
  %v2007 = vpack.c.b16 %v1674, %v1673
  %v2008 = vpack.c.b16 %v1676, %v1675
  %v2009 = vpack.c.b16 %v1678, %v1677
  %v2010 = vpack.c.b16 %v1680, %v1679
  %v2011 = vpack.c.b16 %v1682, %v1681
  %v2012 = vpack.c.b16 %v1684, %v1683
  %v2013 = vpack.c.b16 %v1686, %v1685
  %v2014 = vpack.c.b16 %v1688, %v1687
  %v2015 = vpack.c.b16 %v1690, %v1689
  %v2016 = vpack.c.b16 %v1692, %v1691
  %v2017 = vpack.c.b16 %v1694, %v1693
  %v2018 = vpack.c.b16 %v1696, %v1695
  %v2019 = vpack.c.b16 %v1698, %v1697
  %v2020 = vpack.c.b16 %v1700, %v1699
  %v2021 = vpack.c.b16 %v1702, %v1701
  %v2022 = vpack.c.b16 %v1704, %v1703
  %v2023 = vpack.c.b16 %v1706, %v1705
  %v2024 = vpack.c.b16 %v1708, %v1707
  %v2025 = vpack.c.b16 %v1710, %v1709
  %v2026 = vpack.c.b16 %v1712, %v1711
  %v2027 = vpack.c.b16 %v1714, %v1713
  %v2028 = vpack.c.b16 %v1716, %v1715
  %v2029 = vpack.c.b16 %v1718, %v1717
  %v2030 = vpack.c.b16 %v1720, %v1719
  %v2031 = vpack.c.b16 %v1722, %v1721
  %v2032 = vpack.c.b16 %v1724, %v1723
  %v2033 = vpack.c.b16 %v1726, %v1725
  %v2034 = vpack.c.b16 %v1728, %v1727
  %v2035 = vpack.c.b16 %v1730, %v1729
  %v2036 = vpack.c.b16 %v1732, %v1731
  %v2037 = vpack.c.b16 %v1734, %v1733
  %v2038 = vpack.c.b16 %v1736, %v1735
  %v2039 = vpack.c.b16 %v1738, %v1737
  %v2040 = vpack.c.b16 %v1740, %v1739
  %v2041 = vpack.c.b16 %v1742, %v1741
  %v2042 = vpack.c.b16 %v1744, %v1743
  %v2043 = vpack.c.b16 %v1746, %v1745
  %v2044 = vpack.c.b16 %v1748, %v1747
  %v2045 = vpack.c.b16 %v1750, %v1749
  %v2046 = vpack.c.b16 %v1752, %v1751
  %v2047 = vpack.c.b16 %v1754, %v1753
  %v2048 = vpack.c.b16 %v1756, %v1755
  %v2049 = vpack.c.b16 %v1758, %v1757
  %v2050 = vpack.c.b16 %v1760, %v1759
  %v2051 = vpack.c.b16 %v1762, %v1761
  %v2052 = vpack.c.b16 %v1764, %v1763
  %v2057 = vunpack.c.l.b16 %v609
  %v2058 = vunpack.c.l.b16 %v610
  %v2059 = vunpack.c.l.b16 %v611
  %v2060 = vunpack.c.l.b16 %v612
  %v2061 = vpack.c.b16 %v2058, %v2057
  %v2062 = vpack.c.b16 %v2060, %v2059
  %vm2064 = vcmask 203776
  %v2066 = vsel %vm2064, %v1765, 0
  %v2069 = vsel %vm2064, %v1766, 0
  %v2072 = vsel %vm2064, %v1767, 0
  %v2075 = vsel %vm2064, %v1768, 0
  %v2078 = vsel %vm2064, %v1769, 0
  %v2081 = vsel %vm2064, %v1770, 0
  %v2084 = vsel %vm2064, %v1771, 0
  %v2087 = vsel %vm2064, %v1772, 0
  %v2090 = vsel %vm2064, %v1773, 0
  %v2093 = vsel %vm2064, %v1774, 0
  %v2096 = vsel %vm2064, %v1775, 0
  %v2099 = vsel %vm2064, %v1776, 0
  %v2102 = vsel %vm2064, %v1777, 0
  %v2105 = vsel %vm2064, %v1778, 0
  %v2108 = vsel %vm2064, %v1779, 0
  %v2111 = vsel %vm2064, %v1780, 0
  %v2114 = vsel %vm2064, %v1781, 0
  %v2117 = vsel %vm2064, %v1782, 0
  %v2120 = vsel %vm2064, %v1783, 0
  %v2123 = vsel %vm2064, %v1784, 0
  %v2126 = vsel %vm2064, %v1785, 0
  %v2129 = vsel %vm2064, %v1786, 0
  %v2132 = vsel %vm2064, %v1787, 0
  %v2135 = vsel %vm2064, %v1788, 0
  %v2138 = vsel %vm2064, %v1789, 0
  %v2141 = vsel %vm2064, %v1790, 0
  %v2144 = vsel %vm2064, %v1791, 0
  %v2147 = vsel %vm2064, %v1792, 0
  %v2150 = vsel %vm2064, %v1793, 0
  %v2153 = vsel %vm2064, %v1794, 0
  %v2156 = vsel %vm2064, %v1795, 0
  %v2159 = vsel %vm2064, %v1796, 0
  %v2162 = vsel %vm2064, %v1797, 0
  %v2165 = vsel %vm2064, %v1798, 0
  %v2168 = vsel %vm2064, %v1799, 0
  %v2171 = vsel %vm2064, %v1800, 0
  %v2174 = vsel %vm2064, %v1801, 0
  %v2177 = vsel %vm2064, %v1802, 0
  %v2180 = vsel %vm2064, %v1803, 0
  %v2183 = vsel %vm2064, %v1804, 0
  %v2186 = vsel %vm2064, %v1805, 0
  %v2189 = vsel %vm2064, %v1806, 0
  %v2192 = vsel %vm2064, %v1807, 0
  %v2195 = vsel %vm2064, %v1808, 0
  %v2198 = vsel %vm2064, %v1809, 0
  %v2201 = vsel %vm2064, %v1810, 0
  %v2204 = vsel %vm2064, %v1811, 0
  %v2207 = vsel %vm2064, %v1812, 0
  %v2210 = vsel %vm2064, %v1813, 0
  %v2213 = vsel %vm2064, %v1814, 0
  %v2216 = vsel %vm2064, %v1815, 0
  %v2219 = vsel %vm2064, %v1816, 0
  %v2222 = vsel %vm2064, %v1817, 0
  %v2225 = vsel %vm2064, %v1818, 0
  %v2228 = vsel %vm2064, %v1819, 0
  %v2231 = vsel %vm2064, %v1820, 0
  %v2234 = vsel %vm2064, %v1821, 0
  %v2237 = vsel %vm2064, %v1822, 0
  %v2240 = vsel %vm2064, %v1823, 0
  %v2243 = vsel %vm2064, %v1824, 0
  %v2246 = vsel %vm2064, %v1825, 0
  %v2249 = vsel %vm2064, %v1826, 0
  %v2252 = vsel %vm2064, %v1827, 0
  %v2255 = vsel %vm2064, %v1828, 0
  %v2258 = vsel %vm2064, %v1829, 0
  %v2261 = vsel %vm2064, %v1830, 0
  %v2264 = vsel %vm2064, %v1831, 0
  %v2267 = vsel %vm2064, %v1832, 0
  %v2270 = vsel %vm2064, %v1833, 0
  %v2273 = vsel %vm2064, %v1834, 0
  %v2276 = vsel %vm2064, %v1835, 0
  %v2279 = vsel %vm2064, %v1836, 0
  %v2282 = vsel %vm2064, %v1837, 0
  %v2285 = vsel %vm2064, %v1838, 0
  %v2288 = vsel %vm2064, %v1839, 0
  %v2291 = vsel %vm2064, %v1840, 0
  %v2294 = vsel %vm2064, %v1841, 0
  %v2297 = vsel %vm2064, %v1842, 0
  %v2300 = vsel %vm2064, %v1843, 0
  %v2303 = vsel %vm2064, %v1844, 0
  %v2306 = vsel %vm2064, %v1845, 0
  %v2309 = vsel %vm2064, %v1846, 0
  %v2312 = vsel %vm2064, %v1847, 0
  %v2315 = vsel %vm2064, %v1848, 0
  %v2318 = vsel %vm2064, %v1849, 0
  %v2321 = vsel %vm2064, %v1850, 0
  %v2324 = vsel %vm2064, %v1851, 0
  %v2327 = vsel %vm2064, %v1852, 0
  %v2330 = vsel %vm2064, %v1853, 0
  %v2333 = vsel %vm2064, %v1854, 0
  %v2336 = vsel %vm2064, %v1855, 0
  %v2339 = vsel %vm2064, %v1856, 0
  %v2342 = vsel %vm2064, %v1857, 0
  %v2345 = vsel %vm2064, %v1858, 0
  %v2348 = vsel %vm2064, %v1859, 0
  %v2351 = vsel %vm2064, %v1860, 0
  %v2354 = vsel %vm2064, %v1861, 0
  %v2357 = vsel %vm2064, %v1862, 0
  %v2360 = vsel %vm2064, %v1863, 0
  %v2363 = vsel %vm2064, %v1864, 0
  %v2366 = vsel %vm2064, %v1865, 0
  %v2369 = vsel %vm2064, %v1866, 0
  %v2372 = vsel %vm2064, %v1867, 0
  %v2375 = vsel %vm2064, %v1868, 0
  %v2378 = vsel %vm2064, %v1869, 0
  %v2381 = vsel %vm2064, %v1870, 0
  %v2384 = vsel %vm2064, %v1871, 0
  %v2387 = vsel %vm2064, %v1872, 0
  %v2390 = vsel %vm2064, %v1873, 0
  %v2393 = vsel %vm2064, %v1874, 0
  %v2396 = vsel %vm2064, %v1875, 0
  %v2399 = vsel %vm2064, %v1876, 0
  %v2402 = vsel %vm2064, %v1877, 0
  %v2405 = vsel %vm2064, %v1878, 0
  %v2408 = vsel %vm2064, %v1879, 0
  %v2411 = vsel %vm2064, %v1880, 0
  %v2414 = vsel %vm2064, %v1881, 0
  %v2417 = vsel %vm2064, %v1882, 0
  %v2420 = vsel %vm2064, %v1883, 0
  %v2423 = vsel %vm2064, %v1884, 0
  %v2426 = vsel %vm2064, %v1885, 0
  %v2429 = vsel %vm2064, %v1886, 0
  %v2432 = vsel %vm2064, %v1887, 0
  %v2435 = vsel %vm2064, %v1888, 0
  %v2438 = vsel %vm2064, %v1889, 0
  %v2441 = vsel %vm2064, %v1890, 0
  %v2444 = vsel %vm2064, %v1891, 0
  %v2447 = vsel %vm2064, %v1892, 0
  %v2450 = vsel %vm2064, %v1893, 0
  %v2453 = vsel %vm2064, %v1894, 0
  %v2456 = vsel %vm2064, %v1895, 0
  %v2459 = vsel %vm2064, %v1896, 0
  %v2462 = vsel %vm2064, %v1897, 0
  %v2465 = vsel %vm2064, %v1898, 0
  %v2468 = vsel %vm2064, %v1899, 0
  %v2471 = vsel %vm2064, %v1900, 0
  %v2474 = vsel %vm2064, %v1901, 0
  %v2477 = vsel %vm2064, %v1902, 0
  %v2480 = vsel %vm2064, %v1903, 0
  %v2483 = vsel %vm2064, %v1904, 0
  %v2486 = vsel %vm2064, %v1905, 0
  %v2489 = vsel %vm2064, %v1906, 0
  %v2492 = vsel %vm2064, %v1907, 0
  %v2495 = vsel %vm2064, %v1908, 0
  %v2498 = vsel %vm2064, %v1909, 0
  %v2501 = vsel %vm2064, %v1910, 0
  %v2504 = vsel %vm2064, %v1911, 0
  %v2507 = vsel %vm2064, %v1912, 0
  %v2510 = vsel %vm2064, %v1913, 0
  %v2513 = vsel %vm2064, %v1914, 0
  %v2516 = vsel %vm2064, %v1915, 0
  %v2519 = vsel %vm2064, %v1916, 0
  %v2522 = vsel %vm2064, %v1917, 0
  %v2525 = vsel %vm2064, %v1918, 0
  %v2528 = vsel %vm2064, %v1919, 0
  %v2531 = vsel %vm2064, %v1920, 0
  %v2534 = vsel %vm2064, %v1921, 0
  %v2537 = vsel %vm2064, %v1922, 0
  %v2540 = vsel %vm2064, %v1923, 0
  %v2543 = vsel %vm2064, %v1924, 0
  %v2546 = vsel %vm2064, %v1925, 0
  %v2549 = vsel %vm2064, %v1926, 0
  %v2552 = vsel %vm2064, %v1927, 0
  %v2555 = vsel %vm2064, %v1928, 0
  %v2558 = vsel %vm2064, %v1929, 0
  %v2561 = vsel %vm2064, %v1930, 0
  %v2564 = vsel %vm2064, %v1931, 0
  %v2567 = vsel %vm2064, %v1932, 0
  %v2570 = vsel %vm2064, %v1933, 0
  %v2573 = vsel %vm2064, %v1934, 0
  %v2576 = vsel %vm2064, %v1935, 0
  %v2579 = vsel %vm2064, %v1936, 0
  %v2582 = vsel %vm2064, %v1937, 0
  %v2585 = vsel %vm2064, %v1938, 0
  %v2588 = vsel %vm2064, %v1939, 0
  %v2591 = vsel %vm2064, %v1940, 0
  %v2594 = vsel %vm2064, %v1941, 0
  %v2597 = vsel %vm2064, %v1942, 0
  %v2600 = vsel %vm2064, %v1943, 0
  %v2603 = vsel %vm2064, %v1944, 0
  %v2606 = vsel %vm2064, %v1945, 0
  %v2609 = vsel %vm2064, %v1946, 0
  %v2612 = vsel %vm2064, %v1947, 0
  %v2615 = vsel %vm2064, %v1948, 0
  %v2618 = vsel %vm2064, %v1949, 0
  %v2621 = vsel %vm2064, %v1950, 0
  %v2624 = vsel %vm2064, %v1951, 0
  %v2627 = vsel %vm2064, %v1952, 0
  %v2630 = vsel %vm2064, %v1953, 0
  %v2633 = vsel %vm2064, %v1954, 0
  %v2636 = vsel %vm2064, %v1955, 0
  %v2639 = vsel %vm2064, %v1956, 0
  %v2642 = vsel %vm2064, %v1957, 0
  %v2645 = vsel %vm2064, %v1958, 0
  %v2648 = vsel %vm2064, %v1959, 0
  %v2651 = vsel %vm2064, %v1960, 0
  %v2654 = vsel %vm2064, %v1961, 0
  %v2657 = vsel %vm2064, %v1962, 0
  %v2660 = vsel %vm2064, %v1963, 0
  %v2663 = vsel %vm2064, %v1964, 0
  %v2666 = vsel %vm2064, %v1965, 0
  %v2669 = vsel %vm2064, %v1966, 0
  %v2672 = vsel %vm2064, %v1967, 0
  %v2675 = vsel %vm2064, %v1968, 0
  %v2678 = vsel %vm2064, %v1969, 0
  %v2681 = vsel %vm2064, %v1970, 0
  %v2684 = vsel %vm2064, %v1971, 0
  %v2687 = vsel %vm2064, %v1972, 0
  %v2690 = vsel %vm2064, %v1973, 0
  %v2693 = vsel %vm2064, %v1974, 0
  %v2696 = vsel %vm2064, %v1975, 0
  %v2699 = vsel %vm2064, %v1976, 0
  %v2702 = vsel %vm2064, %v1977, 0
  %v2705 = vsel %vm2064, %v1978, 0
  %v2708 = vsel %vm2064, %v1979, 0
  %v2711 = vsel %vm2064, %v1980, 0
  %v2714 = vsel %vm2064, %v1981, 0
  %v2717 = vsel %vm2064, %v1982, 0
  %v2720 = vsel %vm2064, %v1983, 0
  %v2723 = vsel %vm2064, %v1984, 0
  %v2726 = vsel %vm2064, %v1985, 0
  %v2729 = vsel %vm2064, %v1986, 0
  %v2732 = vsel %vm2064, %v1987, 0
  %v2735 = vsel %vm2064, %v1988, 0
  %v2738 = vsel %vm2064, %v1989, 0
  %v2741 = vsel %vm2064, %v1990, 0
  %v2744 = vsel %vm2064, %v1991, 0
  %v2747 = vsel %vm2064, %v1992, 0
  %v2750 = vsel %vm2064, %v1993, 0
  %v2753 = vsel %vm2064, %v1994, 0
  %v2756 = vsel %vm2064, %v1995, 0
  %v2759 = vsel %vm2064, %v1996, 0
  %v2762 = vsel %vm2064, %v1997, 0
  %v2765 = vsel %vm2064, %v1998, 0
  %v2768 = vsel %vm2064, %v1999, 0
  %v2771 = vsel %vm2064, %v2000, 0
  %v2774 = vsel %vm2064, %v2001, 0
  %v2777 = vsel %vm2064, %v2002, 0
  %v2780 = vsel %vm2064, %v2003, 0
  %v2783 = vsel %vm2064, %v2004, 0
  %v2786 = vsel %vm2064, %v2005, 0
  %v2789 = vsel %vm2064, %v2006, 0
  %v2792 = vsel %vm2064, %v2007, 0
  %v2795 = vsel %vm2064, %v2008, 0
  %v2798 = vsel %vm2064, %v2009, 0
  %v2801 = vsel %vm2064, %v2010, 0
  %v2804 = vsel %vm2064, %v2011, 0
  %v2807 = vsel %vm2064, %v2012, 0
  %v2810 = vsel %vm2064, %v2013, 0
  %v2813 = vsel %vm2064, %v2014, 0
  %v2816 = vsel %vm2064, %v2015, 0
  %v2819 = vsel %vm2064, %v2016, 0
  %v2822 = vsel %vm2064, %v2017, 0
  %v2825 = vsel %vm2064, %v2018, 0
  %v2828 = vsel %vm2064, %v2019, 0
  %v2831 = vsel %vm2064, %v2020, 0
  %v2834 = vsel %vm2064, %v2021, 0
  %v2837 = vsel %vm2064, %v2022, 0
  %v2840 = vsel %vm2064, %v2023, 0
  %v2843 = vsel %vm2064, %v2024, 0
  %v2846 = vsel %vm2064, %v2025, 0
  %v2849 = vsel %vm2064, %v2026, 0
  %v2852 = vsel %vm2064, %v2027, 0
  %v2855 = vsel %vm2064, %v2028, 0
  %v2858 = vsel %vm2064, %v2029, 0
  %v2861 = vsel %vm2064, %v2030, 0
  %v2864 = vsel %vm2064, %v2031, 0
  %v2867 = vsel %vm2064, %v2032, 0
  %v2870 = vsel %vm2064, %v2033, 0
  %v2873 = vsel %vm2064, %v2034, 0
  %v2876 = vsel %vm2064, %v2035, 0
  %v2879 = vsel %vm2064, %v2036, 0
  %v2882 = vsel %vm2064, %v2037, 0
  %v2885 = vsel %vm2064, %v2038, 0
  %v2888 = vsel %vm2064, %v2039, 0
  %v2891 = vsel %vm2064, %v2040, 0
  %v2894 = vsel %vm2064, %v2041, 0
  %v2897 = vsel %vm2064, %v2042, 0
  %v2900 = vsel %vm2064, %v2043, 0
  %v2903 = vsel %vm2064, %v2044, 0
  %v2906 = vsel %vm2064, %v2045, 0
  %v2909 = vsel %vm2064, %v2046, 0
  %v2912 = vsel %vm2064, %v2047, 0
  %v2915 = vsel %vm2064, %v2048, 0
  %v2918 = vsel %vm2064, %v2049, 0
  %v2921 = vsel %vm2064, %v2050, 0
  %v2924 = vsel %vm2064, %v2051, 0
  %v2927 = vsel %vm2064, %v2052, 0
  %vm2929 = vcmask 1043456
  %vm2930 = vcmask 1044480
  %v2931 = vsel %vm2929, 4294967295, 65535
  %v2932 = vsel %vm2930, %v2931, 0
  %v2934 = vand.u32 %v2062, %v2932
  %2936 = vmatprep.subr.bf16.mxu0 0
  %2937 = vmatpush1.bf16.msra.mxu0 %v2061
  %2938 = vmatprep.subr.bf16.mxu0 0
  %2939 = vmatpush1.bf16.msra.mxu0 %v2934
  %2940 = vmatprep.subr.bf16.mxu0 0
  %2941 = vmatpush1.bf16.msra.mxu0 0
  %2942 = vmatprep.subr.bf16.mxu0 0
  %2943 = vmatpush1.bf16.msra.mxu0 0
  %2944 = vmatprep.subr.bf16.mxu0 0
  %2945 = vmatpush1.bf16.msra.mxu0 0
  %2946 = vmatprep.subr.bf16.mxu0 0
  %2947 = vmatpush1.bf16.msra.mxu0 0
  %2948 = vmatprep.subr.bf16.mxu0 0
  %2949 = vmatpush1.bf16.msra.mxu0 0
  %2950 = vmatprep.subr.bf16.mxu0 0
  %2951 = vmatpush1.bf16.msra.mxu0 0
  %2952 = vmatprep.subr.bf16.mxu0 0
  %2953 = vmatpush1.bf16.msra.mxu0 0
  %2954 = vmatprep.subr.bf16.mxu0 0
  %2955 = vmatpush1.bf16.msra.mxu0 0
  %2956 = vmatprep.subr.bf16.mxu0 0
  %2957 = vmatpush1.bf16.msra.mxu0 0
  %2958 = vmatprep.subr.bf16.mxu0 0
  %2959 = vmatpush1.bf16.msra.mxu0 0
  %2960 = vmatprep.subr.bf16.mxu0 0
  %2961 = vmatpush1.bf16.msra.mxu0 0
  %2962 = vmatprep.subr.bf16.mxu0 0
  %2963 = vmatpush1.bf16.msra.mxu0 0
  %2964 = vmatprep.subr.bf16.mxu0 0
  %2965 = vmatpush1.bf16.msra.mxu0 0
  %2966 = vmatprep.subr.bf16.mxu0 0
  %2967 = vmatpush1.bf16.msra.mxu0 0
  %2968 = vmatprep.mubr.bf16.mxu0 0
  %2969 = vmatmul.mubr.bf16.gmra.mrb[0].mxu0 %v2066
  %v2970 = vpop.f32.mrb[0].mxu0
  %v2971 = vadd.f32 0.0, %v2970
  %v2972 = vpop.f32.mrb[0].mxu0
  %v2973 = vpop.f32.mrb[0].mxu0
  %v2974 = vadd.f32 0.0, %v2973
  %v2975 = vpop.f32.mrb[0].mxu0
  %2976 = vmatprep.mubr.bf16.mxu0 0
  %2977 = vmatmul.mubr.bf16.gmra.mrb[0].mxu0 %v2069
  %v2978 = vpop.f32.mrb[0].mxu0
  %v2979 = vadd.f32 0.0, %v2978
  %v2980 = vpop.f32.mrb[0].mxu0
  %v2981 = vpop.f32.mrb[0].mxu0
  %v2982 = vadd.f32 0.0, %v2981
  %v2983 = vpop.f32.mrb[0].mxu0
  %2984 = vmatprep.mubr.bf16.mxu0 0
  %2985 = vmatmul.mubr.bf16.gmra.mrb[0].mxu0 %v2072
  %v2986 = vpop.f32.mrb[0].mxu0
  %v2987 = vadd.f32 0.0, %v2986
  %v2988 = vpop.f32.mrb[0].mxu0
  %v2989 = vpop.f32.mrb[0].mxu0
  %v2990 = vadd.f32 0.0, %v2989
  %v2991 = vpop.f32.mrb[0].mxu0
  %2992 = vmatprep.mubr.bf16.mxu0 0
  %2993 = vmatmul.mubr.bf16.gmra.mrb[0].mxu0 %v2075
  %v2994 = vpop.f32.mrb[0].mxu0
  %v2995 = vadd.f32 0.0, %v2994
  %v2996 = vpop.f32.mrb[0].mxu0
  %v2997 = vpop.f32.mrb[0].mxu0
  %v2998 = vadd.f32 0.0, %v2997
  %v2999 = vpop.f32.mrb[0].mxu0
  %3000 = vmatprep.mubr.bf16.mxu0 0
  %3001 = vmatmul.mubr.bf16.gmra.mrb[0].mxu0 %v2078
  %v3002 = vpop.f32.mrb[0].mxu0
  %v3003 = vadd.f32 0.0, %v3002
  %v3004 = vpop.f32.mrb[0].mxu0
  %v3005 = vpop.f32.mrb[0].mxu0
  %v3006 = vadd.f32 0.0, %v3005
  %v3007 = vpop.f32.mrb[0].mxu0
  %3008 = vmatprep.mubr.bf16.mxu0 0
  %3009 = vmatmul.mubr.bf16.gmra.mrb[0].mxu0 %v2081
  %v3010 = vpop.f32.mrb[0].mxu0
  %v3011 = vadd.f32 0.0, %v3010
  %v3012 = vpop.f32.mrb[0].mxu0
  %v3013 = vpop.f32.mrb[0].mxu0
  %v3014 = vadd.f32 0.0, %v3013
  %v3015 = vpop.f32.mrb[0].mxu0
  %3016 = vmatprep.mubr.bf16.mxu0 0
  %3017 = vmatmul.mubr.bf16.gmra.mrb[0].mxu0 %v2084
  %v3018 = vpop.f32.mrb[0].mxu0
  %v3019 = vadd.f32 0.0, %v3018
  %v3020 = vpop.f32.mrb[0].mxu0
  %v3021 = vpop.f32.mrb[0].mxu0
  %v3022 = vadd.f32 0.0, %v3021
  %v3023 = vpop.f32.mrb[0].mxu0
  %3024 = vmatprep.mubr.bf16.mxu0 0
  %3025 = vmatmul.mubr.bf16.gmra.mrb[0].mxu0 %v2087
  %v3026 = vpop.f32.mrb[0].mxu0
  %v3027 = vadd.f32 0.0, %v3026
  %v3028 = vpop.f32.mrb[0].mxu0
  %v3029 = vpop.f32.mrb[0].mxu0
  %v3030 = vadd.f32 0.0, %v3029
  %v3031 = vpop.f32.mrb[0].mxu0
  %3032 = vmatprep.mubr.bf16.mxu0 0
  %3033 = vmatmul.mubr.bf16.gmra.mrb[0].mxu0 %v2090
  %v3034 = vpop.f32.mrb[0].mxu0
  %v3035 = vadd.f32 0.0, %v3034
  %v3036 = vpop.f32.mrb[0].mxu0
  %v3037 = vpop.f32.mrb[0].mxu0
  %v3038 = vadd.f32 0.0, %v3037
  %v3039 = vpop.f32.mrb[0].mxu0
  %3040 = vmatprep.mubr.bf16.mxu0 0
  %3041 = vmatmul.mubr.bf16.gmra.mrb[0].mxu0 %v2093
  %v3042 = vpop.f32.mrb[0].mxu0
  %v3043 = vadd.f32 0.0, %v3042
  %v3044 = vpop.f32.mrb[0].mxu0
  %v3045 = vpop.f32.mrb[0].mxu0
  %v3046 = vadd.f32 0.0, %v3045
  %v3047 = vpop.f32.mrb[0].mxu0
  %3048 = vmatprep.mubr.bf16.mxu0 0
  %3049 = vmatmul.mubr.bf16.gmra.mrb[0].mxu0 %v2096
  %v3050 = vpop.f32.mrb[0].mxu0
  %v3051 = vadd.f32 0.0, %v3050
  %v3052 = vpop.f32.mrb[0].mxu0
  %v3053 = vpop.f32.mrb[0].mxu0
  %v3054 = vadd.f32 0.0, %v3053
  %v3055 = vpop.f32.mrb[0].mxu0
  %3056 = vmatprep.mubr.bf16.mxu0 0
  %3057 = vmatmul.mubr.bf16.gmra.mrb[0].mxu0 %v2099
  %v3058 = vpop.f32.mrb[0].mxu0
  %v3059 = vadd.f32 0.0, %v3058
  %v3060 = vpop.f32.mrb[0].mxu0
  %v3061 = vpop.f32.mrb[0].mxu0
  %v3062 = vadd.f32 0.0, %v3061
  %v3063 = vpop.f32.mrb[0].mxu0
  %3064 = vmatprep.mubr.bf16.mxu0 0
  %3065 = vmatmul.mubr.bf16.gmra.mrb[0].mxu0 %v2102
  %v3066 = vpop.f32.mrb[0].mxu0
  %v3067 = vadd.f32 0.0, %v3066
  %v3068 = vpop.f32.mrb[0].mxu0
  %v3069 = vpop.f32.mrb[0].mxu0
  %v3070 = vadd.f32 0.0, %v3069
  %v3071 = vpop.f32.mrb[0].mxu0
  %3072 = vmatprep.mubr.bf16.mxu0 0
  %3073 = vmatmul.mubr.bf16.gmra.mrb[0].mxu0 %v2105
  %v3074 = vpop.f32.mrb[0].mxu0
  %v3075 = vadd.f32 0.0, %v3074
  %v3076 = vpop.f32.mrb[0].mxu0
  %v3077 = vpop.f32.mrb[0].mxu0
  %v3078 = vadd.f32 0.0, %v3077
  %v3079 = vpop.f32.mrb[0].mxu0
  %3080 = vmatprep.mubr.bf16.mxu0 0
  %3081 = vmatmul.mubr.bf16.gmra.mrb[0].mxu0 %v2108
  %v3082 = vpop.f32.mrb[0].mxu0
  %v3083 = vadd.f32 0.0, %v3082
  %v3084 = vpop.f32.mrb[0].mxu0
  %v3085 = vpop.f32.mrb[0].mxu0
  %v3086 = vadd.f32 0.0, %v3085
  %v3087 = vpop.f32.mrb[0].mxu0
  %3088 = vmatprep.mubr.bf16.mxu0 0
  %3089 = vmatmul.mubr.bf16.gmra.mrb[0].mxu0 %v2111
  %v3090 = vpop.f32.mrb[0].mxu0
  %v3091 = vadd.f32 0.0, %v3090
  %v3092 = vpop.f32.mrb[0].mxu0
  %v3093 = vpop.f32.mrb[0].mxu0
  %v3094 = vadd.f32 0.0, %v3093
  %v3095 = vpop.f32.mrb[0].mxu0
  %3096 = vmatprep.mubr.bf16.mxu0 0
  %3097 = vmatmul.mubr.bf16.gmra.mrb[0].mxu0 %v2114
  %v3098 = vpop.f32.mrb[0].mxu0
  %v3099 = vadd.f32 0.0, %v3098
  %v3100 = vpop.f32.mrb[0].mxu0
  %v3101 = vpop.f32.mrb[0].mxu0
  %v3102 = vadd.f32 0.0, %v3101
  %v3103 = vpop.f32.mrb[0].mxu0
  %3104 = vmatprep.mubr.bf16.mxu0 0
  %3105 = vmatmul.mubr.bf16.gmra.mrb[0].mxu0 %v2117
  %v3106 = vpop.f32.mrb[0].mxu0
  %v3107 = vadd.f32 0.0, %v3106
  %v3108 = vpop.f32.mrb[0].mxu0
  %v3109 = vpop.f32.mrb[0].mxu0
  %v3110 = vadd.f32 0.0, %v3109
  %v3111 = vpop.f32.mrb[0].mxu0
  %3112 = vmatprep.mubr.bf16.mxu0 0
  %3113 = vmatmul.mubr.bf16.gmra.mrb[0].mxu0 %v2120
  %v3114 = vpop.f32.mrb[0].mxu0
  %v3115 = vadd.f32 0.0, %v3114
  %v3116 = vpop.f32.mrb[0].mxu0
  %v3117 = vpop.f32.mrb[0].mxu0
  %v3118 = vadd.f32 0.0, %v3117
  %v3119 = vpop.f32.mrb[0].mxu0
  %3120 = vmatprep.mubr.bf16.mxu0 0
  %3121 = vmatmul.mubr.bf16.gmra.mrb[0].mxu0 %v2123
  %v3122 = vpop.f32.mrb[0].mxu0
  %v3123 = vadd.f32 0.0, %v3122
  %v3124 = vpop.f32.mrb[0].mxu0
  %v3125 = vpop.f32.mrb[0].mxu0
  %v3126 = vadd.f32 0.0, %v3125
  %v3127 = vpop.f32.mrb[0].mxu0
  %3128 = vmatprep.mubr.bf16.mxu0 0
  %3129 = vmatmul.mubr.bf16.gmra.mrb[0].mxu0 %v2126
  %v3130 = vpop.f32.mrb[0].mxu0
  %v3131 = vadd.f32 0.0, %v3130
  %v3132 = vpop.f32.mrb[0].mxu0
  %v3133 = vpop.f32.mrb[0].mxu0
  %v3134 = vadd.f32 0.0, %v3133
  %v3135 = vpop.f32.mrb[0].mxu0
  %3136 = vmatprep.mubr.bf16.mxu0 0
  %3137 = vmatmul.mubr.bf16.gmra.mrb[0].mxu0 %v2129
  %v3138 = vpop.f32.mrb[0].mxu0
  %v3139 = vadd.f32 0.0, %v3138
  %v3140 = vpop.f32.mrb[0].mxu0
  %v3141 = vpop.f32.mrb[0].mxu0
  %v3142 = vadd.f32 0.0, %v3141
  %v3143 = vpop.f32.mrb[0].mxu0
  %3144 = vmatprep.mubr.bf16.mxu0 0
  %3145 = vmatmul.mubr.bf16.gmra.mrb[0].mxu0 %v2132
  %v3146 = vpop.f32.mrb[0].mxu0
  %v3147 = vadd.f32 0.0, %v3146
  %v3148 = vpop.f32.mrb[0].mxu0
  %v3149 = vpop.f32.mrb[0].mxu0
  %v3150 = vadd.f32 0.0, %v3149
  %v3151 = vpop.f32.mrb[0].mxu0
  %3152 = vmatprep.mubr.bf16.mxu0 0
  %3153 = vmatmul.mubr.bf16.gmra.mrb[0].mxu0 %v2135
  %v3154 = vpop.f32.mrb[0].mxu0
  %v3155 = vadd.f32 0.0, %v3154
  %v3156 = vpop.f32.mrb[0].mxu0
  %v3157 = vpop.f32.mrb[0].mxu0
  %v3158 = vadd.f32 0.0, %v3157
  %v3159 = vpop.f32.mrb[0].mxu0
  %3160 = vmatprep.mubr.bf16.mxu0 0
  %3161 = vmatmul.mubr.bf16.gmra.mrb[0].mxu0 %v2138
  %v3162 = vpop.f32.mrb[0].mxu0
  %v3163 = vadd.f32 0.0, %v3162
  %v3164 = vpop.f32.mrb[0].mxu0
  %v3165 = vpop.f32.mrb[0].mxu0
  %v3166 = vadd.f32 0.0, %v3165
  %v3167 = vpop.f32.mrb[0].mxu0
  %3168 = vmatprep.mubr.bf16.mxu0 0
  %3169 = vmatmul.mubr.bf16.gmra.mrb[0].mxu0 %v2141
  %v3170 = vpop.f32.mrb[0].mxu0
  %v3171 = vadd.f32 0.0, %v3170
  %v3172 = vpop.f32.mrb[0].mxu0
  %v3173 = vpop.f32.mrb[0].mxu0
  %v3174 = vadd.f32 0.0, %v3173
  %v3175 = vpop.f32.mrb[0].mxu0
  %3176 = vmatprep.mubr.bf16.mxu0 0
  %3177 = vmatmul.mubr.bf16.gmra.mrb[0].mxu0 %v2144
  %v3178 = vpop.f32.mrb[0].mxu0
  %v3179 = vadd.f32 0.0, %v3178
  %v3180 = vpop.f32.mrb[0].mxu0
  %v3181 = vpop.f32.mrb[0].mxu0
  %v3182 = vadd.f32 0.0, %v3181
  %v3183 = vpop.f32.mrb[0].mxu0
  %3184 = vmatprep.mubr.bf16.mxu0 0
  %3185 = vmatmul.mubr.bf16.gmra.mrb[0].mxu0 %v2147
  %v3186 = vpop.f32.mrb[0].mxu0
  %v3187 = vadd.f32 0.0, %v3186
  %v3188 = vpop.f32.mrb[0].mxu0
  %v3189 = vpop.f32.mrb[0].mxu0
  %v3190 = vadd.f32 0.0, %v3189
  %v3191 = vpop.f32.mrb[0].mxu0
  %3192 = vmatprep.mubr.bf16.mxu0 0
  %3193 = vmatmul.mubr.bf16.gmra.mrb[0].mxu0 %v2150
  %v3194 = vpop.f32.mrb[0].mxu0
  %v3195 = vadd.f32 0.0, %v3194
  %v3196 = vpop.f32.mrb[0].mxu0
  %v3197 = vpop.f32.mrb[0].mxu0
  %v3198 = vadd.f32 0.0, %v3197
  %v3199 = vpop.f32.mrb[0].mxu0
  %3200 = vmatprep.mubr.bf16.mxu0 0
  %3201 = vmatmul.mubr.bf16.gmra.mrb[0].mxu0 %v2153
  %v3202 = vpop.f32.mrb[0].mxu0
  %v3203 = vadd.f32 0.0, %v3202
  %v3204 = vpop.f32.mrb[0].mxu0
  %v3205 = vpop.f32.mrb[0].mxu0
  %v3206 = vadd.f32 0.0, %v3205
  %v3207 = vpop.f32.mrb[0].mxu0
  %3208 = vmatprep.mubr.bf16.mxu0 0
  %3209 = vmatmul.mubr.bf16.gmra.mrb[0].mxu0 %v2156
  %v3210 = vpop.f32.mrb[0].mxu0
  %v3211 = vadd.f32 0.0, %v3210
  %v3212 = vpop.f32.mrb[0].mxu0
  %v3213 = vpop.f32.mrb[0].mxu0
  %v3214 = vadd.f32 0.0, %v3213
  %v3215 = vpop.f32.mrb[0].mxu0
  %3216 = vmatprep.mubr.bf16.mxu0 0
  %3217 = vmatmul.mubr.bf16.gmra.mrb[0].mxu0 %v2159
  %v3218 = vpop.f32.mrb[0].mxu0
  %v3219 = vadd.f32 0.0, %v3218
  %v3220 = vpop.f32.mrb[0].mxu0
  %v3221 = vpop.f32.mrb[0].mxu0
  %v3222 = vadd.f32 0.0, %v3221
  %v3223 = vpop.f32.mrb[0].mxu0
  %3224 = vmatprep.mubr.bf16.mxu0 0
  %3225 = vmatmul.mubr.bf16.gmra.mrb[0].mxu0 %v2162
  %v3226 = vpop.f32.mrb[0].mxu0
  %v3227 = vadd.f32 0.0, %v3226
  %v3228 = vpop.f32.mrb[0].mxu0
  %v3229 = vpop.f32.mrb[0].mxu0
  %v3230 = vadd.f32 0.0, %v3229
  %v3231 = vpop.f32.mrb[0].mxu0
  %3232 = vmatprep.mubr.bf16.mxu0 0
  %3233 = vmatmul.mubr.bf16.gmra.mrb[0].mxu0 %v2165
  %v3234 = vpop.f32.mrb[0].mxu0
  %v3235 = vadd.f32 0.0, %v3234
  %v3236 = vpop.f32.mrb[0].mxu0
  %v3237 = vpop.f32.mrb[0].mxu0
  %v3238 = vadd.f32 0.0, %v3237
  %v3239 = vpop.f32.mrb[0].mxu0
  %3240 = vmatprep.mubr.bf16.mxu0 0
  %3241 = vmatmul.mubr.bf16.gmra.mrb[0].mxu0 %v2168
  %v3242 = vpop.f32.mrb[0].mxu0
  %v3243 = vadd.f32 0.0, %v3242
  %v3244 = vpop.f32.mrb[0].mxu0
  %v3245 = vpop.f32.mrb[0].mxu0
  %v3246 = vadd.f32 0.0, %v3245
  %v3247 = vpop.f32.mrb[0].mxu0
  %3248 = vmatprep.mubr.bf16.mxu0 0
  %3249 = vmatmul.mubr.bf16.gmra.mrb[0].mxu0 %v2171
  %v3250 = vpop.f32.mrb[0].mxu0
  %v3251 = vadd.f32 0.0, %v3250
  %v3252 = vpop.f32.mrb[0].mxu0
  %v3253 = vpop.f32.mrb[0].mxu0
  %v3254 = vadd.f32 0.0, %v3253
  %v3255 = vpop.f32.mrb[0].mxu0
  %3256 = vmatprep.mubr.bf16.mxu0 0
  %3257 = vmatmul.mubr.bf16.gmra.mrb[0].mxu0 %v2174
  %v3258 = vpop.f32.mrb[0].mxu0
  %v3259 = vadd.f32 0.0, %v3258
  %v3260 = vpop.f32.mrb[0].mxu0
  %v3261 = vpop.f32.mrb[0].mxu0
  %v3262 = vadd.f32 0.0, %v3261
  %v3263 = vpop.f32.mrb[0].mxu0
  %3264 = vmatprep.mubr.bf16.mxu0 0
  %3265 = vmatmul.mubr.bf16.gmra.mrb[0].mxu0 %v2177
  %v3266 = vpop.f32.mrb[0].mxu0
  %v3267 = vadd.f32 0.0, %v3266
  %v3268 = vpop.f32.mrb[0].mxu0
  %v3269 = vpop.f32.mrb[0].mxu0
  %v3270 = vadd.f32 0.0, %v3269
  %v3271 = vpop.f32.mrb[0].mxu0
  %3272 = vmatprep.mubr.bf16.mxu0 0
  %3273 = vmatmul.mubr.bf16.gmra.mrb[0].mxu0 %v2180
  %v3274 = vpop.f32.mrb[0].mxu0
  %v3275 = vadd.f32 0.0, %v3274
  %v3276 = vpop.f32.mrb[0].mxu0
  %v3277 = vpop.f32.mrb[0].mxu0
  %v3278 = vadd.f32 0.0, %v3277
  %v3279 = vpop.f32.mrb[0].mxu0
  %3280 = vmatprep.mubr.bf16.mxu0 0
  %3281 = vmatmul.mubr.bf16.gmra.mrb[0].mxu0 %v2183
  %v3282 = vpop.f32.mrb[0].mxu0
  %v3283 = vadd.f32 0.0, %v3282
  %v3284 = vpop.f32.mrb[0].mxu0
  %v3285 = vpop.f32.mrb[0].mxu0
  %v3286 = vadd.f32 0.0, %v3285
  %v3287 = vpop.f32.mrb[0].mxu0
  %3288 = vmatprep.mubr.bf16.mxu0 0
  %3289 = vmatmul.mubr.bf16.gmra.mrb[0].mxu0 %v2186
  %v3290 = vpop.f32.mrb[0].mxu0
  %v3291 = vadd.f32 0.0, %v3290
  %v3292 = vpop.f32.mrb[0].mxu0
  %v3293 = vpop.f32.mrb[0].mxu0
  %v3294 = vadd.f32 0.0, %v3293
  %v3295 = vpop.f32.mrb[0].mxu0
  %3296 = vmatprep.mubr.bf16.mxu0 0
  %3297 = vmatmul.mubr.bf16.gmra.mrb[0].mxu0 %v2189
  %v3298 = vpop.f32.mrb[0].mxu0
  %v3299 = vadd.f32 0.0, %v3298
  %v3300 = vpop.f32.mrb[0].mxu0
  %v3301 = vpop.f32.mrb[0].mxu0
  %v3302 = vadd.f32 0.0, %v3301
  %v3303 = vpop.f32.mrb[0].mxu0
  %3304 = vmatprep.mubr.bf16.mxu0 0
  %3305 = vmatmul.mubr.bf16.gmra.mrb[0].mxu0 %v2192
  %v3306 = vpop.f32.mrb[0].mxu0
  %v3307 = vadd.f32 0.0, %v3306
  %v3308 = vpop.f32.mrb[0].mxu0
  %v3309 = vpop.f32.mrb[0].mxu0
  %v3310 = vadd.f32 0.0, %v3309
  %v3311 = vpop.f32.mrb[0].mxu0
  %3312 = vmatprep.mubr.bf16.mxu0 0
  %3313 = vmatmul.mubr.bf16.gmra.mrb[0].mxu0 %v2195
  %v3314 = vpop.f32.mrb[0].mxu0
  %v3315 = vadd.f32 0.0, %v3314
  %v3316 = vpop.f32.mrb[0].mxu0
  %v3317 = vpop.f32.mrb[0].mxu0
  %v3318 = vadd.f32 0.0, %v3317
  %v3319 = vpop.f32.mrb[0].mxu0
  %3320 = vmatprep.mubr.bf16.mxu0 0
  %3321 = vmatmul.mubr.bf16.gmra.mrb[0].mxu0 %v2198
  %v3322 = vpop.f32.mrb[0].mxu0
  %v3323 = vadd.f32 0.0, %v3322
  %v3324 = vpop.f32.mrb[0].mxu0
  %v3325 = vpop.f32.mrb[0].mxu0
  %v3326 = vadd.f32 0.0, %v3325
  %v3327 = vpop.f32.mrb[0].mxu0
  %3328 = vmatprep.mubr.bf16.mxu0 0
  %3329 = vmatmul.mubr.bf16.gmra.mrb[0].mxu0 %v2201
  %v3330 = vpop.f32.mrb[0].mxu0
  %v3331 = vadd.f32 0.0, %v3330
  %v3332 = vpop.f32.mrb[0].mxu0
  %v3333 = vpop.f32.mrb[0].mxu0
  %v3334 = vadd.f32 0.0, %v3333
  %v3335 = vpop.f32.mrb[0].mxu0
  %3336 = vmatprep.mubr.bf16.mxu0 0
  %3337 = vmatmul.mubr.bf16.gmra.mrb[0].mxu0 %v2204
  %v3338 = vpop.f32.mrb[0].mxu0
  %v3339 = vadd.f32 0.0, %v3338
  %v3340 = vpop.f32.mrb[0].mxu0
  %v3341 = vpop.f32.mrb[0].mxu0
  %v3342 = vadd.f32 0.0, %v3341
  %v3343 = vpop.f32.mrb[0].mxu0
  %3344 = vmatprep.mubr.bf16.mxu0 0
  %3345 = vmatmul.mubr.bf16.gmra.mrb[0].mxu0 %v2207
  %v3346 = vpop.f32.mrb[0].mxu0
  %v3347 = vadd.f32 0.0, %v3346
  %v3348 = vpop.f32.mrb[0].mxu0
  %v3349 = vpop.f32.mrb[0].mxu0
  %v3350 = vadd.f32 0.0, %v3349
  %v3351 = vpop.f32.mrb[0].mxu0
  %3352 = vmatprep.mubr.bf16.mxu0 0
  %3353 = vmatmul.mubr.bf16.gmra.mrb[0].mxu0 %v2210
  %v3354 = vpop.f32.mrb[0].mxu0
  %v3355 = vadd.f32 0.0, %v3354
  %v3356 = vpop.f32.mrb[0].mxu0
  %v3357 = vpop.f32.mrb[0].mxu0
  %v3358 = vadd.f32 0.0, %v3357
  %v3359 = vpop.f32.mrb[0].mxu0
  %3360 = vmatprep.mubr.bf16.mxu0 0
  %3361 = vmatmul.mubr.bf16.gmra.mrb[0].mxu0 %v2213
  %v3362 = vpop.f32.mrb[0].mxu0
  %v3363 = vadd.f32 0.0, %v3362
  %v3364 = vpop.f32.mrb[0].mxu0
  %v3365 = vpop.f32.mrb[0].mxu0
  %v3366 = vadd.f32 0.0, %v3365
  %v3367 = vpop.f32.mrb[0].mxu0
  %3368 = vmatprep.mubr.bf16.mxu0 0
  %3369 = vmatmul.mubr.bf16.gmra.mrb[0].mxu0 %v2216
  %v3370 = vpop.f32.mrb[0].mxu0
  %v3371 = vadd.f32 0.0, %v3370
  %v3372 = vpop.f32.mrb[0].mxu0
  %v3373 = vpop.f32.mrb[0].mxu0
  %v3374 = vadd.f32 0.0, %v3373
  %v3375 = vpop.f32.mrb[0].mxu0
  %3376 = vmatprep.mubr.bf16.mxu0 0
  %3377 = vmatmul.mubr.bf16.gmra.mrb[0].mxu0 %v2219
  %v3378 = vpop.f32.mrb[0].mxu0
  %v3379 = vadd.f32 0.0, %v3378
  %v3380 = vpop.f32.mrb[0].mxu0
  %v3381 = vpop.f32.mrb[0].mxu0
  %v3382 = vadd.f32 0.0, %v3381
  %v3383 = vpop.f32.mrb[0].mxu0
  %3384 = vmatprep.mubr.bf16.mxu0 0
  %3385 = vmatmul.mubr.bf16.gmra.mrb[0].mxu0 %v2222
  %v3386 = vpop.f32.mrb[0].mxu0
  %v3387 = vadd.f32 0.0, %v3386
  %v3388 = vpop.f32.mrb[0].mxu0
  %v3389 = vpop.f32.mrb[0].mxu0
  %v3390 = vadd.f32 0.0, %v3389
  %v3391 = vpop.f32.mrb[0].mxu0
  %3392 = vmatprep.mubr.bf16.mxu0 0
  %3393 = vmatmul.mubr.bf16.gmra.mrb[0].mxu0 %v2225
  %v3394 = vpop.f32.mrb[0].mxu0
  %v3395 = vadd.f32 0.0, %v3394
  %v3396 = vpop.f32.mrb[0].mxu0
  %v3397 = vpop.f32.mrb[0].mxu0
  %v3398 = vadd.f32 0.0, %v3397
  %v3399 = vpop.f32.mrb[0].mxu0
  %3400 = vmatprep.mubr.bf16.mxu0 0
  %3401 = vmatmul.mubr.bf16.gmra.mrb[0].mxu0 %v2228
  %v3402 = vpop.f32.mrb[0].mxu0
  %v3403 = vadd.f32 0.0, %v3402
  %v3404 = vpop.f32.mrb[0].mxu0
  %v3405 = vpop.f32.mrb[0].mxu0
  %v3406 = vadd.f32 0.0, %v3405
  %v3407 = vpop.f32.mrb[0].mxu0
  %3408 = vmatprep.mubr.bf16.mxu0 0
  %3409 = vmatmul.mubr.bf16.gmra.mrb[0].mxu0 %v2231
  %v3410 = vpop.f32.mrb[0].mxu0
  %v3411 = vadd.f32 0.0, %v3410
  %v3412 = vpop.f32.mrb[0].mxu0
  %v3413 = vpop.f32.mrb[0].mxu0
  %v3414 = vadd.f32 0.0, %v3413
  %v3415 = vpop.f32.mrb[0].mxu0
  %3416 = vmatprep.mubr.bf16.mxu0 0
  %3417 = vmatmul.mubr.bf16.gmra.mrb[0].mxu0 %v2234
  %v3418 = vpop.f32.mrb[0].mxu0
  %v3419 = vadd.f32 0.0, %v3418
  %v3420 = vpop.f32.mrb[0].mxu0
  %v3421 = vpop.f32.mrb[0].mxu0
  %v3422 = vadd.f32 0.0, %v3421
  %v3423 = vpop.f32.mrb[0].mxu0
  %3424 = vmatprep.mubr.bf16.mxu0 0
  %3425 = vmatmul.mubr.bf16.gmra.mrb[0].mxu0 %v2237
  %v3426 = vpop.f32.mrb[0].mxu0
  %v3427 = vadd.f32 0.0, %v3426
  %v3428 = vpop.f32.mrb[0].mxu0
  %v3429 = vpop.f32.mrb[0].mxu0
  %v3430 = vadd.f32 0.0, %v3429
  %v3431 = vpop.f32.mrb[0].mxu0
  %3432 = vmatprep.mubr.bf16.mxu0 0
  %3433 = vmatmul.mubr.bf16.gmra.mrb[0].mxu0 %v2240
  %v3434 = vpop.f32.mrb[0].mxu0
  %v3435 = vadd.f32 0.0, %v3434
  %v3436 = vpop.f32.mrb[0].mxu0
  %v3437 = vpop.f32.mrb[0].mxu0
  %v3438 = vadd.f32 0.0, %v3437
  %v3439 = vpop.f32.mrb[0].mxu0
  %3440 = vmatprep.mubr.bf16.mxu0 0
  %3441 = vmatmul.mubr.bf16.gmra.mrb[0].mxu0 %v2243
  %v3442 = vpop.f32.mrb[0].mxu0
  %v3443 = vadd.f32 0.0, %v3442
  %v3444 = vpop.f32.mrb[0].mxu0
  %v3445 = vpop.f32.mrb[0].mxu0
  %v3446 = vadd.f32 0.0, %v3445
  %v3447 = vpop.f32.mrb[0].mxu0
  %3448 = vmatprep.mubr.bf16.mxu0 0
  %3449 = vmatmul.mubr.bf16.gmra.mrb[0].mxu0 %v2246
  %v3450 = vpop.f32.mrb[0].mxu0
  %v3451 = vadd.f32 0.0, %v3450
  %v3452 = vpop.f32.mrb[0].mxu0
  %v3453 = vpop.f32.mrb[0].mxu0
  %v3454 = vadd.f32 0.0, %v3453
  %v3455 = vpop.f32.mrb[0].mxu0
  %3456 = vmatprep.mubr.bf16.mxu0 0
  %3457 = vmatmul.mubr.bf16.gmra.mrb[0].mxu0 %v2249
  %v3458 = vpop.f32.mrb[0].mxu0
  %v3459 = vadd.f32 0.0, %v3458
  %v3460 = vpop.f32.mrb[0].mxu0
  %v3461 = vpop.f32.mrb[0].mxu0
  %v3462 = vadd.f32 0.0, %v3461
  %v3463 = vpop.f32.mrb[0].mxu0
  %3464 = vmatprep.mubr.bf16.mxu0 0
  %3465 = vmatmul.mubr.bf16.gmra.mrb[0].mxu0 %v2252
  %v3466 = vpop.f32.mrb[0].mxu0
  %v3467 = vadd.f32 0.0, %v3466
  %v3468 = vpop.f32.mrb[0].mxu0
  %v3469 = vpop.f32.mrb[0].mxu0
  %v3470 = vadd.f32 0.0, %v3469
  %v3471 = vpop.f32.mrb[0].mxu0
  %3472 = vmatprep.mubr.bf16.mxu0 0
  %3473 = vmatmul.mubr.bf16.gmra.mrb[0].mxu0 %v2255
  %v3474 = vpop.f32.mrb[0].mxu0
  %v3475 = vadd.f32 0.0, %v3474
  %v3476 = vpop.f32.mrb[0].mxu0
  %v3477 = vpop.f32.mrb[0].mxu0
  %v3478 = vadd.f32 0.0, %v3477
  %v3479 = vpop.f32.mrb[0].mxu0
  %3480 = vmatprep.mubr.bf16.mxu0 0
  %3481 = vmatmul.mubr.bf16.gmra.mrb[0].mxu0 %v2258
  %v3482 = vpop.f32.mrb[0].mxu0
  %v3483 = vadd.f32 0.0, %v3482
  %v3484 = vpop.f32.mrb[0].mxu0
  %v3485 = vpop.f32.mrb[0].mxu0
  %v3486 = vadd.f32 0.0, %v3485
  %v3487 = vpop.f32.mrb[0].mxu0
  %3488 = vmatprep.mubr.bf16.mxu0 0
  %3489 = vmatmul.mubr.bf16.gmra.mrb[0].mxu0 %v2261
  %v3490 = vpop.f32.mrb[0].mxu0
  %v3491 = vadd.f32 0.0, %v3490
  %v3492 = vpop.f32.mrb[0].mxu0
  %v3493 = vpop.f32.mrb[0].mxu0
  %v3494 = vadd.f32 0.0, %v3493
  %v3495 = vpop.f32.mrb[0].mxu0
  %3496 = vmatprep.mubr.bf16.mxu0 0
  %3497 = vmatmul.mubr.bf16.gmra.mrb[0].mxu0 %v2264
  %v3498 = vpop.f32.mrb[0].mxu0
  %v3499 = vadd.f32 0.0, %v3498
  %v3500 = vpop.f32.mrb[0].mxu0
  %v3501 = vpop.f32.mrb[0].mxu0
  %v3502 = vadd.f32 0.0, %v3501
  %v3503 = vpop.f32.mrb[0].mxu0
  %3504 = vmatprep.mubr.bf16.mxu0 0
  %3505 = vmatmul.mubr.bf16.gmra.mrb[0].mxu0 %v2267
  %v3506 = vpop.f32.mrb[0].mxu0
  %v3507 = vadd.f32 0.0, %v3506
  %v3508 = vpop.f32.mrb[0].mxu0
  %v3509 = vpop.f32.mrb[0].mxu0
  %v3510 = vadd.f32 0.0, %v3509
  %v3511 = vpop.f32.mrb[0].mxu0
  %3512 = vmatprep.mubr.bf16.mxu0 0
  %3513 = vmatmul.mubr.bf16.gmra.mrb[0].mxu0 %v2270
  %v3514 = vpop.f32.mrb[0].mxu0
  %v3515 = vadd.f32 0.0, %v3514
  %v3516 = vpop.f32.mrb[0].mxu0
  %v3517 = vpop.f32.mrb[0].mxu0
  %v3518 = vadd.f32 0.0, %v3517
  %v3519 = vpop.f32.mrb[0].mxu0
  %3520 = vmatprep.mubr.bf16.mxu0 0
  %3521 = vmatmul.mubr.bf16.gmra.mrb[0].mxu0 %v2273
  %v3522 = vpop.f32.mrb[0].mxu0
  %v3523 = vadd.f32 0.0, %v3522
  %v3524 = vpop.f32.mrb[0].mxu0
  %v3525 = vpop.f32.mrb[0].mxu0
  %v3526 = vadd.f32 0.0, %v3525
  %v3527 = vpop.f32.mrb[0].mxu0
  %3528 = vmatprep.mubr.bf16.mxu0 0
  %3529 = vmatmul.mubr.bf16.gmra.mrb[0].mxu0 %v2276
  %v3530 = vpop.f32.mrb[0].mxu0
  %v3531 = vadd.f32 0.0, %v3530
  %v3532 = vpop.f32.mrb[0].mxu0
  %v3533 = vpop.f32.mrb[0].mxu0
  %v3534 = vadd.f32 0.0, %v3533
  %v3535 = vpop.f32.mrb[0].mxu0
  %3536 = vmatprep.mubr.bf16.mxu0 0
  %3537 = vmatmul.mubr.bf16.gmra.mrb[0].mxu0 %v2279
  %v3538 = vpop.f32.mrb[0].mxu0
  %v3539 = vadd.f32 0.0, %v3538
  %v3540 = vpop.f32.mrb[0].mxu0
  %v3541 = vpop.f32.mrb[0].mxu0
  %v3542 = vadd.f32 0.0, %v3541
  %v3543 = vpop.f32.mrb[0].mxu0
  %3544 = vmatprep.mubr.bf16.mxu0 0
  %3545 = vmatmul.mubr.bf16.gmra.mrb[0].mxu0 %v2282
  %v3546 = vpop.f32.mrb[0].mxu0
  %v3547 = vadd.f32 0.0, %v3546
  %v3548 = vpop.f32.mrb[0].mxu0
  %v3549 = vpop.f32.mrb[0].mxu0
  %v3550 = vadd.f32 0.0, %v3549
  %v3551 = vpop.f32.mrb[0].mxu0
  %3552 = vmatprep.mubr.bf16.mxu0 0
  %3553 = vmatmul.mubr.bf16.gmra.mrb[0].mxu0 %v2285
  %v3554 = vpop.f32.mrb[0].mxu0
  %v3555 = vadd.f32 0.0, %v3554
  %v3556 = vpop.f32.mrb[0].mxu0
  %v3557 = vpop.f32.mrb[0].mxu0
  %v3558 = vadd.f32 0.0, %v3557
  %v3559 = vpop.f32.mrb[0].mxu0
  %3560 = vmatprep.mubr.bf16.mxu0 0
  %3561 = vmatmul.mubr.bf16.gmra.mrb[0].mxu0 %v2288
  %v3562 = vpop.f32.mrb[0].mxu0
  %v3563 = vadd.f32 0.0, %v3562
  %v3564 = vpop.f32.mrb[0].mxu0
  %v3565 = vpop.f32.mrb[0].mxu0
  %v3566 = vadd.f32 0.0, %v3565
  %v3567 = vpop.f32.mrb[0].mxu0
  %3568 = vmatprep.mubr.bf16.mxu0 0
  %3569 = vmatmul.mubr.bf16.gmra.mrb[0].mxu0 %v2291
  %v3570 = vpop.f32.mrb[0].mxu0
  %v3571 = vadd.f32 0.0, %v3570
  %v3572 = vpop.f32.mrb[0].mxu0
  %v3573 = vpop.f32.mrb[0].mxu0
  %v3574 = vadd.f32 0.0, %v3573
  %v3575 = vpop.f32.mrb[0].mxu0
  %3576 = vmatprep.mubr.bf16.mxu0 0
  %3577 = vmatmul.mubr.bf16.gmra.mrb[0].mxu0 %v2294
  %v3578 = vpop.f32.mrb[0].mxu0
  %v3579 = vadd.f32 0.0, %v3578
  %v3580 = vpop.f32.mrb[0].mxu0
  %v3581 = vpop.f32.mrb[0].mxu0
  %v3582 = vadd.f32 0.0, %v3581
  %v3583 = vpop.f32.mrb[0].mxu0
  %3584 = vmatprep.mubr.bf16.mxu0 0
  %3585 = vmatmul.mubr.bf16.gmra.mrb[0].mxu0 %v2297
  %v3586 = vpop.f32.mrb[0].mxu0
  %v3587 = vadd.f32 0.0, %v3586
  %v3588 = vpop.f32.mrb[0].mxu0
  %v3589 = vpop.f32.mrb[0].mxu0
  %v3590 = vadd.f32 0.0, %v3589
  %v3591 = vpop.f32.mrb[0].mxu0
  %3592 = vmatprep.mubr.bf16.mxu0 0
  %3593 = vmatmul.mubr.bf16.gmra.mrb[0].mxu0 %v2300
  %v3594 = vpop.f32.mrb[0].mxu0
  %v3595 = vadd.f32 0.0, %v3594
  %v3596 = vpop.f32.mrb[0].mxu0
  %v3597 = vpop.f32.mrb[0].mxu0
  %v3598 = vadd.f32 0.0, %v3597
  %v3599 = vpop.f32.mrb[0].mxu0
  %3600 = vmatprep.mubr.bf16.mxu0 0
  %3601 = vmatmul.mubr.bf16.gmra.mrb[0].mxu0 %v2303
  %v3602 = vpop.f32.mrb[0].mxu0
  %v3603 = vadd.f32 0.0, %v3602
  %v3604 = vpop.f32.mrb[0].mxu0
  %v3605 = vpop.f32.mrb[0].mxu0
  %v3606 = vadd.f32 0.0, %v3605
  %v3607 = vpop.f32.mrb[0].mxu0
  %3608 = vmatprep.mubr.bf16.mxu0 0
  %3609 = vmatmul.mubr.bf16.gmra.mrb[0].mxu0 %v2306
  %v3610 = vpop.f32.mrb[0].mxu0
  %v3611 = vadd.f32 0.0, %v3610
  %v3612 = vpop.f32.mrb[0].mxu0
  %v3613 = vpop.f32.mrb[0].mxu0
  %v3614 = vadd.f32 0.0, %v3613
  %v3615 = vpop.f32.mrb[0].mxu0
  %3616 = vmatprep.mubr.bf16.mxu0 0
  %3617 = vmatmul.mubr.bf16.gmra.mrb[0].mxu0 %v2309
  %v3618 = vpop.f32.mrb[0].mxu0
  %v3619 = vadd.f32 0.0, %v3618
  %v3620 = vpop.f32.mrb[0].mxu0
  %v3621 = vpop.f32.mrb[0].mxu0
  %v3622 = vadd.f32 0.0, %v3621
  %v3623 = vpop.f32.mrb[0].mxu0
  %3624 = vmatprep.mubr.bf16.mxu0 0
  %3625 = vmatmul.mubr.bf16.gmra.mrb[0].mxu0 %v2312
  %v3626 = vpop.f32.mrb[0].mxu0
  %v3627 = vadd.f32 0.0, %v3626
  %v3628 = vpop.f32.mrb[0].mxu0
  %v3629 = vpop.f32.mrb[0].mxu0
  %v3630 = vadd.f32 0.0, %v3629
  %v3631 = vpop.f32.mrb[0].mxu0
  %3632 = vmatprep.mubr.bf16.mxu0 0
  %3633 = vmatmul.mubr.bf16.gmra.mrb[0].mxu0 %v2315
  %v3634 = vpop.f32.mrb[0].mxu0
  %v3635 = vadd.f32 0.0, %v3634
  %v3636 = vpop.f32.mrb[0].mxu0
  %v3637 = vpop.f32.mrb[0].mxu0
  %v3638 = vadd.f32 0.0, %v3637
  %v3639 = vpop.f32.mrb[0].mxu0
  %3640 = vmatprep.mubr.bf16.mxu0 0
  %3641 = vmatmul.mubr.bf16.gmra.mrb[0].mxu0 %v2318
  %v3642 = vpop.f32.mrb[0].mxu0
  %v3643 = vadd.f32 0.0, %v3642
  %v3644 = vpop.f32.mrb[0].mxu0
  %v3645 = vpop.f32.mrb[0].mxu0
  %v3646 = vadd.f32 0.0, %v3645
  %v3647 = vpop.f32.mrb[0].mxu0
  %3648 = vmatprep.mubr.bf16.mxu0 0
  %3649 = vmatmul.mubr.bf16.gmra.mrb[0].mxu0 %v2321
  %v3650 = vpop.f32.mrb[0].mxu0
  %v3651 = vadd.f32 0.0, %v3650
  %v3652 = vpop.f32.mrb[0].mxu0
  %v3653 = vpop.f32.mrb[0].mxu0
  %v3654 = vadd.f32 0.0, %v3653
  %v3655 = vpop.f32.mrb[0].mxu0
  %3656 = vmatprep.mubr.bf16.mxu0 0
  %3657 = vmatmul.mubr.bf16.gmra.mrb[0].mxu0 %v2324
  %v3658 = vpop.f32.mrb[0].mxu0
  %v3659 = vadd.f32 0.0, %v3658
  %v3660 = vpop.f32.mrb[0].mxu0
  %v3661 = vpop.f32.mrb[0].mxu0
  %v3662 = vadd.f32 0.0, %v3661
  %v3663 = vpop.f32.mrb[0].mxu0
  %3664 = vmatprep.mubr.bf16.mxu0 0
  %3665 = vmatmul.mubr.bf16.gmra.mrb[0].mxu0 %v2327
  %v3666 = vpop.f32.mrb[0].mxu0
  %v3667 = vadd.f32 0.0, %v3666
  %v3668 = vpop.f32.mrb[0].mxu0
  %v3669 = vpop.f32.mrb[0].mxu0
  %v3670 = vadd.f32 0.0, %v3669
  %v3671 = vpop.f32.mrb[0].mxu0
  %3672 = vmatprep.mubr.bf16.mxu0 0
  %3673 = vmatmul.mubr.bf16.gmra.mrb[0].mxu0 %v2330
  %v3674 = vpop.f32.mrb[0].mxu0
  %v3675 = vadd.f32 0.0, %v3674
  %v3676 = vpop.f32.mrb[0].mxu0
  %v3677 = vpop.f32.mrb[0].mxu0
  %v3678 = vadd.f32 0.0, %v3677
  %v3679 = vpop.f32.mrb[0].mxu0
  %3680 = vmatprep.mubr.bf16.mxu0 0
  %3681 = vmatmul.mubr.bf16.gmra.mrb[0].mxu0 %v2333
  %v3682 = vpop.f32.mrb[0].mxu0
  %v3683 = vadd.f32 0.0, %v3682
  %v3684 = vpop.f32.mrb[0].mxu0
  %v3685 = vpop.f32.mrb[0].mxu0
  %v3686 = vadd.f32 0.0, %v3685
  %v3687 = vpop.f32.mrb[0].mxu0
  %3688 = vmatprep.mubr.bf16.mxu0 0
  %3689 = vmatmul.mubr.bf16.gmra.mrb[0].mxu0 %v2336
  %v3690 = vpop.f32.mrb[0].mxu0
  %v3691 = vadd.f32 0.0, %v3690
  %v3692 = vpop.f32.mrb[0].mxu0
  %v3693 = vpop.f32.mrb[0].mxu0
  %v3694 = vadd.f32 0.0, %v3693
  %v3695 = vpop.f32.mrb[0].mxu0
  %3696 = vmatprep.mubr.bf16.mxu0 0
  %3697 = vmatmul.mubr.bf16.gmra.mrb[0].mxu0 %v2339
  %v3698 = vpop.f32.mrb[0].mxu0
  %v3699 = vadd.f32 0.0, %v3698
  %v3700 = vpop.f32.mrb[0].mxu0
  %v3701 = vpop.f32.mrb[0].mxu0
  %v3702 = vadd.f32 0.0, %v3701
  %v3703 = vpop.f32.mrb[0].mxu0
  %3704 = vmatprep.mubr.bf16.mxu0 0
  %3705 = vmatmul.mubr.bf16.gmra.mrb[0].mxu0 %v2342
  %v3706 = vpop.f32.mrb[0].mxu0
  %v3707 = vadd.f32 0.0, %v3706
  %v3708 = vpop.f32.mrb[0].mxu0
  %v3709 = vpop.f32.mrb[0].mxu0
  %v3710 = vadd.f32 0.0, %v3709
  %v3711 = vpop.f32.mrb[0].mxu0
  %3712 = vmatprep.mubr.bf16.mxu0 0
  %3713 = vmatmul.mubr.bf16.gmra.mrb[0].mxu0 %v2345
  %v3714 = vpop.f32.mrb[0].mxu0
  %v3715 = vadd.f32 0.0, %v3714
  %v3716 = vpop.f32.mrb[0].mxu0
  %v3717 = vpop.f32.mrb[0].mxu0
  %v3718 = vadd.f32 0.0, %v3717
  %v3719 = vpop.f32.mrb[0].mxu0
  %3720 = vmatprep.mubr.bf16.mxu0 0
  %3721 = vmatmul.mubr.bf16.gmra.mrb[0].mxu0 %v2348
  %v3722 = vpop.f32.mrb[0].mxu0
  %v3723 = vadd.f32 0.0, %v3722
  %v3724 = vpop.f32.mrb[0].mxu0
  %v3725 = vpop.f32.mrb[0].mxu0
  %v3726 = vadd.f32 0.0, %v3725
  %v3727 = vpop.f32.mrb[0].mxu0
  %3728 = vmatprep.mubr.bf16.mxu0 0
  %3729 = vmatmul.mubr.bf16.gmra.mrb[0].mxu0 %v2351
  %v3730 = vpop.f32.mrb[0].mxu0
  %v3731 = vadd.f32 0.0, %v3730
  %v3732 = vpop.f32.mrb[0].mxu0
  %v3733 = vpop.f32.mrb[0].mxu0
  %v3734 = vadd.f32 0.0, %v3733
  %v3735 = vpop.f32.mrb[0].mxu0
  %3736 = vmatprep.mubr.bf16.mxu0 0
  %3737 = vmatmul.mubr.bf16.gmra.mrb[0].mxu0 %v2354
  %v3738 = vpop.f32.mrb[0].mxu0
  %v3739 = vadd.f32 0.0, %v3738
  %v3740 = vpop.f32.mrb[0].mxu0
  %v3741 = vpop.f32.mrb[0].mxu0
  %v3742 = vadd.f32 0.0, %v3741
  %v3743 = vpop.f32.mrb[0].mxu0
  %3744 = vmatprep.mubr.bf16.mxu0 0
  %3745 = vmatmul.mubr.bf16.gmra.mrb[0].mxu0 %v2357
  %v3746 = vpop.f32.mrb[0].mxu0
  %v3747 = vadd.f32 0.0, %v3746
  %v3748 = vpop.f32.mrb[0].mxu0
  %v3749 = vpop.f32.mrb[0].mxu0
  %v3750 = vadd.f32 0.0, %v3749
  %v3751 = vpop.f32.mrb[0].mxu0
  %3752 = vmatprep.mubr.bf16.mxu0 0
  %3753 = vmatmul.mubr.bf16.gmra.mrb[0].mxu0 %v2360
  %v3754 = vpop.f32.mrb[0].mxu0
  %v3755 = vadd.f32 0.0, %v3754
  %v3756 = vpop.f32.mrb[0].mxu0
  %v3757 = vpop.f32.mrb[0].mxu0
  %v3758 = vadd.f32 0.0, %v3757
  %v3759 = vpop.f32.mrb[0].mxu0
  %3760 = vmatprep.mubr.bf16.mxu0 0
  %3761 = vmatmul.mubr.bf16.gmra.mrb[0].mxu0 %v2363
  %v3762 = vpop.f32.mrb[0].mxu0
  %v3763 = vadd.f32 0.0, %v3762
  %v3764 = vpop.f32.mrb[0].mxu0
  %v3765 = vpop.f32.mrb[0].mxu0
  %v3766 = vadd.f32 0.0, %v3765
  %v3767 = vpop.f32.mrb[0].mxu0
  %3768 = vmatprep.mubr.bf16.mxu0 0
  %3769 = vmatmul.mubr.bf16.gmra.mrb[0].mxu0 %v2366
  %v3770 = vpop.f32.mrb[0].mxu0
  %v3771 = vadd.f32 0.0, %v3770
  %v3772 = vpop.f32.mrb[0].mxu0
  %v3773 = vpop.f32.mrb[0].mxu0
  %v3774 = vadd.f32 0.0, %v3773
  %v3775 = vpop.f32.mrb[0].mxu0
  %3776 = vmatprep.mubr.bf16.mxu0 0
  %3777 = vmatmul.mubr.bf16.gmra.mrb[0].mxu0 %v2369
  %v3778 = vpop.f32.mrb[0].mxu0
  %v3779 = vadd.f32 0.0, %v3778
  %v3780 = vpop.f32.mrb[0].mxu0
  %v3781 = vpop.f32.mrb[0].mxu0
  %v3782 = vadd.f32 0.0, %v3781
  %v3783 = vpop.f32.mrb[0].mxu0
  %3784 = vmatprep.mubr.bf16.mxu0 0
  %3785 = vmatmul.mubr.bf16.gmra.mrb[0].mxu0 %v2372
  %v3786 = vpop.f32.mrb[0].mxu0
  %v3787 = vadd.f32 0.0, %v3786
  %v3788 = vpop.f32.mrb[0].mxu0
  %v3789 = vpop.f32.mrb[0].mxu0
  %v3790 = vadd.f32 0.0, %v3789
  %v3791 = vpop.f32.mrb[0].mxu0
  %3792 = vmatprep.mubr.bf16.mxu0 0
  %3793 = vmatmul.mubr.bf16.gmra.mrb[0].mxu0 %v2375
  %v3794 = vpop.f32.mrb[0].mxu0
  %v3795 = vadd.f32 0.0, %v3794
  %v3796 = vpop.f32.mrb[0].mxu0
  %v3797 = vpop.f32.mrb[0].mxu0
  %v3798 = vadd.f32 0.0, %v3797
  %v3799 = vpop.f32.mrb[0].mxu0
  %3800 = vmatprep.mubr.bf16.mxu0 0
  %3801 = vmatmul.mubr.bf16.gmra.mrb[0].mxu0 %v2378
  %v3802 = vpop.f32.mrb[0].mxu0
  %v3803 = vadd.f32 0.0, %v3802
  %v3804 = vpop.f32.mrb[0].mxu0
  %v3805 = vpop.f32.mrb[0].mxu0
  %v3806 = vadd.f32 0.0, %v3805
  %v3807 = vpop.f32.mrb[0].mxu0
  %3808 = vmatprep.mubr.bf16.mxu0 0
  %3809 = vmatmul.mubr.bf16.gmra.mrb[0].mxu0 %v2381
  %v3810 = vpop.f32.mrb[0].mxu0
  %v3811 = vadd.f32 0.0, %v3810
  %v3812 = vpop.f32.mrb[0].mxu0
  %v3813 = vpop.f32.mrb[0].mxu0
  %v3814 = vadd.f32 0.0, %v3813
  %v3815 = vpop.f32.mrb[0].mxu0
  %3816 = vmatprep.mubr.bf16.mxu0 0
  %3817 = vmatmul.mubr.bf16.gmra.mrb[0].mxu0 %v2384
  %v3818 = vpop.f32.mrb[0].mxu0
  %v3819 = vadd.f32 0.0, %v3818
  %v3820 = vpop.f32.mrb[0].mxu0
  %v3821 = vpop.f32.mrb[0].mxu0
  %v3822 = vadd.f32 0.0, %v3821
  %v3823 = vpop.f32.mrb[0].mxu0
  %3824 = vmatprep.mubr.bf16.mxu0 0
  %3825 = vmatmul.mubr.bf16.gmra.mrb[0].mxu0 %v2387
  %v3826 = vpop.f32.mrb[0].mxu0
  %v3827 = vadd.f32 0.0, %v3826
  %v3828 = vpop.f32.mrb[0].mxu0
  %v3829 = vpop.f32.mrb[0].mxu0
  %v3830 = vadd.f32 0.0, %v3829
  %v3831 = vpop.f32.mrb[0].mxu0
  %3832 = vmatprep.mubr.bf16.mxu0 0
  %3833 = vmatmul.mubr.bf16.gmra.mrb[0].mxu0 %v2390
  %v3834 = vpop.f32.mrb[0].mxu0
  %v3835 = vadd.f32 0.0, %v3834
  %v3836 = vpop.f32.mrb[0].mxu0
  %v3837 = vpop.f32.mrb[0].mxu0
  %v3838 = vadd.f32 0.0, %v3837
  %v3839 = vpop.f32.mrb[0].mxu0
  %3840 = vmatprep.mubr.bf16.mxu0 0
  %3841 = vmatmul.mubr.bf16.gmra.mrb[0].mxu0 %v2393
  %v3842 = vpop.f32.mrb[0].mxu0
  %v3843 = vadd.f32 0.0, %v3842
  %v3844 = vpop.f32.mrb[0].mxu0
  %v3845 = vpop.f32.mrb[0].mxu0
  %v3846 = vadd.f32 0.0, %v3845
  %v3847 = vpop.f32.mrb[0].mxu0
  %3848 = vmatprep.mubr.bf16.mxu0 0
  %3849 = vmatmul.mubr.bf16.gmra.mrb[0].mxu0 %v2396
  %v3850 = vpop.f32.mrb[0].mxu0
  %v3851 = vadd.f32 0.0, %v3850
  %v3852 = vpop.f32.mrb[0].mxu0
  %v3853 = vpop.f32.mrb[0].mxu0
  %v3854 = vadd.f32 0.0, %v3853
  %v3855 = vpop.f32.mrb[0].mxu0
  %3856 = vmatprep.mubr.bf16.mxu0 0
  %3857 = vmatmul.mubr.bf16.gmra.mrb[0].mxu0 %v2399
  %v3858 = vpop.f32.mrb[0].mxu0
  %v3859 = vadd.f32 0.0, %v3858
  %v3860 = vpop.f32.mrb[0].mxu0
  %v3861 = vpop.f32.mrb[0].mxu0
  %v3862 = vadd.f32 0.0, %v3861
  %v3863 = vpop.f32.mrb[0].mxu0
  %3864 = vmatprep.mubr.bf16.mxu0 0
  %3865 = vmatmul.mubr.bf16.gmra.mrb[0].mxu0 %v2402
  %v3866 = vpop.f32.mrb[0].mxu0
  %v3867 = vadd.f32 0.0, %v3866
  %v3868 = vpop.f32.mrb[0].mxu0
  %v3869 = vpop.f32.mrb[0].mxu0
  %v3870 = vadd.f32 0.0, %v3869
  %v3871 = vpop.f32.mrb[0].mxu0
  %3872 = vmatprep.mubr.bf16.mxu0 0
  %3873 = vmatmul.mubr.bf16.gmra.mrb[0].mxu0 %v2405
  %v3874 = vpop.f32.mrb[0].mxu0
  %v3875 = vadd.f32 0.0, %v3874
  %v3876 = vpop.f32.mrb[0].mxu0
  %v3877 = vpop.f32.mrb[0].mxu0
  %v3878 = vadd.f32 0.0, %v3877
  %v3879 = vpop.f32.mrb[0].mxu0
  %3880 = vmatprep.mubr.bf16.mxu0 0
  %3881 = vmatmul.mubr.bf16.gmra.mrb[0].mxu0 %v2408
  %v3882 = vpop.f32.mrb[0].mxu0
  %v3883 = vadd.f32 0.0, %v3882
  %v3884 = vpop.f32.mrb[0].mxu0
  %v3885 = vpop.f32.mrb[0].mxu0
  %v3886 = vadd.f32 0.0, %v3885
  %v3887 = vpop.f32.mrb[0].mxu0
  %3888 = vmatprep.mubr.bf16.mxu0 0
  %3889 = vmatmul.mubr.bf16.gmra.mrb[0].mxu0 %v2411
  %v3890 = vpop.f32.mrb[0].mxu0
  %v3891 = vadd.f32 0.0, %v3890
  %v3892 = vpop.f32.mrb[0].mxu0
  %v3893 = vpop.f32.mrb[0].mxu0
  %v3894 = vadd.f32 0.0, %v3893
  %v3895 = vpop.f32.mrb[0].mxu0
  %3896 = vmatprep.mubr.bf16.mxu0 0
  %3897 = vmatmul.mubr.bf16.gmra.mrb[0].mxu0 %v2414
  %v3898 = vpop.f32.mrb[0].mxu0
  %v3899 = vadd.f32 0.0, %v3898
  %v3900 = vpop.f32.mrb[0].mxu0
  %v3901 = vpop.f32.mrb[0].mxu0
  %v3902 = vadd.f32 0.0, %v3901
  %v3903 = vpop.f32.mrb[0].mxu0
  %3904 = vmatprep.mubr.bf16.mxu0 0
  %3905 = vmatmul.mubr.bf16.gmra.mrb[0].mxu0 %v2417
  %v3906 = vpop.f32.mrb[0].mxu0
  %v3907 = vadd.f32 0.0, %v3906
  %v3908 = vpop.f32.mrb[0].mxu0
  %v3909 = vpop.f32.mrb[0].mxu0
  %v3910 = vadd.f32 0.0, %v3909
  %v3911 = vpop.f32.mrb[0].mxu0
  %3912 = vmatprep.mubr.bf16.mxu0 0
  %3913 = vmatmul.mubr.bf16.gmra.mrb[0].mxu0 %v2420
  %v3914 = vpop.f32.mrb[0].mxu0
  %v3915 = vadd.f32 0.0, %v3914
  %v3916 = vpop.f32.mrb[0].mxu0
  %v3917 = vpop.f32.mrb[0].mxu0
  %v3918 = vadd.f32 0.0, %v3917
  %v3919 = vpop.f32.mrb[0].mxu0
  %3920 = vmatprep.mubr.bf16.mxu0 0
  %3921 = vmatmul.mubr.bf16.gmra.mrb[0].mxu0 %v2423
  %v3922 = vpop.f32.mrb[0].mxu0
  %v3923 = vadd.f32 0.0, %v3922
  %v3924 = vpop.f32.mrb[0].mxu0
  %v3925 = vpop.f32.mrb[0].mxu0
  %v3926 = vadd.f32 0.0, %v3925
  %v3927 = vpop.f32.mrb[0].mxu0
  %3928 = vmatprep.mubr.bf16.mxu0 0
  %3929 = vmatmul.mubr.bf16.gmra.mrb[0].mxu0 %v2426
  %v3930 = vpop.f32.mrb[0].mxu0
  %v3931 = vadd.f32 0.0, %v3930
  %v3932 = vpop.f32.mrb[0].mxu0
  %v3933 = vpop.f32.mrb[0].mxu0
  %v3934 = vadd.f32 0.0, %v3933
  %v3935 = vpop.f32.mrb[0].mxu0
  %3936 = vmatprep.mubr.bf16.mxu0 0
  %3937 = vmatmul.mubr.bf16.gmra.mrb[0].mxu0 %v2429
  %v3938 = vpop.f32.mrb[0].mxu0
  %v3939 = vadd.f32 0.0, %v3938
  %v3940 = vpop.f32.mrb[0].mxu0
  %v3941 = vpop.f32.mrb[0].mxu0
  %v3942 = vadd.f32 0.0, %v3941
  %v3943 = vpop.f32.mrb[0].mxu0
  %3944 = vmatprep.mubr.bf16.mxu0 0
  %3945 = vmatmul.mubr.bf16.gmra.mrb[0].mxu0 %v2432
  %v3946 = vpop.f32.mrb[0].mxu0
  %v3947 = vadd.f32 0.0, %v3946
  %v3948 = vpop.f32.mrb[0].mxu0
  %v3949 = vpop.f32.mrb[0].mxu0
  %v3950 = vadd.f32 0.0, %v3949
  %v3951 = vpop.f32.mrb[0].mxu0
  %3952 = vmatprep.mubr.bf16.mxu0 0
  %3953 = vmatmul.mubr.bf16.gmra.mrb[0].mxu0 %v2435
  %v3954 = vpop.f32.mrb[0].mxu0
  %v3955 = vadd.f32 0.0, %v3954
  %v3956 = vpop.f32.mrb[0].mxu0
  %v3957 = vpop.f32.mrb[0].mxu0
  %v3958 = vadd.f32 0.0, %v3957
  %v3959 = vpop.f32.mrb[0].mxu0
  %3960 = vmatprep.mubr.bf16.mxu0 0
  %3961 = vmatmul.mubr.bf16.gmra.mrb[0].mxu0 %v2438
  %v3962 = vpop.f32.mrb[0].mxu0
  %v3963 = vadd.f32 0.0, %v3962
  %v3964 = vpop.f32.mrb[0].mxu0
  %v3965 = vpop.f32.mrb[0].mxu0
  %v3966 = vadd.f32 0.0, %v3965
  %v3967 = vpop.f32.mrb[0].mxu0
  %3968 = vmatprep.mubr.bf16.mxu0 0
  %3969 = vmatmul.mubr.bf16.gmra.mrb[0].mxu0 %v2441
  %v3970 = vpop.f32.mrb[0].mxu0
  %v3971 = vadd.f32 0.0, %v3970
  %v3972 = vpop.f32.mrb[0].mxu0
  %v3973 = vpop.f32.mrb[0].mxu0
  %v3974 = vadd.f32 0.0, %v3973
  %v3975 = vpop.f32.mrb[0].mxu0
  %3976 = vmatprep.mubr.bf16.mxu0 0
  %3977 = vmatmul.mubr.bf16.gmra.mrb[0].mxu0 %v2444
  %v3978 = vpop.f32.mrb[0].mxu0
  %v3979 = vadd.f32 0.0, %v3978
  %v3980 = vpop.f32.mrb[0].mxu0
  %v3981 = vpop.f32.mrb[0].mxu0
  %v3982 = vadd.f32 0.0, %v3981
  %v3983 = vpop.f32.mrb[0].mxu0
  %3984 = vmatprep.mubr.bf16.mxu0 0
  %3985 = vmatmul.mubr.bf16.gmra.mrb[0].mxu0 %v2447
  %v3986 = vpop.f32.mrb[0].mxu0
  %v3987 = vadd.f32 0.0, %v3986
  %v3988 = vpop.f32.mrb[0].mxu0
  %v3989 = vpop.f32.mrb[0].mxu0
  %v3990 = vadd.f32 0.0, %v3989
  %v3991 = vpop.f32.mrb[0].mxu0
  %3992 = vmatprep.mubr.bf16.mxu0 0
  %3993 = vmatmul.mubr.bf16.gmra.mrb[0].mxu0 %v2450
  %v3994 = vpop.f32.mrb[0].mxu0
  %v3995 = vadd.f32 0.0, %v3994
  %v3996 = vpop.f32.mrb[0].mxu0
  %v3997 = vpop.f32.mrb[0].mxu0
  %v3998 = vadd.f32 0.0, %v3997
  %v3999 = vpop.f32.mrb[0].mxu0
  %4000 = vmatprep.mubr.bf16.mxu0 0
  %4001 = vmatmul.mubr.bf16.gmra.mrb[0].mxu0 %v2453
  %v4002 = vpop.f32.mrb[0].mxu0
  %v4003 = vadd.f32 0.0, %v4002
  %v4004 = vpop.f32.mrb[0].mxu0
  %v4005 = vpop.f32.mrb[0].mxu0
  %v4006 = vadd.f32 0.0, %v4005
  %v4007 = vpop.f32.mrb[0].mxu0
  %4008 = vmatprep.mubr.bf16.mxu0 0
  %4009 = vmatmul.mubr.bf16.gmra.mrb[0].mxu0 %v2456
  %v4010 = vpop.f32.mrb[0].mxu0
  %v4011 = vadd.f32 0.0, %v4010
  %v4012 = vpop.f32.mrb[0].mxu0
  %v4013 = vpop.f32.mrb[0].mxu0
  %v4014 = vadd.f32 0.0, %v4013
  %v4015 = vpop.f32.mrb[0].mxu0
  %4016 = vmatprep.mubr.bf16.mxu0 0
  %4017 = vmatmul.mubr.bf16.gmra.mrb[0].mxu0 %v2459
  %v4018 = vpop.f32.mrb[0].mxu0
  %v4019 = vadd.f32 0.0, %v4018
  %v4020 = vpop.f32.mrb[0].mxu0
  %v4021 = vpop.f32.mrb[0].mxu0
  %v4022 = vadd.f32 0.0, %v4021
  %v4023 = vpop.f32.mrb[0].mxu0
  %4024 = vmatprep.mubr.bf16.mxu0 0
  %4025 = vmatmul.mubr.bf16.gmra.mrb[0].mxu0 %v2462
  %v4026 = vpop.f32.mrb[0].mxu0
  %v4027 = vadd.f32 0.0, %v4026
  %v4028 = vpop.f32.mrb[0].mxu0
  %v4029 = vpop.f32.mrb[0].mxu0
  %v4030 = vadd.f32 0.0, %v4029
  %v4031 = vpop.f32.mrb[0].mxu0
  %4032 = vmatprep.mubr.bf16.mxu0 0
  %4033 = vmatmul.mubr.bf16.gmra.mrb[0].mxu0 %v2465
  %v4034 = vpop.f32.mrb[0].mxu0
  %v4035 = vadd.f32 0.0, %v4034
  %v4036 = vpop.f32.mrb[0].mxu0
  %v4037 = vpop.f32.mrb[0].mxu0
  %v4038 = vadd.f32 0.0, %v4037
  %v4039 = vpop.f32.mrb[0].mxu0
  %4040 = vmatprep.mubr.bf16.mxu0 0
  %4041 = vmatmul.mubr.bf16.gmra.mrb[0].mxu0 %v2468
  %v4042 = vpop.f32.mrb[0].mxu0
  %v4043 = vadd.f32 0.0, %v4042
  %v4044 = vpop.f32.mrb[0].mxu0
  %v4045 = vpop.f32.mrb[0].mxu0
  %v4046 = vadd.f32 0.0, %v4045
  %v4047 = vpop.f32.mrb[0].mxu0
  %4048 = vmatprep.mubr.bf16.mxu0 0
  %4049 = vmatmul.mubr.bf16.gmra.mrb[0].mxu0 %v2471
  %v4050 = vpop.f32.mrb[0].mxu0
  %v4051 = vadd.f32 0.0, %v4050
  %v4052 = vpop.f32.mrb[0].mxu0
  %v4053 = vpop.f32.mrb[0].mxu0
  %v4054 = vadd.f32 0.0, %v4053
  %v4055 = vpop.f32.mrb[0].mxu0
  %4056 = vmatprep.mubr.bf16.mxu0 0
  %4057 = vmatmul.mubr.bf16.gmra.mrb[0].mxu0 %v2474
  %v4058 = vpop.f32.mrb[0].mxu0
  %v4059 = vadd.f32 0.0, %v4058
  %v4060 = vpop.f32.mrb[0].mxu0
  %v4061 = vpop.f32.mrb[0].mxu0
  %v4062 = vadd.f32 0.0, %v4061
  %v4063 = vpop.f32.mrb[0].mxu0
  %4064 = vmatprep.mubr.bf16.mxu0 0
  %4065 = vmatmul.mubr.bf16.gmra.mrb[0].mxu0 %v2477
  %v4066 = vpop.f32.mrb[0].mxu0
  %v4067 = vadd.f32 0.0, %v4066
  %v4068 = vpop.f32.mrb[0].mxu0
  %v4069 = vpop.f32.mrb[0].mxu0
  %v4070 = vadd.f32 0.0, %v4069
  %v4071 = vpop.f32.mrb[0].mxu0
  %4072 = vmatprep.mubr.bf16.mxu0 0
  %4073 = vmatmul.mubr.bf16.gmra.mrb[0].mxu0 %v2480
  %v4074 = vpop.f32.mrb[0].mxu0
  %v4075 = vadd.f32 0.0, %v4074
  %v4076 = vpop.f32.mrb[0].mxu0
  %v4077 = vpop.f32.mrb[0].mxu0
  %v4078 = vadd.f32 0.0, %v4077
  %v4079 = vpop.f32.mrb[0].mxu0
  %4080 = vmatprep.mubr.bf16.mxu0 0
  %4081 = vmatmul.mubr.bf16.gmra.mrb[0].mxu0 %v2483
  %v4082 = vpop.f32.mrb[0].mxu0
  %v4083 = vadd.f32 0.0, %v4082
  %v4084 = vpop.f32.mrb[0].mxu0
  %v4085 = vpop.f32.mrb[0].mxu0
  %v4086 = vadd.f32 0.0, %v4085
  %v4087 = vpop.f32.mrb[0].mxu0
  %4088 = vmatprep.mubr.bf16.mxu0 0
  %4089 = vmatmul.mubr.bf16.gmra.mrb[0].mxu0 %v2486
  %v4090 = vpop.f32.mrb[0].mxu0
  %v4091 = vadd.f32 0.0, %v4090
  %v4092 = vpop.f32.mrb[0].mxu0
  %v4093 = vpop.f32.mrb[0].mxu0
  %v4094 = vadd.f32 0.0, %v4093
  %v4095 = vpop.f32.mrb[0].mxu0
  %4096 = vmatprep.mubr.bf16.mxu0 0
  %4097 = vmatmul.mubr.bf16.gmra.mrb[0].mxu0 %v2489
  %v4098 = vpop.f32.mrb[0].mxu0
  %v4099 = vadd.f32 0.0, %v4098
  %v4100 = vpop.f32.mrb[0].mxu0
  %v4101 = vpop.f32.mrb[0].mxu0
  %v4102 = vadd.f32 0.0, %v4101
  %v4103 = vpop.f32.mrb[0].mxu0
  %4104 = vmatprep.mubr.bf16.mxu0 0
  %4105 = vmatmul.mubr.bf16.gmra.mrb[0].mxu0 %v2492
  %v4106 = vpop.f32.mrb[0].mxu0
  %v4107 = vadd.f32 0.0, %v4106
  %v4108 = vpop.f32.mrb[0].mxu0
  %v4109 = vpop.f32.mrb[0].mxu0
  %v4110 = vadd.f32 0.0, %v4109
  %v4111 = vpop.f32.mrb[0].mxu0
  %4112 = vmatprep.mubr.bf16.mxu0 0
  %4113 = vmatmul.mubr.bf16.gmra.mrb[0].mxu0 %v2495
  %v4114 = vpop.f32.mrb[0].mxu0
  %v4115 = vadd.f32 0.0, %v4114
  %v4116 = vpop.f32.mrb[0].mxu0
  %v4117 = vpop.f32.mrb[0].mxu0
  %v4118 = vadd.f32 0.0, %v4117
  %v4119 = vpop.f32.mrb[0].mxu0
  %4120 = vmatprep.mubr.bf16.mxu0 0
  %4121 = vmatmul.mubr.bf16.gmra.mrb[0].mxu0 %v2498
  %v4122 = vpop.f32.mrb[0].mxu0
  %v4123 = vadd.f32 0.0, %v4122
  %v4124 = vpop.f32.mrb[0].mxu0
  %v4125 = vpop.f32.mrb[0].mxu0
  %v4126 = vadd.f32 0.0, %v4125
  %v4127 = vpop.f32.mrb[0].mxu0
  %4128 = vmatprep.mubr.bf16.mxu0 0
  %4129 = vmatmul.mubr.bf16.gmra.mrb[0].mxu0 %v2501
  %v4130 = vpop.f32.mrb[0].mxu0
  %v4131 = vadd.f32 0.0, %v4130
  %v4132 = vpop.f32.mrb[0].mxu0
  %v4133 = vpop.f32.mrb[0].mxu0
  %v4134 = vadd.f32 0.0, %v4133
  %v4135 = vpop.f32.mrb[0].mxu0
  %4136 = vmatprep.mubr.bf16.mxu0 0
  %4137 = vmatmul.mubr.bf16.gmra.mrb[0].mxu0 %v2504
  %v4138 = vpop.f32.mrb[0].mxu0
  %v4139 = vadd.f32 0.0, %v4138
  %v4140 = vpop.f32.mrb[0].mxu0
  %v4141 = vpop.f32.mrb[0].mxu0
  %v4142 = vadd.f32 0.0, %v4141
  %v4143 = vpop.f32.mrb[0].mxu0
  %4144 = vmatprep.mubr.bf16.mxu0 0
  %4145 = vmatmul.mubr.bf16.gmra.mrb[0].mxu0 %v2507
  %v4146 = vpop.f32.mrb[0].mxu0
  %v4147 = vadd.f32 0.0, %v4146
  %v4148 = vpop.f32.mrb[0].mxu0
  %v4149 = vpop.f32.mrb[0].mxu0
  %v4150 = vadd.f32 0.0, %v4149
  %v4151 = vpop.f32.mrb[0].mxu0
  %4152 = vmatprep.mubr.bf16.mxu0 0
  %4153 = vmatmul.mubr.bf16.gmra.mrb[0].mxu0 %v2510
  %v4154 = vpop.f32.mrb[0].mxu0
  %v4155 = vadd.f32 0.0, %v4154
  %v4156 = vpop.f32.mrb[0].mxu0
  %v4157 = vpop.f32.mrb[0].mxu0
  %v4158 = vadd.f32 0.0, %v4157
  %v4159 = vpop.f32.mrb[0].mxu0
  %4160 = vmatprep.mubr.bf16.mxu0 0
  %4161 = vmatmul.mubr.bf16.gmra.mrb[0].mxu0 %v2513
  %v4162 = vpop.f32.mrb[0].mxu0
  %v4163 = vadd.f32 0.0, %v4162
  %v4164 = vpop.f32.mrb[0].mxu0
  %v4165 = vpop.f32.mrb[0].mxu0
  %v4166 = vadd.f32 0.0, %v4165
  %v4167 = vpop.f32.mrb[0].mxu0
  %4168 = vmatprep.mubr.bf16.mxu0 0
  %4169 = vmatmul.mubr.bf16.gmra.mrb[0].mxu0 %v2516
  %v4170 = vpop.f32.mrb[0].mxu0
  %v4171 = vadd.f32 0.0, %v4170
  %v4172 = vpop.f32.mrb[0].mxu0
  %v4173 = vpop.f32.mrb[0].mxu0
  %v4174 = vadd.f32 0.0, %v4173
  %v4175 = vpop.f32.mrb[0].mxu0
  %4176 = vmatprep.mubr.bf16.mxu0 0
  %4177 = vmatmul.mubr.bf16.gmra.mrb[0].mxu0 %v2519
  %v4178 = vpop.f32.mrb[0].mxu0
  %v4179 = vadd.f32 0.0, %v4178
  %v4180 = vpop.f32.mrb[0].mxu0
  %v4181 = vpop.f32.mrb[0].mxu0
  %v4182 = vadd.f32 0.0, %v4181
  %v4183 = vpop.f32.mrb[0].mxu0
  %4184 = vmatprep.mubr.bf16.mxu0 0
  %4185 = vmatmul.mubr.bf16.gmra.mrb[0].mxu0 %v2522
  %v4186 = vpop.f32.mrb[0].mxu0
  %v4187 = vadd.f32 0.0, %v4186
  %v4188 = vpop.f32.mrb[0].mxu0
  %v4189 = vpop.f32.mrb[0].mxu0
  %v4190 = vadd.f32 0.0, %v4189
  %v4191 = vpop.f32.mrb[0].mxu0
  %4192 = vmatprep.mubr.bf16.mxu0 0
  %4193 = vmatmul.mubr.bf16.gmra.mrb[0].mxu0 %v2525
  %v4194 = vpop.f32.mrb[0].mxu0
  %v4195 = vadd.f32 0.0, %v4194
  %v4196 = vpop.f32.mrb[0].mxu0
  %v4197 = vpop.f32.mrb[0].mxu0
  %v4198 = vadd.f32 0.0, %v4197
  %v4199 = vpop.f32.mrb[0].mxu0
  %4200 = vmatprep.mubr.bf16.mxu0 0
  %4201 = vmatmul.mubr.bf16.gmra.mrb[0].mxu0 %v2528
  %v4202 = vpop.f32.mrb[0].mxu0
  %v4203 = vadd.f32 0.0, %v4202
  %v4204 = vpop.f32.mrb[0].mxu0
  %v4205 = vpop.f32.mrb[0].mxu0
  %v4206 = vadd.f32 0.0, %v4205
  %v4207 = vpop.f32.mrb[0].mxu0
  %4208 = vmatprep.mubr.bf16.mxu0 0
  %4209 = vmatmul.mubr.bf16.gmra.mrb[0].mxu0 %v2531
  %v4210 = vpop.f32.mrb[0].mxu0
  %v4211 = vadd.f32 0.0, %v4210
  %v4212 = vpop.f32.mrb[0].mxu0
  %v4213 = vpop.f32.mrb[0].mxu0
  %v4214 = vadd.f32 0.0, %v4213
  %v4215 = vpop.f32.mrb[0].mxu0
  %4216 = vmatprep.mubr.bf16.mxu0 0
  %4217 = vmatmul.mubr.bf16.gmra.mrb[0].mxu0 %v2534
  %v4218 = vpop.f32.mrb[0].mxu0
  %v4219 = vadd.f32 0.0, %v4218
  %v4220 = vpop.f32.mrb[0].mxu0
  %v4221 = vpop.f32.mrb[0].mxu0
  %v4222 = vadd.f32 0.0, %v4221
  %v4223 = vpop.f32.mrb[0].mxu0
  %4224 = vmatprep.mubr.bf16.mxu0 0
  %4225 = vmatmul.mubr.bf16.gmra.mrb[0].mxu0 %v2537
  %v4226 = vpop.f32.mrb[0].mxu0
  %v4227 = vadd.f32 0.0, %v4226
  %v4228 = vpop.f32.mrb[0].mxu0
  %v4229 = vpop.f32.mrb[0].mxu0
  %v4230 = vadd.f32 0.0, %v4229
  %v4231 = vpop.f32.mrb[0].mxu0
  %4232 = vmatprep.mubr.bf16.mxu0 0
  %4233 = vmatmul.mubr.bf16.gmra.mrb[0].mxu0 %v2540
  %v4234 = vpop.f32.mrb[0].mxu0
  %v4235 = vadd.f32 0.0, %v4234
  %v4236 = vpop.f32.mrb[0].mxu0
  %v4237 = vpop.f32.mrb[0].mxu0
  %v4238 = vadd.f32 0.0, %v4237
  %v4239 = vpop.f32.mrb[0].mxu0
  %4240 = vmatprep.mubr.bf16.mxu0 0
  %4241 = vmatmul.mubr.bf16.gmra.mrb[0].mxu0 %v2543
  %v4242 = vpop.f32.mrb[0].mxu0
  %v4243 = vadd.f32 0.0, %v4242
  %v4244 = vpop.f32.mrb[0].mxu0
  %v4245 = vpop.f32.mrb[0].mxu0
  %v4246 = vadd.f32 0.0, %v4245
  %v4247 = vpop.f32.mrb[0].mxu0
  %4248 = vmatprep.mubr.bf16.mxu0 0
  %4249 = vmatmul.mubr.bf16.gmra.mrb[0].mxu0 %v2546
  %v4250 = vpop.f32.mrb[0].mxu0
  %v4251 = vadd.f32 0.0, %v4250
  %v4252 = vpop.f32.mrb[0].mxu0
  %v4253 = vpop.f32.mrb[0].mxu0
  %v4254 = vadd.f32 0.0, %v4253
  %v4255 = vpop.f32.mrb[0].mxu0
  %4256 = vmatprep.mubr.bf16.mxu0 0
  %4257 = vmatmul.mubr.bf16.gmra.mrb[0].mxu0 %v2549
  %v4258 = vpop.f32.mrb[0].mxu0
  %v4259 = vadd.f32 0.0, %v4258
  %v4260 = vpop.f32.mrb[0].mxu0
  %v4261 = vpop.f32.mrb[0].mxu0
  %v4262 = vadd.f32 0.0, %v4261
  %v4263 = vpop.f32.mrb[0].mxu0
  %4264 = vmatprep.mubr.bf16.mxu0 0
  %4265 = vmatmul.mubr.bf16.gmra.mrb[0].mxu0 %v2552
  %v4266 = vpop.f32.mrb[0].mxu0
  %v4267 = vadd.f32 0.0, %v4266
  %v4268 = vpop.f32.mrb[0].mxu0
  %v4269 = vpop.f32.mrb[0].mxu0
  %v4270 = vadd.f32 0.0, %v4269
  %v4271 = vpop.f32.mrb[0].mxu0
  %4272 = vmatprep.mubr.bf16.mxu0 0
  %4273 = vmatmul.mubr.bf16.gmra.mrb[0].mxu0 %v2555
  %v4274 = vpop.f32.mrb[0].mxu0
  %v4275 = vadd.f32 0.0, %v4274
  %v4276 = vpop.f32.mrb[0].mxu0
  %v4277 = vpop.f32.mrb[0].mxu0
  %v4278 = vadd.f32 0.0, %v4277
  %v4279 = vpop.f32.mrb[0].mxu0
  %4280 = vmatprep.mubr.bf16.mxu0 0
  %4281 = vmatmul.mubr.bf16.gmra.mrb[0].mxu0 %v2558
  %v4282 = vpop.f32.mrb[0].mxu0
  %v4283 = vadd.f32 0.0, %v4282
  %v4284 = vpop.f32.mrb[0].mxu0
  %v4285 = vpop.f32.mrb[0].mxu0
  %v4286 = vadd.f32 0.0, %v4285
  %v4287 = vpop.f32.mrb[0].mxu0
  %4288 = vmatprep.mubr.bf16.mxu0 0
  %4289 = vmatmul.mubr.bf16.gmra.mrb[0].mxu0 %v2561
  %v4290 = vpop.f32.mrb[0].mxu0
  %v4291 = vadd.f32 0.0, %v4290
  %v4292 = vpop.f32.mrb[0].mxu0
  %v4293 = vpop.f32.mrb[0].mxu0
  %v4294 = vadd.f32 0.0, %v4293
  %v4295 = vpop.f32.mrb[0].mxu0
  %4296 = vmatprep.mubr.bf16.mxu0 0
  %4297 = vmatmul.mubr.bf16.gmra.mrb[0].mxu0 %v2564
  %v4298 = vpop.f32.mrb[0].mxu0
  %v4299 = vadd.f32 0.0, %v4298
  %v4300 = vpop.f32.mrb[0].mxu0
  %v4301 = vpop.f32.mrb[0].mxu0
  %v4302 = vadd.f32 0.0, %v4301
  %v4303 = vpop.f32.mrb[0].mxu0
  %4304 = vmatprep.mubr.bf16.mxu0 0
  %4305 = vmatmul.mubr.bf16.gmra.mrb[0].mxu0 %v2567
  %v4306 = vpop.f32.mrb[0].mxu0
  %v4307 = vadd.f32 0.0, %v4306
  %v4308 = vpop.f32.mrb[0].mxu0
  %v4309 = vpop.f32.mrb[0].mxu0
  %v4310 = vadd.f32 0.0, %v4309
  %v4311 = vpop.f32.mrb[0].mxu0
  %4312 = vmatprep.mubr.bf16.mxu0 0
  %4313 = vmatmul.mubr.bf16.gmra.mrb[0].mxu0 %v2570
  %v4314 = vpop.f32.mrb[0].mxu0
  %v4315 = vadd.f32 0.0, %v4314
  %v4316 = vpop.f32.mrb[0].mxu0
  %v4317 = vpop.f32.mrb[0].mxu0
  %v4318 = vadd.f32 0.0, %v4317
  %v4319 = vpop.f32.mrb[0].mxu0
  %4320 = vmatprep.mubr.bf16.mxu0 0
  %4321 = vmatmul.mubr.bf16.gmra.mrb[0].mxu0 %v2573
  %v4322 = vpop.f32.mrb[0].mxu0
  %v4323 = vadd.f32 0.0, %v4322
  %v4324 = vpop.f32.mrb[0].mxu0
  %v4325 = vpop.f32.mrb[0].mxu0
  %v4326 = vadd.f32 0.0, %v4325
  %v4327 = vpop.f32.mrb[0].mxu0
  %4328 = vmatprep.mubr.bf16.mxu0 0
  %4329 = vmatmul.mubr.bf16.gmra.mrb[0].mxu0 %v2576
  %v4330 = vpop.f32.mrb[0].mxu0
  %v4331 = vadd.f32 0.0, %v4330
  %v4332 = vpop.f32.mrb[0].mxu0
  %v4333 = vpop.f32.mrb[0].mxu0
  %v4334 = vadd.f32 0.0, %v4333
  %v4335 = vpop.f32.mrb[0].mxu0
  %4336 = vmatprep.mubr.bf16.mxu0 0
  %4337 = vmatmul.mubr.bf16.gmra.mrb[0].mxu0 %v2579
  %v4338 = vpop.f32.mrb[0].mxu0
  %v4339 = vadd.f32 0.0, %v4338
  %v4340 = vpop.f32.mrb[0].mxu0
  %v4341 = vpop.f32.mrb[0].mxu0
  %v4342 = vadd.f32 0.0, %v4341
  %v4343 = vpop.f32.mrb[0].mxu0
  %4344 = vmatprep.mubr.bf16.mxu0 0
  %4345 = vmatmul.mubr.bf16.gmra.mrb[0].mxu0 %v2582
  %v4346 = vpop.f32.mrb[0].mxu0
  %v4347 = vadd.f32 0.0, %v4346
  %v4348 = vpop.f32.mrb[0].mxu0
  %v4349 = vpop.f32.mrb[0].mxu0
  %v4350 = vadd.f32 0.0, %v4349
  %v4351 = vpop.f32.mrb[0].mxu0
  %4352 = vmatprep.mubr.bf16.mxu0 0
  %4353 = vmatmul.mubr.bf16.gmra.mrb[0].mxu0 %v2585
  %v4354 = vpop.f32.mrb[0].mxu0
  %v4355 = vadd.f32 0.0, %v4354
  %v4356 = vpop.f32.mrb[0].mxu0
  %v4357 = vpop.f32.mrb[0].mxu0
  %v4358 = vadd.f32 0.0, %v4357
  %v4359 = vpop.f32.mrb[0].mxu0
  %4360 = vmatprep.mubr.bf16.mxu0 0
  %4361 = vmatmul.mubr.bf16.gmra.mrb[0].mxu0 %v2588
  %v4362 = vpop.f32.mrb[0].mxu0
  %v4363 = vadd.f32 0.0, %v4362
  %v4364 = vpop.f32.mrb[0].mxu0
  %v4365 = vpop.f32.mrb[0].mxu0
  %v4366 = vadd.f32 0.0, %v4365
  %v4367 = vpop.f32.mrb[0].mxu0
  %4368 = vmatprep.mubr.bf16.mxu0 0
  %4369 = vmatmul.mubr.bf16.gmra.mrb[0].mxu0 %v2591
  %v4370 = vpop.f32.mrb[0].mxu0
  %v4371 = vadd.f32 0.0, %v4370
  %v4372 = vpop.f32.mrb[0].mxu0
  %v4373 = vpop.f32.mrb[0].mxu0
  %v4374 = vadd.f32 0.0, %v4373
  %v4375 = vpop.f32.mrb[0].mxu0
  %4376 = vmatprep.mubr.bf16.mxu0 0
  %4377 = vmatmul.mubr.bf16.gmra.mrb[0].mxu0 %v2594
  %v4378 = vpop.f32.mrb[0].mxu0
  %v4379 = vadd.f32 0.0, %v4378
  %v4380 = vpop.f32.mrb[0].mxu0
  %v4381 = vpop.f32.mrb[0].mxu0
  %v4382 = vadd.f32 0.0, %v4381
  %v4383 = vpop.f32.mrb[0].mxu0
  %4384 = vmatprep.mubr.bf16.mxu0 0
  %4385 = vmatmul.mubr.bf16.gmra.mrb[0].mxu0 %v2597
  %v4386 = vpop.f32.mrb[0].mxu0
  %v4387 = vadd.f32 0.0, %v4386
  %v4388 = vpop.f32.mrb[0].mxu0
  %v4389 = vpop.f32.mrb[0].mxu0
  %v4390 = vadd.f32 0.0, %v4389
  %v4391 = vpop.f32.mrb[0].mxu0
  %4392 = vmatprep.mubr.bf16.mxu0 0
  %4393 = vmatmul.mubr.bf16.gmra.mrb[0].mxu0 %v2600
  %v4394 = vpop.f32.mrb[0].mxu0
  %v4395 = vadd.f32 0.0, %v4394
  %v4396 = vpop.f32.mrb[0].mxu0
  %v4397 = vpop.f32.mrb[0].mxu0
  %v4398 = vadd.f32 0.0, %v4397
  %v4399 = vpop.f32.mrb[0].mxu0
  %4400 = vmatprep.mubr.bf16.mxu0 0
  %4401 = vmatmul.mubr.bf16.gmra.mrb[0].mxu0 %v2603
  %v4402 = vpop.f32.mrb[0].mxu0
  %v4403 = vadd.f32 0.0, %v4402
  %v4404 = vpop.f32.mrb[0].mxu0
  %v4405 = vpop.f32.mrb[0].mxu0
  %v4406 = vadd.f32 0.0, %v4405
  %v4407 = vpop.f32.mrb[0].mxu0
  %4408 = vmatprep.mubr.bf16.mxu0 0
  %4409 = vmatmul.mubr.bf16.gmra.mrb[0].mxu0 %v2606
  %v4410 = vpop.f32.mrb[0].mxu0
  %v4411 = vadd.f32 0.0, %v4410
  %v4412 = vpop.f32.mrb[0].mxu0
  %v4413 = vpop.f32.mrb[0].mxu0
  %v4414 = vadd.f32 0.0, %v4413
  %v4415 = vpop.f32.mrb[0].mxu0
  %4416 = vmatprep.mubr.bf16.mxu0 0
  %4417 = vmatmul.mubr.bf16.gmra.mrb[0].mxu0 %v2609
  %v4418 = vpop.f32.mrb[0].mxu0
  %v4419 = vadd.f32 0.0, %v4418
  %v4420 = vpop.f32.mrb[0].mxu0
  %v4421 = vpop.f32.mrb[0].mxu0
  %v4422 = vadd.f32 0.0, %v4421
  %v4423 = vpop.f32.mrb[0].mxu0
  %4424 = vmatprep.mubr.bf16.mxu0 0
  %4425 = vmatmul.mubr.bf16.gmra.mrb[0].mxu0 %v2612
  %v4426 = vpop.f32.mrb[0].mxu0
  %v4427 = vadd.f32 0.0, %v4426
  %v4428 = vpop.f32.mrb[0].mxu0
  %v4429 = vpop.f32.mrb[0].mxu0
  %v4430 = vadd.f32 0.0, %v4429
  %v4431 = vpop.f32.mrb[0].mxu0
  %4432 = vmatprep.mubr.bf16.mxu0 0
  %4433 = vmatmul.mubr.bf16.gmra.mrb[0].mxu0 %v2615
  %v4434 = vpop.f32.mrb[0].mxu0
  %v4435 = vadd.f32 0.0, %v4434
  %v4436 = vpop.f32.mrb[0].mxu0
  %v4437 = vpop.f32.mrb[0].mxu0
  %v4438 = vadd.f32 0.0, %v4437
  %v4439 = vpop.f32.mrb[0].mxu0
  %4440 = vmatprep.mubr.bf16.mxu0 0
  %4441 = vmatmul.mubr.bf16.gmra.mrb[0].mxu0 %v2618
  %v4442 = vpop.f32.mrb[0].mxu0
  %v4443 = vadd.f32 0.0, %v4442
  %v4444 = vpop.f32.mrb[0].mxu0
  %v4445 = vpop.f32.mrb[0].mxu0
  %v4446 = vadd.f32 0.0, %v4445
  %v4447 = vpop.f32.mrb[0].mxu0
  %4448 = vmatprep.mubr.bf16.mxu0 0
  %4449 = vmatmul.mubr.bf16.gmra.mrb[0].mxu0 %v2621
  %v4450 = vpop.f32.mrb[0].mxu0
  %v4451 = vadd.f32 0.0, %v4450
  %v4452 = vpop.f32.mrb[0].mxu0
  %v4453 = vpop.f32.mrb[0].mxu0
  %v4454 = vadd.f32 0.0, %v4453
  %v4455 = vpop.f32.mrb[0].mxu0
  %4456 = vmatprep.mubr.bf16.mxu0 0
  %4457 = vmatmul.mubr.bf16.gmra.mrb[0].mxu0 %v2624
  %v4458 = vpop.f32.mrb[0].mxu0
  %v4459 = vadd.f32 0.0, %v4458
  %v4460 = vpop.f32.mrb[0].mxu0
  %v4461 = vpop.f32.mrb[0].mxu0
  %v4462 = vadd.f32 0.0, %v4461
  %v4463 = vpop.f32.mrb[0].mxu0
  %4464 = vmatprep.mubr.bf16.mxu0 0
  %4465 = vmatmul.mubr.bf16.gmra.mrb[0].mxu0 %v2627
  %v4466 = vpop.f32.mrb[0].mxu0
  %v4467 = vadd.f32 0.0, %v4466
  %v4468 = vpop.f32.mrb[0].mxu0
  %v4469 = vpop.f32.mrb[0].mxu0
  %v4470 = vadd.f32 0.0, %v4469
  %v4471 = vpop.f32.mrb[0].mxu0
  %4472 = vmatprep.mubr.bf16.mxu0 0
  %4473 = vmatmul.mubr.bf16.gmra.mrb[0].mxu0 %v2630
  %v4474 = vpop.f32.mrb[0].mxu0
  %v4475 = vadd.f32 0.0, %v4474
  %v4476 = vpop.f32.mrb[0].mxu0
  %v4477 = vpop.f32.mrb[0].mxu0
  %v4478 = vadd.f32 0.0, %v4477
  %v4479 = vpop.f32.mrb[0].mxu0
  %4480 = vmatprep.mubr.bf16.mxu0 0
  %4481 = vmatmul.mubr.bf16.gmra.mrb[0].mxu0 %v2633
  %v4482 = vpop.f32.mrb[0].mxu0
  %v4483 = vadd.f32 0.0, %v4482
  %v4484 = vpop.f32.mrb[0].mxu0
  %v4485 = vpop.f32.mrb[0].mxu0
  %v4486 = vadd.f32 0.0, %v4485
  %v4487 = vpop.f32.mrb[0].mxu0
  %4488 = vmatprep.mubr.bf16.mxu0 0
  %4489 = vmatmul.mubr.bf16.gmra.mrb[0].mxu0 %v2636
  %v4490 = vpop.f32.mrb[0].mxu0
  %v4491 = vadd.f32 0.0, %v4490
  %v4492 = vpop.f32.mrb[0].mxu0
  %v4493 = vpop.f32.mrb[0].mxu0
  %v4494 = vadd.f32 0.0, %v4493
  %v4495 = vpop.f32.mrb[0].mxu0
  %4496 = vmatprep.mubr.bf16.mxu0 0
  %4497 = vmatmul.mubr.bf16.gmra.mrb[0].mxu0 %v2639
  %v4498 = vpop.f32.mrb[0].mxu0
  %v4499 = vadd.f32 0.0, %v4498
  %v4500 = vpop.f32.mrb[0].mxu0
  %v4501 = vpop.f32.mrb[0].mxu0
  %v4502 = vadd.f32 0.0, %v4501
  %v4503 = vpop.f32.mrb[0].mxu0
  %4504 = vmatprep.mubr.bf16.mxu0 0
  %4505 = vmatmul.mubr.bf16.gmra.mrb[0].mxu0 %v2642
  %v4506 = vpop.f32.mrb[0].mxu0
  %v4507 = vadd.f32 0.0, %v4506
  %v4508 = vpop.f32.mrb[0].mxu0
  %v4509 = vpop.f32.mrb[0].mxu0
  %v4510 = vadd.f32 0.0, %v4509
  %v4511 = vpop.f32.mrb[0].mxu0
  %4512 = vmatprep.mubr.bf16.mxu0 0
  %4513 = vmatmul.mubr.bf16.gmra.mrb[0].mxu0 %v2645
  %v4514 = vpop.f32.mrb[0].mxu0
  %v4515 = vadd.f32 0.0, %v4514
  %v4516 = vpop.f32.mrb[0].mxu0
  %v4517 = vpop.f32.mrb[0].mxu0
  %v4518 = vadd.f32 0.0, %v4517
  %v4519 = vpop.f32.mrb[0].mxu0
  %4520 = vmatprep.mubr.bf16.mxu0 0
  %4521 = vmatmul.mubr.bf16.gmra.mrb[0].mxu0 %v2648
  %v4522 = vpop.f32.mrb[0].mxu0
  %v4523 = vadd.f32 0.0, %v4522
  %v4524 = vpop.f32.mrb[0].mxu0
  %v4525 = vpop.f32.mrb[0].mxu0
  %v4526 = vadd.f32 0.0, %v4525
  %v4527 = vpop.f32.mrb[0].mxu0
  %4528 = vmatprep.mubr.bf16.mxu0 0
  %4529 = vmatmul.mubr.bf16.gmra.mrb[0].mxu0 %v2651
  %v4530 = vpop.f32.mrb[0].mxu0
  %v4531 = vadd.f32 0.0, %v4530
  %v4532 = vpop.f32.mrb[0].mxu0
  %v4533 = vpop.f32.mrb[0].mxu0
  %v4534 = vadd.f32 0.0, %v4533
  %v4535 = vpop.f32.mrb[0].mxu0
  %4536 = vmatprep.mubr.bf16.mxu0 0
  %4537 = vmatmul.mubr.bf16.gmra.mrb[0].mxu0 %v2654
  %v4538 = vpop.f32.mrb[0].mxu0
  %v4539 = vadd.f32 0.0, %v4538
  %v4540 = vpop.f32.mrb[0].mxu0
  %v4541 = vpop.f32.mrb[0].mxu0
  %v4542 = vadd.f32 0.0, %v4541
  %v4543 = vpop.f32.mrb[0].mxu0
  %4544 = vmatprep.mubr.bf16.mxu0 0
  %4545 = vmatmul.mubr.bf16.gmra.mrb[0].mxu0 %v2657
  %v4546 = vpop.f32.mrb[0].mxu0
  %v4547 = vadd.f32 0.0, %v4546
  %v4548 = vpop.f32.mrb[0].mxu0
  %v4549 = vpop.f32.mrb[0].mxu0
  %v4550 = vadd.f32 0.0, %v4549
  %v4551 = vpop.f32.mrb[0].mxu0
  %4552 = vmatprep.mubr.bf16.mxu0 0
  %4553 = vmatmul.mubr.bf16.gmra.mrb[0].mxu0 %v2660
  %v4554 = vpop.f32.mrb[0].mxu0
  %v4555 = vadd.f32 0.0, %v4554
  %v4556 = vpop.f32.mrb[0].mxu0
  %v4557 = vpop.f32.mrb[0].mxu0
  %v4558 = vadd.f32 0.0, %v4557
  %v4559 = vpop.f32.mrb[0].mxu0
  %4560 = vmatprep.mubr.bf16.mxu0 0
  %4561 = vmatmul.mubr.bf16.gmra.mrb[0].mxu0 %v2663
  %v4562 = vpop.f32.mrb[0].mxu0
  %v4563 = vadd.f32 0.0, %v4562
  %v4564 = vpop.f32.mrb[0].mxu0
  %v4565 = vpop.f32.mrb[0].mxu0
  %v4566 = vadd.f32 0.0, %v4565
  %v4567 = vpop.f32.mrb[0].mxu0
  %4568 = vmatprep.mubr.bf16.mxu0 0
  %4569 = vmatmul.mubr.bf16.gmra.mrb[0].mxu0 %v2666
  %v4570 = vpop.f32.mrb[0].mxu0
  %v4571 = vadd.f32 0.0, %v4570
  %v4572 = vpop.f32.mrb[0].mxu0
  %v4573 = vpop.f32.mrb[0].mxu0
  %v4574 = vadd.f32 0.0, %v4573
  %v4575 = vpop.f32.mrb[0].mxu0
  %4576 = vmatprep.mubr.bf16.mxu0 0
  %4577 = vmatmul.mubr.bf16.gmra.mrb[0].mxu0 %v2669
  %v4578 = vpop.f32.mrb[0].mxu0
  %v4579 = vadd.f32 0.0, %v4578
  %v4580 = vpop.f32.mrb[0].mxu0
  %v4581 = vpop.f32.mrb[0].mxu0
  %v4582 = vadd.f32 0.0, %v4581
  %v4583 = vpop.f32.mrb[0].mxu0
  %4584 = vmatprep.mubr.bf16.mxu0 0
  %4585 = vmatmul.mubr.bf16.gmra.mrb[0].mxu0 %v2672
  %v4586 = vpop.f32.mrb[0].mxu0
  %v4587 = vadd.f32 0.0, %v4586
  %v4588 = vpop.f32.mrb[0].mxu0
  %v4589 = vpop.f32.mrb[0].mxu0
  %v4590 = vadd.f32 0.0, %v4589
  %v4591 = vpop.f32.mrb[0].mxu0
  %4592 = vmatprep.mubr.bf16.mxu0 0
  %4593 = vmatmul.mubr.bf16.gmra.mrb[0].mxu0 %v2675
  %v4594 = vpop.f32.mrb[0].mxu0
  %v4595 = vadd.f32 0.0, %v4594
  %v4596 = vpop.f32.mrb[0].mxu0
  %v4597 = vpop.f32.mrb[0].mxu0
  %v4598 = vadd.f32 0.0, %v4597
  %v4599 = vpop.f32.mrb[0].mxu0
  %4600 = vmatprep.mubr.bf16.mxu0 0
  %4601 = vmatmul.mubr.bf16.gmra.mrb[0].mxu0 %v2678
  %v4602 = vpop.f32.mrb[0].mxu0
  %v4603 = vadd.f32 0.0, %v4602
  %v4604 = vpop.f32.mrb[0].mxu0
  %v4605 = vpop.f32.mrb[0].mxu0
  %v4606 = vadd.f32 0.0, %v4605
  %v4607 = vpop.f32.mrb[0].mxu0
  %4608 = vmatprep.mubr.bf16.mxu0 0
  %4609 = vmatmul.mubr.bf16.gmra.mrb[0].mxu0 %v2681
  %v4610 = vpop.f32.mrb[0].mxu0
  %v4611 = vadd.f32 0.0, %v4610
  %v4612 = vpop.f32.mrb[0].mxu0
  %v4613 = vpop.f32.mrb[0].mxu0
  %v4614 = vadd.f32 0.0, %v4613
  %v4615 = vpop.f32.mrb[0].mxu0
  %4616 = vmatprep.mubr.bf16.mxu0 0
  %4617 = vmatmul.mubr.bf16.gmra.mrb[0].mxu0 %v2684
  %v4618 = vpop.f32.mrb[0].mxu0
  %v4619 = vadd.f32 0.0, %v4618
  %v4620 = vpop.f32.mrb[0].mxu0
  %v4621 = vpop.f32.mrb[0].mxu0
  %v4622 = vadd.f32 0.0, %v4621
  %v4623 = vpop.f32.mrb[0].mxu0
  %4624 = vmatprep.mubr.bf16.mxu0 0
  %4625 = vmatmul.mubr.bf16.gmra.mrb[0].mxu0 %v2687
  %v4626 = vpop.f32.mrb[0].mxu0
  %v4627 = vadd.f32 0.0, %v4626
  %v4628 = vpop.f32.mrb[0].mxu0
  %v4629 = vpop.f32.mrb[0].mxu0
  %v4630 = vadd.f32 0.0, %v4629
  %v4631 = vpop.f32.mrb[0].mxu0
  %4632 = vmatprep.mubr.bf16.mxu0 0
  %4633 = vmatmul.mubr.bf16.gmra.mrb[0].mxu0 %v2690
  %v4634 = vpop.f32.mrb[0].mxu0
  %v4635 = vadd.f32 0.0, %v4634
  %v4636 = vpop.f32.mrb[0].mxu0
  %v4637 = vpop.f32.mrb[0].mxu0
  %v4638 = vadd.f32 0.0, %v4637
  %v4639 = vpop.f32.mrb[0].mxu0
  %4640 = vmatprep.mubr.bf16.mxu0 0
  %4641 = vmatmul.mubr.bf16.gmra.mrb[0].mxu0 %v2693
  %v4642 = vpop.f32.mrb[0].mxu0
  %v4643 = vadd.f32 0.0, %v4642
  %v4644 = vpop.f32.mrb[0].mxu0
  %v4645 = vpop.f32.mrb[0].mxu0
  %v4646 = vadd.f32 0.0, %v4645
  %v4647 = vpop.f32.mrb[0].mxu0
  %4648 = vmatprep.mubr.bf16.mxu0 0
  %4649 = vmatmul.mubr.bf16.gmra.mrb[0].mxu0 %v2696
  %v4650 = vpop.f32.mrb[0].mxu0
  %v4651 = vadd.f32 0.0, %v4650
  %v4652 = vpop.f32.mrb[0].mxu0
  %v4653 = vpop.f32.mrb[0].mxu0
  %v4654 = vadd.f32 0.0, %v4653
  %v4655 = vpop.f32.mrb[0].mxu0
  %4656 = vmatprep.mubr.bf16.mxu0 0
  %4657 = vmatmul.mubr.bf16.gmra.mrb[0].mxu0 %v2699
  %v4658 = vpop.f32.mrb[0].mxu0
  %v4659 = vadd.f32 0.0, %v4658
  %v4660 = vpop.f32.mrb[0].mxu0
  %v4661 = vpop.f32.mrb[0].mxu0
  %v4662 = vadd.f32 0.0, %v4661
  %v4663 = vpop.f32.mrb[0].mxu0
  %4664 = vmatprep.mubr.bf16.mxu0 0
  %4665 = vmatmul.mubr.bf16.gmra.mrb[0].mxu0 %v2702
  %v4666 = vpop.f32.mrb[0].mxu0
  %v4667 = vadd.f32 0.0, %v4666
  %v4668 = vpop.f32.mrb[0].mxu0
  %v4669 = vpop.f32.mrb[0].mxu0
  %v4670 = vadd.f32 0.0, %v4669
  %v4671 = vpop.f32.mrb[0].mxu0
  %4672 = vmatprep.mubr.bf16.mxu0 0
  %4673 = vmatmul.mubr.bf16.gmra.mrb[0].mxu0 %v2705
  %v4674 = vpop.f32.mrb[0].mxu0
  %v4675 = vadd.f32 0.0, %v4674
  %v4676 = vpop.f32.mrb[0].mxu0
  %v4677 = vpop.f32.mrb[0].mxu0
  %v4678 = vadd.f32 0.0, %v4677
  %v4679 = vpop.f32.mrb[0].mxu0
  %4680 = vmatprep.mubr.bf16.mxu0 0
  %4681 = vmatmul.mubr.bf16.gmra.mrb[0].mxu0 %v2708
  %v4682 = vpop.f32.mrb[0].mxu0
  %v4683 = vadd.f32 0.0, %v4682
  %v4684 = vpop.f32.mrb[0].mxu0
  %v4685 = vpop.f32.mrb[0].mxu0
  %v4686 = vadd.f32 0.0, %v4685
  %v4687 = vpop.f32.mrb[0].mxu0
  %4688 = vmatprep.mubr.bf16.mxu0 0
  %4689 = vmatmul.mubr.bf16.gmra.mrb[0].mxu0 %v2711
  %v4690 = vpop.f32.mrb[0].mxu0
  %v4691 = vadd.f32 0.0, %v4690
  %v4692 = vpop.f32.mrb[0].mxu0
  %v4693 = vpop.f32.mrb[0].mxu0
  %v4694 = vadd.f32 0.0, %v4693
  %v4695 = vpop.f32.mrb[0].mxu0
  %4696 = vmatprep.mubr.bf16.mxu0 0
  %4697 = vmatmul.mubr.bf16.gmra.mrb[0].mxu0 %v2714
  %v4698 = vpop.f32.mrb[0].mxu0
  %v4699 = vadd.f32 0.0, %v4698
  %v4700 = vpop.f32.mrb[0].mxu0
  %v4701 = vpop.f32.mrb[0].mxu0
  %v4702 = vadd.f32 0.0, %v4701
  %v4703 = vpop.f32.mrb[0].mxu0
  %4704 = vmatprep.mubr.bf16.mxu0 0
  %4705 = vmatmul.mubr.bf16.gmra.mrb[0].mxu0 %v2717
  %v4706 = vpop.f32.mrb[0].mxu0
  %v4707 = vadd.f32 0.0, %v4706
  %v4708 = vpop.f32.mrb[0].mxu0
  %v4709 = vpop.f32.mrb[0].mxu0
  %v4710 = vadd.f32 0.0, %v4709
  %v4711 = vpop.f32.mrb[0].mxu0
  %4712 = vmatprep.mubr.bf16.mxu0 0
  %4713 = vmatmul.mubr.bf16.gmra.mrb[0].mxu0 %v2720
  %v4714 = vpop.f32.mrb[0].mxu0
  %v4715 = vadd.f32 0.0, %v4714
  %v4716 = vpop.f32.mrb[0].mxu0
  %v4717 = vpop.f32.mrb[0].mxu0
  %v4718 = vadd.f32 0.0, %v4717
  %v4719 = vpop.f32.mrb[0].mxu0
  %4720 = vmatprep.mubr.bf16.mxu0 0
  %4721 = vmatmul.mubr.bf16.gmra.mrb[0].mxu0 %v2723
  %v4722 = vpop.f32.mrb[0].mxu0
  %v4723 = vadd.f32 0.0, %v4722
  %v4724 = vpop.f32.mrb[0].mxu0
  %v4725 = vpop.f32.mrb[0].mxu0
  %v4726 = vadd.f32 0.0, %v4725
  %v4727 = vpop.f32.mrb[0].mxu0
  %4728 = vmatprep.mubr.bf16.mxu0 0
  %4729 = vmatmul.mubr.bf16.gmra.mrb[0].mxu0 %v2726
  %v4730 = vpop.f32.mrb[0].mxu0
  %v4731 = vadd.f32 0.0, %v4730
  %v4732 = vpop.f32.mrb[0].mxu0
  %v4733 = vpop.f32.mrb[0].mxu0
  %v4734 = vadd.f32 0.0, %v4733
  %v4735 = vpop.f32.mrb[0].mxu0
  %4736 = vmatprep.mubr.bf16.mxu0 0
  %4737 = vmatmul.mubr.bf16.gmra.mrb[0].mxu0 %v2729
  %v4738 = vpop.f32.mrb[0].mxu0
  %v4739 = vadd.f32 0.0, %v4738
  %v4740 = vpop.f32.mrb[0].mxu0
  %v4741 = vpop.f32.mrb[0].mxu0
  %v4742 = vadd.f32 0.0, %v4741
  %v4743 = vpop.f32.mrb[0].mxu0
  %4744 = vmatprep.mubr.bf16.mxu0 0
  %4745 = vmatmul.mubr.bf16.gmra.mrb[0].mxu0 %v2732
  %v4746 = vpop.f32.mrb[0].mxu0
  %v4747 = vadd.f32 0.0, %v4746
  %v4748 = vpop.f32.mrb[0].mxu0
  %v4749 = vpop.f32.mrb[0].mxu0
  %v4750 = vadd.f32 0.0, %v4749
  %v4751 = vpop.f32.mrb[0].mxu0
  %4752 = vmatprep.mubr.bf16.mxu0 0
  %4753 = vmatmul.mubr.bf16.gmra.mrb[0].mxu0 %v2735
  %v4754 = vpop.f32.mrb[0].mxu0
  %v4755 = vadd.f32 0.0, %v4754
  %v4756 = vpop.f32.mrb[0].mxu0
  %v4757 = vpop.f32.mrb[0].mxu0
  %v4758 = vadd.f32 0.0, %v4757
  %v4759 = vpop.f32.mrb[0].mxu0
  %4760 = vmatprep.mubr.bf16.mxu0 0
  %4761 = vmatmul.mubr.bf16.gmra.mrb[0].mxu0 %v2738
  %v4762 = vpop.f32.mrb[0].mxu0
  %v4763 = vadd.f32 0.0, %v4762
  %v4764 = vpop.f32.mrb[0].mxu0
  %v4765 = vpop.f32.mrb[0].mxu0
  %v4766 = vadd.f32 0.0, %v4765
  %v4767 = vpop.f32.mrb[0].mxu0
  %4768 = vmatprep.mubr.bf16.mxu0 0
  %4769 = vmatmul.mubr.bf16.gmra.mrb[0].mxu0 %v2741
  %v4770 = vpop.f32.mrb[0].mxu0
  %v4771 = vadd.f32 0.0, %v4770
  %v4772 = vpop.f32.mrb[0].mxu0
  %v4773 = vpop.f32.mrb[0].mxu0
  %v4774 = vadd.f32 0.0, %v4773
  %v4775 = vpop.f32.mrb[0].mxu0
  %4776 = vmatprep.mubr.bf16.mxu0 0
  %4777 = vmatmul.mubr.bf16.gmra.mrb[0].mxu0 %v2744
  %v4778 = vpop.f32.mrb[0].mxu0
  %v4779 = vadd.f32 0.0, %v4778
  %v4780 = vpop.f32.mrb[0].mxu0
  %v4781 = vpop.f32.mrb[0].mxu0
  %v4782 = vadd.f32 0.0, %v4781
  %v4783 = vpop.f32.mrb[0].mxu0
  %4784 = vmatprep.mubr.bf16.mxu0 0
  %4785 = vmatmul.mubr.bf16.gmra.mrb[0].mxu0 %v2747
  %v4786 = vpop.f32.mrb[0].mxu0
  %v4787 = vadd.f32 0.0, %v4786
  %v4788 = vpop.f32.mrb[0].mxu0
  %v4789 = vpop.f32.mrb[0].mxu0
  %v4790 = vadd.f32 0.0, %v4789
  %v4791 = vpop.f32.mrb[0].mxu0
  %4792 = vmatprep.mubr.bf16.mxu0 0
  %4793 = vmatmul.mubr.bf16.gmra.mrb[0].mxu0 %v2750
  %v4794 = vpop.f32.mrb[0].mxu0
  %v4795 = vadd.f32 0.0, %v4794
  %v4796 = vpop.f32.mrb[0].mxu0
  %v4797 = vpop.f32.mrb[0].mxu0
  %v4798 = vadd.f32 0.0, %v4797
  %v4799 = vpop.f32.mrb[0].mxu0
  %4800 = vmatprep.mubr.bf16.mxu0 0
  %4801 = vmatmul.mubr.bf16.gmra.mrb[0].mxu0 %v2753
  %v4802 = vpop.f32.mrb[0].mxu0
  %v4803 = vadd.f32 0.0, %v4802
  %v4804 = vpop.f32.mrb[0].mxu0
  %v4805 = vpop.f32.mrb[0].mxu0
  %v4806 = vadd.f32 0.0, %v4805
  %v4807 = vpop.f32.mrb[0].mxu0
  %4808 = vmatprep.mubr.bf16.mxu0 0
  %4809 = vmatmul.mubr.bf16.gmra.mrb[0].mxu0 %v2756
  %v4810 = vpop.f32.mrb[0].mxu0
  %v4811 = vadd.f32 0.0, %v4810
  %v4812 = vpop.f32.mrb[0].mxu0
  %v4813 = vpop.f32.mrb[0].mxu0
  %v4814 = vadd.f32 0.0, %v4813
  %v4815 = vpop.f32.mrb[0].mxu0
  %4816 = vmatprep.mubr.bf16.mxu0 0
  %4817 = vmatmul.mubr.bf16.gmra.mrb[0].mxu0 %v2759
  %v4818 = vpop.f32.mrb[0].mxu0
  %v4819 = vadd.f32 0.0, %v4818
  %v4820 = vpop.f32.mrb[0].mxu0
  %v4821 = vpop.f32.mrb[0].mxu0
  %v4822 = vadd.f32 0.0, %v4821
  %v4823 = vpop.f32.mrb[0].mxu0
  %4824 = vmatprep.mubr.bf16.mxu0 0
  %4825 = vmatmul.mubr.bf16.gmra.mrb[0].mxu0 %v2762
  %v4826 = vpop.f32.mrb[0].mxu0
  %v4827 = vadd.f32 0.0, %v4826
  %v4828 = vpop.f32.mrb[0].mxu0
  %v4829 = vpop.f32.mrb[0].mxu0
  %v4830 = vadd.f32 0.0, %v4829
  %v4831 = vpop.f32.mrb[0].mxu0
  %4832 = vmatprep.mubr.bf16.mxu0 0
  %4833 = vmatmul.mubr.bf16.gmra.mrb[0].mxu0 %v2765
  %v4834 = vpop.f32.mrb[0].mxu0
  %v4835 = vadd.f32 0.0, %v4834
  %v4836 = vpop.f32.mrb[0].mxu0
  %v4837 = vpop.f32.mrb[0].mxu0
  %v4838 = vadd.f32 0.0, %v4837
  %v4839 = vpop.f32.mrb[0].mxu0
  %4840 = vmatprep.mubr.bf16.mxu0 0
  %4841 = vmatmul.mubr.bf16.gmra.mrb[0].mxu0 %v2768
  %v4842 = vpop.f32.mrb[0].mxu0
  %v4843 = vadd.f32 0.0, %v4842
  %v4844 = vpop.f32.mrb[0].mxu0
  %v4845 = vpop.f32.mrb[0].mxu0
  %v4846 = vadd.f32 0.0, %v4845
  %v4847 = vpop.f32.mrb[0].mxu0
  %4848 = vmatprep.mubr.bf16.mxu0 0
  %4849 = vmatmul.mubr.bf16.gmra.mrb[0].mxu0 %v2771
  %v4850 = vpop.f32.mrb[0].mxu0
  %v4851 = vadd.f32 0.0, %v4850
  %v4852 = vpop.f32.mrb[0].mxu0
  %v4853 = vpop.f32.mrb[0].mxu0
  %v4854 = vadd.f32 0.0, %v4853
  %v4855 = vpop.f32.mrb[0].mxu0
  %4856 = vmatprep.mubr.bf16.mxu0 0
  %4857 = vmatmul.mubr.bf16.gmra.mrb[0].mxu0 %v2774
  %v4858 = vpop.f32.mrb[0].mxu0
  %v4859 = vadd.f32 0.0, %v4858
  %v4860 = vpop.f32.mrb[0].mxu0
  %v4861 = vpop.f32.mrb[0].mxu0
  %v4862 = vadd.f32 0.0, %v4861
  %v4863 = vpop.f32.mrb[0].mxu0
  %4864 = vmatprep.mubr.bf16.mxu0 0
  %4865 = vmatmul.mubr.bf16.gmra.mrb[0].mxu0 %v2777
  %v4866 = vpop.f32.mrb[0].mxu0
  %v4867 = vadd.f32 0.0, %v4866
  %v4868 = vpop.f32.mrb[0].mxu0
  %v4869 = vpop.f32.mrb[0].mxu0
  %v4870 = vadd.f32 0.0, %v4869
  %v4871 = vpop.f32.mrb[0].mxu0
  %4872 = vmatprep.mubr.bf16.mxu0 0
  %4873 = vmatmul.mubr.bf16.gmra.mrb[0].mxu0 %v2780
  %v4874 = vpop.f32.mrb[0].mxu0
  %v4875 = vadd.f32 0.0, %v4874
  %v4876 = vpop.f32.mrb[0].mxu0
  %v4877 = vpop.f32.mrb[0].mxu0
  %v4878 = vadd.f32 0.0, %v4877
  %v4879 = vpop.f32.mrb[0].mxu0
  %4880 = vmatprep.mubr.bf16.mxu0 0
  %4881 = vmatmul.mubr.bf16.gmra.mrb[0].mxu0 %v2783
  %v4882 = vpop.f32.mrb[0].mxu0
  %v4883 = vadd.f32 0.0, %v4882
  %v4884 = vpop.f32.mrb[0].mxu0
  %v4885 = vpop.f32.mrb[0].mxu0
  %v4886 = vadd.f32 0.0, %v4885
  %v4887 = vpop.f32.mrb[0].mxu0
  %4888 = vmatprep.mubr.bf16.mxu0 0
  %4889 = vmatmul.mubr.bf16.gmra.mrb[0].mxu0 %v2786
  %v4890 = vpop.f32.mrb[0].mxu0
  %v4891 = vadd.f32 0.0, %v4890
  %v4892 = vpop.f32.mrb[0].mxu0
  %v4893 = vpop.f32.mrb[0].mxu0
  %v4894 = vadd.f32 0.0, %v4893
  %v4895 = vpop.f32.mrb[0].mxu0
  %4896 = vmatprep.mubr.bf16.mxu0 0
  %4897 = vmatmul.mubr.bf16.gmra.mrb[0].mxu0 %v2789
  %v4898 = vpop.f32.mrb[0].mxu0
  %v4899 = vadd.f32 0.0, %v4898
  %v4900 = vpop.f32.mrb[0].mxu0
  %v4901 = vpop.f32.mrb[0].mxu0
  %v4902 = vadd.f32 0.0, %v4901
  %v4903 = vpop.f32.mrb[0].mxu0
  %4904 = vmatprep.mubr.bf16.mxu0 0
  %4905 = vmatmul.mubr.bf16.gmra.mrb[0].mxu0 %v2792
  %v4906 = vpop.f32.mrb[0].mxu0
  %v4907 = vadd.f32 0.0, %v4906
  %v4908 = vpop.f32.mrb[0].mxu0
  %v4909 = vpop.f32.mrb[0].mxu0
  %v4910 = vadd.f32 0.0, %v4909
  %v4911 = vpop.f32.mrb[0].mxu0
  %4912 = vmatprep.mubr.bf16.mxu0 0
  %4913 = vmatmul.mubr.bf16.gmra.mrb[0].mxu0 %v2795
  %v4914 = vpop.f32.mrb[0].mxu0
  %v4915 = vadd.f32 0.0, %v4914
  %v4916 = vpop.f32.mrb[0].mxu0
  %v4917 = vpop.f32.mrb[0].mxu0
  %v4918 = vadd.f32 0.0, %v4917
  %v4919 = vpop.f32.mrb[0].mxu0
  %4920 = vmatprep.mubr.bf16.mxu0 0
  %4921 = vmatmul.mubr.bf16.gmra.mrb[0].mxu0 %v2798
  %v4922 = vpop.f32.mrb[0].mxu0
  %v4923 = vadd.f32 0.0, %v4922
  %v4924 = vpop.f32.mrb[0].mxu0
  %v4925 = vpop.f32.mrb[0].mxu0
  %v4926 = vadd.f32 0.0, %v4925
  %v4927 = vpop.f32.mrb[0].mxu0
  %4928 = vmatprep.mubr.bf16.mxu0 0
  %4929 = vmatmul.mubr.bf16.gmra.mrb[0].mxu0 %v2801
  %v4930 = vpop.f32.mrb[0].mxu0
  %v4931 = vadd.f32 0.0, %v4930
  %v4932 = vpop.f32.mrb[0].mxu0
  %v4933 = vpop.f32.mrb[0].mxu0
  %v4934 = vadd.f32 0.0, %v4933
  %v4935 = vpop.f32.mrb[0].mxu0
  %4936 = vmatprep.mubr.bf16.mxu0 0
  %4937 = vmatmul.mubr.bf16.gmra.mrb[0].mxu0 %v2804
  %v4938 = vpop.f32.mrb[0].mxu0
  %v4939 = vadd.f32 0.0, %v4938
  %v4940 = vpop.f32.mrb[0].mxu0
  %v4941 = vpop.f32.mrb[0].mxu0
  %v4942 = vadd.f32 0.0, %v4941
  %v4943 = vpop.f32.mrb[0].mxu0
  %4944 = vmatprep.mubr.bf16.mxu0 0
  %4945 = vmatmul.mubr.bf16.gmra.mrb[0].mxu0 %v2807
  %v4946 = vpop.f32.mrb[0].mxu0
  %v4947 = vadd.f32 0.0, %v4946
  %v4948 = vpop.f32.mrb[0].mxu0
  %v4949 = vpop.f32.mrb[0].mxu0
  %v4950 = vadd.f32 0.0, %v4949
  %v4951 = vpop.f32.mrb[0].mxu0
  %4952 = vmatprep.mubr.bf16.mxu0 0
  %4953 = vmatmul.mubr.bf16.gmra.mrb[0].mxu0 %v2810
  %v4954 = vpop.f32.mrb[0].mxu0
  %v4955 = vadd.f32 0.0, %v4954
  %v4956 = vpop.f32.mrb[0].mxu0
  %v4957 = vpop.f32.mrb[0].mxu0
  %v4958 = vadd.f32 0.0, %v4957
  %v4959 = vpop.f32.mrb[0].mxu0
  %4960 = vmatprep.mubr.bf16.mxu0 0
  %4961 = vmatmul.mubr.bf16.gmra.mrb[0].mxu0 %v2813
  %v4962 = vpop.f32.mrb[0].mxu0
  %v4963 = vadd.f32 0.0, %v4962
  %v4964 = vpop.f32.mrb[0].mxu0
  %v4965 = vpop.f32.mrb[0].mxu0
  %v4966 = vadd.f32 0.0, %v4965
  %v4967 = vpop.f32.mrb[0].mxu0
  %4968 = vmatprep.mubr.bf16.mxu0 0
  %4969 = vmatmul.mubr.bf16.gmra.mrb[0].mxu0 %v2816
  %v4970 = vpop.f32.mrb[0].mxu0
  %v4971 = vadd.f32 0.0, %v4970
  %v4972 = vpop.f32.mrb[0].mxu0
  %v4973 = vpop.f32.mrb[0].mxu0
  %v4974 = vadd.f32 0.0, %v4973
  %v4975 = vpop.f32.mrb[0].mxu0
  %4976 = vmatprep.mubr.bf16.mxu0 0
  %4977 = vmatmul.mubr.bf16.gmra.mrb[0].mxu0 %v2819
  %v4978 = vpop.f32.mrb[0].mxu0
  %v4979 = vadd.f32 0.0, %v4978
  %v4980 = vpop.f32.mrb[0].mxu0
  %v4981 = vpop.f32.mrb[0].mxu0
  %v4982 = vadd.f32 0.0, %v4981
  %v4983 = vpop.f32.mrb[0].mxu0
  %4984 = vmatprep.mubr.bf16.mxu0 0
  %4985 = vmatmul.mubr.bf16.gmra.mrb[0].mxu0 %v2822
  %v4986 = vpop.f32.mrb[0].mxu0
  %v4987 = vadd.f32 0.0, %v4986
  %v4988 = vpop.f32.mrb[0].mxu0
  %v4989 = vpop.f32.mrb[0].mxu0
  %v4990 = vadd.f32 0.0, %v4989
  %v4991 = vpop.f32.mrb[0].mxu0
  %4992 = vmatprep.mubr.bf16.mxu0 0
  %4993 = vmatmul.mubr.bf16.gmra.mrb[0].mxu0 %v2825
  %v4994 = vpop.f32.mrb[0].mxu0
  %v4995 = vadd.f32 0.0, %v4994
  %v4996 = vpop.f32.mrb[0].mxu0
  %v4997 = vpop.f32.mrb[0].mxu0
  %v4998 = vadd.f32 0.0, %v4997
  %v4999 = vpop.f32.mrb[0].mxu0
  %5000 = vmatprep.mubr.bf16.mxu0 0
  %5001 = vmatmul.mubr.bf16.gmra.mrb[0].mxu0 %v2828
  %v5002 = vpop.f32.mrb[0].mxu0
  %v5003 = vadd.f32 0.0, %v5002
  %v5004 = vpop.f32.mrb[0].mxu0
  %v5005 = vpop.f32.mrb[0].mxu0
  %v5006 = vadd.f32 0.0, %v5005
  %v5007 = vpop.f32.mrb[0].mxu0
  %5008 = vmatprep.mubr.bf16.mxu0 0
  %5009 = vmatmul.mubr.bf16.gmra.mrb[0].mxu0 %v2831
  %v5010 = vpop.f32.mrb[0].mxu0
  %v5011 = vadd.f32 0.0, %v5010
  %v5012 = vpop.f32.mrb[0].mxu0
  %v5013 = vpop.f32.mrb[0].mxu0
  %v5014 = vadd.f32 0.0, %v5013
  %v5015 = vpop.f32.mrb[0].mxu0
  %5016 = vmatprep.mubr.bf16.mxu0 0
  %5017 = vmatmul.mubr.bf16.gmra.mrb[0].mxu0 %v2834
  %v5018 = vpop.f32.mrb[0].mxu0
  %v5019 = vadd.f32 0.0, %v5018
  %v5020 = vpop.f32.mrb[0].mxu0
  %v5021 = vpop.f32.mrb[0].mxu0
  %v5022 = vadd.f32 0.0, %v5021
  %v5023 = vpop.f32.mrb[0].mxu0
  %5024 = vmatprep.mubr.bf16.mxu0 0
  %5025 = vmatmul.mubr.bf16.gmra.mrb[0].mxu0 %v2837
  %v5026 = vpop.f32.mrb[0].mxu0
  %v5027 = vadd.f32 0.0, %v5026
  %v5028 = vpop.f32.mrb[0].mxu0
  %v5029 = vpop.f32.mrb[0].mxu0
  %v5030 = vadd.f32 0.0, %v5029
  %v5031 = vpop.f32.mrb[0].mxu0
  %5032 = vmatprep.mubr.bf16.mxu0 0
  %5033 = vmatmul.mubr.bf16.gmra.mrb[0].mxu0 %v2840
  %v5034 = vpop.f32.mrb[0].mxu0
  %v5035 = vadd.f32 0.0, %v5034
  %v5036 = vpop.f32.mrb[0].mxu0
  %v5037 = vpop.f32.mrb[0].mxu0
  %v5038 = vadd.f32 0.0, %v5037
  %v5039 = vpop.f32.mrb[0].mxu0
  %5040 = vmatprep.mubr.bf16.mxu0 0
  %5041 = vmatmul.mubr.bf16.gmra.mrb[0].mxu0 %v2843
  %v5042 = vpop.f32.mrb[0].mxu0
  %v5043 = vadd.f32 0.0, %v5042
  %v5044 = vpop.f32.mrb[0].mxu0
  %v5045 = vpop.f32.mrb[0].mxu0
  %v5046 = vadd.f32 0.0, %v5045
  %v5047 = vpop.f32.mrb[0].mxu0
  %5048 = vmatprep.mubr.bf16.mxu0 0
  %5049 = vmatmul.mubr.bf16.gmra.mrb[0].mxu0 %v2846
  %v5050 = vpop.f32.mrb[0].mxu0
  %v5051 = vadd.f32 0.0, %v5050
  %v5052 = vpop.f32.mrb[0].mxu0
  %v5053 = vpop.f32.mrb[0].mxu0
  %v5054 = vadd.f32 0.0, %v5053
  %v5055 = vpop.f32.mrb[0].mxu0
  %5056 = vmatprep.mubr.bf16.mxu0 0
  %5057 = vmatmul.mubr.bf16.gmra.mrb[0].mxu0 %v2849
  %v5058 = vpop.f32.mrb[0].mxu0
  %v5059 = vadd.f32 0.0, %v5058
  %v5060 = vpop.f32.mrb[0].mxu0
  %v5061 = vpop.f32.mrb[0].mxu0
  %v5062 = vadd.f32 0.0, %v5061
  %v5063 = vpop.f32.mrb[0].mxu0
  %5064 = vmatprep.mubr.bf16.mxu0 0
  %5065 = vmatmul.mubr.bf16.gmra.mrb[0].mxu0 %v2852
  %v5066 = vpop.f32.mrb[0].mxu0
  %v5067 = vadd.f32 0.0, %v5066
  %v5068 = vpop.f32.mrb[0].mxu0
  %v5069 = vpop.f32.mrb[0].mxu0
  %v5070 = vadd.f32 0.0, %v5069
  %v5071 = vpop.f32.mrb[0].mxu0
  %5072 = vmatprep.mubr.bf16.mxu0 0
  %5073 = vmatmul.mubr.bf16.gmra.mrb[0].mxu0 %v2855
  %v5074 = vpop.f32.mrb[0].mxu0
  %v5075 = vadd.f32 0.0, %v5074
  %v5076 = vpop.f32.mrb[0].mxu0
  %v5077 = vpop.f32.mrb[0].mxu0
  %v5078 = vadd.f32 0.0, %v5077
  %v5079 = vpop.f32.mrb[0].mxu0
  %5080 = vmatprep.mubr.bf16.mxu0 0
  %5081 = vmatmul.mubr.bf16.gmra.mrb[0].mxu0 %v2858
  %v5082 = vpop.f32.mrb[0].mxu0
  %v5083 = vadd.f32 0.0, %v5082
  %v5084 = vpop.f32.mrb[0].mxu0
  %v5085 = vpop.f32.mrb[0].mxu0
  %v5086 = vadd.f32 0.0, %v5085
  %v5087 = vpop.f32.mrb[0].mxu0
  %5088 = vmatprep.mubr.bf16.mxu0 0
  %5089 = vmatmul.mubr.bf16.gmra.mrb[0].mxu0 %v2861
  %v5090 = vpop.f32.mrb[0].mxu0
  %v5091 = vadd.f32 0.0, %v5090
  %v5092 = vpop.f32.mrb[0].mxu0
  %v5093 = vpop.f32.mrb[0].mxu0
  %v5094 = vadd.f32 0.0, %v5093
  %v5095 = vpop.f32.mrb[0].mxu0
  %5096 = vmatprep.mubr.bf16.mxu0 0
  %5097 = vmatmul.mubr.bf16.gmra.mrb[0].mxu0 %v2864
  %v5098 = vpop.f32.mrb[0].mxu0
  %v5099 = vadd.f32 0.0, %v5098
  %v5100 = vpop.f32.mrb[0].mxu0
  %v5101 = vpop.f32.mrb[0].mxu0
  %v5102 = vadd.f32 0.0, %v5101
  %v5103 = vpop.f32.mrb[0].mxu0
  %5104 = vmatprep.mubr.bf16.mxu0 0
  %5105 = vmatmul.mubr.bf16.gmra.mrb[0].mxu0 %v2867
  %v5106 = vpop.f32.mrb[0].mxu0
  %v5107 = vadd.f32 0.0, %v5106
  %v5108 = vpop.f32.mrb[0].mxu0
  %v5109 = vpop.f32.mrb[0].mxu0
  %v5110 = vadd.f32 0.0, %v5109
  %v5111 = vpop.f32.mrb[0].mxu0
  %5112 = vmatprep.mubr.bf16.mxu0 0
  %5113 = vmatmul.mubr.bf16.gmra.mrb[0].mxu0 %v2870
  %v5114 = vpop.f32.mrb[0].mxu0
  %v5115 = vadd.f32 0.0, %v5114
  %v5116 = vpop.f32.mrb[0].mxu0
  %v5117 = vpop.f32.mrb[0].mxu0
  %v5118 = vadd.f32 0.0, %v5117
  %v5119 = vpop.f32.mrb[0].mxu0
  %5120 = vmatprep.mubr.bf16.mxu0 0
  %5121 = vmatmul.mubr.bf16.gmra.mrb[0].mxu0 %v2873
  %v5122 = vpop.f32.mrb[0].mxu0
  %v5123 = vadd.f32 0.0, %v5122
  %v5124 = vpop.f32.mrb[0].mxu0
  %v5125 = vpop.f32.mrb[0].mxu0
  %v5126 = vadd.f32 0.0, %v5125
  %v5127 = vpop.f32.mrb[0].mxu0
  %5128 = vmatprep.mubr.bf16.mxu0 0
  %5129 = vmatmul.mubr.bf16.gmra.mrb[0].mxu0 %v2876
  %v5130 = vpop.f32.mrb[0].mxu0
  %v5131 = vadd.f32 0.0, %v5130
  %v5132 = vpop.f32.mrb[0].mxu0
  %v5133 = vpop.f32.mrb[0].mxu0
  %v5134 = vadd.f32 0.0, %v5133
  %v5135 = vpop.f32.mrb[0].mxu0
  %5136 = vmatprep.mubr.bf16.mxu0 0
  %5137 = vmatmul.mubr.bf16.gmra.mrb[0].mxu0 %v2879
  %v5138 = vpop.f32.mrb[0].mxu0
  %v5139 = vadd.f32 0.0, %v5138
  %v5140 = vpop.f32.mrb[0].mxu0
  %v5141 = vpop.f32.mrb[0].mxu0
  %v5142 = vadd.f32 0.0, %v5141
  %v5143 = vpop.f32.mrb[0].mxu0
  %5144 = vmatprep.mubr.bf16.mxu0 0
  %5145 = vmatmul.mubr.bf16.gmra.mrb[0].mxu0 %v2882
  %v5146 = vpop.f32.mrb[0].mxu0
  %v5147 = vadd.f32 0.0, %v5146
  %v5148 = vpop.f32.mrb[0].mxu0
  %v5149 = vpop.f32.mrb[0].mxu0
  %v5150 = vadd.f32 0.0, %v5149
  %v5151 = vpop.f32.mrb[0].mxu0
  %5152 = vmatprep.mubr.bf16.mxu0 0
  %5153 = vmatmul.mubr.bf16.gmra.mrb[0].mxu0 %v2885
  %v5154 = vpop.f32.mrb[0].mxu0
  %v5155 = vadd.f32 0.0, %v5154
  %v5156 = vpop.f32.mrb[0].mxu0
  %v5157 = vpop.f32.mrb[0].mxu0
  %v5158 = vadd.f32 0.0, %v5157
  %v5159 = vpop.f32.mrb[0].mxu0
  %5160 = vmatprep.mubr.bf16.mxu0 0
  %5161 = vmatmul.mubr.bf16.gmra.mrb[0].mxu0 %v2888
  %v5162 = vpop.f32.mrb[0].mxu0
  %v5163 = vadd.f32 0.0, %v5162
  %v5164 = vpop.f32.mrb[0].mxu0
  %v5165 = vpop.f32.mrb[0].mxu0
  %v5166 = vadd.f32 0.0, %v5165
  %v5167 = vpop.f32.mrb[0].mxu0
  %5168 = vmatprep.mubr.bf16.mxu0 0
  %5169 = vmatmul.mubr.bf16.gmra.mrb[0].mxu0 %v2891
  %v5170 = vpop.f32.mrb[0].mxu0
  %v5171 = vadd.f32 0.0, %v5170
  %v5172 = vpop.f32.mrb[0].mxu0
  %v5173 = vpop.f32.mrb[0].mxu0
  %v5174 = vadd.f32 0.0, %v5173
  %v5175 = vpop.f32.mrb[0].mxu0
  %5176 = vmatprep.mubr.bf16.mxu0 0
  %5177 = vmatmul.mubr.bf16.gmra.mrb[0].mxu0 %v2894
  %v5178 = vpop.f32.mrb[0].mxu0
  %v5179 = vadd.f32 0.0, %v5178
  %v5180 = vpop.f32.mrb[0].mxu0
  %v5181 = vpop.f32.mrb[0].mxu0
  %v5182 = vadd.f32 0.0, %v5181
  %v5183 = vpop.f32.mrb[0].mxu0
  %5184 = vmatprep.mubr.bf16.mxu0 0
  %5185 = vmatmul.mubr.bf16.gmra.mrb[0].mxu0 %v2897
  %v5186 = vpop.f32.mrb[0].mxu0
  %v5187 = vadd.f32 0.0, %v5186
  %v5188 = vpop.f32.mrb[0].mxu0
  %v5189 = vpop.f32.mrb[0].mxu0
  %v5190 = vadd.f32 0.0, %v5189
  %v5191 = vpop.f32.mrb[0].mxu0
  %5192 = vmatprep.mubr.bf16.mxu0 0
  %5193 = vmatmul.mubr.bf16.gmra.mrb[0].mxu0 %v2900
  %v5194 = vpop.f32.mrb[0].mxu0
  %v5195 = vadd.f32 0.0, %v5194
  %v5196 = vpop.f32.mrb[0].mxu0
  %v5197 = vpop.f32.mrb[0].mxu0
  %v5198 = vadd.f32 0.0, %v5197
  %v5199 = vpop.f32.mrb[0].mxu0
  %5200 = vmatprep.mubr.bf16.mxu0 0
  %5201 = vmatmul.mubr.bf16.gmra.mrb[0].mxu0 %v2903
  %v5202 = vpop.f32.mrb[0].mxu0
  %v5203 = vadd.f32 0.0, %v5202
  %v5204 = vpop.f32.mrb[0].mxu0
  %v5205 = vpop.f32.mrb[0].mxu0
  %v5206 = vadd.f32 0.0, %v5205
  %v5207 = vpop.f32.mrb[0].mxu0
  %5208 = vmatprep.mubr.bf16.mxu0 0
  %5209 = vmatmul.mubr.bf16.gmra.mrb[0].mxu0 %v2906
  %v5210 = vpop.f32.mrb[0].mxu0
  %v5211 = vadd.f32 0.0, %v5210
  %v5212 = vpop.f32.mrb[0].mxu0
  %v5213 = vpop.f32.mrb[0].mxu0
  %v5214 = vadd.f32 0.0, %v5213
  %v5215 = vpop.f32.mrb[0].mxu0
  %5216 = vmatprep.mubr.bf16.mxu0 0
  %5217 = vmatmul.mubr.bf16.gmra.mrb[0].mxu0 %v2909
  %v5218 = vpop.f32.mrb[0].mxu0
  %v5219 = vadd.f32 0.0, %v5218
  %v5220 = vpop.f32.mrb[0].mxu0
  %v5221 = vpop.f32.mrb[0].mxu0
  %v5222 = vadd.f32 0.0, %v5221
  %v5223 = vpop.f32.mrb[0].mxu0
  %5224 = vmatprep.mubr.bf16.mxu0 0
  %5225 = vmatmul.mubr.bf16.gmra.mrb[0].mxu0 %v2912
  %v5226 = vpop.f32.mrb[0].mxu0
  %v5227 = vadd.f32 0.0, %v5226
  %v5228 = vpop.f32.mrb[0].mxu0
  %v5229 = vpop.f32.mrb[0].mxu0
  %v5230 = vadd.f32 0.0, %v5229
  %v5231 = vpop.f32.mrb[0].mxu0
  %5232 = vmatprep.mubr.bf16.mxu0 0
  %5233 = vmatmul.mubr.bf16.gmra.mrb[0].mxu0 %v2915
  %v5234 = vpop.f32.mrb[0].mxu0
  %v5235 = vadd.f32 0.0, %v5234
  %v5236 = vpop.f32.mrb[0].mxu0
  %v5237 = vpop.f32.mrb[0].mxu0
  %v5238 = vadd.f32 0.0, %v5237
  %v5239 = vpop.f32.mrb[0].mxu0
  %5240 = vmatprep.mubr.bf16.mxu0 0
  %5241 = vmatmul.mubr.bf16.gmra.mrb[0].mxu0 %v2918
  %v5242 = vpop.f32.mrb[0].mxu0
  %v5243 = vadd.f32 0.0, %v5242
  %v5244 = vpop.f32.mrb[0].mxu0
  %v5245 = vpop.f32.mrb[0].mxu0
  %v5246 = vadd.f32 0.0, %v5245
  %v5247 = vpop.f32.mrb[0].mxu0
  %5248 = vmatprep.mubr.bf16.mxu0 0
  %5249 = vmatmul.mubr.bf16.gmra.mrb[0].mxu0 %v2921
  %v5250 = vpop.f32.mrb[0].mxu0
  %v5251 = vadd.f32 0.0, %v5250
  %v5252 = vpop.f32.mrb[0].mxu0
  %v5253 = vpop.f32.mrb[0].mxu0
  %v5254 = vadd.f32 0.0, %v5253
  %v5255 = vpop.f32.mrb[0].mxu0
  %5256 = vmatprep.mubr.bf16.mxu0 0
  %5257 = vmatmul.mubr.bf16.gmra.mrb[0].mxu0 %v2924
  %v5258 = vpop.f32.mrb[0].mxu0
  %v5259 = vadd.f32 0.0, %v5258
  %v5260 = vpop.f32.mrb[0].mxu0
  %v5261 = vpop.f32.mrb[0].mxu0
  %v5262 = vadd.f32 0.0, %v5261
  %v5263 = vpop.f32.mrb[0].mxu0
  %5264 = vmatprep.mubr.bf16.mxu0 0
  %5265 = vmatmul.mubr.bf16.gmra.mrb[0].mxu0 %v2927
  %v5266 = vpop.f32.mrb[0].mxu0
  %v5267 = vadd.f32 0.0, %v5266
  %v5268 = vpop.f32.mrb[0].mxu0
  %v5269 = vpop.f32.mrb[0].mxu0
  %v5270 = vadd.f32 0.0, %v5269
  %v5271 = vpop.f32.mrb[0].mxu0
  %5272 = vdwg.mxu0
  %v5273 = vmax.f32 %v2971, %v3067
  %v5274 = vmax.f32 %v2974, %v3070
  %v5275 = vmax.f32 %v2979, %v3075
  %v5276 = vmax.f32 %v2982, %v3078
  %v5277 = vmax.f32 %v2987, %v3083
  %v5278 = vmax.f32 %v2990, %v3086
  %v5279 = vmax.f32 %v2995, %v3091
  %v5280 = vmax.f32 %v2998, %v3094
  %v5281 = vmax.f32 %v3003, %v3099
  %v5282 = vmax.f32 %v3006, %v3102
  %v5283 = vmax.f32 %v3011, %v3107
  %v5284 = vmax.f32 %v3014, %v3110
  %v5285 = vmax.f32 %v3019, %v3115
  %v5286 = vmax.f32 %v3022, %v3118
  %v5287 = vmax.f32 %v3027, %v3123
  %v5288 = vmax.f32 %v3030, %v3126
  %v5289 = vmax.f32 %v3035, %v3131
  %v5290 = vmax.f32 %v3038, %v3134
  %v5291 = vmax.f32 %v3043, %v3139
  %v5292 = vmax.f32 %v3046, %v3142
  %v5293 = vmax.f32 %v3051, %v3147
  %v5294 = vmax.f32 %v3054, %v3150
  %v5295 = vmax.f32 %v3059, %v3155
  %v5296 = vmax.f32 %v3062, %v3158
  %v5297 = vmax.f32 %v3163, %v3259
  %v5298 = vmax.f32 %v3166, %v3262
  %v5299 = vmax.f32 %v3171, %v3267
  %v5300 = vmax.f32 %v3174, %v3270
  %v5301 = vmax.f32 %v3179, %v3275
  %v5302 = vmax.f32 %v3182, %v3278
  %v5303 = vmax.f32 %v3187, %v3283
  %v5304 = vmax.f32 %v3190, %v3286
  %v5305 = vmax.f32 %v3195, %v3291
  %v5306 = vmax.f32 %v3198, %v3294
  %v5307 = vmax.f32 %v3203, %v3299
  %v5308 = vmax.f32 %v3206, %v3302
  %v5309 = vmax.f32 %v3211, %v3307
  %v5310 = vmax.f32 %v3214, %v3310
  %v5311 = vmax.f32 %v3219, %v3315
  %v5312 = vmax.f32 %v3222, %v3318
  %v5313 = vmax.f32 %v3227, %v3323
  %v5314 = vmax.f32 %v3230, %v3326
  %v5315 = vmax.f32 %v3235, %v3331
  %v5316 = vmax.f32 %v3238, %v3334
  %v5317 = vmax.f32 %v3243, %v3339
  %v5318 = vmax.f32 %v3246, %v3342
  %v5319 = vmax.f32 %v3251, %v3347
  %v5320 = vmax.f32 %v3254, %v3350
  %v5321 = vmax.f32 %v3355, %v3451
  %v5322 = vmax.f32 %v3358, %v3454
  %v5323 = vmax.f32 %v3363, %v3459
  %v5324 = vmax.f32 %v3366, %v3462
  %v5325 = vmax.f32 %v3371, %v3467
  %v5326 = vmax.f32 %v3374, %v3470
  %v5327 = vmax.f32 %v3379, %v3475
  %v5328 = vmax.f32 %v3382, %v3478
  %v5329 = vmax.f32 %v3387, %v3483
  %v5330 = vmax.f32 %v3390, %v3486
  %v5331 = vmax.f32 %v3395, %v3491
  %v5332 = vmax.f32 %v3398, %v3494
  %v5333 = vmax.f32 %v3403, %v3499
  %v5334 = vmax.f32 %v3406, %v3502
  %v5335 = vmax.f32 %v3411, %v3507
  %v5336 = vmax.f32 %v3414, %v3510
  %v5337 = vmax.f32 %v3419, %v3515
  %v5338 = vmax.f32 %v3422, %v3518
  %v5339 = vmax.f32 %v3427, %v3523
  %v5340 = vmax.f32 %v3430, %v3526
  %v5341 = vmax.f32 %v3435, %v3531
  %v5342 = vmax.f32 %v3438, %v3534
  %v5343 = vmax.f32 %v3443, %v3539
  %v5344 = vmax.f32 %v3446, %v3542
  %v5345 = vmax.f32 %v3547, %v3643
  %v5346 = vmax.f32 %v3550, %v3646
  %v5347 = vmax.f32 %v3555, %v3651
  %v5348 = vmax.f32 %v3558, %v3654
  %v5349 = vmax.f32 %v3563, %v3659
  %v5350 = vmax.f32 %v3566, %v3662
  %v5351 = vmax.f32 %v3571, %v3667
  %v5352 = vmax.f32 %v3574, %v3670
  %v5353 = vmax.f32 %v3579, %v3675
  %v5354 = vmax.f32 %v3582, %v3678
  %v5355 = vmax.f32 %v3587, %v3683
  %v5356 = vmax.f32 %v3590, %v3686
  %v5357 = vmax.f32 %v3595, %v3691
  %v5358 = vmax.f32 %v3598, %v3694
  %v5359 = vmax.f32 %v3603, %v3699
  %v5360 = vmax.f32 %v3606, %v3702
  %v5361 = vmax.f32 %v3611, %v3707
  %v5362 = vmax.f32 %v3614, %v3710
  %v5363 = vmax.f32 %v3619, %v3715
  %v5364 = vmax.f32 %v3622, %v3718
  %v5365 = vmax.f32 %v3627, %v3723
  %v5366 = vmax.f32 %v3630, %v3726
  %v5367 = vmax.f32 %v3635, %v3731
  %v5368 = vmax.f32 %v3638, %v3734
  %v5369 = vmax.f32 %v3739, %v3835
  %v5370 = vmax.f32 %v3742, %v3838
  %v5371 = vmax.f32 %v3747, %v3843
  %v5372 = vmax.f32 %v3750, %v3846
  %v5373 = vmax.f32 %v3755, %v3851
  %v5374 = vmax.f32 %v3758, %v3854
  %v5375 = vmax.f32 %v3763, %v3859
  %v5376 = vmax.f32 %v3766, %v3862
  %v5377 = vmax.f32 %v3771, %v3867
  %v5378 = vmax.f32 %v3774, %v3870
  %v5379 = vmax.f32 %v3779, %v3875
  %v5380 = vmax.f32 %v3782, %v3878
  %v5381 = vmax.f32 %v3787, %v3883
  %v5382 = vmax.f32 %v3790, %v3886
  %v5383 = vmax.f32 %v3795, %v3891
  %v5384 = vmax.f32 %v3798, %v3894
  %v5385 = vmax.f32 %v3803, %v3899
  %v5386 = vmax.f32 %v3806, %v3902
  %v5387 = vmax.f32 %v3811, %v3907
  %v5388 = vmax.f32 %v3814, %v3910
  %v5389 = vmax.f32 %v3819, %v3915
  %v5390 = vmax.f32 %v3822, %v3918
  %v5391 = vmax.f32 %v3827, %v3923
  %v5392 = vmax.f32 %v3830, %v3926
  %v5393 = vmax.f32 %v3931, %v4027
  %v5394 = vmax.f32 %v3934, %v4030
  %v5395 = vmax.f32 %v3939, %v4035
  %v5396 = vmax.f32 %v3942, %v4038
  %v5397 = vmax.f32 %v3947, %v4043
  %v5398 = vmax.f32 %v3950, %v4046
  %v5399 = vmax.f32 %v3955, %v4051
  %v5400 = vmax.f32 %v3958, %v4054
  %v5401 = vmax.f32 %v3963, %v4059
  %v5402 = vmax.f32 %v3966, %v4062
  %v5403 = vmax.f32 %v3971, %v4067
  %v5404 = vmax.f32 %v3974, %v4070
  %v5405 = vmax.f32 %v3979, %v4075
  %v5406 = vmax.f32 %v3982, %v4078
  %v5407 = vmax.f32 %v3987, %v4083
  %v5408 = vmax.f32 %v3990, %v4086
  %v5409 = vmax.f32 %v3995, %v4091
  %v5410 = vmax.f32 %v3998, %v4094
  %v5411 = vmax.f32 %v4003, %v4099
  %v5412 = vmax.f32 %v4006, %v4102
  %v5413 = vmax.f32 %v4011, %v4107
  %v5414 = vmax.f32 %v4014, %v4110
  %v5415 = vmax.f32 %v4019, %v4115
  %v5416 = vmax.f32 %v4022, %v4118
  %v5417 = vmax.f32 %v4123, %v4219
  %v5418 = vmax.f32 %v4126, %v4222
  %v5419 = vmax.f32 %v4131, %v4227
  %v5420 = vmax.f32 %v4134, %v4230
  %v5421 = vmax.f32 %v4139, %v4235
  %v5422 = vmax.f32 %v4142, %v4238
  %v5423 = vmax.f32 %v4147, %v4243
  %v5424 = vmax.f32 %v4150, %v4246
  %v5425 = vmax.f32 %v4155, %v4251
  %v5426 = vmax.f32 %v4158, %v4254
  %v5427 = vmax.f32 %v4163, %v4259
  %v5428 = vmax.f32 %v4166, %v4262
  %v5429 = vmax.f32 %v4171, %v4267
  %v5430 = vmax.f32 %v4174, %v4270
  %v5431 = vmax.f32 %v4179, %v4275
  %v5432 = vmax.f32 %v4182, %v4278
  %v5433 = vmax.f32 %v4187, %v4283
  %v5434 = vmax.f32 %v4190, %v4286
  %v5435 = vmax.f32 %v4195, %v4291
  %v5436 = vmax.f32 %v4198, %v4294
  %v5437 = vmax.f32 %v4203, %v4299
  %v5438 = vmax.f32 %v4206, %v4302
  %v5439 = vmax.f32 %v4211, %v4307
  %v5440 = vmax.f32 %v4214, %v4310
  %v5441 = vmax.f32 %v4315, %v4411
  %v5442 = vmax.f32 %v4318, %v4414
  %v5443 = vmax.f32 %v4323, %v4419
  %v5444 = vmax.f32 %v4326, %v4422
  %v5445 = vmax.f32 %v4331, %v4427
  %v5446 = vmax.f32 %v4334, %v4430
  %v5447 = vmax.f32 %v4339, %v4435
  %v5448 = vmax.f32 %v4342, %v4438
  %v5449 = vmax.f32 %v4347, %v4443
  %v5450 = vmax.f32 %v4350, %v4446
  %v5451 = vmax.f32 %v4355, %v4451
  %v5452 = vmax.f32 %v4358, %v4454
  %v5453 = vmax.f32 %v4363, %v4459
  %v5454 = vmax.f32 %v4366, %v4462
  %v5455 = vmax.f32 %v4371, %v4467
  %v5456 = vmax.f32 %v4374, %v4470
  %v5457 = vmax.f32 %v4379, %v4475
  %v5458 = vmax.f32 %v4382, %v4478
  %v5459 = vmax.f32 %v4387, %v4483
  %v5460 = vmax.f32 %v4390, %v4486
  %v5461 = vmax.f32 %v4395, %v4491
  %v5462 = vmax.f32 %v4398, %v4494
  %v5463 = vmax.f32 %v4403, %v4499
  %v5464 = vmax.f32 %v4406, %v4502
  %v5465 = vmax.f32 %v4507, %v4603
  %v5466 = vmax.f32 %v4510, %v4606
  %v5467 = vmax.f32 %v4515, %v4611
  %v5468 = vmax.f32 %v4518, %v4614
  %v5469 = vmax.f32 %v4523, %v4619
  %v5470 = vmax.f32 %v4526, %v4622
  %v5471 = vmax.f32 %v4531, %v4627
  %v5472 = vmax.f32 %v4534, %v4630
  %v5473 = vmax.f32 %v4539, %v4635
  %v5474 = vmax.f32 %v4542, %v4638
  %v5475 = vmax.f32 %v4547, %v4643
  %v5476 = vmax.f32 %v4550, %v4646
  %v5477 = vmax.f32 %v4555, %v4651
  %v5478 = vmax.f32 %v4558, %v4654
  %v5479 = vmax.f32 %v4563, %v4659
  %v5480 = vmax.f32 %v4566, %v4662
  %v5481 = vmax.f32 %v4571, %v4667
  %v5482 = vmax.f32 %v4574, %v4670
  %v5483 = vmax.f32 %v4579, %v4675
  %v5484 = vmax.f32 %v4582, %v4678
  %v5485 = vmax.f32 %v4587, %v4683
  %v5486 = vmax.f32 %v4590, %v4686
  %v5487 = vmax.f32 %v4595, %v4691
  %v5488 = vmax.f32 %v4598, %v4694
  %v5489 = vmax.f32 %v4699, %v4795
  %v5490 = vmax.f32 %v4702, %v4798
  %v5491 = vmax.f32 %v4707, %v4803
  %v5492 = vmax.f32 %v4710, %v4806
  %v5493 = vmax.f32 %v4715, %v4811
  %v5494 = vmax.f32 %v4718, %v4814
  %v5495 = vmax.f32 %v4723, %v4819
  %v5496 = vmax.f32 %v4726, %v4822
  %v5497 = vmax.f32 %v4731, %v4827
  %v5498 = vmax.f32 %v4734, %v4830
  %v5499 = vmax.f32 %v4739, %v4835
  %v5500 = vmax.f32 %v4742, %v4838
  %v5501 = vmax.f32 %v4747, %v4843
  %v5502 = vmax.f32 %v4750, %v4846
  %v5503 = vmax.f32 %v4755, %v4851
  %v5504 = vmax.f32 %v4758, %v4854
  %v5505 = vmax.f32 %v4763, %v4859
  %v5506 = vmax.f32 %v4766, %v4862
  %v5507 = vmax.f32 %v4771, %v4867
  %v5508 = vmax.f32 %v4774, %v4870
  %v5509 = vmax.f32 %v4779, %v4875
  %v5510 = vmax.f32 %v4782, %v4878
  %v5511 = vmax.f32 %v4787, %v4883
  %v5512 = vmax.f32 %v4790, %v4886
  %v5513 = vmax.f32 %v4891, %v4987
  %v5514 = vmax.f32 %v4894, %v4990
  %v5515 = vmax.f32 %v4899, %v4995
  %v5516 = vmax.f32 %v4902, %v4998
  %v5517 = vmax.f32 %v4907, %v5003
  %v5518 = vmax.f32 %v4910, %v5006
  %v5519 = vmax.f32 %v4915, %v5011
  %v5520 = vmax.f32 %v4918, %v5014
  %v5521 = vmax.f32 %v4923, %v5019
  %v5522 = vmax.f32 %v4926, %v5022
  %v5523 = vmax.f32 %v4931, %v5027
  %v5524 = vmax.f32 %v4934, %v5030
  %v5525 = vmax.f32 %v4939, %v5035
  %v5526 = vmax.f32 %v4942, %v5038
  %v5527 = vmax.f32 %v4947, %v5043
  %v5528 = vmax.f32 %v4950, %v5046
  %v5529 = vmax.f32 %v4955, %v5051
  %v5530 = vmax.f32 %v4958, %v5054
  %v5531 = vmax.f32 %v4963, %v5059
  %v5532 = vmax.f32 %v4966, %v5062
  %v5533 = vmax.f32 %v4971, %v5067
  %v5534 = vmax.f32 %v4974, %v5070
  %v5535 = vmax.f32 %v4979, %v5075
  %v5536 = vmax.f32 %v4982, %v5078
  %v5537 = vmax.f32 %v5083, %v5179
  %v5538 = vmax.f32 %v5086, %v5182
  %v5539 = vmax.f32 %v5091, %v5187
  %v5540 = vmax.f32 %v5094, %v5190
  %v5541 = vmax.f32 %v5099, %v5195
  %v5542 = vmax.f32 %v5102, %v5198
  %v5543 = vmax.f32 %v5107, %v5203
  %v5544 = vmax.f32 %v5110, %v5206
  %v5545 = vmax.f32 %v5115, %v5211
  %v5546 = vmax.f32 %v5118, %v5214
  %v5547 = vmax.f32 %v5123, %v5219
  %v5548 = vmax.f32 %v5126, %v5222
  %v5549 = vmax.f32 %v5131, %v5227
  %v5550 = vmax.f32 %v5134, %v5230
  %v5551 = vmax.f32 %v5139, %v5235
  %v5552 = vmax.f32 %v5142, %v5238
  %v5553 = vmax.f32 %v5147, %v5243
  %v5554 = vmax.f32 %v5150, %v5246
  %v5555 = vmax.f32 %v5155, %v5251
  %v5556 = vmax.f32 %v5158, %v5254
  %v5557 = vmax.f32 %v5163, %v5259
  %v5558 = vmax.f32 %v5166, %v5262
  %v5559 = vmax.f32 %v5171, %v5267
  %v5560 = vmax.f32 %v5174, %v5270
  %v5561 = vmax.f32 %v5273, %v5274
  %v5562 = vmax.f32 %v5275, %v5276
  %v5563 = vmax.f32 %v5277, %v5278
  %v5564 = vmax.f32 %v5279, %v5280
  %v5565 = vmax.f32 %v5281, %v5282
  %v5566 = vmax.f32 %v5283, %v5284
  %v5567 = vmax.f32 %v5285, %v5286
  %v5568 = vmax.f32 %v5287, %v5288
  %v5569 = vmax.f32 %v5289, %v5290
  %v5570 = vmax.f32 %v5291, %v5292
  %v5571 = vmax.f32 %v5293, %v5294
  %v5572 = vmax.f32 %v5295, %v5296
  %v5573 = vmax.f32 %v5297, %v5298
  %v5574 = vmax.f32 %v5299, %v5300
  %v5575 = vmax.f32 %v5301, %v5302
  %v5576 = vmax.f32 %v5303, %v5304
  %v5577 = vmax.f32 %v5305, %v5306
  %v5578 = vmax.f32 %v5307, %v5308
  %v5579 = vmax.f32 %v5309, %v5310
  %v5580 = vmax.f32 %v5311, %v5312
  %v5581 = vmax.f32 %v5313, %v5314
  %v5582 = vmax.f32 %v5315, %v5316
  %v5583 = vmax.f32 %v5317, %v5318
  %v5584 = vmax.f32 %v5319, %v5320
  %v5585 = vmax.f32 %v5321, %v5322
  %v5586 = vmax.f32 %v5323, %v5324
  %v5587 = vmax.f32 %v5325, %v5326
  %v5588 = vmax.f32 %v5327, %v5328
  %v5589 = vmax.f32 %v5329, %v5330
  %v5590 = vmax.f32 %v5331, %v5332
  %v5591 = vmax.f32 %v5333, %v5334
  %v5592 = vmax.f32 %v5335, %v5336
  %v5593 = vmax.f32 %v5337, %v5338
  %v5594 = vmax.f32 %v5339, %v5340
  %v5595 = vmax.f32 %v5341, %v5342
  %v5596 = vmax.f32 %v5343, %v5344
  %v5597 = vmax.f32 %v5345, %v5346
  %v5598 = vmax.f32 %v5347, %v5348
  %v5599 = vmax.f32 %v5349, %v5350
  %v5600 = vmax.f32 %v5351, %v5352
  %v5601 = vmax.f32 %v5353, %v5354
  %v5602 = vmax.f32 %v5355, %v5356
  %v5603 = vmax.f32 %v5357, %v5358
  %v5604 = vmax.f32 %v5359, %v5360
  %v5605 = vmax.f32 %v5361, %v5362
  %v5606 = vmax.f32 %v5363, %v5364
  %v5607 = vmax.f32 %v5365, %v5366
  %v5608 = vmax.f32 %v5367, %v5368
  %v5609 = vmax.f32 %v5369, %v5370
  %v5610 = vmax.f32 %v5371, %v5372
  %v5611 = vmax.f32 %v5373, %v5374
  %v5612 = vmax.f32 %v5375, %v5376
  %v5613 = vmax.f32 %v5377, %v5378
  %v5614 = vmax.f32 %v5379, %v5380
  %v5615 = vmax.f32 %v5381, %v5382
  %v5616 = vmax.f32 %v5383, %v5384
  %v5617 = vmax.f32 %v5385, %v5386
  %v5618 = vmax.f32 %v5387, %v5388
  %v5619 = vmax.f32 %v5389, %v5390
  %v5620 = vmax.f32 %v5391, %v5392
  %v5621 = vmax.f32 %v5393, %v5394
  %v5622 = vmax.f32 %v5395, %v5396
  %v5623 = vmax.f32 %v5397, %v5398
  %v5624 = vmax.f32 %v5399, %v5400
  %v5625 = vmax.f32 %v5401, %v5402
  %v5626 = vmax.f32 %v5403, %v5404
  %v5627 = vmax.f32 %v5405, %v5406
  %v5628 = vmax.f32 %v5407, %v5408
  %v5629 = vmax.f32 %v5409, %v5410
  %v5630 = vmax.f32 %v5411, %v5412
  %v5631 = vmax.f32 %v5413, %v5414
  %v5632 = vmax.f32 %v5415, %v5416
  %v5633 = vmax.f32 %v5417, %v5418
  %v5634 = vmax.f32 %v5419, %v5420
  %v5635 = vmax.f32 %v5421, %v5422
  %v5636 = vmax.f32 %v5423, %v5424
  %v5637 = vmax.f32 %v5425, %v5426
  %v5638 = vmax.f32 %v5427, %v5428
  %v5639 = vmax.f32 %v5429, %v5430
  %v5640 = vmax.f32 %v5431, %v5432
  %v5641 = vmax.f32 %v5433, %v5434
  %v5642 = vmax.f32 %v5435, %v5436
  %v5643 = vmax.f32 %v5437, %v5438
  %v5644 = vmax.f32 %v5439, %v5440
  %v5645 = vmax.f32 %v5441, %v5442
  %v5646 = vmax.f32 %v5443, %v5444
  %v5647 = vmax.f32 %v5445, %v5446
  %v5648 = vmax.f32 %v5447, %v5448
  %v5649 = vmax.f32 %v5449, %v5450
  %v5650 = vmax.f32 %v5451, %v5452
  %v5651 = vmax.f32 %v5453, %v5454
  %v5652 = vmax.f32 %v5455, %v5456
  %v5653 = vmax.f32 %v5457, %v5458
  %v5654 = vmax.f32 %v5459, %v5460
  %v5655 = vmax.f32 %v5461, %v5462
  %v5656 = vmax.f32 %v5463, %v5464
  %v5657 = vmax.f32 %v5465, %v5466
  %v5658 = vmax.f32 %v5467, %v5468
  %v5659 = vmax.f32 %v5469, %v5470
  %v5660 = vmax.f32 %v5471, %v5472
  %v5661 = vmax.f32 %v5473, %v5474
  %v5662 = vmax.f32 %v5475, %v5476
  %v5663 = vmax.f32 %v5477, %v5478
  %v5664 = vmax.f32 %v5479, %v5480
  %v5665 = vmax.f32 %v5481, %v5482
  %v5666 = vmax.f32 %v5483, %v5484
  %v5667 = vmax.f32 %v5485, %v5486
  %v5668 = vmax.f32 %v5487, %v5488
  %v5669 = vmax.f32 %v5489, %v5490
  %v5670 = vmax.f32 %v5491, %v5492
  %v5671 = vmax.f32 %v5493, %v5494
  %v5672 = vmax.f32 %v5495, %v5496
  %v5673 = vmax.f32 %v5497, %v5498
  %v5674 = vmax.f32 %v5499, %v5500
  %v5675 = vmax.f32 %v5501, %v5502
  %v5676 = vmax.f32 %v5503, %v5504
  %v5677 = vmax.f32 %v5505, %v5506
  %v5678 = vmax.f32 %v5507, %v5508
  %v5679 = vmax.f32 %v5509, %v5510
  %v5680 = vmax.f32 %v5511, %v5512
  %v5681 = vmax.f32 %v5513, %v5514
  %v5682 = vmax.f32 %v5515, %v5516
  %v5683 = vmax.f32 %v5517, %v5518
  %v5684 = vmax.f32 %v5519, %v5520
  %v5685 = vmax.f32 %v5521, %v5522
  %v5686 = vmax.f32 %v5523, %v5524
  %v5687 = vmax.f32 %v5525, %v5526
  %v5688 = vmax.f32 %v5527, %v5528
  %v5689 = vmax.f32 %v5529, %v5530
  %v5690 = vmax.f32 %v5531, %v5532
  %v5691 = vmax.f32 %v5533, %v5534
  %v5692 = vmax.f32 %v5535, %v5536
  %v5693 = vmax.f32 %v5537, %v5538
  %v5694 = vmax.f32 %v5539, %v5540
  %v5695 = vmax.f32 %v5541, %v5542
  %v5696 = vmax.f32 %v5543, %v5544
  %v5697 = vmax.f32 %v5545, %v5546
  %v5698 = vmax.f32 %v5547, %v5548
  %v5699 = vmax.f32 %v5549, %v5550
  %v5700 = vmax.f32 %v5551, %v5552
  %v5701 = vmax.f32 %v5553, %v5554
  %v5702 = vmax.f32 %v5555, %v5556
  %v5703 = vmax.f32 %v5557, %v5558
  %v5704 = vmax.f32 %v5559, %v5560
  %v5705 = vld [vmem:[%s2] sm:$0x1]
  %v5707 = vlaneseq
  %v5708 = vshrl.u32 %v5707, 7
  %v5709 = vsub.s32 0, %v5708
  %v5710 = vrot.slane %v5705, %v5709
  %v5712 = vadd.f32 %v5561, %v5710
  %v5713 = vadd.f32 %v5562, %v5710
  %v5714 = vadd.f32 %v5563, %v5710
  %v5715 = vadd.f32 %v5564, %v5710
  %v5716 = vadd.f32 %v5565, %v5710
  %v5717 = vadd.f32 %v5566, %v5710
  %v5718 = vadd.f32 %v5567, %v5710
  %v5719 = vadd.f32 %v5568, %v5710
  %v5720 = vadd.f32 %v5569, %v5710
  %v5721 = vadd.f32 %v5570, %v5710
  %v5722 = vadd.f32 %v5571, %v5710
  %v5723 = vadd.f32 %v5572, %v5710
  %v5724 = vadd.f32 %v5573, %v5710
  %v5725 = vadd.f32 %v5574, %v5710
  %v5726 = vadd.f32 %v5575, %v5710
  %v5727 = vadd.f32 %v5576, %v5710
  %v5728 = vadd.f32 %v5577, %v5710
  %v5729 = vadd.f32 %v5578, %v5710
  %v5730 = vadd.f32 %v5579, %v5710
  %v5731 = vadd.f32 %v5580, %v5710
  %v5732 = vadd.f32 %v5581, %v5710
  %v5733 = vadd.f32 %v5582, %v5710
  %v5734 = vadd.f32 %v5583, %v5710
  %v5735 = vadd.f32 %v5584, %v5710
  %v5736 = vadd.f32 %v5585, %v5710
  %v5737 = vadd.f32 %v5586, %v5710
  %v5738 = vadd.f32 %v5587, %v5710
  %v5739 = vadd.f32 %v5588, %v5710
  %v5740 = vadd.f32 %v5589, %v5710
  %v5741 = vadd.f32 %v5590, %v5710
  %v5742 = vadd.f32 %v5591, %v5710
  %v5743 = vadd.f32 %v5592, %v5710
  %v5744 = vadd.f32 %v5593, %v5710
  %v5745 = vadd.f32 %v5594, %v5710
  %v5746 = vadd.f32 %v5595, %v5710
  %v5747 = vadd.f32 %v5596, %v5710
  %v5748 = vadd.f32 %v5597, %v5710
  %v5749 = vadd.f32 %v5598, %v5710
  %v5750 = vadd.f32 %v5599, %v5710
  %v5751 = vadd.f32 %v5600, %v5710
  %v5752 = vadd.f32 %v5601, %v5710
  %v5753 = vadd.f32 %v5602, %v5710
  %v5754 = vadd.f32 %v5603, %v5710
  %v5755 = vadd.f32 %v5604, %v5710
  %v5756 = vadd.f32 %v5605, %v5710
  %v5757 = vadd.f32 %v5606, %v5710
  %v5758 = vadd.f32 %v5607, %v5710
  %v5759 = vadd.f32 %v5608, %v5710
  %v5760 = vadd.f32 %v5609, %v5710
  %v5761 = vadd.f32 %v5610, %v5710
  %v5762 = vadd.f32 %v5611, %v5710
  %v5763 = vadd.f32 %v5612, %v5710
  %v5764 = vadd.f32 %v5613, %v5710
  %v5765 = vadd.f32 %v5614, %v5710
  %v5766 = vadd.f32 %v5615, %v5710
  %v5767 = vadd.f32 %v5616, %v5710
  %v5768 = vadd.f32 %v5617, %v5710
  %v5769 = vadd.f32 %v5618, %v5710
  %v5770 = vadd.f32 %v5619, %v5710
  %v5771 = vadd.f32 %v5620, %v5710
  %v5772 = vadd.f32 %v5621, %v5710
  %v5773 = vadd.f32 %v5622, %v5710
  %v5774 = vadd.f32 %v5623, %v5710
  %v5775 = vadd.f32 %v5624, %v5710
  %v5776 = vadd.f32 %v5625, %v5710
  %v5777 = vadd.f32 %v5626, %v5710
  %v5778 = vadd.f32 %v5627, %v5710
  %v5779 = vadd.f32 %v5628, %v5710
  %v5780 = vadd.f32 %v5629, %v5710
  %v5781 = vadd.f32 %v5630, %v5710
  %v5782 = vadd.f32 %v5631, %v5710
  %v5783 = vadd.f32 %v5632, %v5710
  %v5784 = vadd.f32 %v5633, %v5710
  %v5785 = vadd.f32 %v5634, %v5710
  %v5786 = vadd.f32 %v5635, %v5710
  %v5787 = vadd.f32 %v5636, %v5710
  %v5788 = vadd.f32 %v5637, %v5710
  %v5789 = vadd.f32 %v5638, %v5710
  %v5790 = vadd.f32 %v5639, %v5710
  %v5791 = vadd.f32 %v5640, %v5710
  %v5792 = vadd.f32 %v5641, %v5710
  %v5793 = vadd.f32 %v5642, %v5710
  %v5794 = vadd.f32 %v5643, %v5710
  %v5795 = vadd.f32 %v5644, %v5710
  %v5796 = vadd.f32 %v5645, %v5710
  %v5797 = vadd.f32 %v5646, %v5710
  %v5798 = vadd.f32 %v5647, %v5710
  %v5799 = vadd.f32 %v5648, %v5710
  %v5800 = vadd.f32 %v5649, %v5710
  %v5801 = vadd.f32 %v5650, %v5710
  %v5802 = vadd.f32 %v5651, %v5710
  %v5803 = vadd.f32 %v5652, %v5710
  %v5804 = vadd.f32 %v5653, %v5710
  %v5805 = vadd.f32 %v5654, %v5710
  %v5806 = vadd.f32 %v5655, %v5710
  %v5807 = vadd.f32 %v5656, %v5710
  %v5808 = vadd.f32 %v5657, %v5710
  %v5809 = vadd.f32 %v5658, %v5710
  %v5810 = vadd.f32 %v5659, %v5710
  %v5811 = vadd.f32 %v5660, %v5710
  %v5812 = vadd.f32 %v5661, %v5710
  %v5813 = vadd.f32 %v5662, %v5710
  %v5814 = vadd.f32 %v5663, %v5710
  %v5815 = vadd.f32 %v5664, %v5710
  %v5816 = vadd.f32 %v5665, %v5710
  %v5817 = vadd.f32 %v5666, %v5710
  %v5818 = vadd.f32 %v5667, %v5710
  %v5819 = vadd.f32 %v5668, %v5710
  %v5820 = vadd.f32 %v5669, %v5710
  %v5821 = vadd.f32 %v5670, %v5710
  %v5822 = vadd.f32 %v5671, %v5710
  %v5823 = vadd.f32 %v5672, %v5710
  %v5824 = vadd.f32 %v5673, %v5710
  %v5825 = vadd.f32 %v5674, %v5710
  %v5826 = vadd.f32 %v5675, %v5710
  %v5827 = vadd.f32 %v5676, %v5710
  %v5828 = vadd.f32 %v5677, %v5710
  %v5829 = vadd.f32 %v5678, %v5710
  %v5830 = vadd.f32 %v5679, %v5710
  %v5831 = vadd.f32 %v5680, %v5710
  %v5832 = vadd.f32 %v5681, %v5710
  %v5833 = vadd.f32 %v5682, %v5710
  %v5834 = vadd.f32 %v5683, %v5710
  %v5835 = vadd.f32 %v5684, %v5710
  %v5836 = vadd.f32 %v5685, %v5710
  %v5837 = vadd.f32 %v5686, %v5710
  %v5838 = vadd.f32 %v5687, %v5710
  %v5839 = vadd.f32 %v5688, %v5710
  %v5840 = vadd.f32 %v5689, %v5710
  %v5841 = vadd.f32 %v5690, %v5710
  %v5842 = vadd.f32 %v5691, %v5710
  %v5843 = vadd.f32 %v5692, %v5710
  %v5844 = vadd.f32 %v5693, %v5710
  %v5845 = vadd.f32 %v5694, %v5710
  %v5846 = vadd.f32 %v5695, %v5710
  %v5847 = vadd.f32 %v5696, %v5710
  %v5848 = vadd.f32 %v5697, %v5710
  %v5849 = vadd.f32 %v5698, %v5710
  %v5850 = vadd.f32 %v5699, %v5710
  %v5851 = vadd.f32 %v5700, %v5710
  %v5852 = vadd.f32 %v5701, %v5710
  %v5853 = vadd.f32 %v5702, %v5710
  %v5854 = vadd.f32 %v5703, %v5710
  %v5855 = vadd.f32 %v5704, %v5710
  %v5856 = vmax.f32 %v5712, 0.0
  %v5857 = vmax.f32 %v5713, 0.0
  %v5858 = vmax.f32 %v5714, 0.0
  %v5859 = vmax.f32 %v5715, 0.0
  %v5860 = vmax.f32 %v5716, 0.0
  %v5861 = vmax.f32 %v5717, 0.0
  %v5862 = vmax.f32 %v5718, 0.0
  %v5863 = vmax.f32 %v5719, 0.0
  %v5864 = vmax.f32 %v5720, 0.0
  %v5865 = vmax.f32 %v5721, 0.0
  %v5866 = vmax.f32 %v5722, 0.0
  %v5867 = vmax.f32 %v5723, 0.0
  %v5868 = vmax.f32 %v5724, 0.0
  %v5869 = vmax.f32 %v5725, 0.0
  %v5870 = vmax.f32 %v5726, 0.0
  %v5871 = vmax.f32 %v5727, 0.0
  %v5872 = vmax.f32 %v5728, 0.0
  %v5873 = vmax.f32 %v5729, 0.0
  %v5874 = vmax.f32 %v5730, 0.0
  %v5875 = vmax.f32 %v5731, 0.0
  %v5876 = vmax.f32 %v5732, 0.0
  %v5877 = vmax.f32 %v5733, 0.0
  %v5878 = vmax.f32 %v5734, 0.0
  %v5879 = vmax.f32 %v5735, 0.0
  %v5880 = vmax.f32 %v5736, 0.0
  %v5881 = vmax.f32 %v5737, 0.0
  %v5882 = vmax.f32 %v5738, 0.0
  %v5883 = vmax.f32 %v5739, 0.0
  %v5884 = vmax.f32 %v5740, 0.0
  %v5885 = vmax.f32 %v5741, 0.0
  %v5886 = vmax.f32 %v5742, 0.0
  %v5887 = vmax.f32 %v5743, 0.0
  %v5888 = vmax.f32 %v5744, 0.0
  %v5889 = vmax.f32 %v5745, 0.0
  %v5890 = vmax.f32 %v5746, 0.0
  %v5891 = vmax.f32 %v5747, 0.0
  %v5892 = vmax.f32 %v5748, 0.0
  %v5893 = vmax.f32 %v5749, 0.0
  %v5894 = vmax.f32 %v5750, 0.0
  %v5895 = vmax.f32 %v5751, 0.0
  %v5896 = vmax.f32 %v5752, 0.0
  %v5897 = vmax.f32 %v5753, 0.0
  %v5898 = vmax.f32 %v5754, 0.0
  %v5899 = vmax.f32 %v5755, 0.0
  %v5900 = vmax.f32 %v5756, 0.0
  %v5901 = vmax.f32 %v5757, 0.0
  %v5902 = vmax.f32 %v5758, 0.0
  %v5903 = vmax.f32 %v5759, 0.0
  %v5904 = vmax.f32 %v5760, 0.0
  %v5905 = vmax.f32 %v5761, 0.0
  %v5906 = vmax.f32 %v5762, 0.0
  %v5907 = vmax.f32 %v5763, 0.0
  %v5908 = vmax.f32 %v5764, 0.0
  %v5909 = vmax.f32 %v5765, 0.0
  %v5910 = vmax.f32 %v5766, 0.0
  %v5911 = vmax.f32 %v5767, 0.0
  %v5912 = vmax.f32 %v5768, 0.0
  %v5913 = vmax.f32 %v5769, 0.0
  %v5914 = vmax.f32 %v5770, 0.0
  %v5915 = vmax.f32 %v5771, 0.0
  %v5916 = vmax.f32 %v5772, 0.0
  %v5917 = vmax.f32 %v5773, 0.0
  %v5918 = vmax.f32 %v5774, 0.0
  %v5919 = vmax.f32 %v5775, 0.0
  %v5920 = vmax.f32 %v5776, 0.0
  %v5921 = vmax.f32 %v5777, 0.0
  %v5922 = vmax.f32 %v5778, 0.0
  %v5923 = vmax.f32 %v5779, 0.0
  %v5924 = vmax.f32 %v5780, 0.0
  %v5925 = vmax.f32 %v5781, 0.0
  %v5926 = vmax.f32 %v5782, 0.0
  %v5927 = vmax.f32 %v5783, 0.0
  %v5928 = vmax.f32 %v5784, 0.0
  %v5929 = vmax.f32 %v5785, 0.0
  %v5930 = vmax.f32 %v5786, 0.0
  %v5931 = vmax.f32 %v5787, 0.0
  %v5932 = vmax.f32 %v5788, 0.0
  %v5933 = vmax.f32 %v5789, 0.0
  %v5934 = vmax.f32 %v5790, 0.0
  %v5935 = vmax.f32 %v5791, 0.0
  %v5936 = vmax.f32 %v5792, 0.0
  %v5937 = vmax.f32 %v5793, 0.0
  %v5938 = vmax.f32 %v5794, 0.0
  %v5939 = vmax.f32 %v5795, 0.0
  %v5940 = vmax.f32 %v5796, 0.0
  %v5941 = vmax.f32 %v5797, 0.0
  %v5942 = vmax.f32 %v5798, 0.0
  %v5943 = vmax.f32 %v5799, 0.0
  %v5944 = vmax.f32 %v5800, 0.0
  %v5945 = vmax.f32 %v5801, 0.0
  %v5946 = vmax.f32 %v5802, 0.0
  %v5947 = vmax.f32 %v5803, 0.0
  %v5948 = vmax.f32 %v5804, 0.0
  %v5949 = vmax.f32 %v5805, 0.0
  %v5950 = vmax.f32 %v5806, 0.0
  %v5951 = vmax.f32 %v5807, 0.0
  %v5952 = vmax.f32 %v5808, 0.0
  %v5953 = vmax.f32 %v5809, 0.0
  %v5954 = vmax.f32 %v5810, 0.0
  %v5955 = vmax.f32 %v5811, 0.0
  %v5956 = vmax.f32 %v5812, 0.0
  %v5957 = vmax.f32 %v5813, 0.0
  %v5958 = vmax.f32 %v5814, 0.0
  %v5959 = vmax.f32 %v5815, 0.0
  %v5960 = vmax.f32 %v5816, 0.0
  %v5961 = vmax.f32 %v5817, 0.0
  %v5962 = vmax.f32 %v5818, 0.0
  %v5963 = vmax.f32 %v5819, 0.0
  %v5964 = vmax.f32 %v5820, 0.0
  %v5965 = vmax.f32 %v5821, 0.0
  %v5966 = vmax.f32 %v5822, 0.0
  %v5967 = vmax.f32 %v5823, 0.0
  %v5968 = vmax.f32 %v5824, 0.0
  %v5969 = vmax.f32 %v5825, 0.0
  %v5970 = vmax.f32 %v5826, 0.0
  %v5971 = vmax.f32 %v5827, 0.0
  %v5972 = vmax.f32 %v5828, 0.0
  %v5973 = vmax.f32 %v5829, 0.0
  %v5974 = vmax.f32 %v5830, 0.0
  %v5975 = vmax.f32 %v5831, 0.0
  %v5976 = vmax.f32 %v5832, 0.0
  %v5977 = vmax.f32 %v5833, 0.0
  %v5978 = vmax.f32 %v5834, 0.0
  %v5979 = vmax.f32 %v5835, 0.0
  %v5980 = vmax.f32 %v5836, 0.0
  %v5981 = vmax.f32 %v5837, 0.0
  %v5982 = vmax.f32 %v5838, 0.0
  %v5983 = vmax.f32 %v5839, 0.0
  %v5984 = vmax.f32 %v5840, 0.0
  %v5985 = vmax.f32 %v5841, 0.0
  %v5986 = vmax.f32 %v5842, 0.0
  %v5987 = vmax.f32 %v5843, 0.0
  %v5988 = vmax.f32 %v5844, 0.0
  %v5989 = vmax.f32 %v5845, 0.0
  %v5990 = vmax.f32 %v5846, 0.0
  %v5991 = vmax.f32 %v5847, 0.0
  %v5992 = vmax.f32 %v5848, 0.0
  %v5993 = vmax.f32 %v5849, 0.0
  %v5994 = vmax.f32 %v5850, 0.0
  %v5995 = vmax.f32 %v5851, 0.0
  %v5996 = vmax.f32 %v5852, 0.0
  %v5997 = vmax.f32 %v5853, 0.0
  %v5998 = vmax.f32 %v5854, 0.0
  %v5999 = vmax.f32 %v5855, 0.0
  %v6000 = vpack.c.bf16 %v5856, %v5856
  %v6001 = vpack.c.bf16 %v5857, %v5857
  %v6002 = vpack.c.bf16 %v5858, %v5858
  %v6003 = vpack.c.bf16 %v5859, %v5859
  %v6004 = vpack.c.bf16 %v5860, %v5860
  %v6005 = vpack.c.bf16 %v5861, %v5861
  %v6006 = vpack.c.bf16 %v5862, %v5862
  %v6007 = vpack.c.bf16 %v5863, %v5863
  %v6008 = vpack.c.bf16 %v5864, %v5864
  %v6009 = vpack.c.bf16 %v5865, %v5865
  %v6010 = vpack.c.bf16 %v5866, %v5866
  %v6011 = vpack.c.bf16 %v5867, %v5867
  %v6012 = vpack.c.bf16 %v5868, %v5868
  %v6013 = vpack.c.bf16 %v5869, %v5869
  %v6014 = vpack.c.bf16 %v5870, %v5870
  %v6015 = vpack.c.bf16 %v5871, %v5871
  %v6016 = vpack.c.bf16 %v5872, %v5872
  %v6017 = vpack.c.bf16 %v5873, %v5873
  %v6018 = vpack.c.bf16 %v5874, %v5874
  %v6019 = vpack.c.bf16 %v5875, %v5875
  %v6020 = vpack.c.bf16 %v5876, %v5876
  %v6021 = vpack.c.bf16 %v5877, %v5877
  %v6022 = vpack.c.bf16 %v5878, %v5878
  %v6023 = vpack.c.bf16 %v5879, %v5879
  %v6024 = vpack.c.bf16 %v5880, %v5880
  %v6025 = vpack.c.bf16 %v5881, %v5881
  %v6026 = vpack.c.bf16 %v5882, %v5882
  %v6027 = vpack.c.bf16 %v5883, %v5883
  %v6028 = vpack.c.bf16 %v5884, %v5884
  %v6029 = vpack.c.bf16 %v5885, %v5885
  %v6030 = vpack.c.bf16 %v5886, %v5886
  %v6031 = vpack.c.bf16 %v5887, %v5887
  %v6032 = vpack.c.bf16 %v5888, %v5888
  %v6033 = vpack.c.bf16 %v5889, %v5889
  %v6034 = vpack.c.bf16 %v5890, %v5890
  %v6035 = vpack.c.bf16 %v5891, %v5891
  %v6036 = vpack.c.bf16 %v5892, %v5892
  %v6037 = vpack.c.bf16 %v5893, %v5893
  %v6038 = vpack.c.bf16 %v5894, %v5894
  %v6039 = vpack.c.bf16 %v5895, %v5895
  %v6040 = vpack.c.bf16 %v5896, %v5896
  %v6041 = vpack.c.bf16 %v5897, %v5897
  %v6042 = vpack.c.bf16 %v5898, %v5898
  %v6043 = vpack.c.bf16 %v5899, %v5899
  %v6044 = vpack.c.bf16 %v5900, %v5900
  %v6045 = vpack.c.bf16 %v5901, %v5901
  %v6046 = vpack.c.bf16 %v5902, %v5902
  %v6047 = vpack.c.bf16 %v5903, %v5903
  %v6048 = vpack.c.bf16 %v5904, %v5904
  %v6049 = vpack.c.bf16 %v5905, %v5905
  %v6050 = vpack.c.bf16 %v5906, %v5906
  %v6051 = vpack.c.bf16 %v5907, %v5907
  %v6052 = vpack.c.bf16 %v5908, %v5908
  %v6053 = vpack.c.bf16 %v5909, %v5909
  %v6054 = vpack.c.bf16 %v5910, %v5910
  %v6055 = vpack.c.bf16 %v5911, %v5911
  %v6056 = vpack.c.bf16 %v5912, %v5912
  %v6057 = vpack.c.bf16 %v5913, %v5913
  %v6058 = vpack.c.bf16 %v5914, %v5914
  %v6059 = vpack.c.bf16 %v5915, %v5915
  %v6060 = vpack.c.bf16 %v5916, %v5916
  %v6061 = vpack.c.bf16 %v5917, %v5917
  %v6062 = vpack.c.bf16 %v5918, %v5918
  %v6063 = vpack.c.bf16 %v5919, %v5919
  %v6064 = vpack.c.bf16 %v5920, %v5920
  %v6065 = vpack.c.bf16 %v5921, %v5921
  %v6066 = vpack.c.bf16 %v5922, %v5922
  %v6067 = vpack.c.bf16 %v5923, %v5923
  %v6068 = vpack.c.bf16 %v5924, %v5924
  %v6069 = vpack.c.bf16 %v5925, %v5925
  %v6070 = vpack.c.bf16 %v5926, %v5926
  %v6071 = vpack.c.bf16 %v5927, %v5927
  %v6072 = vpack.c.bf16 %v5928, %v5928
  %v6073 = vpack.c.bf16 %v5929, %v5929
  %v6074 = vpack.c.bf16 %v5930, %v5930
  %v6075 = vpack.c.bf16 %v5931, %v5931
  %v6076 = vpack.c.bf16 %v5932, %v5932
  %v6077 = vpack.c.bf16 %v5933, %v5933
  %v6078 = vpack.c.bf16 %v5934, %v5934
  %v6079 = vpack.c.bf16 %v5935, %v5935
  %v6080 = vpack.c.bf16 %v5936, %v5936
  %v6081 = vpack.c.bf16 %v5937, %v5937
  %v6082 = vpack.c.bf16 %v5938, %v5938
  %v6083 = vpack.c.bf16 %v5939, %v5939
  %v6084 = vpack.c.bf16 %v5940, %v5940
  %v6085 = vpack.c.bf16 %v5941, %v5941
  %v6086 = vpack.c.bf16 %v5942, %v5942
  %v6087 = vpack.c.bf16 %v5943, %v5943
  %v6088 = vpack.c.bf16 %v5944, %v5944
  %v6089 = vpack.c.bf16 %v5945, %v5945
  %v6090 = vpack.c.bf16 %v5946, %v5946
  %v6091 = vpack.c.bf16 %v5947, %v5947
  %v6092 = vpack.c.bf16 %v5948, %v5948
  %v6093 = vpack.c.bf16 %v5949, %v5949
  %v6094 = vpack.c.bf16 %v5950, %v5950
  %v6095 = vpack.c.bf16 %v5951, %v5951
  %v6096 = vpack.c.bf16 %v5952, %v5952
  %v6097 = vpack.c.bf16 %v5953, %v5953
  %v6098 = vpack.c.bf16 %v5954, %v5954
  %v6099 = vpack.c.bf16 %v5955, %v5955
  %v6100 = vpack.c.bf16 %v5956, %v5956
  %v6101 = vpack.c.bf16 %v5957, %v5957
  %v6102 = vpack.c.bf16 %v5958, %v5958
  %v6103 = vpack.c.bf16 %v5959, %v5959
  %v6104 = vpack.c.bf16 %v5960, %v5960
  %v6105 = vpack.c.bf16 %v5961, %v5961
  %v6106 = vpack.c.bf16 %v5962, %v5962
  %v6107 = vpack.c.bf16 %v5963, %v5963
  %v6108 = vpack.c.bf16 %v5964, %v5964
  %v6109 = vpack.c.bf16 %v5965, %v5965
  %v6110 = vpack.c.bf16 %v5966, %v5966
  %v6111 = vpack.c.bf16 %v5967, %v5967
  %v6112 = vpack.c.bf16 %v5968, %v5968
  %v6113 = vpack.c.bf16 %v5969, %v5969
  %v6114 = vpack.c.bf16 %v5970, %v5970
  %v6115 = vpack.c.bf16 %v5971, %v5971
  %v6116 = vpack.c.bf16 %v5972, %v5972
  %v6117 = vpack.c.bf16 %v5973, %v5973
  %v6118 = vpack.c.bf16 %v5974, %v5974
  %v6119 = vpack.c.bf16 %v5975, %v5975
  %v6120 = vpack.c.bf16 %v5976, %v5976
  %v6121 = vpack.c.bf16 %v5977, %v5977
  %v6122 = vpack.c.bf16 %v5978, %v5978
  %v6123 = vpack.c.bf16 %v5979, %v5979
  %v6124 = vpack.c.bf16 %v5980, %v5980
  %v6125 = vpack.c.bf16 %v5981, %v5981
  %v6126 = vpack.c.bf16 %v5982, %v5982
  %v6127 = vpack.c.bf16 %v5983, %v5983
  %v6128 = vpack.c.bf16 %v5984, %v5984
  %v6129 = vpack.c.bf16 %v5985, %v5985
  %v6130 = vpack.c.bf16 %v5986, %v5986
  %v6131 = vpack.c.bf16 %v5987, %v5987
  %v6132 = vpack.c.bf16 %v5988, %v5988
  %v6133 = vpack.c.bf16 %v5989, %v5989
  %v6134 = vpack.c.bf16 %v5990, %v5990
  %v6135 = vpack.c.bf16 %v5991, %v5991
  %v6136 = vpack.c.bf16 %v5992, %v5992
  %v6137 = vpack.c.bf16 %v5993, %v5993
  %v6138 = vpack.c.bf16 %v5994, %v5994
  %v6139 = vpack.c.bf16 %v5995, %v5995
  %v6140 = vpack.c.bf16 %v5996, %v5996
  %v6141 = vpack.c.bf16 %v5997, %v5997
  %v6142 = vpack.c.bf16 %v5998, %v5998
  %v6143 = vpack.c.bf16 %v5999, %v5999
  %6208 = vrot.lane.b32.xlu0 %v6001, 32
  %v6209 = vpop.permute.xlu0 %6208
  %6210 = vrot.lane.b32.xlu0 %v6002, 32
  %v6211 = vpop.permute.xlu0 %6210
  %6212 = vrot.lane.b32.xlu0 %v6003, 32
  %v6213 = vpop.permute.xlu0 %6212
  %6214 = vrot.lane.b32.xlu0 %v6004, 32
  %v6215 = vpop.permute.xlu0 %6214
  %6216 = vrot.lane.b32.xlu0 %v6005, 32
  %v6217 = vpop.permute.xlu0 %6216
  %6218 = vrot.lane.b32.xlu0 %v6006, 32
  %v6219 = vpop.permute.xlu0 %6218
  %6220 = vrot.lane.b32.xlu0 %v6007, 32
  %v6221 = vpop.permute.xlu0 %6220
  %6222 = vrot.lane.b32.xlu0 %v6008, 32
  %v6223 = vpop.permute.xlu0 %6222
  %6224 = vrot.lane.b32.xlu0 %v6013, 32
  %v6225 = vpop.permute.xlu0 %6224
  %6226 = vrot.lane.b32.xlu0 %v6014, 32
  %v6227 = vpop.permute.xlu0 %6226
  %6228 = vrot.lane.b32.xlu0 %v6015, 32
  %v6229 = vpop.permute.xlu0 %6228
  %6230 = vrot.lane.b32.xlu0 %v6016, 32
  %v6231 = vpop.permute.xlu0 %6230
  %6232 = vrot.lane.b32.xlu0 %v6017, 32
  %v6233 = vpop.permute.xlu0 %6232
  %6234 = vrot.lane.b32.xlu0 %v6018, 32
  %v6235 = vpop.permute.xlu0 %6234
  %6236 = vrot.lane.b32.xlu0 %v6019, 32
  %v6237 = vpop.permute.xlu0 %6236
  %6238 = vrot.lane.b32.xlu0 %v6020, 32
  %v6239 = vpop.permute.xlu0 %6238
  %6240 = vrot.lane.b32.xlu0 %v6025, 32
  %v6241 = vpop.permute.xlu0 %6240
  %6242 = vrot.lane.b32.xlu0 %v6026, 32
  %v6243 = vpop.permute.xlu0 %6242
  %6244 = vrot.lane.b32.xlu0 %v6027, 32
  %v6245 = vpop.permute.xlu0 %6244
  %6246 = vrot.lane.b32.xlu0 %v6028, 32
  %v6247 = vpop.permute.xlu0 %6246
  %6248 = vrot.lane.b32.xlu0 %v6029, 32
  %v6249 = vpop.permute.xlu0 %6248
  %6250 = vrot.lane.b32.xlu0 %v6030, 32
  %v6251 = vpop.permute.xlu0 %6250
  %6252 = vrot.lane.b32.xlu0 %v6031, 32
  %v6253 = vpop.permute.xlu0 %6252
  %6254 = vrot.lane.b32.xlu0 %v6032, 32
  %v6255 = vpop.permute.xlu0 %6254
  %6256 = vrot.lane.b32.xlu0 %v6037, 32
  %v6257 = vpop.permute.xlu0 %6256
  %6258 = vrot.lane.b32.xlu0 %v6038, 32
  %v6259 = vpop.permute.xlu0 %6258
  %6260 = vrot.lane.b32.xlu0 %v6039, 32
  %v6261 = vpop.permute.xlu0 %6260
  %6262 = vrot.lane.b32.xlu0 %v6040, 32
  %v6263 = vpop.permute.xlu0 %6262
  %6264 = vrot.lane.b32.xlu0 %v6041, 32
  %v6265 = vpop.permute.xlu0 %6264
  %6266 = vrot.lane.b32.xlu0 %v6042, 32
  %v6267 = vpop.permute.xlu0 %6266
  %6268 = vrot.lane.b32.xlu0 %v6043, 32
  %v6269 = vpop.permute.xlu0 %6268
  %6270 = vrot.lane.b32.xlu0 %v6044, 32
  %v6271 = vpop.permute.xlu0 %6270
  %6272 = vrot.lane.b32.xlu0 %v6049, 32
  %v6273 = vpop.permute.xlu0 %6272
  %6274 = vrot.lane.b32.xlu0 %v6050, 32
  %v6275 = vpop.permute.xlu0 %6274
  %6276 = vrot.lane.b32.xlu0 %v6051, 32
  %v6277 = vpop.permute.xlu0 %6276
  %6278 = vrot.lane.b32.xlu0 %v6052, 32
  %v6279 = vpop.permute.xlu0 %6278
  %6280 = vrot.lane.b32.xlu0 %v6053, 32
  %v6281 = vpop.permute.xlu0 %6280
  %6282 = vrot.lane.b32.xlu0 %v6054, 32
  %v6283 = vpop.permute.xlu0 %6282
  %6284 = vrot.lane.b32.xlu0 %v6055, 32
  %v6285 = vpop.permute.xlu0 %6284
  %6286 = vrot.lane.b32.xlu0 %v6056, 32
  %v6287 = vpop.permute.xlu0 %6286
  %6288 = vrot.lane.b32.xlu0 %v6061, 32
  %v6289 = vpop.permute.xlu0 %6288
  %6290 = vrot.lane.b32.xlu0 %v6062, 32
  %v6291 = vpop.permute.xlu0 %6290
  %6292 = vrot.lane.b32.xlu0 %v6063, 32
  %v6293 = vpop.permute.xlu0 %6292
  %6294 = vrot.lane.b32.xlu0 %v6064, 32
  %v6295 = vpop.permute.xlu0 %6294
  %6296 = vrot.lane.b32.xlu0 %v6065, 32
  %v6297 = vpop.permute.xlu0 %6296
  %6298 = vrot.lane.b32.xlu0 %v6066, 32
  %v6299 = vpop.permute.xlu0 %6298
  %6300 = vrot.lane.b32.xlu0 %v6067, 32
  %v6301 = vpop.permute.xlu0 %6300
  %6302 = vrot.lane.b32.xlu0 %v6068, 32
  %v6303 = vpop.permute.xlu0 %6302
  %6304 = vrot.lane.b32.xlu0 %v6073, 32
  %v6305 = vpop.permute.xlu0 %6304
  %6306 = vrot.lane.b32.xlu0 %v6074, 32
  %v6307 = vpop.permute.xlu0 %6306
  %6308 = vrot.lane.b32.xlu0 %v6075, 32
  %v6309 = vpop.permute.xlu0 %6308
  %6310 = vrot.lane.b32.xlu0 %v6076, 32
  %v6311 = vpop.permute.xlu0 %6310
  %6312 = vrot.lane.b32.xlu0 %v6077, 32
  %v6313 = vpop.permute.xlu0 %6312
  %6314 = vrot.lane.b32.xlu0 %v6078, 32
  %v6315 = vpop.permute.xlu0 %6314
  %6316 = vrot.lane.b32.xlu0 %v6079, 32
  %v6317 = vpop.permute.xlu0 %6316
  %6318 = vrot.lane.b32.xlu0 %v6080, 32
  %v6319 = vpop.permute.xlu0 %6318
  %6320 = vrot.lane.b32.xlu0 %v6085, 32
  %v6321 = vpop.permute.xlu0 %6320
  %6322 = vrot.lane.b32.xlu0 %v6086, 32
  %v6323 = vpop.permute.xlu0 %6322
  %6324 = vrot.lane.b32.xlu0 %v6087, 32
  %v6325 = vpop.permute.xlu0 %6324
  %6326 = vrot.lane.b32.xlu0 %v6088, 32
  %v6327 = vpop.permute.xlu0 %6326
  %6328 = vrot.lane.b32.xlu0 %v6089, 32
  %v6329 = vpop.permute.xlu0 %6328
  %6330 = vrot.lane.b32.xlu0 %v6090, 32
  %v6331 = vpop.permute.xlu0 %6330
  %6332 = vrot.lane.b32.xlu0 %v6091, 32
  %v6333 = vpop.permute.xlu0 %6332
  %6334 = vrot.lane.b32.xlu0 %v6092, 32
  %v6335 = vpop.permute.xlu0 %6334
  %6344 = vrot.lane.b32.xlu0 %v6002, 64
  %v6345 = vpop.permute.xlu0 %6344
  %6346 = vrot.lane.b32.xlu0 %v6003, 64
  %v6347 = vpop.permute.xlu0 %6346
  %6348 = vrot.lane.b32.xlu0 %v6004, 64
  %v6349 = vpop.permute.xlu0 %6348
  %6350 = vrot.lane.b32.xlu0 %v6005, 64
  %v6351 = vpop.permute.xlu0 %6350
  %6352 = vrot.lane.b32.xlu0 %v6006, 64
  %v6353 = vpop.permute.xlu0 %6352
  %6354 = vrot.lane.b32.xlu0 %v6007, 64
  %v6355 = vpop.permute.xlu0 %6354
  %6356 = vrot.lane.b32.xlu0 %v6008, 64
  %v6357 = vpop.permute.xlu0 %6356
  %6358 = vrot.lane.b32.xlu0 %v6009, 64
  %v6359 = vpop.permute.xlu0 %6358
  %6360 = vrot.lane.b32.xlu0 %v6014, 64
  %v6361 = vpop.permute.xlu0 %6360
  %6362 = vrot.lane.b32.xlu0 %v6015, 64
  %v6363 = vpop.permute.xlu0 %6362
  %6364 = vrot.lane.b32.xlu0 %v6016, 64
  %v6365 = vpop.permute.xlu0 %6364
  %6366 = vrot.lane.b32.xlu0 %v6017, 64
  %v6367 = vpop.permute.xlu0 %6366
  %6368 = vrot.lane.b32.xlu0 %v6018, 64
  %v6369 = vpop.permute.xlu0 %6368
  %6370 = vrot.lane.b32.xlu0 %v6019, 64
  %v6371 = vpop.permute.xlu0 %6370
  %6372 = vrot.lane.b32.xlu0 %v6020, 64
  %v6373 = vpop.permute.xlu0 %6372
  %6374 = vrot.lane.b32.xlu0 %v6021, 64
  %v6375 = vpop.permute.xlu0 %6374
  %6376 = vrot.lane.b32.xlu0 %v6026, 64
  %v6377 = vpop.permute.xlu0 %6376
  %6378 = vrot.lane.b32.xlu0 %v6027, 64
  %v6379 = vpop.permute.xlu0 %6378
  %6380 = vrot.lane.b32.xlu0 %v6028, 64
  %v6381 = vpop.permute.xlu0 %6380
  %6382 = vrot.lane.b32.xlu0 %v6029, 64
  %v6383 = vpop.permute.xlu0 %6382
  %6384 = vrot.lane.b32.xlu0 %v6030, 64
  %v6385 = vpop.permute.xlu0 %6384
  %6386 = vrot.lane.b32.xlu0 %v6031, 64
  %v6387 = vpop.permute.xlu0 %6386
  %6388 = vrot.lane.b32.xlu0 %v6032, 64
  %v6389 = vpop.permute.xlu0 %6388
  %6390 = vrot.lane.b32.xlu0 %v6033, 64
  %v6391 = vpop.permute.xlu0 %6390
  %6392 = vrot.lane.b32.xlu0 %v6038, 64
  %v6393 = vpop.permute.xlu0 %6392
  %6394 = vrot.lane.b32.xlu0 %v6039, 64
  %v6395 = vpop.permute.xlu0 %6394
  %6396 = vrot.lane.b32.xlu0 %v6040, 64
  %v6397 = vpop.permute.xlu0 %6396
  %6398 = vrot.lane.b32.xlu0 %v6041, 64
  %v6399 = vpop.permute.xlu0 %6398
  %6400 = vrot.lane.b32.xlu0 %v6042, 64
  %v6401 = vpop.permute.xlu0 %6400
  %6402 = vrot.lane.b32.xlu0 %v6043, 64
  %v6403 = vpop.permute.xlu0 %6402
  %6404 = vrot.lane.b32.xlu0 %v6044, 64
  %v6405 = vpop.permute.xlu0 %6404
  %6406 = vrot.lane.b32.xlu0 %v6045, 64
  %v6407 = vpop.permute.xlu0 %6406
  %6408 = vrot.lane.b32.xlu0 %v6050, 64
  %v6409 = vpop.permute.xlu0 %6408
  %6410 = vrot.lane.b32.xlu0 %v6051, 64
  %v6411 = vpop.permute.xlu0 %6410
  %6412 = vrot.lane.b32.xlu0 %v6052, 64
  %v6413 = vpop.permute.xlu0 %6412
  %6414 = vrot.lane.b32.xlu0 %v6053, 64
  %v6415 = vpop.permute.xlu0 %6414
  %6416 = vrot.lane.b32.xlu0 %v6054, 64
  %v6417 = vpop.permute.xlu0 %6416
  %6418 = vrot.lane.b32.xlu0 %v6055, 64
  %v6419 = vpop.permute.xlu0 %6418
  %6420 = vrot.lane.b32.xlu0 %v6056, 64
  %v6421 = vpop.permute.xlu0 %6420
  %6422 = vrot.lane.b32.xlu0 %v6057, 64
  %v6423 = vpop.permute.xlu0 %6422
  %6424 = vrot.lane.b32.xlu0 %v6062, 64
  %v6425 = vpop.permute.xlu0 %6424
  %6426 = vrot.lane.b32.xlu0 %v6063, 64
  %v6427 = vpop.permute.xlu0 %6426
  %6428 = vrot.lane.b32.xlu0 %v6064, 64
  %v6429 = vpop.permute.xlu0 %6428
  %6430 = vrot.lane.b32.xlu0 %v6065, 64
  %v6431 = vpop.permute.xlu0 %6430
  %6432 = vrot.lane.b32.xlu0 %v6066, 64
  %v6433 = vpop.permute.xlu0 %6432
  %6434 = vrot.lane.b32.xlu0 %v6067, 64
  %v6435 = vpop.permute.xlu0 %6434
  %6436 = vrot.lane.b32.xlu0 %v6068, 64
  %v6437 = vpop.permute.xlu0 %6436
  %6438 = vrot.lane.b32.xlu0 %v6069, 64
  %v6439 = vpop.permute.xlu0 %6438
  %6440 = vrot.lane.b32.xlu0 %v6074, 64
  %v6441 = vpop.permute.xlu0 %6440
  %6442 = vrot.lane.b32.xlu0 %v6075, 64
  %v6443 = vpop.permute.xlu0 %6442
  %6444 = vrot.lane.b32.xlu0 %v6076, 64
  %v6445 = vpop.permute.xlu0 %6444
  %6446 = vrot.lane.b32.xlu0 %v6077, 64
  %v6447 = vpop.permute.xlu0 %6446
  %6448 = vrot.lane.b32.xlu0 %v6078, 64
  %v6449 = vpop.permute.xlu0 %6448
  %6450 = vrot.lane.b32.xlu0 %v6079, 64
  %v6451 = vpop.permute.xlu0 %6450
  %6452 = vrot.lane.b32.xlu0 %v6080, 64
  %v6453 = vpop.permute.xlu0 %6452
  %6454 = vrot.lane.b32.xlu0 %v6081, 64
  %v6455 = vpop.permute.xlu0 %6454
  %6456 = vrot.lane.b32.xlu0 %v6086, 64
  %v6457 = vpop.permute.xlu0 %6456
  %6458 = vrot.lane.b32.xlu0 %v6087, 64
  %v6459 = vpop.permute.xlu0 %6458
  %6460 = vrot.lane.b32.xlu0 %v6088, 64
  %v6461 = vpop.permute.xlu0 %6460
  %6462 = vrot.lane.b32.xlu0 %v6089, 64
  %v6463 = vpop.permute.xlu0 %6462
  %6464 = vrot.lane.b32.xlu0 %v6090, 64
  %v6465 = vpop.permute.xlu0 %6464
  %6466 = vrot.lane.b32.xlu0 %v6091, 64
  %v6467 = vpop.permute.xlu0 %6466
  %6468 = vrot.lane.b32.xlu0 %v6092, 64
  %v6469 = vpop.permute.xlu0 %6468
  %6470 = vrot.lane.b32.xlu0 %v6093, 64
  %v6471 = vpop.permute.xlu0 %6470
  %6480 = vrot.lane.b32.xlu0 %v6003, 96
  %v6481 = vpop.permute.xlu0 %6480
  %6482 = vrot.lane.b32.xlu0 %v6004, 96
  %v6483 = vpop.permute.xlu0 %6482
  %6484 = vrot.lane.b32.xlu0 %v6005, 96
  %v6485 = vpop.permute.xlu0 %6484
  %6486 = vrot.lane.b32.xlu0 %v6006, 96
  %v6487 = vpop.permute.xlu0 %6486
  %6488 = vrot.lane.b32.xlu0 %v6007, 96
  %v6489 = vpop.permute.xlu0 %6488
  %6490 = vrot.lane.b32.xlu0 %v6008, 96
  %v6491 = vpop.permute.xlu0 %6490
  %6492 = vrot.lane.b32.xlu0 %v6009, 96
  %v6493 = vpop.permute.xlu0 %6492
  %6494 = vrot.lane.b32.xlu0 %v6010, 96
  %v6495 = vpop.permute.xlu0 %6494
  %6496 = vrot.lane.b32.xlu0 %v6015, 96
  %v6497 = vpop.permute.xlu0 %6496
  %6498 = vrot.lane.b32.xlu0 %v6016, 96
  %v6499 = vpop.permute.xlu0 %6498
  %6500 = vrot.lane.b32.xlu0 %v6017, 96
  %v6501 = vpop.permute.xlu0 %6500
  %6502 = vrot.lane.b32.xlu0 %v6018, 96
  %v6503 = vpop.permute.xlu0 %6502
  %6504 = vrot.lane.b32.xlu0 %v6019, 96
  %v6505 = vpop.permute.xlu0 %6504
  %6506 = vrot.lane.b32.xlu0 %v6020, 96
  %v6507 = vpop.permute.xlu0 %6506
  %6508 = vrot.lane.b32.xlu0 %v6021, 96
  %v6509 = vpop.permute.xlu0 %6508
  %6510 = vrot.lane.b32.xlu0 %v6022, 96
  %v6511 = vpop.permute.xlu0 %6510
  %6512 = vrot.lane.b32.xlu0 %v6027, 96
  %v6513 = vpop.permute.xlu0 %6512
  %6514 = vrot.lane.b32.xlu0 %v6028, 96
  %v6515 = vpop.permute.xlu0 %6514
  %6516 = vrot.lane.b32.xlu0 %v6029, 96
  %v6517 = vpop.permute.xlu0 %6516
  %6518 = vrot.lane.b32.xlu0 %v6030, 96
  %v6519 = vpop.permute.xlu0 %6518
  %6520 = vrot.lane.b32.xlu0 %v6031, 96
  %v6521 = vpop.permute.xlu0 %6520
  %6522 = vrot.lane.b32.xlu0 %v6032, 96
  %v6523 = vpop.permute.xlu0 %6522
  %6524 = vrot.lane.b32.xlu0 %v6033, 96
  %v6525 = vpop.permute.xlu0 %6524
  %6526 = vrot.lane.b32.xlu0 %v6034, 96
  %v6527 = vpop.permute.xlu0 %6526
  %6528 = vrot.lane.b32.xlu0 %v6039, 96
  %v6529 = vpop.permute.xlu0 %6528
  %6530 = vrot.lane.b32.xlu0 %v6040, 96
  %v6531 = vpop.permute.xlu0 %6530
  %6532 = vrot.lane.b32.xlu0 %v6041, 96
  %v6533 = vpop.permute.xlu0 %6532
  %6534 = vrot.lane.b32.xlu0 %v6042, 96
  %v6535 = vpop.permute.xlu0 %6534
  %6536 = vrot.lane.b32.xlu0 %v6043, 96
  %v6537 = vpop.permute.xlu0 %6536
  %6538 = vrot.lane.b32.xlu0 %v6044, 96
  %v6539 = vpop.permute.xlu0 %6538
  %6540 = vrot.lane.b32.xlu0 %v6045, 96
  %v6541 = vpop.permute.xlu0 %6540
  %6542 = vrot.lane.b32.xlu0 %v6046, 96
  %v6543 = vpop.permute.xlu0 %6542
  %6544 = vrot.lane.b32.xlu0 %v6051, 96
  %v6545 = vpop.permute.xlu0 %6544
  %6546 = vrot.lane.b32.xlu0 %v6052, 96
  %v6547 = vpop.permute.xlu0 %6546
  %6548 = vrot.lane.b32.xlu0 %v6053, 96
  %v6549 = vpop.permute.xlu0 %6548
  %6550 = vrot.lane.b32.xlu0 %v6054, 96
  %v6551 = vpop.permute.xlu0 %6550
  %6552 = vrot.lane.b32.xlu0 %v6055, 96
  %v6553 = vpop.permute.xlu0 %6552
  %6554 = vrot.lane.b32.xlu0 %v6056, 96
  %v6555 = vpop.permute.xlu0 %6554
  %6556 = vrot.lane.b32.xlu0 %v6057, 96
  %v6557 = vpop.permute.xlu0 %6556
  %6558 = vrot.lane.b32.xlu0 %v6058, 96
  %v6559 = vpop.permute.xlu0 %6558
  %6560 = vrot.lane.b32.xlu0 %v6063, 96
  %v6561 = vpop.permute.xlu0 %6560
  %6562 = vrot.lane.b32.xlu0 %v6064, 96
  %v6563 = vpop.permute.xlu0 %6562
  %6564 = vrot.lane.b32.xlu0 %v6065, 96
  %v6565 = vpop.permute.xlu0 %6564
  %6566 = vrot.lane.b32.xlu0 %v6066, 96
  %v6567 = vpop.permute.xlu0 %6566
  %6568 = vrot.lane.b32.xlu0 %v6067, 96
  %v6569 = vpop.permute.xlu0 %6568
  %6570 = vrot.lane.b32.xlu0 %v6068, 96
  %v6571 = vpop.permute.xlu0 %6570
  %6572 = vrot.lane.b32.xlu0 %v6069, 96
  %v6573 = vpop.permute.xlu0 %6572
  %6574 = vrot.lane.b32.xlu0 %v6070, 96
  %v6575 = vpop.permute.xlu0 %6574
  %6576 = vrot.lane.b32.xlu0 %v6075, 96
  %v6577 = vpop.permute.xlu0 %6576
  %6578 = vrot.lane.b32.xlu0 %v6076, 96
  %v6579 = vpop.permute.xlu0 %6578
  %6580 = vrot.lane.b32.xlu0 %v6077, 96
  %v6581 = vpop.permute.xlu0 %6580
  %6582 = vrot.lane.b32.xlu0 %v6078, 96
  %v6583 = vpop.permute.xlu0 %6582
  %6584 = vrot.lane.b32.xlu0 %v6079, 96
  %v6585 = vpop.permute.xlu0 %6584
  %6586 = vrot.lane.b32.xlu0 %v6080, 96
  %v6587 = vpop.permute.xlu0 %6586
  %6588 = vrot.lane.b32.xlu0 %v6081, 96
  %v6589 = vpop.permute.xlu0 %6588
  %6590 = vrot.lane.b32.xlu0 %v6082, 96
  %v6591 = vpop.permute.xlu0 %6590
  %6592 = vrot.lane.b32.xlu0 %v6087, 96
  %v6593 = vpop.permute.xlu0 %6592
  %6594 = vrot.lane.b32.xlu0 %v6088, 96
  %v6595 = vpop.permute.xlu0 %6594
  %6596 = vrot.lane.b32.xlu0 %v6089, 96
  %v6597 = vpop.permute.xlu0 %6596
  %6598 = vrot.lane.b32.xlu0 %v6090, 96
  %v6599 = vpop.permute.xlu0 %6598
  %6600 = vrot.lane.b32.xlu0 %v6091, 96
  %v6601 = vpop.permute.xlu0 %6600
  %6602 = vrot.lane.b32.xlu0 %v6092, 96
  %v6603 = vpop.permute.xlu0 %6602
  %6604 = vrot.lane.b32.xlu0 %v6093, 96
  %v6605 = vpop.permute.xlu0 %6604
  %6606 = vrot.lane.b32.xlu0 %v6094, 96
  %v6607 = vpop.permute.xlu0 %6606
  %6623 = vrot.lane.b32.xlu0 %v6012, 32
  %v6624 = vpop.permute.xlu0 %6623
  %6625 = vrot.lane.b32.xlu0 %v6024, 32
  %v6626 = vpop.permute.xlu0 %6625
  %6627 = vrot.lane.b32.xlu0 %v6036, 32
  %v6628 = vpop.permute.xlu0 %6627
  %6629 = vrot.lane.b32.xlu0 %v6048, 32
  %v6630 = vpop.permute.xlu0 %6629
  %6631 = vrot.lane.b32.xlu0 %v6060, 32
  %v6632 = vpop.permute.xlu0 %6631
  %6633 = vrot.lane.b32.xlu0 %v6072, 32
  %v6634 = vpop.permute.xlu0 %6633
  %6635 = vrot.lane.b32.xlu0 %v6084, 32
  %v6636 = vpop.permute.xlu0 %6635
  %6637 = vrot.lane.b32.xlu0 %v6096, 32
  %v6638 = vpop.permute.xlu0 %6637
  %6639 = vrot.lane.b32.xlu0 %v6097, 32
  %v6640 = vpop.permute.xlu0 %6639
  %6641 = vrot.lane.b32.xlu0 %v6098, 32
  %v6642 = vpop.permute.xlu0 %6641
  %6643 = vrot.lane.b32.xlu0 %v6099, 32
  %v6644 = vpop.permute.xlu0 %6643
  %6645 = vrot.lane.b32.xlu0 %v6100, 32
  %v6646 = vpop.permute.xlu0 %6645
  %6647 = vrot.lane.b32.xlu0 %v6101, 32
  %v6648 = vpop.permute.xlu0 %6647
  %6649 = vrot.lane.b32.xlu0 %v6102, 32
  %v6650 = vpop.permute.xlu0 %6649
  %6651 = vrot.lane.b32.xlu0 %v6103, 32
  %v6652 = vpop.permute.xlu0 %6651
  %6654 = vrot.lane.b32.xlu0 %v6013, 64
  %v6655 = vpop.permute.xlu0 %6654
  %6656 = vrot.lane.b32.xlu0 %v6025, 64
  %v6657 = vpop.permute.xlu0 %6656
  %6658 = vrot.lane.b32.xlu0 %v6037, 64
  %v6659 = vpop.permute.xlu0 %6658
  %6660 = vrot.lane.b32.xlu0 %v6049, 64
  %v6661 = vpop.permute.xlu0 %6660
  %6662 = vrot.lane.b32.xlu0 %v6061, 64
  %v6663 = vpop.permute.xlu0 %6662
  %6664 = vrot.lane.b32.xlu0 %v6073, 64
  %v6665 = vpop.permute.xlu0 %6664
  %6666 = vrot.lane.b32.xlu0 %v6085, 64
  %v6667 = vpop.permute.xlu0 %6666
  %6668 = vrot.lane.b32.xlu0 %v6097, 64
  %v6669 = vpop.permute.xlu0 %6668
  %6670 = vrot.lane.b32.xlu0 %v6098, 64
  %v6671 = vpop.permute.xlu0 %6670
  %6672 = vrot.lane.b32.xlu0 %v6099, 64
  %v6673 = vpop.permute.xlu0 %6672
  %6674 = vrot.lane.b32.xlu0 %v6100, 64
  %v6675 = vpop.permute.xlu0 %6674
  %6676 = vrot.lane.b32.xlu0 %v6101, 64
  %v6677 = vpop.permute.xlu0 %6676
  %6678 = vrot.lane.b32.xlu0 %v6102, 64
  %v6679 = vpop.permute.xlu0 %6678
  %6680 = vrot.lane.b32.xlu0 %v6103, 64
  %v6681 = vpop.permute.xlu0 %6680
  %6682 = vrot.lane.b32.xlu0 %v6104, 64
  %v6683 = vpop.permute.xlu0 %6682
  %6685 = vrot.lane.b32.xlu0 %v6014, 96
  %v6686 = vpop.permute.xlu0 %6685
  %6687 = vrot.lane.b32.xlu0 %v6026, 96
  %v6688 = vpop.permute.xlu0 %6687
  %6689 = vrot.lane.b32.xlu0 %v6038, 96
  %v6690 = vpop.permute.xlu0 %6689
  %6691 = vrot.lane.b32.xlu0 %v6050, 96
  %v6692 = vpop.permute.xlu0 %6691
  %6693 = vrot.lane.b32.xlu0 %v6062, 96
  %v6694 = vpop.permute.xlu0 %6693
  %6695 = vrot.lane.b32.xlu0 %v6074, 96
  %v6696 = vpop.permute.xlu0 %6695
  %6697 = vrot.lane.b32.xlu0 %v6086, 96
  %v6698 = vpop.permute.xlu0 %6697
  %6699 = vrot.lane.b32.xlu0 %v6098, 96
  %v6700 = vpop.permute.xlu0 %6699
  %6701 = vrot.lane.b32.xlu0 %v6099, 96
  %v6702 = vpop.permute.xlu0 %6701
  %6703 = vrot.lane.b32.xlu0 %v6100, 96
  %v6704 = vpop.permute.xlu0 %6703
  %6705 = vrot.lane.b32.xlu0 %v6101, 96
  %v6706 = vpop.permute.xlu0 %6705
  %6707 = vrot.lane.b32.xlu0 %v6102, 96
  %v6708 = vpop.permute.xlu0 %6707
  %6709 = vrot.lane.b32.xlu0 %v6103, 96
  %v6710 = vpop.permute.xlu0 %6709
  %6711 = vrot.lane.b32.xlu0 %v6104, 96
  %v6712 = vpop.permute.xlu0 %6711
  %6713 = vrot.lane.b32.xlu0 %v6105, 96
  %v6714 = vpop.permute.xlu0 %6713
  %6724 = vrot.lane.b32.xlu0 %v6021, 32
  %v6725 = vpop.permute.xlu0 %6724
  %6726 = vrot.lane.b32.xlu0 %v6022, 32
  %v6727 = vpop.permute.xlu0 %6726
  %6728 = vrot.lane.b32.xlu0 %v6023, 32
  %v6729 = vpop.permute.xlu0 %6728
  %6730 = vrot.lane.b32.xlu0 %v6033, 32
  %v6731 = vpop.permute.xlu0 %6730
  %6732 = vrot.lane.b32.xlu0 %v6034, 32
  %v6733 = vpop.permute.xlu0 %6732
  %6734 = vrot.lane.b32.xlu0 %v6035, 32
  %v6735 = vpop.permute.xlu0 %6734
  %6736 = vrot.lane.b32.xlu0 %v6045, 32
  %v6737 = vpop.permute.xlu0 %6736
  %6738 = vrot.lane.b32.xlu0 %v6046, 32
  %v6739 = vpop.permute.xlu0 %6738
  %6740 = vrot.lane.b32.xlu0 %v6047, 32
  %v6741 = vpop.permute.xlu0 %6740
  %6742 = vrot.lane.b32.xlu0 %v6057, 32
  %v6743 = vpop.permute.xlu0 %6742
  %6744 = vrot.lane.b32.xlu0 %v6058, 32
  %v6745 = vpop.permute.xlu0 %6744
  %6746 = vrot.lane.b32.xlu0 %v6059, 32
  %v6747 = vpop.permute.xlu0 %6746
  %6748 = vrot.lane.b32.xlu0 %v6069, 32
  %v6749 = vpop.permute.xlu0 %6748
  %6750 = vrot.lane.b32.xlu0 %v6070, 32
  %v6751 = vpop.permute.xlu0 %6750
  %6752 = vrot.lane.b32.xlu0 %v6071, 32
  %v6753 = vpop.permute.xlu0 %6752
  %6754 = vrot.lane.b32.xlu0 %v6081, 32
  %v6755 = vpop.permute.xlu0 %6754
  %6756 = vrot.lane.b32.xlu0 %v6082, 32
  %v6757 = vpop.permute.xlu0 %6756
  %6758 = vrot.lane.b32.xlu0 %v6083, 32
  %v6759 = vpop.permute.xlu0 %6758
  %6760 = vrot.lane.b32.xlu0 %v6093, 32
  %v6761 = vpop.permute.xlu0 %6760
  %6762 = vrot.lane.b32.xlu0 %v6094, 32
  %v6763 = vpop.permute.xlu0 %6762
  %6764 = vrot.lane.b32.xlu0 %v6095, 32
  %v6765 = vpop.permute.xlu0 %6764
  %6766 = vrot.lane.b32.xlu0 %v6104, 32
  %v6767 = vpop.permute.xlu0 %6766
  %6768 = vrot.lane.b32.xlu0 %v6105, 32
  %v6769 = vpop.permute.xlu0 %6768
  %6770 = vrot.lane.b32.xlu0 %v6106, 32
  %v6771 = vpop.permute.xlu0 %6770
  %6772 = vrot.lane.b32.xlu0 %v6107, 32
  %v6773 = vpop.permute.xlu0 %6772
  %6782 = vrot.lane.b32.xlu0 %v6024, 64
  %v6783 = vpop.permute.xlu0 %6782
  %6784 = vrot.lane.b32.xlu0 %v6036, 64
  %v6785 = vpop.permute.xlu0 %6784
  %6786 = vrot.lane.b32.xlu0 %v6048, 64
  %v6787 = vpop.permute.xlu0 %6786
  %6788 = vrot.lane.b32.xlu0 %v6060, 64
  %v6789 = vpop.permute.xlu0 %6788
  %6790 = vrot.lane.b32.xlu0 %v6072, 64
  %v6791 = vpop.permute.xlu0 %6790
  %6792 = vrot.lane.b32.xlu0 %v6084, 64
  %v6793 = vpop.permute.xlu0 %6792
  %6794 = vrot.lane.b32.xlu0 %v6096, 64
  %v6795 = vpop.permute.xlu0 %6794
  %6796 = vrot.lane.b32.xlu0 %v6108, 64
  %v6797 = vpop.permute.xlu0 %6796
  %6798 = vrot.lane.b32.xlu0 %v6109, 64
  %v6799 = vpop.permute.xlu0 %6798
  %6800 = vrot.lane.b32.xlu0 %v6110, 64
  %v6801 = vpop.permute.xlu0 %6800
  %6802 = vrot.lane.b32.xlu0 %v6111, 64
  %v6803 = vpop.permute.xlu0 %6802
  %6804 = vrot.lane.b32.xlu0 %v6112, 64
  %v6805 = vpop.permute.xlu0 %6804
  %6806 = vrot.lane.b32.xlu0 %v6113, 64
  %v6807 = vpop.permute.xlu0 %6806
  %6808 = vrot.lane.b32.xlu0 %v6114, 64
  %v6809 = vpop.permute.xlu0 %6808
  %6810 = vrot.lane.b32.xlu0 %v6115, 64
  %v6811 = vpop.permute.xlu0 %6810
  %6813 = vrot.lane.b32.xlu0 %v6025, 96
  %v6814 = vpop.permute.xlu0 %6813
  %6815 = vrot.lane.b32.xlu0 %v6037, 96
  %v6816 = vpop.permute.xlu0 %6815
  %6817 = vrot.lane.b32.xlu0 %v6049, 96
  %v6818 = vpop.permute.xlu0 %6817
  %6819 = vrot.lane.b32.xlu0 %v6061, 96
  %v6820 = vpop.permute.xlu0 %6819
  %6821 = vrot.lane.b32.xlu0 %v6073, 96
  %v6822 = vpop.permute.xlu0 %6821
  %6823 = vrot.lane.b32.xlu0 %v6085, 96
  %v6824 = vpop.permute.xlu0 %6823
  %6825 = vrot.lane.b32.xlu0 %v6097, 96
  %v6826 = vpop.permute.xlu0 %6825
  %6827 = vrot.lane.b32.xlu0 %v6109, 96
  %v6828 = vpop.permute.xlu0 %6827
  %6829 = vrot.lane.b32.xlu0 %v6110, 96
  %v6830 = vpop.permute.xlu0 %6829
  %6831 = vrot.lane.b32.xlu0 %v6111, 96
  %v6832 = vpop.permute.xlu0 %6831
  %6833 = vrot.lane.b32.xlu0 %v6112, 96
  %v6834 = vpop.permute.xlu0 %6833
  %6835 = vrot.lane.b32.xlu0 %v6113, 96
  %v6836 = vpop.permute.xlu0 %6835
  %6837 = vrot.lane.b32.xlu0 %v6114, 96
  %v6838 = vpop.permute.xlu0 %6837
  %6839 = vrot.lane.b32.xlu0 %v6115, 96
  %v6840 = vpop.permute.xlu0 %6839
  %6841 = vrot.lane.b32.xlu0 %v6116, 96
  %v6842 = vpop.permute.xlu0 %6841
  %6845 = vrot.lane.b32.xlu0 %v6111, 32
  %v6846 = vpop.permute.xlu0 %6845
  %6847 = vrot.lane.b32.xlu0 %v6112, 32
  %v6848 = vpop.permute.xlu0 %6847
  %6849 = vrot.lane.b32.xlu0 %v6113, 32
  %v6850 = vpop.permute.xlu0 %6849
  %6851 = vrot.lane.b32.xlu0 %v6114, 32
  %v6852 = vpop.permute.xlu0 %6851
  %6853 = vrot.lane.b32.xlu0 %v6115, 32
  %v6854 = vpop.permute.xlu0 %6853
  %6855 = vrot.lane.b32.xlu0 %v6116, 32
  %v6856 = vpop.permute.xlu0 %6855
  %6857 = vrot.lane.b32.xlu0 %v6117, 32
  %v6858 = vpop.permute.xlu0 %6857
  %6859 = vrot.lane.b32.xlu0 %v6118, 32
  %v6860 = vpop.permute.xlu0 %6859
  %6862 = vrot.lane.b32.xlu0 %v6034, 64
  %v6863 = vpop.permute.xlu0 %6862
  %6864 = vrot.lane.b32.xlu0 %v6035, 64
  %v6865 = vpop.permute.xlu0 %6864
  %6866 = vrot.lane.b32.xlu0 %v6046, 64
  %v6867 = vpop.permute.xlu0 %6866
  %6868 = vrot.lane.b32.xlu0 %v6047, 64
  %v6869 = vpop.permute.xlu0 %6868
  %6870 = vrot.lane.b32.xlu0 %v6058, 64
  %v6871 = vpop.permute.xlu0 %6870
  %6872 = vrot.lane.b32.xlu0 %v6059, 64
  %v6873 = vpop.permute.xlu0 %6872
  %6874 = vrot.lane.b32.xlu0 %v6070, 64
  %v6875 = vpop.permute.xlu0 %6874
  %6876 = vrot.lane.b32.xlu0 %v6071, 64
  %v6877 = vpop.permute.xlu0 %6876
  %6878 = vrot.lane.b32.xlu0 %v6082, 64
  %v6879 = vpop.permute.xlu0 %6878
  %6880 = vrot.lane.b32.xlu0 %v6083, 64
  %v6881 = vpop.permute.xlu0 %6880
  %6882 = vrot.lane.b32.xlu0 %v6094, 64
  %v6883 = vpop.permute.xlu0 %6882
  %6884 = vrot.lane.b32.xlu0 %v6095, 64
  %v6885 = vpop.permute.xlu0 %6884
  %6886 = vrot.lane.b32.xlu0 %v6105, 64
  %v6887 = vpop.permute.xlu0 %6886
  %6888 = vrot.lane.b32.xlu0 %v6106, 64
  %v6889 = vpop.permute.xlu0 %6888
  %6890 = vrot.lane.b32.xlu0 %v6107, 64
  %v6891 = vpop.permute.xlu0 %6890
  %6892 = vrot.lane.b32.xlu0 %v6116, 64
  %v6893 = vpop.permute.xlu0 %6892
  %6894 = vrot.lane.b32.xlu0 %v6117, 64
  %v6895 = vpop.permute.xlu0 %6894
  %6896 = vrot.lane.b32.xlu0 %v6118, 64
  %v6897 = vpop.permute.xlu0 %6896
  %6898 = vrot.lane.b32.xlu0 %v6119, 64
  %v6899 = vpop.permute.xlu0 %6898
  %6908 = vrot.lane.b32.xlu0 %v6036, 96
  %v6909 = vpop.permute.xlu0 %6908
  %6910 = vrot.lane.b32.xlu0 %v6048, 96
  %v6911 = vpop.permute.xlu0 %6910
  %6912 = vrot.lane.b32.xlu0 %v6060, 96
  %v6913 = vpop.permute.xlu0 %6912
  %6914 = vrot.lane.b32.xlu0 %v6072, 96
  %v6915 = vpop.permute.xlu0 %6914
  %6916 = vrot.lane.b32.xlu0 %v6084, 96
  %v6917 = vpop.permute.xlu0 %6916
  %6918 = vrot.lane.b32.xlu0 %v6096, 96
  %v6919 = vpop.permute.xlu0 %6918
  %6920 = vrot.lane.b32.xlu0 %v6108, 96
  %v6921 = vpop.permute.xlu0 %6920
  %6922 = vrot.lane.b32.xlu0 %v6120, 96
  %v6923 = vpop.permute.xlu0 %6922
  %6924 = vrot.lane.b32.xlu0 %v6121, 96
  %v6925 = vpop.permute.xlu0 %6924
  %6926 = vrot.lane.b32.xlu0 %v6122, 96
  %v6927 = vpop.permute.xlu0 %6926
  %6928 = vrot.lane.b32.xlu0 %v6123, 96
  %v6929 = vpop.permute.xlu0 %6928
  %6930 = vrot.lane.b32.xlu0 %v6124, 96
  %v6931 = vpop.permute.xlu0 %6930
  %6932 = vrot.lane.b32.xlu0 %v6125, 96
  %v6933 = vpop.permute.xlu0 %6932
  %6934 = vrot.lane.b32.xlu0 %v6126, 96
  %v6935 = vpop.permute.xlu0 %6934
  %6936 = vrot.lane.b32.xlu0 %v6127, 96
  %v6937 = vpop.permute.xlu0 %6936
  %vm6938 = vcmask 261120
  %v6941 = vsel %vm6938, %v6000, %v6209
  %v6944 = vsel %vm6938, %v6001, %v6211
  %v6947 = vsel %vm6938, %v6002, %v6213
  %v6950 = vsel %vm6938, %v6003, %v6215
  %v6953 = vsel %vm6938, %v6004, %v6217
  %v6956 = vsel %vm6938, %v6005, %v6219
  %v6959 = vsel %vm6938, %v6006, %v6221
  %v6962 = vsel %vm6938, %v6007, %v6223
  %v6965 = vsel %vm6938, %v6012, %v6225
  %v6968 = vsel %vm6938, %v6013, %v6227
  %v6971 = vsel %vm6938, %v6014, %v6229
  %v6974 = vsel %vm6938, %v6015, %v6231
  %v6977 = vsel %vm6938, %v6016, %v6233
  %v6980 = vsel %vm6938, %v6017, %v6235
  %v6983 = vsel %vm6938, %v6018, %v6237
  %v6986 = vsel %vm6938, %v6019, %v6239
  %v6989 = vsel %vm6938, %v6024, %v6241
  %v6992 = vsel %vm6938, %v6025, %v6243
  %v6995 = vsel %vm6938, %v6026, %v6245
  %v6998 = vsel %vm6938, %v6027, %v6247
  %v7001 = vsel %vm6938, %v6028, %v6249
  %v7004 = vsel %vm6938, %v6029, %v6251
  %v7007 = vsel %vm6938, %v6030, %v6253
  %v7010 = vsel %vm6938, %v6031, %v6255
  %v7013 = vsel %vm6938, %v6036, %v6257
  %v7016 = vsel %vm6938, %v6037, %v6259
  %v7019 = vsel %vm6938, %v6038, %v6261
  %v7022 = vsel %vm6938, %v6039, %v6263
  %v7025 = vsel %vm6938, %v6040, %v6265
  %v7028 = vsel %vm6938, %v6041, %v6267
  %v7031 = vsel %vm6938, %v6042, %v6269
  %v7034 = vsel %vm6938, %v6043, %v6271
  %v7037 = vsel %vm6938, %v6048, %v6273
  %v7040 = vsel %vm6938, %v6049, %v6275
  %v7043 = vsel %vm6938, %v6050, %v6277
  %v7046 = vsel %vm6938, %v6051, %v6279
  %v7049 = vsel %vm6938, %v6052, %v6281
  %v7052 = vsel %vm6938, %v6053, %v6283
  %v7055 = vsel %vm6938, %v6054, %v6285
  %v7058 = vsel %vm6938, %v6055, %v6287
  %v7061 = vsel %vm6938, %v6060, %v6289
  %v7064 = vsel %vm6938, %v6061, %v6291
  %v7067 = vsel %vm6938, %v6062, %v6293
  %v7070 = vsel %vm6938, %v6063, %v6295
  %v7073 = vsel %vm6938, %v6064, %v6297
  %v7076 = vsel %vm6938, %v6065, %v6299
  %v7079 = vsel %vm6938, %v6066, %v6301
  %v7082 = vsel %vm6938, %v6067, %v6303
  %v7085 = vsel %vm6938, %v6072, %v6305
  %v7088 = vsel %vm6938, %v6073, %v6307
  %v7091 = vsel %vm6938, %v6074, %v6309
  %v7094 = vsel %vm6938, %v6075, %v6311
  %v7097 = vsel %vm6938, %v6076, %v6313
  %v7100 = vsel %vm6938, %v6077, %v6315
  %v7103 = vsel %vm6938, %v6078, %v6317
  %v7106 = vsel %vm6938, %v6079, %v6319
  %v7109 = vsel %vm6938, %v6084, %v6321
  %v7112 = vsel %vm6938, %v6085, %v6323
  %v7115 = vsel %vm6938, %v6086, %v6325
  %v7118 = vsel %vm6938, %v6087, %v6327
  %v7121 = vsel %vm6938, %v6088, %v6329
  %v7124 = vsel %vm6938, %v6089, %v6331
  %v7127 = vsel %vm6938, %v6090, %v6333
  %v7130 = vsel %vm6938, %v6091, %v6335
  %vm7131 = vcmask 523264
  %v7133 = vsel %vm7131, %v6941, %v6345
  %v7135 = vsel %vm7131, %v6944, %v6347
  %v7137 = vsel %vm7131, %v6947, %v6349
  %v7139 = vsel %vm7131, %v6950, %v6351
  %v7141 = vsel %vm7131, %v6953, %v6353
  %v7143 = vsel %vm7131, %v6956, %v6355
  %v7145 = vsel %vm7131, %v6959, %v6357
  %v7147 = vsel %vm7131, %v6962, %v6359
  %v7149 = vsel %vm7131, %v6965, %v6361
  %v7151 = vsel %vm7131, %v6968, %v6363
  %v7153 = vsel %vm7131, %v6971, %v6365
  %v7155 = vsel %vm7131, %v6974, %v6367
  %v7157 = vsel %vm7131, %v6977, %v6369
  %v7159 = vsel %vm7131, %v6980, %v6371
  %v7161 = vsel %vm7131, %v6983, %v6373
  %v7163 = vsel %vm7131, %v6986, %v6375
  %v7165 = vsel %vm7131, %v6989, %v6377
  %v7167 = vsel %vm7131, %v6992, %v6379
  %v7169 = vsel %vm7131, %v6995, %v6381
  %v7171 = vsel %vm7131, %v6998, %v6383
  %v7173 = vsel %vm7131, %v7001, %v6385
  %v7175 = vsel %vm7131, %v7004, %v6387
  %v7177 = vsel %vm7131, %v7007, %v6389
  %v7179 = vsel %vm7131, %v7010, %v6391
  %v7181 = vsel %vm7131, %v7013, %v6393
  %v7183 = vsel %vm7131, %v7016, %v6395
  %v7185 = vsel %vm7131, %v7019, %v6397
  %v7187 = vsel %vm7131, %v7022, %v6399
  %v7189 = vsel %vm7131, %v7025, %v6401
  %v7191 = vsel %vm7131, %v7028, %v6403
  %v7193 = vsel %vm7131, %v7031, %v6405
  %v7195 = vsel %vm7131, %v7034, %v6407
  %v7197 = vsel %vm7131, %v7037, %v6409
  %v7199 = vsel %vm7131, %v7040, %v6411
  %v7201 = vsel %vm7131, %v7043, %v6413
  %v7203 = vsel %vm7131, %v7046, %v6415
  %v7205 = vsel %vm7131, %v7049, %v6417
  %v7207 = vsel %vm7131, %v7052, %v6419
  %v7209 = vsel %vm7131, %v7055, %v6421
  %v7211 = vsel %vm7131, %v7058, %v6423
  %v7213 = vsel %vm7131, %v7061, %v6425
  %v7215 = vsel %vm7131, %v7064, %v6427
  %v7217 = vsel %vm7131, %v7067, %v6429
  %v7219 = vsel %vm7131, %v7070, %v6431
  %v7221 = vsel %vm7131, %v7073, %v6433
  %v7223 = vsel %vm7131, %v7076, %v6435
  %v7225 = vsel %vm7131, %v7079, %v6437
  %v7227 = vsel %vm7131, %v7082, %v6439
  %v7229 = vsel %vm7131, %v7085, %v6441
  %v7231 = vsel %vm7131, %v7088, %v6443
  %v7233 = vsel %vm7131, %v7091, %v6445
  %v7235 = vsel %vm7131, %v7094, %v6447
  %v7237 = vsel %vm7131, %v7097, %v6449
  %v7239 = vsel %vm7131, %v7100, %v6451
  %v7241 = vsel %vm7131, %v7103, %v6453
  %v7243 = vsel %vm7131, %v7106, %v6455
  %v7245 = vsel %vm7131, %v7109, %v6457
  %v7247 = vsel %vm7131, %v7112, %v6459
  %v7249 = vsel %vm7131, %v7115, %v6461
  %v7251 = vsel %vm7131, %v7118, %v6463
  %v7253 = vsel %vm7131, %v7121, %v6465
  %v7255 = vsel %vm7131, %v7124, %v6467
  %v7257 = vsel %vm7131, %v7127, %v6469
  %v7259 = vsel %vm7131, %v7130, %v6471
  %vm7260 = vcmask 785408
  %v7262 = vsel %vm7260, %v7133, %v6481
  %v7264 = vsel %vm7260, %v7135, %v6483
  %v7266 = vsel %vm7260, %v7137, %v6485
  %v7268 = vsel %vm7260, %v7139, %v6487
  %v7270 = vsel %vm7260, %v7141, %v6489
  %v7272 = vsel %vm7260, %v7143, %v6491
  %v7274 = vsel %vm7260, %v7145, %v6493
  %v7276 = vsel %vm7260, %v7147, %v6495
  %v7278 = vsel %vm7260, %v7149, %v6497
  %v7280 = vsel %vm7260, %v7151, %v6499
  %v7282 = vsel %vm7260, %v7153, %v6501
  %v7284 = vsel %vm7260, %v7155, %v6503
  %v7286 = vsel %vm7260, %v7157, %v6505
  %v7288 = vsel %vm7260, %v7159, %v6507
  %v7290 = vsel %vm7260, %v7161, %v6509
  %v7292 = vsel %vm7260, %v7163, %v6511
  %v7294 = vsel %vm7260, %v7165, %v6513
  %v7296 = vsel %vm7260, %v7167, %v6515
  %v7298 = vsel %vm7260, %v7169, %v6517
  %v7300 = vsel %vm7260, %v7171, %v6519
  %v7302 = vsel %vm7260, %v7173, %v6521
  %v7304 = vsel %vm7260, %v7175, %v6523
  %v7306 = vsel %vm7260, %v7177, %v6525
  %v7308 = vsel %vm7260, %v7179, %v6527
  %v7310 = vsel %vm7260, %v7181, %v6529
  %v7312 = vsel %vm7260, %v7183, %v6531
  %v7314 = vsel %vm7260, %v7185, %v6533
  %v7316 = vsel %vm7260, %v7187, %v6535
  %v7318 = vsel %vm7260, %v7189, %v6537
  %v7320 = vsel %vm7260, %v7191, %v6539
  %v7322 = vsel %vm7260, %v7193, %v6541
  %v7324 = vsel %vm7260, %v7195, %v6543
  %v7326 = vsel %vm7260, %v7197, %v6545
  %v7328 = vsel %vm7260, %v7199, %v6547
  %v7330 = vsel %vm7260, %v7201, %v6549
  %v7332 = vsel %vm7260, %v7203, %v6551
  %v7334 = vsel %vm7260, %v7205, %v6553
  %v7336 = vsel %vm7260, %v7207, %v6555
  %v7338 = vsel %vm7260, %v7209, %v6557
  %v7340 = vsel %vm7260, %v7211, %v6559
  %v7342 = vsel %vm7260, %v7213, %v6561
  %v7344 = vsel %vm7260, %v7215, %v6563
  %v7346 = vsel %vm7260, %v7217, %v6565
  %v7348 = vsel %vm7260, %v7219, %v6567
  %v7350 = vsel %vm7260, %v7221, %v6569
  %v7352 = vsel %vm7260, %v7223, %v6571
  %v7354 = vsel %vm7260, %v7225, %v6573
  %v7356 = vsel %vm7260, %v7227, %v6575
  %v7358 = vsel %vm7260, %v7229, %v6577
  %v7360 = vsel %vm7260, %v7231, %v6579
  %v7362 = vsel %vm7260, %v7233, %v6581
  %v7364 = vsel %vm7260, %v7235, %v6583
  %v7366 = vsel %vm7260, %v7237, %v6585
  %v7368 = vsel %vm7260, %v7239, %v6587
  %v7370 = vsel %vm7260, %v7241, %v6589
  %v7372 = vsel %vm7260, %v7243, %v6591
  %v7374 = vsel %vm7260, %v7245, %v6593
  %v7376 = vsel %vm7260, %v7247, %v6595
  %v7378 = vsel %vm7260, %v7249, %v6597
  %v7380 = vsel %vm7260, %v7251, %v6599
  %v7382 = vsel %vm7260, %v7253, %v6601
  %v7384 = vsel %vm7260, %v7255, %v6603
  %v7386 = vsel %vm7260, %v7257, %v6605
  %v7388 = vsel %vm7260, %v7259, %v6607
  %v7390 = vsel %vm6938, %v6004, %v6624
  %v7391 = vsel %vm6938, %v6005, %v6225
  %v7392 = vsel %vm6938, %v6006, %v6227
  %v7393 = vsel %vm6938, %v6007, %v6229
  %v7395 = vsel %vm6938, %v6008, %v6231
  %v7397 = vsel %vm6938, %v6009, %v6233
  %v7399 = vsel %vm6938, %v6010, %v6235
  %v7401 = vsel %vm6938, %v6011, %v6237
  %v7403 = vsel %vm6938, %v6016, %v6626
  %v7404 = vsel %vm6938, %v6017, %v6241
  %v7405 = vsel %vm6938, %v6018, %v6243
  %v7406 = vsel %vm6938, %v6019, %v6245
  %v7408 = vsel %vm6938, %v6020, %v6247
  %v7410 = vsel %vm6938, %v6021, %v6249
  %v7412 = vsel %vm6938, %v6022, %v6251
  %v7414 = vsel %vm6938, %v6023, %v6253
  %v7416 = vsel %vm6938, %v6028, %v6628
  %v7417 = vsel %vm6938, %v6029, %v6257
  %v7418 = vsel %vm6938, %v6030, %v6259
  %v7419 = vsel %vm6938, %v6031, %v6261
  %v7421 = vsel %vm6938, %v6032, %v6263
  %v7423 = vsel %vm6938, %v6033, %v6265
  %v7425 = vsel %vm6938, %v6034, %v6267
  %v7427 = vsel %vm6938, %v6035, %v6269
  %v7429 = vsel %vm6938, %v6040, %v6630
  %v7430 = vsel %vm6938, %v6041, %v6273
  %v7431 = vsel %vm6938, %v6042, %v6275
  %v7432 = vsel %vm6938, %v6043, %v6277
  %v7434 = vsel %vm6938, %v6044, %v6279
  %v7436 = vsel %vm6938, %v6045, %v6281
  %v7438 = vsel %vm6938, %v6046, %v6283
  %v7440 = vsel %vm6938, %v6047, %v6285
  %v7442 = vsel %vm6938, %v6052, %v6632
  %v7443 = vsel %vm6938, %v6053, %v6289
  %v7444 = vsel %vm6938, %v6054, %v6291
  %v7445 = vsel %vm6938, %v6055, %v6293
  %v7447 = vsel %vm6938, %v6056, %v6295
  %v7449 = vsel %vm6938, %v6057, %v6297
  %v7451 = vsel %vm6938, %v6058, %v6299
  %v7453 = vsel %vm6938, %v6059, %v6301
  %v7455 = vsel %vm6938, %v6064, %v6634
  %v7456 = vsel %vm6938, %v6065, %v6305
  %v7457 = vsel %vm6938, %v6066, %v6307
  %v7458 = vsel %vm6938, %v6067, %v6309
  %v7460 = vsel %vm6938, %v6068, %v6311
  %v7462 = vsel %vm6938, %v6069, %v6313
  %v7464 = vsel %vm6938, %v6070, %v6315
  %v7466 = vsel %vm6938, %v6071, %v6317
  %v7468 = vsel %vm6938, %v6076, %v6636
  %v7469 = vsel %vm6938, %v6077, %v6321
  %v7470 = vsel %vm6938, %v6078, %v6323
  %v7471 = vsel %vm6938, %v6079, %v6325
  %v7473 = vsel %vm6938, %v6080, %v6327
  %v7475 = vsel %vm6938, %v6081, %v6329
  %v7477 = vsel %vm6938, %v6082, %v6331
  %v7479 = vsel %vm6938, %v6083, %v6333
  %v7481 = vsel %vm6938, %v6088, %v6638
  %v7483 = vsel %vm6938, %v6089, %v6640
  %v7485 = vsel %vm6938, %v6090, %v6642
  %v7487 = vsel %vm6938, %v6091, %v6644
  %v7490 = vsel %vm6938, %v6092, %v6646
  %v7493 = vsel %vm6938, %v6093, %v6648
  %v7496 = vsel %vm6938, %v6094, %v6650
  %v7499 = vsel %vm6938, %v6095, %v6652
  %v7501 = vsel %vm7131, %v7390, %v6655
  %v7502 = vsel %vm7131, %v7391, %v6361
  %v7503 = vsel %vm7131, %v7392, %v6363
  %v7504 = vsel %vm7131, %v7393, %v6365
  %v7505 = vsel %vm7131, %v7395, %v6367
  %v7506 = vsel %vm7131, %v7397, %v6369
  %v7507 = vsel %vm7131, %v7399, %v6371
  %v7508 = vsel %vm7131, %v7401, %v6373
  %v7510 = vsel %vm7131, %v7403, %v6657
  %v7511 = vsel %vm7131, %v7404, %v6377
  %v7512 = vsel %vm7131, %v7405, %v6379
  %v7513 = vsel %vm7131, %v7406, %v6381
  %v7514 = vsel %vm7131, %v7408, %v6383
  %v7515 = vsel %vm7131, %v7410, %v6385
  %v7516 = vsel %vm7131, %v7412, %v6387
  %v7517 = vsel %vm7131, %v7414, %v6389
  %v7519 = vsel %vm7131, %v7416, %v6659
  %v7520 = vsel %vm7131, %v7417, %v6393
  %v7521 = vsel %vm7131, %v7418, %v6395
  %v7522 = vsel %vm7131, %v7419, %v6397
  %v7523 = vsel %vm7131, %v7421, %v6399
  %v7524 = vsel %vm7131, %v7423, %v6401
  %v7525 = vsel %vm7131, %v7425, %v6403
  %v7526 = vsel %vm7131, %v7427, %v6405
  %v7528 = vsel %vm7131, %v7429, %v6661
  %v7529 = vsel %vm7131, %v7430, %v6409
  %v7530 = vsel %vm7131, %v7431, %v6411
  %v7531 = vsel %vm7131, %v7432, %v6413
  %v7532 = vsel %vm7131, %v7434, %v6415
  %v7533 = vsel %vm7131, %v7436, %v6417
  %v7534 = vsel %vm7131, %v7438, %v6419
  %v7535 = vsel %vm7131, %v7440, %v6421
  %v7537 = vsel %vm7131, %v7442, %v6663
  %v7538 = vsel %vm7131, %v7443, %v6425
  %v7539 = vsel %vm7131, %v7444, %v6427
  %v7540 = vsel %vm7131, %v7445, %v6429
  %v7541 = vsel %vm7131, %v7447, %v6431
  %v7542 = vsel %vm7131, %v7449, %v6433
  %v7543 = vsel %vm7131, %v7451, %v6435
  %v7544 = vsel %vm7131, %v7453, %v6437
  %v7546 = vsel %vm7131, %v7455, %v6665
  %v7547 = vsel %vm7131, %v7456, %v6441
  %v7548 = vsel %vm7131, %v7457, %v6443
  %v7549 = vsel %vm7131, %v7458, %v6445
  %v7550 = vsel %vm7131, %v7460, %v6447
  %v7551 = vsel %vm7131, %v7462, %v6449
  %v7552 = vsel %vm7131, %v7464, %v6451
  %v7553 = vsel %vm7131, %v7466, %v6453
  %v7555 = vsel %vm7131, %v7468, %v6667
  %v7556 = vsel %vm7131, %v7469, %v6457
  %v7557 = vsel %vm7131, %v7470, %v6459
  %v7558 = vsel %vm7131, %v7471, %v6461
  %v7559 = vsel %vm7131, %v7473, %v6463
  %v7560 = vsel %vm7131, %v7475, %v6465
  %v7561 = vsel %vm7131, %v7477, %v6467
  %v7562 = vsel %vm7131, %v7479, %v6469
  %v7564 = vsel %vm7131, %v7481, %v6669
  %v7566 = vsel %vm7131, %v7483, %v6671
  %v7568 = vsel %vm7131, %v7485, %v6673
  %v7570 = vsel %vm7131, %v7487, %v6675
  %v7572 = vsel %vm7131, %v7490, %v6677
  %v7574 = vsel %vm7131, %v7493, %v6679
  %v7576 = vsel %vm7131, %v7496, %v6681
  %v7578 = vsel %vm7131, %v7499, %v6683
  %v7580 = vsel %vm7260, %v7501, %v6686
  %v7581 = vsel %vm7260, %v7502, %v6497
  %v7582 = vsel %vm7260, %v7503, %v6499
  %v7583 = vsel %vm7260, %v7504, %v6501
  %v7584 = vsel %vm7260, %v7505, %v6503
  %v7585 = vsel %vm7260, %v7506, %v6505
  %v7586 = vsel %vm7260, %v7507, %v6507
  %v7587 = vsel %vm7260, %v7508, %v6509
  %v7589 = vsel %vm7260, %v7510, %v6688
  %v7590 = vsel %vm7260, %v7511, %v6513
  %v7591 = vsel %vm7260, %v7512, %v6515
  %v7592 = vsel %vm7260, %v7513, %v6517
  %v7593 = vsel %vm7260, %v7514, %v6519
  %v7594 = vsel %vm7260, %v7515, %v6521
  %v7595 = vsel %vm7260, %v7516, %v6523
  %v7596 = vsel %vm7260, %v7517, %v6525
  %v7598 = vsel %vm7260, %v7519, %v6690
  %v7599 = vsel %vm7260, %v7520, %v6529
  %v7600 = vsel %vm7260, %v7521, %v6531
  %v7601 = vsel %vm7260, %v7522, %v6533
  %v7602 = vsel %vm7260, %v7523, %v6535
  %v7603 = vsel %vm7260, %v7524, %v6537
  %v7604 = vsel %vm7260, %v7525, %v6539
  %v7605 = vsel %vm7260, %v7526, %v6541
  %v7607 = vsel %vm7260, %v7528, %v6692
  %v7608 = vsel %vm7260, %v7529, %v6545
  %v7609 = vsel %vm7260, %v7530, %v6547
  %v7610 = vsel %vm7260, %v7531, %v6549
  %v7611 = vsel %vm7260, %v7532, %v6551
  %v7612 = vsel %vm7260, %v7533, %v6553
  %v7613 = vsel %vm7260, %v7534, %v6555
  %v7614 = vsel %vm7260, %v7535, %v6557
  %v7616 = vsel %vm7260, %v7537, %v6694
  %v7617 = vsel %vm7260, %v7538, %v6561
  %v7618 = vsel %vm7260, %v7539, %v6563
  %v7619 = vsel %vm7260, %v7540, %v6565
  %v7620 = vsel %vm7260, %v7541, %v6567
  %v7621 = vsel %vm7260, %v7542, %v6569
  %v7622 = vsel %vm7260, %v7543, %v6571
  %v7623 = vsel %vm7260, %v7544, %v6573
  %v7625 = vsel %vm7260, %v7546, %v6696
  %v7626 = vsel %vm7260, %v7547, %v6577
  %v7627 = vsel %vm7260, %v7548, %v6579
  %v7628 = vsel %vm7260, %v7549, %v6581
  %v7629 = vsel %vm7260, %v7550, %v6583
  %v7630 = vsel %vm7260, %v7551, %v6585
  %v7631 = vsel %vm7260, %v7552, %v6587
  %v7632 = vsel %vm7260, %v7553, %v6589
  %v7634 = vsel %vm7260, %v7555, %v6698
  %v7635 = vsel %vm7260, %v7556, %v6593
  %v7636 = vsel %vm7260, %v7557, %v6595
  %v7637 = vsel %vm7260, %v7558, %v6597
  %v7638 = vsel %vm7260, %v7559, %v6599
  %v7639 = vsel %vm7260, %v7560, %v6601
  %v7640 = vsel %vm7260, %v7561, %v6603
  %v7641 = vsel %vm7260, %v7562, %v6605
  %v7643 = vsel %vm7260, %v7564, %v6700
  %v7645 = vsel %vm7260, %v7566, %v6702
  %v7647 = vsel %vm7260, %v7568, %v6704
  %v7649 = vsel %vm7260, %v7570, %v6706
  %v7651 = vsel %vm7260, %v7572, %v6708
  %v7653 = vsel %vm7260, %v7574, %v6710
  %v7655 = vsel %vm7260, %v7576, %v6712
  %v7657 = vsel %vm7260, %v7578, %v6714
  %v7659 = vsel %vm6938, %v6020, %v6725
  %v7661 = vsel %vm6938, %v6021, %v6727
  %v7663 = vsel %vm6938, %v6022, %v6729
  %v7665 = vsel %vm6938, %v6032, %v6731
  %v7667 = vsel %vm6938, %v6033, %v6733
  %v7669 = vsel %vm6938, %v6034, %v6735
  %v7671 = vsel %vm6938, %v6044, %v6737
  %v7673 = vsel %vm6938, %v6045, %v6739
  %v7675 = vsel %vm6938, %v6046, %v6741
  %v7677 = vsel %vm6938, %v6056, %v6743
  %v7679 = vsel %vm6938, %v6057, %v6745
  %v7681 = vsel %vm6938, %v6058, %v6747
  %v7683 = vsel %vm6938, %v6068, %v6749
  %v7685 = vsel %vm6938, %v6069, %v6751
  %v7687 = vsel %vm6938, %v6070, %v6753
  %v7689 = vsel %vm6938, %v6080, %v6755
  %v7691 = vsel %vm6938, %v6081, %v6757
  %v7693 = vsel %vm6938, %v6082, %v6759
  %v7695 = vsel %vm6938, %v6092, %v6761
  %v7697 = vsel %vm6938, %v6093, %v6763
  %v7699 = vsel %vm6938, %v6094, %v6765
  %v7701 = vsel %vm6938, %v6099, %v6646
  %v7703 = vsel %vm6938, %v6100, %v6648
  %v7705 = vsel %vm6938, %v6101, %v6650
  %v7707 = vsel %vm6938, %v6102, %v6652
  %v7710 = vsel %vm6938, %v6103, %v6767
  %v7713 = vsel %vm6938, %v6104, %v6769
  %v7716 = vsel %vm6938, %v6105, %v6771
  %v7719 = vsel %vm6938, %v6106, %v6773
  %v7721 = vsel %vm7131, %v6974, %v6783
  %v7722 = vsel %vm7131, %v6977, %v6657
  %v7723 = vsel %vm7131, %v6980, %v6377
  %v7724 = vsel %vm7131, %v6983, %v6379
  %v7725 = vsel %vm7131, %v6986, %v6381
  %v7726 = vsel %vm7131, %v7659, %v6383
  %v7727 = vsel %vm7131, %v7661, %v6385
  %v7728 = vsel %vm7131, %v7663, %v6387
  %v7730 = vsel %vm7131, %v6998, %v6785
  %v7731 = vsel %vm7131, %v7001, %v6659
  %v7732 = vsel %vm7131, %v7004, %v6393
  %v7733 = vsel %vm7131, %v7007, %v6395
  %v7734 = vsel %vm7131, %v7010, %v6397
  %v7735 = vsel %vm7131, %v7665, %v6399
  %v7736 = vsel %vm7131, %v7667, %v6401
  %v7737 = vsel %vm7131, %v7669, %v6403
  %v7739 = vsel %vm7131, %v7022, %v6787
  %v7740 = vsel %vm7131, %v7025, %v6661
  %v7741 = vsel %vm7131, %v7028, %v6409
  %v7742 = vsel %vm7131, %v7031, %v6411
  %v7743 = vsel %vm7131, %v7034, %v6413
  %v7744 = vsel %vm7131, %v7671, %v6415
  %v7745 = vsel %vm7131, %v7673, %v6417
  %v7746 = vsel %vm7131, %v7675, %v6419
  %v7748 = vsel %vm7131, %v7046, %v6789
  %v7749 = vsel %vm7131, %v7049, %v6663
  %v7750 = vsel %vm7131, %v7052, %v6425
  %v7751 = vsel %vm7131, %v7055, %v6427
  %v7752 = vsel %vm7131, %v7058, %v6429
  %v7753 = vsel %vm7131, %v7677, %v6431
  %v7754 = vsel %vm7131, %v7679, %v6433
  %v7755 = vsel %vm7131, %v7681, %v6435
  %v7757 = vsel %vm7131, %v7070, %v6791
  %v7758 = vsel %vm7131, %v7073, %v6665
  %v7759 = vsel %vm7131, %v7076, %v6441
  %v7760 = vsel %vm7131, %v7079, %v6443
  %v7761 = vsel %vm7131, %v7082, %v6445
  %v7762 = vsel %vm7131, %v7683, %v6447
  %v7763 = vsel %vm7131, %v7685, %v6449
  %v7764 = vsel %vm7131, %v7687, %v6451
  %v7766 = vsel %vm7131, %v7094, %v6793
  %v7767 = vsel %vm7131, %v7097, %v6667
  %v7768 = vsel %vm7131, %v7100, %v6457
  %v7769 = vsel %vm7131, %v7103, %v6459
  %v7770 = vsel %vm7131, %v7106, %v6461
  %v7771 = vsel %vm7131, %v7689, %v6463
  %v7772 = vsel %vm7131, %v7691, %v6465
  %v7773 = vsel %vm7131, %v7693, %v6467
  %v7775 = vsel %vm7131, %v7118, %v6795
  %v7776 = vsel %vm7131, %v7121, %v6669
  %v7777 = vsel %vm7131, %v7124, %v6671
  %v7778 = vsel %vm7131, %v7127, %v6673
  %v7779 = vsel %vm7131, %v7130, %v6675
  %v7780 = vsel %vm7131, %v7695, %v6677
  %v7781 = vsel %vm7131, %v7697, %v6679
  %v7782 = vsel %vm7131, %v7699, %v6681
  %v7784 = vsel %vm7131, %v7701, %v6797
  %v7786 = vsel %vm7131, %v7703, %v6799
  %v7788 = vsel %vm7131, %v7705, %v6801
  %v7790 = vsel %vm7131, %v7707, %v6803
  %v7792 = vsel %vm7131, %v7710, %v6805
  %v7794 = vsel %vm7131, %v7713, %v6807
  %v7796 = vsel %vm7131, %v7716, %v6809
  %v7798 = vsel %vm7131, %v7719, %v6811
  %v7800 = vsel %vm7260, %v7721, %v6814
  %v7801 = vsel %vm7260, %v7722, %v6688
  %v7802 = vsel %vm7260, %v7723, %v6513
  %v7803 = vsel %vm7260, %v7724, %v6515
  %v7804 = vsel %vm7260, %v7725, %v6517
  %v7805 = vsel %vm7260, %v7726, %v6519
  %v7806 = vsel %vm7260, %v7727, %v6521
  %v7807 = vsel %vm7260, %v7728, %v6523
  %v7809 = vsel %vm7260, %v7730, %v6816
  %v7810 = vsel %vm7260, %v7731, %v6690
  %v7811 = vsel %vm7260, %v7732, %v6529
  %v7812 = vsel %vm7260, %v7733, %v6531
  %v7813 = vsel %vm7260, %v7734, %v6533
  %v7814 = vsel %vm7260, %v7735, %v6535
  %v7815 = vsel %vm7260, %v7736, %v6537
  %v7816 = vsel %vm7260, %v7737, %v6539
  %v7818 = vsel %vm7260, %v7739, %v6818
  %v7819 = vsel %vm7260, %v7740, %v6692
  %v7820 = vsel %vm7260, %v7741, %v6545
  %v7821 = vsel %vm7260, %v7742, %v6547
  %v7822 = vsel %vm7260, %v7743, %v6549
  %v7823 = vsel %vm7260, %v7744, %v6551
  %v7824 = vsel %vm7260, %v7745, %v6553
  %v7825 = vsel %vm7260, %v7746, %v6555
  %v7827 = vsel %vm7260, %v7748, %v6820
  %v7828 = vsel %vm7260, %v7749, %v6694
  %v7829 = vsel %vm7260, %v7750, %v6561
  %v7830 = vsel %vm7260, %v7751, %v6563
  %v7831 = vsel %vm7260, %v7752, %v6565
  %v7832 = vsel %vm7260, %v7753, %v6567
  %v7833 = vsel %vm7260, %v7754, %v6569
  %v7834 = vsel %vm7260, %v7755, %v6571
  %v7836 = vsel %vm7260, %v7757, %v6822
  %v7837 = vsel %vm7260, %v7758, %v6696
  %v7838 = vsel %vm7260, %v7759, %v6577
  %v7839 = vsel %vm7260, %v7760, %v6579
  %v7840 = vsel %vm7260, %v7761, %v6581
  %v7841 = vsel %vm7260, %v7762, %v6583
  %v7842 = vsel %vm7260, %v7763, %v6585
  %v7843 = vsel %vm7260, %v7764, %v6587
  %v7845 = vsel %vm7260, %v7766, %v6824
  %v7846 = vsel %vm7260, %v7767, %v6698
  %v7847 = vsel %vm7260, %v7768, %v6593
  %v7848 = vsel %vm7260, %v7769, %v6595
  %v7849 = vsel %vm7260, %v7770, %v6597
  %v7850 = vsel %vm7260, %v7771, %v6599
  %v7851 = vsel %vm7260, %v7772, %v6601
  %v7852 = vsel %vm7260, %v7773, %v6603
  %v7854 = vsel %vm7260, %v7775, %v6826
  %v7855 = vsel %vm7260, %v7776, %v6700
  %v7856 = vsel %vm7260, %v7777, %v6702
  %v7857 = vsel %vm7260, %v7778, %v6704
  %v7858 = vsel %vm7260, %v7779, %v6706
  %v7859 = vsel %vm7260, %v7780, %v6708
  %v7860 = vsel %vm7260, %v7781, %v6710
  %v7861 = vsel %vm7260, %v7782, %v6712
  %v7863 = vsel %vm7260, %v7784, %v6828
  %v7865 = vsel %vm7260, %v7786, %v6830
  %v7867 = vsel %vm7260, %v7788, %v6832
  %v7869 = vsel %vm7260, %v7790, %v6834
  %v7871 = vsel %vm7260, %v7792, %v6836
  %v7873 = vsel %vm7260, %v7794, %v6838
  %v7875 = vsel %vm7260, %v7796, %v6840
  %v7877 = vsel %vm7260, %v7798, %v6842
  %v7879 = vsel %vm6938, %v6098, %v6644
  %v7882 = vsel %vm6938, %v6110, %v6846
  %v7885 = vsel %vm6938, %v6111, %v6848
  %v7888 = vsel %vm6938, %v6112, %v6850
  %v7891 = vsel %vm6938, %v6113, %v6852
  %v7894 = vsel %vm6938, %v6114, %v6854
  %v7897 = vsel %vm6938, %v6115, %v6856
  %v7900 = vsel %vm6938, %v6116, %v6858
  %v7903 = vsel %vm6938, %v6117, %v6860
  %v7905 = vsel %vm7131, %v7665, %v6863
  %v7907 = vsel %vm7131, %v7667, %v6865
  %v7909 = vsel %vm7131, %v7671, %v6867
  %v7911 = vsel %vm7131, %v7673, %v6869
  %v7913 = vsel %vm7131, %v7677, %v6871
  %v7915 = vsel %vm7131, %v7679, %v6873
  %v7917 = vsel %vm7131, %v7683, %v6875
  %v7919 = vsel %vm7131, %v7685, %v6877
  %v7921 = vsel %vm7131, %v7689, %v6879
  %v7923 = vsel %vm7131, %v7691, %v6881
  %v7925 = vsel %vm7131, %v7695, %v6883
  %v7927 = vsel %vm7131, %v7697, %v6885
  %v7928 = vsel %vm7131, %v7879, %v6675
  %v7929 = vsel %vm7131, %v7701, %v6677
  %v7930 = vsel %vm7131, %v7703, %v6679
  %v7931 = vsel %vm7131, %v7705, %v6681
  %v7932 = vsel %vm7131, %v7707, %v6683
  %v7934 = vsel %vm7131, %v7710, %v6887
  %v7936 = vsel %vm7131, %v7713, %v6889
  %v7938 = vsel %vm7131, %v7716, %v6891
  %v7939 = vsel %vm7131, %v7882, %v6805
  %v7940 = vsel %vm7131, %v7885, %v6807
  %v7941 = vsel %vm7131, %v7888, %v6809
  %v7942 = vsel %vm7131, %v7891, %v6811
  %v7944 = vsel %vm7131, %v7894, %v6893
  %v7946 = vsel %vm7131, %v7897, %v6895
  %v7948 = vsel %vm7131, %v7900, %v6897
  %v7950 = vsel %vm7131, %v7903, %v6899
  %v7952 = vsel %vm7260, %v7169, %v6909
  %v7953 = vsel %vm7260, %v7171, %v6816
  %v7954 = vsel %vm7260, %v7173, %v6690
  %v7955 = vsel %vm7260, %v7175, %v6529
  %v7956 = vsel %vm7260, %v7177, %v6531
  %v7957 = vsel %vm7260, %v7179, %v6533
  %v7958 = vsel %vm7260, %v7905, %v6535
  %v7959 = vsel %vm7260, %v7907, %v6537
  %v7961 = vsel %vm7260, %v7185, %v6911
  %v7962 = vsel %vm7260, %v7187, %v6818
  %v7963 = vsel %vm7260, %v7189, %v6692
  %v7964 = vsel %vm7260, %v7191, %v6545
  %v7965 = vsel %vm7260, %v7193, %v6547
  %v7966 = vsel %vm7260, %v7195, %v6549
  %v7967 = vsel %vm7260, %v7909, %v6551
  %v7968 = vsel %vm7260, %v7911, %v6553
  %v7970 = vsel %vm7260, %v7201, %v6913
  %v7971 = vsel %vm7260, %v7203, %v6820
  %v7972 = vsel %vm7260, %v7205, %v6694
  %v7973 = vsel %vm7260, %v7207, %v6561
  %v7974 = vsel %vm7260, %v7209, %v6563
  %v7975 = vsel %vm7260, %v7211, %v6565
  %v7976 = vsel %vm7260, %v7913, %v6567
  %v7977 = vsel %vm7260, %v7915, %v6569
  %v7979 = vsel %vm7260, %v7217, %v6915
  %v7980 = vsel %vm7260, %v7219, %v6822
  %v7981 = vsel %vm7260, %v7221, %v6696
  %v7982 = vsel %vm7260, %v7223, %v6577
  %v7983 = vsel %vm7260, %v7225, %v6579
  %v7984 = vsel %vm7260, %v7227, %v6581
  %v7985 = vsel %vm7260, %v7917, %v6583
  %v7986 = vsel %vm7260, %v7919, %v6585
  %v7988 = vsel %vm7260, %v7233, %v6917
  %v7989 = vsel %vm7260, %v7235, %v6824
  %v7990 = vsel %vm7260, %v7237, %v6698
  %v7991 = vsel %vm7260, %v7239, %v6593
  %v7992 = vsel %vm7260, %v7241, %v6595
  %v7993 = vsel %vm7260, %v7243, %v6597
  %v7994 = vsel %vm7260, %v7921, %v6599
  %v7995 = vsel %vm7260, %v7923, %v6601
  %v7997 = vsel %vm7260, %v7249, %v6919
  %v7998 = vsel %vm7260, %v7251, %v6826
  %v7999 = vsel %vm7260, %v7253, %v6700
  %v8000 = vsel %vm7260, %v7255, %v6702
  %v8001 = vsel %vm7260, %v7257, %v6704
  %v8002 = vsel %vm7260, %v7259, %v6706
  %v8003 = vsel %vm7260, %v7925, %v6708
  %v8004 = vsel %vm7260, %v7927, %v6710
  %v8006 = vsel %vm7260, %v7928, %v6921
  %v8007 = vsel %vm7260, %v7929, %v6828
  %v8008 = vsel %vm7260, %v7930, %v6830
  %v8009 = vsel %vm7260, %v7931, %v6832
  %v8010 = vsel %vm7260, %v7932, %v6834
  %v8011 = vsel %vm7260, %v7934, %v6836
  %v8012 = vsel %vm7260, %v7936, %v6838
  %v8013 = vsel %vm7260, %v7938, %v6840
  %v8015 = vsel %vm7260, %v7939, %v6923
  %v8017 = vsel %vm7260, %v7940, %v6925
  %v8019 = vsel %vm7260, %v7941, %v6927
  %v8021 = vsel %vm7260, %v7942, %v6929
  %v8023 = vsel %vm7260, %v7944, %v6931
  %v8025 = vsel %vm7260, %v7946, %v6933
  %v8027 = vsel %vm7260, %v7948, %v6935
  %v8029 = vsel %vm7260, %v7950, %v6937
  %8032 = vrot.lane.b32.xlu0 %v6110, 32
  %v8033 = vpop.permute.xlu0 %8032
  %8034 = vrot.lane.b32.xlu0 %v6122, 32
  %v8035 = vpop.permute.xlu0 %8034
  %8036 = vrot.lane.b32.xlu0 %v6123, 32
  %v8037 = vpop.permute.xlu0 %8036
  %8038 = vrot.lane.b32.xlu0 %v6124, 32
  %v8039 = vpop.permute.xlu0 %8038
  %8040 = vrot.lane.b32.xlu0 %v6125, 32
  %v8041 = vpop.permute.xlu0 %8040
  %8042 = vrot.lane.b32.xlu0 %v6126, 32
  %v8043 = vpop.permute.xlu0 %8042
  %8044 = vrot.lane.b32.xlu0 %v6127, 32
  %v8045 = vpop.permute.xlu0 %8044
  %8046 = vrot.lane.b32.xlu0 %v6128, 32
  %v8047 = vpop.permute.xlu0 %8046
  %8048 = vrot.lane.b32.xlu0 %v6129, 32
  %v8049 = vpop.permute.xlu0 %8048
  %8051 = vrot.lane.b32.xlu0 %v6123, 64
  %v8052 = vpop.permute.xlu0 %8051
  %8053 = vrot.lane.b32.xlu0 %v6124, 64
  %v8054 = vpop.permute.xlu0 %8053
  %8055 = vrot.lane.b32.xlu0 %v6125, 64
  %v8056 = vpop.permute.xlu0 %8055
  %8057 = vrot.lane.b32.xlu0 %v6126, 64
  %v8058 = vpop.permute.xlu0 %8057
  %8059 = vrot.lane.b32.xlu0 %v6127, 64
  %v8060 = vpop.permute.xlu0 %8059
  %8061 = vrot.lane.b32.xlu0 %v6128, 64
  %v8062 = vpop.permute.xlu0 %8061
  %8063 = vrot.lane.b32.xlu0 %v6129, 64
  %v8064 = vpop.permute.xlu0 %8063
  %8065 = vrot.lane.b32.xlu0 %v6130, 64
  %v8066 = vpop.permute.xlu0 %8065
  %8068 = vrot.lane.b32.xlu0 %v6047, 96
  %v8069 = vpop.permute.xlu0 %8068
  %8070 = vrot.lane.b32.xlu0 %v6059, 96
  %v8071 = vpop.permute.xlu0 %8070
  %8072 = vrot.lane.b32.xlu0 %v6071, 96
  %v8073 = vpop.permute.xlu0 %8072
  %8074 = vrot.lane.b32.xlu0 %v6083, 96
  %v8075 = vpop.permute.xlu0 %8074
  %8076 = vrot.lane.b32.xlu0 %v6095, 96
  %v8077 = vpop.permute.xlu0 %8076
  %8078 = vrot.lane.b32.xlu0 %v6106, 96
  %v8079 = vpop.permute.xlu0 %8078
  %8080 = vrot.lane.b32.xlu0 %v6107, 96
  %v8081 = vpop.permute.xlu0 %8080
  %8082 = vrot.lane.b32.xlu0 %v6117, 96
  %v8083 = vpop.permute.xlu0 %8082
  %8084 = vrot.lane.b32.xlu0 %v6118, 96
  %v8085 = vpop.permute.xlu0 %8084
  %8086 = vrot.lane.b32.xlu0 %v6119, 96
  %v8087 = vpop.permute.xlu0 %8086
  %8088 = vrot.lane.b32.xlu0 %v6128, 96
  %v8089 = vpop.permute.xlu0 %8088
  %8090 = vrot.lane.b32.xlu0 %v6129, 96
  %v8091 = vpop.permute.xlu0 %8090
  %8092 = vrot.lane.b32.xlu0 %v6130, 96
  %v8093 = vpop.permute.xlu0 %8092
  %8094 = vrot.lane.b32.xlu0 %v6131, 96
  %v8095 = vpop.permute.xlu0 %8094
  %8104 = vrot.lane.b32.xlu0 %v6109, 32
  %v8105 = vpop.permute.xlu0 %8104
  %8106 = vrot.lane.b32.xlu0 %v6121, 32
  %v8107 = vpop.permute.xlu0 %8106
  %8108 = vrot.lane.b32.xlu0 %v6133, 32
  %v8109 = vpop.permute.xlu0 %8108
  %8110 = vrot.lane.b32.xlu0 %v6134, 32
  %v8111 = vpop.permute.xlu0 %8110
  %8112 = vrot.lane.b32.xlu0 %v6135, 32
  %v8113 = vpop.permute.xlu0 %8112
  %8114 = vrot.lane.b32.xlu0 %v6136, 32
  %v8115 = vpop.permute.xlu0 %8114
  %8116 = vrot.lane.b32.xlu0 %v6137, 32
  %v8117 = vpop.permute.xlu0 %8116
  %8118 = vrot.lane.b32.xlu0 %v6138, 32
  %v8119 = vpop.permute.xlu0 %8118
  %8120 = vrot.lane.b32.xlu0 %v6139, 32
  %v8121 = vpop.permute.xlu0 %8120
  %8122 = vrot.lane.b32.xlu0 %v6140, 32
  %v8123 = vpop.permute.xlu0 %8122
  %8125 = vrot.lane.b32.xlu0 %v6122, 64
  %v8126 = vpop.permute.xlu0 %8125
  %8127 = vrot.lane.b32.xlu0 %v6134, 64
  %v8128 = vpop.permute.xlu0 %8127
  %8129 = vrot.lane.b32.xlu0 %v6135, 64
  %v8130 = vpop.permute.xlu0 %8129
  %8131 = vrot.lane.b32.xlu0 %v6136, 64
  %v8132 = vpop.permute.xlu0 %8131
  %8133 = vrot.lane.b32.xlu0 %v6137, 64
  %v8134 = vpop.permute.xlu0 %8133
  %8135 = vrot.lane.b32.xlu0 %v6138, 64
  %v8136 = vpop.permute.xlu0 %8135
  %8137 = vrot.lane.b32.xlu0 %v6139, 64
  %v8138 = vpop.permute.xlu0 %8137
  %8139 = vrot.lane.b32.xlu0 %v6140, 64
  %v8140 = vpop.permute.xlu0 %8139
  %8141 = vrot.lane.b32.xlu0 %v6141, 64
  %v8142 = vpop.permute.xlu0 %8141
  %8144 = vrot.lane.b32.xlu0 %v6135, 96
  %v8145 = vpop.permute.xlu0 %8144
  %8146 = vrot.lane.b32.xlu0 %v6136, 96
  %v8147 = vpop.permute.xlu0 %8146
  %8148 = vrot.lane.b32.xlu0 %v6137, 96
  %v8149 = vpop.permute.xlu0 %8148
  %8150 = vrot.lane.b32.xlu0 %v6138, 96
  %v8151 = vpop.permute.xlu0 %8150
  %8152 = vrot.lane.b32.xlu0 %v6139, 96
  %v8153 = vpop.permute.xlu0 %8152
  %8154 = vrot.lane.b32.xlu0 %v6140, 96
  %v8155 = vpop.permute.xlu0 %8154
  %8156 = vrot.lane.b32.xlu0 %v6141, 96
  %v8157 = vpop.permute.xlu0 %8156
  %8158 = vrot.lane.b32.xlu0 %v6142, 96
  %v8159 = vpop.permute.xlu0 %8158
  %v8161 = vsel %vm6938, %v6097, %v6642
  %v8164 = vsel %vm6938, %v6109, %v8033
  %v8167 = vsel %vm6938, %v6121, %v8035
  %v8170 = vsel %vm6938, %v6122, %v8037
  %v8173 = vsel %vm6938, %v6123, %v8039
  %v8176 = vsel %vm6938, %v6124, %v8041
  %v8179 = vsel %vm6938, %v6125, %v8043
  %v8182 = vsel %vm6938, %v6126, %v8045
  %v8185 = vsel %vm6938, %v6127, %v8047
  %v8188 = vsel %vm6938, %v6128, %v8049
  %v8189 = vsel %vm7131, %v8161, %v6673
  %v8190 = vsel %vm7131, %v8164, %v6803
  %v8192 = vsel %vm7131, %v8167, %v8052
  %v8194 = vsel %vm7131, %v8170, %v8054
  %v8196 = vsel %vm7131, %v8173, %v8056
  %v8198 = vsel %vm7131, %v8176, %v8058
  %v8200 = vsel %vm7131, %v8179, %v8060
  %v8202 = vsel %vm7131, %v8182, %v8062
  %v8204 = vsel %vm7131, %v8185, %v8064
  %v8206 = vsel %vm7131, %v8188, %v8066
  %v8208 = vsel %vm7260, %v7909, %v8069
  %v8210 = vsel %vm7260, %v7913, %v8071
  %v8212 = vsel %vm7260, %v7917, %v8073
  %v8214 = vsel %vm7260, %v7921, %v8075
  %v8216 = vsel %vm7260, %v7925, %v8077
  %v8217 = vsel %vm7260, %v8189, %v6704
  %v8218 = vsel %vm7260, %v7928, %v6706
  %v8219 = vsel %vm7260, %v7929, %v6708
  %v8220 = vsel %vm7260, %v7930, %v6710
  %v8221 = vsel %vm7260, %v7931, %v6712
  %v8222 = vsel %vm7260, %v7932, %v6714
  %v8224 = vsel %vm7260, %v7934, %v8079
  %v8226 = vsel %vm7260, %v7936, %v8081
  %v8227 = vsel %vm7260, %v8190, %v6834
  %v8228 = vsel %vm7260, %v7939, %v6836
  %v8229 = vsel %vm7260, %v7940, %v6838
  %v8230 = vsel %vm7260, %v7941, %v6840
  %v8231 = vsel %vm7260, %v7942, %v6842
  %v8233 = vsel %vm7260, %v7944, %v8083
  %v8235 = vsel %vm7260, %v7946, %v8085
  %v8237 = vsel %vm7260, %v7948, %v8087
  %v8238 = vsel %vm7260, %v8192, %v6931
  %v8239 = vsel %vm7260, %v8194, %v6933
  %v8240 = vsel %vm7260, %v8196, %v6935
  %v8241 = vsel %vm7260, %v8198, %v6937
  %v8243 = vsel %vm7260, %v8200, %v8089
  %v8245 = vsel %vm7260, %v8202, %v8091
  %v8247 = vsel %vm7260, %v8204, %v8093
  %v8249 = vsel %vm7260, %v8206, %v8095
  %v8251 = vsel %vm6938, %v6096, %v6640
  %v8254 = vsel %vm6938, %v6108, %v8105
  %v8257 = vsel %vm6938, %v6120, %v8107
  %v8260 = vsel %vm6938, %v6132, %v8109
  %v8263 = vsel %vm6938, %v6133, %v8111
  %v8266 = vsel %vm6938, %v6134, %v8113
  %v8269 = vsel %vm6938, %v6135, %v8115
  %v8272 = vsel %vm6938, %v6136, %v8117
  %v8275 = vsel %vm6938, %v6137, %v8119
  %v8278 = vsel %vm6938, %v6138, %v8121
  %v8281 = vsel %vm6938, %v6139, %v8123
  %v8282 = vsel %vm7131, %v8251, %v6671
  %v8283 = vsel %vm7131, %v8254, %v6801
  %v8285 = vsel %vm7131, %v8257, %v8126
  %v8287 = vsel %vm7131, %v8260, %v8128
  %v8289 = vsel %vm7131, %v8263, %v8130
  %v8291 = vsel %vm7131, %v8266, %v8132
  %v8293 = vsel %vm7131, %v8269, %v8134
  %v8295 = vsel %vm7131, %v8272, %v8136
  %v8297 = vsel %vm7131, %v8275, %v8138
  %v8299 = vsel %vm7131, %v8278, %v8140
  %v8301 = vsel %vm7131, %v8281, %v8142
  %v8302 = vsel %vm7260, %v8282, %v6702
  %v8303 = vsel %vm7260, %v8283, %v6832
  %v8304 = vsel %vm7260, %v8285, %v6929
  %v8306 = vsel %vm7260, %v8287, %v8145
  %v8308 = vsel %vm7260, %v8289, %v8147
  %v8310 = vsel %vm7260, %v8291, %v8149
  %v8312 = vsel %vm7260, %v8293, %v8151
  %v8314 = vsel %vm7260, %v8295, %v8153
  %v8316 = vsel %vm7260, %v8297, %v8155
  %v8318 = vsel %vm7260, %v8299, %v8157
  %v8320 = vsel %vm7260, %v8301, %v8159
  %v8618 = vunpack.c.l.b16 %v7262
  %v8619 = vunpack.c.l.b16 %v7580
  %v8620 = vunpack.c.l.b16 %v7800
  %v8621 = vunpack.c.l.b16 %v7952
  %v8622 = vunpack.c.l.b16 %v7312
  %v8623 = vunpack.c.l.b16 %v7326
  %v8624 = vunpack.c.l.b16 %v6052
  %v8625 = vunpack.c.l.b16 %v7264
  %v8626 = vunpack.c.l.b16 %v7581
  %v8627 = vunpack.c.l.b16 %v7801
  %v8628 = vunpack.c.l.b16 %v7953
  %v8629 = vunpack.c.l.b16 %v7314
  %v8630 = vunpack.c.l.b16 %v7328
  %v8631 = vunpack.c.l.b16 %v6053
  %v8632 = vunpack.c.l.b16 %v7266
  %v8633 = vunpack.c.l.b16 %v7582
  %v8634 = vunpack.c.l.b16 %v7802
  %v8635 = vunpack.c.l.b16 %v7954
  %v8636 = vunpack.c.l.b16 %v7316
  %v8637 = vunpack.c.l.b16 %v7330
  %v8638 = vunpack.c.l.b16 %v6054
  %v8639 = vunpack.c.l.b16 %v7268
  %v8640 = vunpack.c.l.b16 %v7583
  %v8641 = vunpack.c.l.b16 %v7803
  %v8642 = vunpack.c.l.b16 %v7955
  %v8643 = vunpack.c.l.b16 %v7318
  %v8644 = vunpack.c.l.b16 %v7332
  %v8645 = vunpack.c.l.b16 %v6055
  %v8646 = vunpack.c.l.b16 %v7270
  %v8647 = vunpack.c.l.b16 %v7584
  %v8648 = vunpack.c.l.b16 %v7804
  %v8649 = vunpack.c.l.b16 %v7956
  %v8650 = vunpack.c.l.b16 %v7320
  %v8651 = vunpack.c.l.b16 %v7334
  %v8652 = vunpack.c.l.b16 %v6056
  %v8653 = vunpack.c.l.b16 %v7272
  %v8654 = vunpack.c.l.b16 %v7585
  %v8655 = vunpack.c.l.b16 %v7805
  %v8656 = vunpack.c.l.b16 %v7957
  %v8657 = vunpack.c.l.b16 %v7322
  %v8658 = vunpack.c.l.b16 %v7336
  %v8659 = vunpack.c.l.b16 %v6057
  %v8660 = vunpack.c.l.b16 %v7274
  %v8661 = vunpack.c.l.b16 %v7586
  %v8662 = vunpack.c.l.b16 %v7806
  %v8663 = vunpack.c.l.b16 %v7958
  %v8664 = vunpack.c.l.b16 %v7324
  %v8665 = vunpack.c.l.b16 %v7338
  %v8666 = vunpack.c.l.b16 %v6058
  %v8667 = vunpack.c.l.b16 %v7276
  %v8668 = vunpack.c.l.b16 %v7587
  %v8669 = vunpack.c.l.b16 %v7807
  %v8670 = vunpack.c.l.b16 %v7959
  %v8671 = vunpack.c.l.b16 %v8208
  %v8672 = vunpack.c.l.b16 %v7340
  %v8673 = vunpack.c.l.b16 %v6059
  %v8674 = vunpack.c.l.b16 %v7278
  %v8675 = vunpack.c.l.b16 %v7589
  %v8676 = vunpack.c.l.b16 %v7809
  %v8677 = vunpack.c.l.b16 %v7961
  %v8678 = vunpack.c.l.b16 %v7342
  %v8679 = vunpack.c.l.b16 %v6064
  %v8680 = vunpack.c.l.b16 %v7280
  %v8681 = vunpack.c.l.b16 %v7590
  %v8682 = vunpack.c.l.b16 %v7810
  %v8683 = vunpack.c.l.b16 %v7962
  %v8684 = vunpack.c.l.b16 %v7344
  %v8685 = vunpack.c.l.b16 %v6065
  %v8686 = vunpack.c.l.b16 %v7282
  %v8687 = vunpack.c.l.b16 %v7591
  %v8688 = vunpack.c.l.b16 %v7811
  %v8689 = vunpack.c.l.b16 %v7963
  %v8690 = vunpack.c.l.b16 %v7346
  %v8691 = vunpack.c.l.b16 %v6066
  %v8692 = vunpack.c.l.b16 %v7284
  %v8693 = vunpack.c.l.b16 %v7592
  %v8694 = vunpack.c.l.b16 %v7812
  %v8695 = vunpack.c.l.b16 %v7964
  %v8696 = vunpack.c.l.b16 %v7348
  %v8697 = vunpack.c.l.b16 %v6067
  %v8698 = vunpack.c.l.b16 %v7286
  %v8699 = vunpack.c.l.b16 %v7593
  %v8700 = vunpack.c.l.b16 %v7813
  %v8701 = vunpack.c.l.b16 %v7965
  %v8702 = vunpack.c.l.b16 %v7350
  %v8703 = vunpack.c.l.b16 %v6068
  %v8704 = vunpack.c.l.b16 %v7288
  %v8705 = vunpack.c.l.b16 %v7594
  %v8706 = vunpack.c.l.b16 %v7814
  %v8707 = vunpack.c.l.b16 %v7966
  %v8708 = vunpack.c.l.b16 %v7352
  %v8709 = vunpack.c.l.b16 %v6069
  %v8710 = vunpack.c.l.b16 %v7290
  %v8711 = vunpack.c.l.b16 %v7595
  %v8712 = vunpack.c.l.b16 %v7815
  %v8713 = vunpack.c.l.b16 %v7967
  %v8714 = vunpack.c.l.b16 %v7354
  %v8715 = vunpack.c.l.b16 %v6070
  %v8716 = vunpack.c.l.b16 %v7292
  %v8717 = vunpack.c.l.b16 %v7596
  %v8718 = vunpack.c.l.b16 %v7816
  %v8719 = vunpack.c.l.b16 %v7968
  %v8720 = vunpack.c.l.b16 %v8210
  %v8721 = vunpack.c.l.b16 %v7356
  %v8722 = vunpack.c.l.b16 %v6071
  %v8723 = vunpack.c.l.b16 %v7294
  %v8724 = vunpack.c.l.b16 %v7598
  %v8725 = vunpack.c.l.b16 %v7818
  %v8726 = vunpack.c.l.b16 %v7970
  %v8727 = vunpack.c.l.b16 %v7358
  %v8728 = vunpack.c.l.b16 %v6076
  %v8729 = vunpack.c.l.b16 %v7296
  %v8730 = vunpack.c.l.b16 %v7599
  %v8731 = vunpack.c.l.b16 %v7819
  %v8732 = vunpack.c.l.b16 %v7971
  %v8733 = vunpack.c.l.b16 %v7360
  %v8734 = vunpack.c.l.b16 %v6077
  %v8735 = vunpack.c.l.b16 %v7298
  %v8736 = vunpack.c.l.b16 %v7600
  %v8737 = vunpack.c.l.b16 %v7820
  %v8738 = vunpack.c.l.b16 %v7972
  %v8739 = vunpack.c.l.b16 %v7362
  %v8740 = vunpack.c.l.b16 %v6078
  %v8741 = vunpack.c.l.b16 %v7300
  %v8742 = vunpack.c.l.b16 %v7601
  %v8743 = vunpack.c.l.b16 %v7821
  %v8744 = vunpack.c.l.b16 %v7973
  %v8745 = vunpack.c.l.b16 %v7364
  %v8746 = vunpack.c.l.b16 %v6079
  %v8747 = vunpack.c.l.b16 %v7302
  %v8748 = vunpack.c.l.b16 %v7602
  %v8749 = vunpack.c.l.b16 %v7822
  %v8750 = vunpack.c.l.b16 %v7974
  %v8751 = vunpack.c.l.b16 %v7366
  %v8752 = vunpack.c.l.b16 %v6080
  %v8753 = vunpack.c.l.b16 %v7304
  %v8754 = vunpack.c.l.b16 %v7603
  %v8755 = vunpack.c.l.b16 %v7823
  %v8756 = vunpack.c.l.b16 %v7975
  %v8757 = vunpack.c.l.b16 %v7368
  %v8758 = vunpack.c.l.b16 %v6081
  %v8759 = vunpack.c.l.b16 %v7306
  %v8760 = vunpack.c.l.b16 %v7604
  %v8761 = vunpack.c.l.b16 %v7824
  %v8762 = vunpack.c.l.b16 %v7976
  %v8763 = vunpack.c.l.b16 %v7370
  %v8764 = vunpack.c.l.b16 %v6082
  %v8765 = vunpack.c.l.b16 %v7308
  %v8766 = vunpack.c.l.b16 %v7605
  %v8767 = vunpack.c.l.b16 %v7825
  %v8768 = vunpack.c.l.b16 %v7977
  %v8769 = vunpack.c.l.b16 %v8212
  %v8770 = vunpack.c.l.b16 %v7372
  %v8771 = vunpack.c.l.b16 %v6083
  %v8772 = vunpack.c.l.b16 %v7310
  %v8773 = vunpack.c.l.b16 %v7607
  %v8774 = vunpack.c.l.b16 %v7827
  %v8775 = vunpack.c.l.b16 %v7979
  %v8776 = vunpack.c.l.b16 %v7374
  %v8777 = vunpack.c.l.b16 %v6088
  %v8778 = vunpack.c.l.b16 %v7608
  %v8779 = vunpack.c.l.b16 %v7828
  %v8780 = vunpack.c.l.b16 %v7980
  %v8781 = vunpack.c.l.b16 %v7376
  %v8782 = vunpack.c.l.b16 %v6089
  %v8783 = vunpack.c.l.b16 %v7609
  %v8784 = vunpack.c.l.b16 %v7829
  %v8785 = vunpack.c.l.b16 %v7981
  %v8786 = vunpack.c.l.b16 %v7378
  %v8787 = vunpack.c.l.b16 %v6090
  %v8788 = vunpack.c.l.b16 %v7610
  %v8789 = vunpack.c.l.b16 %v7830
  %v8790 = vunpack.c.l.b16 %v7982
  %v8791 = vunpack.c.l.b16 %v7380
  %v8792 = vunpack.c.l.b16 %v6091
  %v8793 = vunpack.c.l.b16 %v7611
  %v8794 = vunpack.c.l.b16 %v7831
  %v8795 = vunpack.c.l.b16 %v7983
  %v8796 = vunpack.c.l.b16 %v7382
  %v8797 = vunpack.c.l.b16 %v6092
  %v8798 = vunpack.c.l.b16 %v7612
  %v8799 = vunpack.c.l.b16 %v7832
  %v8800 = vunpack.c.l.b16 %v7984
  %v8801 = vunpack.c.l.b16 %v7384
  %v8802 = vunpack.c.l.b16 %v6093
  %v8803 = vunpack.c.l.b16 %v7613
  %v8804 = vunpack.c.l.b16 %v7833
  %v8805 = vunpack.c.l.b16 %v7985
  %v8806 = vunpack.c.l.b16 %v7386
  %v8807 = vunpack.c.l.b16 %v6094
  %v8808 = vunpack.c.l.b16 %v7614
  %v8809 = vunpack.c.l.b16 %v7834
  %v8810 = vunpack.c.l.b16 %v7986
  %v8811 = vunpack.c.l.b16 %v8214
  %v8812 = vunpack.c.l.b16 %v7388
  %v8813 = vunpack.c.l.b16 %v6095
  %v8814 = vunpack.c.l.b16 %v7616
  %v8815 = vunpack.c.l.b16 %v7836
  %v8816 = vunpack.c.l.b16 %v7988
  %v8817 = vunpack.c.l.b16 %v8302
  %v8818 = vunpack.c.l.b16 %v6100
  %v8819 = vunpack.c.l.b16 %v7617
  %v8820 = vunpack.c.l.b16 %v7837
  %v8821 = vunpack.c.l.b16 %v7989
  %v8822 = vunpack.c.l.b16 %v8217
  %v8823 = vunpack.c.l.b16 %v6101
  %v8824 = vunpack.c.l.b16 %v7618
  %v8825 = vunpack.c.l.b16 %v7838
  %v8826 = vunpack.c.l.b16 %v7990
  %v8827 = vunpack.c.l.b16 %v8218
  %v8828 = vunpack.c.l.b16 %v6102
  %v8829 = vunpack.c.l.b16 %v7619
  %v8830 = vunpack.c.l.b16 %v7839
  %v8831 = vunpack.c.l.b16 %v7991
  %v8832 = vunpack.c.l.b16 %v8219
  %v8833 = vunpack.c.l.b16 %v6103
  %v8834 = vunpack.c.l.b16 %v7620
  %v8835 = vunpack.c.l.b16 %v7840
  %v8836 = vunpack.c.l.b16 %v7992
  %v8837 = vunpack.c.l.b16 %v8220
  %v8838 = vunpack.c.l.b16 %v6104
  %v8839 = vunpack.c.l.b16 %v7621
  %v8840 = vunpack.c.l.b16 %v7841
  %v8841 = vunpack.c.l.b16 %v7993
  %v8842 = vunpack.c.l.b16 %v8221
  %v8843 = vunpack.c.l.b16 %v6105
  %v8844 = vunpack.c.l.b16 %v7622
  %v8845 = vunpack.c.l.b16 %v7842
  %v8846 = vunpack.c.l.b16 %v7994
  %v8847 = vunpack.c.l.b16 %v8222
  %v8848 = vunpack.c.l.b16 %v6106
  %v8849 = vunpack.c.l.b16 %v7623
  %v8850 = vunpack.c.l.b16 %v7843
  %v8851 = vunpack.c.l.b16 %v7995
  %v8852 = vunpack.c.l.b16 %v8216
  %v8853 = vunpack.c.l.b16 %v8224
  %v8854 = vunpack.c.l.b16 %v6107
  %v8855 = vunpack.c.l.b16 %v7625
  %v8856 = vunpack.c.l.b16 %v7845
  %v8857 = vunpack.c.l.b16 %v7997
  %v8858 = vunpack.c.l.b16 %v8303
  %v8859 = vunpack.c.l.b16 %v6112
  %v8860 = vunpack.c.l.b16 %v7626
  %v8861 = vunpack.c.l.b16 %v7846
  %v8862 = vunpack.c.l.b16 %v7998
  %v8863 = vunpack.c.l.b16 %v8227
  %v8864 = vunpack.c.l.b16 %v6113
  %v8865 = vunpack.c.l.b16 %v7627
  %v8866 = vunpack.c.l.b16 %v7847
  %v8867 = vunpack.c.l.b16 %v7999
  %v8868 = vunpack.c.l.b16 %v8228
  %v8869 = vunpack.c.l.b16 %v6114
  %v8870 = vunpack.c.l.b16 %v7628
  %v8871 = vunpack.c.l.b16 %v7848
  %v8872 = vunpack.c.l.b16 %v8000
  %v8873 = vunpack.c.l.b16 %v8229
  %v8874 = vunpack.c.l.b16 %v6115
  %v8875 = vunpack.c.l.b16 %v7629
  %v8876 = vunpack.c.l.b16 %v7849
  %v8877 = vunpack.c.l.b16 %v8001
  %v8878 = vunpack.c.l.b16 %v8230
  %v8879 = vunpack.c.l.b16 %v6116
  %v8880 = vunpack.c.l.b16 %v7630
  %v8881 = vunpack.c.l.b16 %v7850
  %v8882 = vunpack.c.l.b16 %v8002
  %v8883 = vunpack.c.l.b16 %v8231
  %v8884 = vunpack.c.l.b16 %v6117
  %v8885 = vunpack.c.l.b16 %v7631
  %v8886 = vunpack.c.l.b16 %v7851
  %v8887 = vunpack.c.l.b16 %v8003
  %v8888 = vunpack.c.l.b16 %v8233
  %v8889 = vunpack.c.l.b16 %v6118
  %v8890 = vunpack.c.l.b16 %v7632
  %v8891 = vunpack.c.l.b16 %v7852
  %v8892 = vunpack.c.l.b16 %v8004
  %v8893 = vunpack.c.l.b16 %v8226
  %v8894 = vunpack.c.l.b16 %v8235
  %v8895 = vunpack.c.l.b16 %v6119
  %v8896 = vunpack.c.l.b16 %v7634
  %v8897 = vunpack.c.l.b16 %v7854
  %v8898 = vunpack.c.l.b16 %v8006
  %v8899 = vunpack.c.l.b16 %v8304
  %v8900 = vunpack.c.l.b16 %v6124
  %v8901 = vunpack.c.l.b16 %v7635
  %v8902 = vunpack.c.l.b16 %v7855
  %v8903 = vunpack.c.l.b16 %v8007
  %v8904 = vunpack.c.l.b16 %v8238
  %v8905 = vunpack.c.l.b16 %v6125
  %v8906 = vunpack.c.l.b16 %v7636
  %v8907 = vunpack.c.l.b16 %v7856
  %v8908 = vunpack.c.l.b16 %v8008
  %v8909 = vunpack.c.l.b16 %v8239
  %v8910 = vunpack.c.l.b16 %v6126
  %v8911 = vunpack.c.l.b16 %v7637
  %v8912 = vunpack.c.l.b16 %v7857
  %v8913 = vunpack.c.l.b16 %v8009
  %v8914 = vunpack.c.l.b16 %v8240
  %v8915 = vunpack.c.l.b16 %v6127
  %v8916 = vunpack.c.l.b16 %v7638
  %v8917 = vunpack.c.l.b16 %v7858
  %v8918 = vunpack.c.l.b16 %v8010
  %v8919 = vunpack.c.l.b16 %v8241
  %v8920 = vunpack.c.l.b16 %v6128
  %v8921 = vunpack.c.l.b16 %v7639
  %v8922 = vunpack.c.l.b16 %v7859
  %v8923 = vunpack.c.l.b16 %v8011
  %v8924 = vunpack.c.l.b16 %v8243
  %v8925 = vunpack.c.l.b16 %v6129
  %v8926 = vunpack.c.l.b16 %v7640
  %v8927 = vunpack.c.l.b16 %v7860
  %v8928 = vunpack.c.l.b16 %v8012
  %v8929 = vunpack.c.l.b16 %v8245
  %v8930 = vunpack.c.l.b16 %v6130
  %v8931 = vunpack.c.l.b16 %v7641
  %v8932 = vunpack.c.l.b16 %v7861
  %v8933 = vunpack.c.l.b16 %v8013
  %v8934 = vunpack.c.l.b16 %v8237
  %v8935 = vunpack.c.l.b16 %v8247
  %v8936 = vunpack.c.l.b16 %v6131
  %v8937 = vunpack.c.l.b16 %v7643
  %v8938 = vunpack.c.l.b16 %v7863
  %v8939 = vunpack.c.l.b16 %v8015
  %v8940 = vunpack.c.l.b16 %v8306
  %v8941 = vunpack.c.l.b16 %v6136
  %v8942 = vunpack.c.l.b16 %v7645
  %v8943 = vunpack.c.l.b16 %v7865
  %v8944 = vunpack.c.l.b16 %v8017
  %v8945 = vunpack.c.l.b16 %v8308
  %v8946 = vunpack.c.l.b16 %v6137
  %v8947 = vunpack.c.l.b16 %v7647
  %v8948 = vunpack.c.l.b16 %v7867
  %v8949 = vunpack.c.l.b16 %v8019
  %v8950 = vunpack.c.l.b16 %v8310
  %v8951 = vunpack.c.l.b16 %v6138
  %v8952 = vunpack.c.l.b16 %v7649
  %v8953 = vunpack.c.l.b16 %v7869
  %v8954 = vunpack.c.l.b16 %v8021
  %v8955 = vunpack.c.l.b16 %v8312
  %v8956 = vunpack.c.l.b16 %v6139
  %v8957 = vunpack.c.l.b16 %v7651
  %v8958 = vunpack.c.l.b16 %v7871
  %v8959 = vunpack.c.l.b16 %v8023
  %v8960 = vunpack.c.l.b16 %v8314
  %v8961 = vunpack.c.l.b16 %v6140
  %v8962 = vunpack.c.l.b16 %v7653
  %v8963 = vunpack.c.l.b16 %v7873
  %v8964 = vunpack.c.l.b16 %v8025
  %v8965 = vunpack.c.l.b16 %v8316
  %v8966 = vunpack.c.l.b16 %v6141
  %v8967 = vunpack.c.l.b16 %v7655
  %v8968 = vunpack.c.l.b16 %v7875
  %v8969 = vunpack.c.l.b16 %v8027
  %v8970 = vunpack.c.l.b16 %v8318
  %v8971 = vunpack.c.l.b16 %v6142
  %v8972 = vunpack.c.l.b16 %v7657
  %v8973 = vunpack.c.l.b16 %v7877
  %v8974 = vunpack.c.l.b16 %v8029
  %v8975 = vunpack.c.l.b16 %v8249
  %v8976 = vunpack.c.l.b16 %v8320
  %v8977 = vunpack.c.l.b16 %v6143
  %v8978 = vld [vmem:[%s3] sm:$0xf]
  %v8979 = vld [vmem:[%s3 + $0x4] sm:$0xf]
  %v8980 = vld [vmem:[%s3 + $0x8] sm:$0xf]
  %v8981 = vld [vmem:[%s3 + $0xc] sm:$0xf]
  %v8982 = vld [vmem:[%s3 + $0x10] sm:$0xf]
  %v8983 = vld [vmem:[%s3 + $0x14] sm:$0xf]
  %v8984 = vld [vmem:[%s3 + $0x18] sm:$0xf]
  %v8985 = vld [vmem:[%s3 + $0x1c] sm:$0xf]
  %v8986 = vld [vmem:[%s3 + $0x20] sm:$0xf]
  %v8987 = vld [vmem:[%s3 + $0x24] sm:$0xf]
  %v8988 = vld [vmem:[%s3 + $0x28] sm:$0xf]
  %v8989 = vld [vmem:[%s3 + $0x2c] sm:$0xf]
  %v8990 = vld [vmem:[%s3 + $0x30] sm:$0xf]
  %v8991 = vld [vmem:[%s3 + $0x34] sm:$0xf]
  %v8992 = vld [vmem:[%s3 + $0x38] sm:$0xf]
  %v8993 = vld [vmem:[%s3 + $0x3c] sm:$0xf]
  %v8994 = vld [vmem:[%s3 + $0x40] sm:$0xf]
  %v8995 = vld [vmem:[%s3 + $0x44] sm:$0xf]
  %v8996 = vld [vmem:[%s3 + $0x48] sm:$0xf]
  %v8997 = vld [vmem:[%s3 + $0x4c] sm:$0xf]
  %v8998 = vld [vmem:[%s3 + $0x50] sm:$0xf]
  %v8999 = vld [vmem:[%s3 + $0x54] sm:$0xf]
  %v9000 = vld [vmem:[%s3 + $0x58] sm:$0xf]
  %v9001 = vld [vmem:[%s3 + $0x5c] sm:$0xf]
  %v9002 = vld [vmem:[%s3 + $0x60] sm:$0xf]
  %v9003 = vld [vmem:[%s3 + $0x64] sm:$0xf]
  %v9004 = vld [vmem:[%s3 + $0x68] sm:$0xf]
  %v9005 = vld [vmem:[%s3 + $0x6c] sm:$0xf]
  %v9006 = vld [vmem:[%s3 + $0x70] sm:$0xf]
  %v9007 = vld [vmem:[%s3 + $0x74] sm:$0xf]
  %v9008 = vld [vmem:[%s3 + $0x78] sm:$0xf]
  %v9009 = vld [vmem:[%s3 + $0x7c] sm:$0xf]
  %v9010 = vld [vmem:[%s3 + $0x80] sm:$0xf]
  %v9011 = vld [vmem:[%s3 + $0x84] sm:$0xf]
  %v9012 = vld [vmem:[%s3 + $0x88] sm:$0xf]
  %v9013 = vld [vmem:[%s3 + $0x8c] sm:$0xf]
  %v9014 = vld [vmem:[%s3 + $0x90] sm:$0xf]
  %v9015 = vld [vmem:[%s3 + $0x94] sm:$0xf]
  %v9016 = vld [vmem:[%s3 + $0x98] sm:$0xf]
  %v9017 = vld [vmem:[%s3 + $0x9c] sm:$0xf]
  %v9018 = vld [vmem:[%s3 + $0xa0] sm:$0xf]
  %v9019 = vld [vmem:[%s3 + $0xa4] sm:$0xf]
  %v9020 = vld [vmem:[%s3 + $0xa8] sm:$0xf]
  %v9021 = vld [vmem:[%s3 + $0xac] sm:$0xf]
  %v9022 = vld [vmem:[%s3 + $0xb0] sm:$0xf]
  %v9023 = vld [vmem:[%s3 + $0xb4] sm:$0xf]
  %v9024 = vld [vmem:[%s3 + $0xb8] sm:$0xf]
  %v9025 = vld [vmem:[%s3 + $0xbc] sm:$0xf]
  %v9026 = vld [vmem:[%s3 + $0xc0] sm:$0xf]
  %v9027 = vld [vmem:[%s3 + $0xc4] sm:$0xf]
  %v9028 = vld [vmem:[%s3 + $0xc8] sm:$0xf]
  %v9029 = vld [vmem:[%s3 + $0xcc] sm:$0xf]
  %v9030 = vld [vmem:[%s3 + $0xd0] sm:$0xf]
  %v9031 = vld [vmem:[%s3 + $0xd4] sm:$0xf]
  %v9032 = vld [vmem:[%s3 + $0xd8] sm:$0xf]
  %v9033 = vld [vmem:[%s3 + $0xdc] sm:$0xf]
  %v9034 = vld [vmem:[%s3 + $0xe0] sm:$0xf]
  %v9035 = vld [vmem:[%s3 + $0xe4] sm:$0xf]
  %v9036 = vld [vmem:[%s3 + $0xe8] sm:$0xf]
  %v9037 = vld [vmem:[%s3 + $0xec] sm:$0xf]
  %v9038 = vld [vmem:[%s3 + $0xf0] sm:$0xf]
  %v9039 = vld [vmem:[%s3 + $0xf4] sm:$0xf]
  %v9040 = vld [vmem:[%s3 + $0xf8] sm:$0xf]
  %v9041 = vld [vmem:[%s3 + $0xfc] sm:$0xf]
  %v9042 = vld [vmem:[%s3 + $0x100] sm:$0xf]
  %v9043 = vld [vmem:[%s3 + $0x104] sm:$0xf]
  %v9044 = vld [vmem:[%s3 + $0x108] sm:$0xf]
  %v9045 = vld [vmem:[%s3 + $0x10c] sm:$0xf]
  %v9046 = vld [vmem:[%s3 + $0x110] sm:$0xf]
  %v9047 = vld [vmem:[%s3 + $0x114] sm:$0xf]
  %v9048 = vld [vmem:[%s3 + $0x118] sm:$0xf]
  %v9049 = vld [vmem:[%s3 + $0x11c] sm:$0xf]
  %v9050 = vld [vmem:[%s3 + $0x120] sm:$0xf]
  %v9051 = vld [vmem:[%s3 + $0x124] sm:$0xf]
  %v9052 = vld [vmem:[%s3 + $0x128] sm:$0xf]
  %v9053 = vld [vmem:[%s3 + $0x12c] sm:$0xf]
  %v9054 = vld [vmem:[%s3 + $0x130] sm:$0xf]
  %v9055 = vld [vmem:[%s3 + $0x134] sm:$0xf]
  %v9056 = vld [vmem:[%s3 + $0x138] sm:$0xf]
  %v9057 = vld [vmem:[%s3 + $0x13c] sm:$0xf]
  %v9058 = vld [vmem:[%s3 + $0x140] sm:$0xf]
  %v9059 = vld [vmem:[%s3 + $0x144] sm:$0xf]
  %v9060 = vld [vmem:[%s3 + $0x148] sm:$0xf]
  %v9061 = vld [vmem:[%s3 + $0x14c] sm:$0xf]
  %v9062 = vld [vmem:[%s3 + $0x150] sm:$0xf]
  %v9063 = vld [vmem:[%s3 + $0x154] sm:$0xf]
  %v9064 = vld [vmem:[%s3 + $0x158] sm:$0xf]
  %v9065 = vld [vmem:[%s3 + $0x15c] sm:$0xf]
  %v9066 = vld [vmem:[%s3 + $0x160] sm:$0xf]
  %v9067 = vld [vmem:[%s3 + $0x164] sm:$0xf]
  %v9068 = vld [vmem:[%s3 + $0x168] sm:$0xf]
  %v9069 = vld [vmem:[%s3 + $0x16c] sm:$0xf]
  %v9070 = vld [vmem:[%s3 + $0x170] sm:$0xf]
  %v9071 = vld [vmem:[%s3 + $0x174] sm:$0xf]
  %v9072 = vld [vmem:[%s3 + $0x178] sm:$0xf]
  %v9073 = vld [vmem:[%s3 + $0x17c] sm:$0xf]
  %v9074 = vld [vmem:[%s3 + $0x180] sm:$0xf]
  %v9075 = vld [vmem:[%s3 + $0x184] sm:$0xf]
  %v9076 = vld [vmem:[%s3 + $0x188] sm:$0xf]
  %v9077 = vld [vmem:[%s3 + $0x18c] sm:$0xf]
  %v9078 = vpack.c.b16 %v8625, %v8618
  %v9079 = vpack.c.b16 %v8626, %v8619
  %v9080 = vpack.c.b16 %v8627, %v8620
  %v9081 = vpack.c.b16 %v8628, %v8621
  %v9082 = vpack.c.b16 %v8629, %v8622
  %v9083 = vpack.c.b16 %v8630, %v8623
  %v9084 = vpack.c.b16 %v8631, %v8624
  %v9085 = vpack.c.b16 %v8639, %v8632
  %v9086 = vpack.c.b16 %v8640, %v8633
  %v9087 = vpack.c.b16 %v8641, %v8634
  %v9088 = vpack.c.b16 %v8642, %v8635
  %v9089 = vpack.c.b16 %v8643, %v8636
  %v9090 = vpack.c.b16 %v8644, %v8637
  %v9091 = vpack.c.b16 %v8645, %v8638
  %v9092 = vpack.c.b16 %v8653, %v8646
  %v9093 = vpack.c.b16 %v8654, %v8647
  %v9094 = vpack.c.b16 %v8655, %v8648
  %v9095 = vpack.c.b16 %v8656, %v8649
  %v9096 = vpack.c.b16 %v8657, %v8650
  %v9097 = vpack.c.b16 %v8658, %v8651
  %v9098 = vpack.c.b16 %v8659, %v8652
  %v9099 = vpack.c.b16 %v8667, %v8660
  %v9100 = vpack.c.b16 %v8668, %v8661
  %v9101 = vpack.c.b16 %v8669, %v8662
  %v9102 = vpack.c.b16 %v8670, %v8663
  %v9103 = vpack.c.b16 %v8671, %v8664
  %v9104 = vpack.c.b16 %v8672, %v8665
  %v9105 = vpack.c.b16 %v8673, %v8666
  %v9106 = vpack.c.b16 %v8680, %v8674
  %v9107 = vpack.c.b16 %v8681, %v8675
  %v9108 = vpack.c.b16 %v8682, %v8676
  %v9109 = vpack.c.b16 %v8683, %v8677
  %v9110 = vpack.c.b16 %v8637, %v8630
  %v9111 = vpack.c.b16 %v8684, %v8678
  %v9112 = vpack.c.b16 %v8685, %v8679
  %v9113 = vpack.c.b16 %v8692, %v8686
  %v9114 = vpack.c.b16 %v8693, %v8687
  %v9115 = vpack.c.b16 %v8694, %v8688
  %v9116 = vpack.c.b16 %v8695, %v8689
  %v9117 = vpack.c.b16 %v8651, %v8644
  %v9118 = vpack.c.b16 %v8696, %v8690
  %v9119 = vpack.c.b16 %v8697, %v8691
  %v9120 = vpack.c.b16 %v8704, %v8698
  %v9121 = vpack.c.b16 %v8705, %v8699
  %v9122 = vpack.c.b16 %v8706, %v8700
  %v9123 = vpack.c.b16 %v8707, %v8701
  %v9124 = vpack.c.b16 %v8665, %v8658
  %v9125 = vpack.c.b16 %v8708, %v8702
  %v9126 = vpack.c.b16 %v8709, %v8703
  %v9127 = vpack.c.b16 %v8716, %v8710
  %v9128 = vpack.c.b16 %v8717, %v8711
  %v9129 = vpack.c.b16 %v8718, %v8712
  %v9130 = vpack.c.b16 %v8719, %v8713
  %v9131 = vpack.c.b16 %v8720, %v8672
  %v9132 = vpack.c.b16 %v8721, %v8714
  %v9133 = vpack.c.b16 %v8722, %v8715
  %v9134 = vpack.c.b16 %v8729, %v8723
  %v9135 = vpack.c.b16 %v8730, %v8724
  %v9136 = vpack.c.b16 %v8731, %v8725
  %v9137 = vpack.c.b16 %v8732, %v8726
  %v9138 = vpack.c.b16 %v8690, %v8684
  %v9139 = vpack.c.b16 %v8733, %v8727
  %v9140 = vpack.c.b16 %v8734, %v8728
  %v9141 = vpack.c.b16 %v8741, %v8735
  %v9142 = vpack.c.b16 %v8742, %v8736
  %v9143 = vpack.c.b16 %v8743, %v8737
  %v9144 = vpack.c.b16 %v8744, %v8738
  %v9145 = vpack.c.b16 %v8702, %v8696
  %v9146 = vpack.c.b16 %v8745, %v8739
  %v9147 = vpack.c.b16 %v8746, %v8740
  %v9148 = vpack.c.b16 %v8753, %v8747
  %v9149 = vpack.c.b16 %v8754, %v8748
  %v9150 = vpack.c.b16 %v8755, %v8749
  %v9151 = vpack.c.b16 %v8756, %v8750
  %v9152 = vpack.c.b16 %v8714, %v8708
  %v9153 = vpack.c.b16 %v8757, %v8751
  %v9154 = vpack.c.b16 %v8758, %v8752
  %v9155 = vpack.c.b16 %v8765, %v8759
  %v9156 = vpack.c.b16 %v8766, %v8760
  %v9157 = vpack.c.b16 %v8767, %v8761
  %v9158 = vpack.c.b16 %v8768, %v8762
  %v9159 = vpack.c.b16 %v8769, %v8721
  %v9160 = vpack.c.b16 %v8770, %v8763
  %v9161 = vpack.c.b16 %v8771, %v8764
  %v9162 = vpack.c.b16 %v8622, %v8772
  %v9163 = vpack.c.b16 %v8778, %v8773
  %v9164 = vpack.c.b16 %v8779, %v8774
  %v9165 = vpack.c.b16 %v8780, %v8775
  %v9166 = vpack.c.b16 %v8739, %v8733
  %v9167 = vpack.c.b16 %v8781, %v8776
  %v9168 = vpack.c.b16 %v8782, %v8777
  %v9169 = vpack.c.b16 %v8636, %v8629
  %v9170 = vpack.c.b16 %v8788, %v8783
  %v9171 = vpack.c.b16 %v8789, %v8784
  %v9172 = vpack.c.b16 %v8790, %v8785
  %v9173 = vpack.c.b16 %v8751, %v8745
  %v9174 = vpack.c.b16 %v8791, %v8786
  %v9175 = vpack.c.b16 %v8792, %v8787
  %v9176 = vpack.c.b16 %v8650, %v8643
  %v9177 = vpack.c.b16 %v8798, %v8793
  %v9178 = vpack.c.b16 %v8799, %v8794
  %v9179 = vpack.c.b16 %v8800, %v8795
  %v9180 = vpack.c.b16 %v8763, %v8757
  %v9181 = vpack.c.b16 %v8801, %v8796
  %v9182 = vpack.c.b16 %v8802, %v8797
  %v9183 = vpack.c.b16 %v8664, %v8657
  %v9184 = vpack.c.b16 %v8808, %v8803
  %v9185 = vpack.c.b16 %v8809, %v8804
  %v9186 = vpack.c.b16 %v8810, %v8805
  %v9187 = vpack.c.b16 %v8811, %v8770
  %v9188 = vpack.c.b16 %v8812, %v8806
  %v9189 = vpack.c.b16 %v8813, %v8807
  %v9190 = vpack.c.b16 %v8819, %v8814
  %v9191 = vpack.c.b16 %v8820, %v8815
  %v9192 = vpack.c.b16 %v8821, %v8816
  %v9193 = vpack.c.b16 %v8786, %v8781
  %v9194 = vpack.c.b16 %v8822, %v8817
  %v9195 = vpack.c.b16 %v8823, %v8818
  %v9196 = vpack.c.b16 %v8829, %v8824
  %v9197 = vpack.c.b16 %v8830, %v8825
  %v9198 = vpack.c.b16 %v8831, %v8826
  %v9199 = vpack.c.b16 %v8796, %v8791
  %v9200 = vpack.c.b16 %v8832, %v8827
  %v9201 = vpack.c.b16 %v8833, %v8828
  %v9202 = vpack.c.b16 %v8839, %v8834
  %v9203 = vpack.c.b16 %v8840, %v8835
  %v9204 = vpack.c.b16 %v8841, %v8836
  %v9205 = vpack.c.b16 %v8806, %v8801
  %v9206 = vpack.c.b16 %v8842, %v8837
  %v9207 = vpack.c.b16 %v8843, %v8838
  %v9208 = vpack.c.b16 %v8849, %v8844
  %v9209 = vpack.c.b16 %v8850, %v8845
  %v9210 = vpack.c.b16 %v8851, %v8846
  %v9211 = vpack.c.b16 %v8852, %v8812
  %v9212 = vpack.c.b16 %v8853, %v8847
  %v9213 = vpack.c.b16 %v8854, %v8848
  %v9214 = vpack.c.b16 %v8860, %v8855
  %v9215 = vpack.c.b16 %v8861, %v8856
  %v9216 = vpack.c.b16 %v8862, %v8857
  %v9217 = vpack.c.b16 %v8827, %v8822
  %v9218 = vpack.c.b16 %v8863, %v8858
  %v9219 = vpack.c.b16 %v8864, %v8859
  %v9220 = vpack.c.b16 %v8870, %v8865
  %v9221 = vpack.c.b16 %v8871, %v8866
  %v9222 = vpack.c.b16 %v8872, %v8867
  %v9223 = vpack.c.b16 %v8837, %v8832
  %v9224 = vpack.c.b16 %v8873, %v8868
  %v9225 = vpack.c.b16 %v8874, %v8869
  %v9226 = vpack.c.b16 %v8880, %v8875
  %v9227 = vpack.c.b16 %v8881, %v8876
  %v9228 = vpack.c.b16 %v8882, %v8877
  %v9229 = vpack.c.b16 %v8847, %v8842
  %v9230 = vpack.c.b16 %v8883, %v8878
  %v9231 = vpack.c.b16 %v8884, %v8879
  %v9232 = vpack.c.b16 %v8890, %v8885
  %v9233 = vpack.c.b16 %v8891, %v8886
  %v9234 = vpack.c.b16 %v8892, %v8887
  %v9235 = vpack.c.b16 %v8893, %v8853
  %v9236 = vpack.c.b16 %v8894, %v8888
  %v9237 = vpack.c.b16 %v8895, %v8889
  %v9238 = vpack.c.b16 %v8901, %v8896
  %v9239 = vpack.c.b16 %v8902, %v8897
  %v9240 = vpack.c.b16 %v8903, %v8898
  %v9241 = vpack.c.b16 %v8868, %v8863
  %v9242 = vpack.c.b16 %v8904, %v8899
  %v9243 = vpack.c.b16 %v8905, %v8900
  %v9244 = vpack.c.b16 %v8911, %v8906
  %v9245 = vpack.c.b16 %v8912, %v8907
  %v9246 = vpack.c.b16 %v8913, %v8908
  %v9247 = vpack.c.b16 %v8878, %v8873
  %v9248 = vpack.c.b16 %v8914, %v8909
  %v9249 = vpack.c.b16 %v8915, %v8910
  %v9250 = vpack.c.b16 %v8921, %v8916
  %v9251 = vpack.c.b16 %v8922, %v8917
  %v9252 = vpack.c.b16 %v8923, %v8918
  %v9253 = vpack.c.b16 %v8888, %v8883
  %v9254 = vpack.c.b16 %v8924, %v8919
  %v9255 = vpack.c.b16 %v8925, %v8920
  %v9256 = vpack.c.b16 %v8931, %v8926
  %v9257 = vpack.c.b16 %v8932, %v8927
  %v9258 = vpack.c.b16 %v8933, %v8928
  %v9259 = vpack.c.b16 %v8934, %v8894
  %v9260 = vpack.c.b16 %v8935, %v8929
  %v9261 = vpack.c.b16 %v8936, %v8930
  %v9262 = vpack.c.b16 %v8942, %v8937
  %v9263 = vpack.c.b16 %v8943, %v8938
  %v9264 = vpack.c.b16 %v8944, %v8939
  %v9265 = vpack.c.b16 %v8909, %v8904
  %v9266 = vpack.c.b16 %v8945, %v8940
  %v9267 = vpack.c.b16 %v8946, %v8941
  %v9268 = vpack.c.b16 %v8952, %v8947
  %v9269 = vpack.c.b16 %v8953, %v8948
  %v9270 = vpack.c.b16 %v8954, %v8949
  %v9271 = vpack.c.b16 %v8919, %v8914
  %v9272 = vpack.c.b16 %v8955, %v8950
  %v9273 = vpack.c.b16 %v8956, %v8951
  %v9274 = vpack.c.b16 %v8962, %v8957
  %v9275 = vpack.c.b16 %v8963, %v8958
  %v9276 = vpack.c.b16 %v8964, %v8959
  %v9277 = vpack.c.b16 %v8929, %v8924
  %v9278 = vpack.c.b16 %v8965, %v8960
  %v9279 = vpack.c.b16 %v8966, %v8961
  %v9280 = vpack.c.b16 %v8972, %v8967
  %v9281 = vpack.c.b16 %v8973, %v8968
  %v9282 = vpack.c.b16 %v8974, %v8969
  %v9283 = vpack.c.b16 %v8975, %v8935
  %v9284 = vpack.c.b16 %v8976, %v8970
  %v9285 = vpack.c.b16 %v8977, %v8971
  %v9562 = vunpack.c.l.b16 %v8978
  %v9563 = vunpack.c.l.b16 %v8979
  %v9564 = vunpack.c.l.b16 %v8980
  %v9565 = vunpack.c.l.b16 %v8981
  %v9566 = vunpack.c.l.b16 %v8982
  %v9567 = vunpack.c.l.b16 %v8983
  %v9568 = vunpack.c.l.b16 %v8984
  %v9569 = vunpack.c.l.b16 %v8985
  %v9570 = vunpack.c.l.b16 %v8986
  %v9571 = vunpack.c.l.b16 %v8987
  %v9572 = vunpack.c.l.b16 %v8988
  %v9573 = vunpack.c.l.b16 %v8989
  %v9574 = vunpack.c.l.b16 %v8990
  %v9575 = vunpack.c.l.b16 %v8991
  %v9576 = vunpack.c.l.b16 %v8992
  %v9577 = vunpack.c.l.b16 %v8993
  %v9578 = vunpack.c.l.b16 %v8994
  %v9579 = vunpack.c.l.b16 %v8995
  %v9580 = vunpack.c.l.b16 %v8996
  %v9581 = vunpack.c.l.b16 %v8997
  %v9582 = vunpack.c.l.b16 %v8998
  %v9583 = vunpack.c.l.b16 %v8999
  %v9584 = vunpack.c.l.b16 %v9000
  %v9585 = vunpack.c.l.b16 %v9001
  %v9586 = vunpack.c.l.b16 %v9002
  %v9587 = vunpack.c.l.b16 %v9003
  %v9588 = vunpack.c.l.b16 %v9004
  %v9589 = vunpack.c.l.b16 %v9005
  %v9590 = vunpack.c.l.b16 %v9006
  %v9591 = vunpack.c.l.b16 %v9007
  %v9592 = vunpack.c.l.b16 %v9008
  %v9593 = vunpack.c.l.b16 %v9009
  %v9594 = vunpack.c.l.b16 %v9010
  %v9595 = vunpack.c.l.b16 %v9011
  %v9596 = vunpack.c.l.b16 %v9012
  %v9597 = vunpack.c.l.b16 %v9013
  %v9598 = vunpack.c.l.b16 %v9014
  %v9599 = vunpack.c.l.b16 %v9015
  %v9600 = vunpack.c.l.b16 %v9016
  %v9601 = vunpack.c.l.b16 %v9017
  %v9602 = vunpack.c.l.b16 %v9018
  %v9603 = vunpack.c.l.b16 %v9019
  %v9604 = vunpack.c.l.b16 %v9020
  %v9605 = vunpack.c.l.b16 %v9021
  %v9606 = vunpack.c.l.b16 %v9022
  %v9607 = vunpack.c.l.b16 %v9023
  %v9608 = vunpack.c.l.b16 %v9024
  %v9609 = vunpack.c.l.b16 %v9025
  %v9610 = vunpack.c.l.b16 %v9026
  %v9611 = vunpack.c.l.b16 %v9027
  %v9612 = vunpack.c.l.b16 %v9028
  %v9613 = vunpack.c.l.b16 %v9029
  %v9614 = vunpack.c.l.b16 %v9030
  %v9615 = vunpack.c.l.b16 %v9031
  %v9616 = vunpack.c.l.b16 %v9032
  %v9617 = vunpack.c.l.b16 %v9033
  %v9618 = vunpack.c.l.b16 %v9034
  %v9619 = vunpack.c.l.b16 %v9035
  %v9620 = vunpack.c.l.b16 %v9036
  %v9621 = vunpack.c.l.b16 %v9037
  %v9622 = vunpack.c.l.b16 %v9038
  %v9623 = vunpack.c.l.b16 %v9039
  %v9624 = vunpack.c.l.b16 %v9040
  %v9625 = vunpack.c.l.b16 %v9041
  %v9626 = vunpack.c.l.b16 %v9042
  %v9627 = vunpack.c.l.b16 %v9043
  %v9628 = vunpack.c.l.b16 %v9044
  %v9629 = vunpack.c.l.b16 %v9045
  %v9630 = vunpack.c.l.b16 %v9046
  %v9631 = vunpack.c.l.b16 %v9047
  %v9632 = vunpack.c.l.b16 %v9048
  %v9633 = vunpack.c.l.b16 %v9049
  %v9634 = vunpack.c.l.b16 %v9050
  %v9635 = vunpack.c.l.b16 %v9051
  %v9636 = vunpack.c.l.b16 %v9052
  %v9637 = vunpack.c.l.b16 %v9053
  %v9638 = vunpack.c.l.b16 %v9054
  %v9639 = vunpack.c.l.b16 %v9055
  %v9640 = vunpack.c.l.b16 %v9056
  %v9641 = vunpack.c.l.b16 %v9057
  %v9642 = vunpack.c.l.b16 %v9058
  %v9643 = vunpack.c.l.b16 %v9059
  %v9644 = vunpack.c.l.b16 %v9060
  %v9645 = vunpack.c.l.b16 %v9061
  %v9646 = vunpack.c.l.b16 %v9062
  %v9647 = vunpack.c.l.b16 %v9063
  %v9648 = vunpack.c.l.b16 %v9064
  %v9649 = vunpack.c.l.b16 %v9065
  %v9650 = vunpack.c.l.b16 %v9066
  %v9651 = vunpack.c.l.b16 %v9067
  %v9652 = vunpack.c.l.b16 %v9068
  %v9653 = vunpack.c.l.b16 %v9069
  %v9654 = vunpack.c.l.b16 %v9070
  %v9655 = vunpack.c.l.b16 %v9071
  %v9656 = vunpack.c.l.b16 %v9072
  %v9657 = vunpack.c.l.b16 %v9073
  %v9658 = vunpack.c.l.b16 %v9074
  %v9659 = vunpack.c.l.b16 %v9075
  %v9660 = vunpack.c.l.b16 %v9076
  %v9661 = vunpack.c.l.b16 %v9077
  %v9662 = vpack.c.b16 %v9563, %v9562
  %v9663 = vpack.c.b16 %v9565, %v9564
  %v9664 = vpack.c.b16 %v9567, %v9566
  %v9665 = vpack.c.b16 %v9569, %v9568
  %v9666 = vpack.c.b16 %v9571, %v9570
  %v9667 = vpack.c.b16 %v9573, %v9572
  %v9668 = vpack.c.b16 %v9575, %v9574
  %v9669 = vpack.c.b16 %v9577, %v9576
  %v9670 = vpack.c.b16 %v9579, %v9578
  %v9671 = vpack.c.b16 %v9581, %v9580
  %v9672 = vpack.c.b16 %v9583, %v9582
  %v9673 = vpack.c.b16 %v9585, %v9584
  %v9674 = vpack.c.b16 %v9587, %v9586
  %v9675 = vpack.c.b16 %v9589, %v9588
  %v9676 = vpack.c.b16 %v9591, %v9590
  %v9677 = vpack.c.b16 %v9593, %v9592
  %v9678 = vpack.c.b16 %v9595, %v9594
  %v9679 = vpack.c.b16 %v9597, %v9596
  %v9680 = vpack.c.b16 %v9599, %v9598
  %v9681 = vpack.c.b16 %v9601, %v9600
  %v9682 = vpack.c.b16 %v9603, %v9602
  %v9683 = vpack.c.b16 %v9605, %v9604
  %v9684 = vpack.c.b16 %v9607, %v9606
  %v9685 = vpack.c.b16 %v9609, %v9608
  %v9686 = vpack.c.b16 %v9611, %v9610
  %v9687 = vpack.c.b16 %v9613, %v9612
  %v9688 = vpack.c.b16 %v9615, %v9614
  %v9689 = vpack.c.b16 %v9617, %v9616
  %v9690 = vpack.c.b16 %v9619, %v9618
  %v9691 = vpack.c.b16 %v9621, %v9620
  %v9692 = vpack.c.b16 %v9623, %v9622
  %v9693 = vpack.c.b16 %v9625, %v9624
  %v9694 = vpack.c.b16 %v9627, %v9626
  %v9695 = vpack.c.b16 %v9629, %v9628
  %v9696 = vpack.c.b16 %v9631, %v9630
  %v9697 = vpack.c.b16 %v9633, %v9632
  %v9698 = vpack.c.b16 %v9635, %v9634
  %v9699 = vpack.c.b16 %v9637, %v9636
  %v9700 = vpack.c.b16 %v9639, %v9638
  %v9701 = vpack.c.b16 %v9641, %v9640
  %v9702 = vpack.c.b16 %v9643, %v9642
  %v9703 = vpack.c.b16 %v9645, %v9644
  %v9704 = vpack.c.b16 %v9647, %v9646
  %v9705 = vpack.c.b16 %v9649, %v9648
  %v9706 = vpack.c.b16 %v9651, %v9650
  %v9707 = vpack.c.b16 %v9653, %v9652
  %v9708 = vpack.c.b16 %v9655, %v9654
  %v9709 = vpack.c.b16 %v9657, %v9656
  %v9710 = vpack.c.b16 %v9659, %v9658
  %v9711 = vpack.c.b16 %v9661, %v9660
  %v9763 = vsel %vm6938, %v9084, 0
  %v9766 = vsel %vm6938, %v9091, 0
  %v9769 = vsel %vm6938, %v9098, 0
  %v9772 = vsel %vm6938, %v9105, 0
  %v9775 = vsel %vm6938, %v9112, 0
  %v9778 = vsel %vm6938, %v9119, 0
  %v9781 = vsel %vm6938, %v9126, 0
  %v9784 = vsel %vm6938, %v9133, 0
  %v9787 = vsel %vm6938, %v9140, 0
  %v9790 = vsel %vm6938, %v9147, 0
  %v9793 = vsel %vm6938, %v9154, 0
  %v9796 = vsel %vm6938, %v9161, 0
  %v9799 = vsel %vm6938, %v9168, 0
  %v9802 = vsel %vm6938, %v9175, 0
  %v9805 = vsel %vm6938, %v9182, 0
  %v9808 = vsel %vm6938, %v9189, 0
  %v9811 = vsel %vm6938, %v9195, 0
  %v9814 = vsel %vm6938, %v9201, 0
  %v9817 = vsel %vm6938, %v9207, 0
  %v9820 = vsel %vm6938, %v9213, 0
  %v9823 = vsel %vm6938, %v9219, 0
  %v9826 = vsel %vm6938, %v9225, 0
  %v9829 = vsel %vm6938, %v9231, 0
  %v9832 = vsel %vm6938, %v9237, 0
  %v9835 = vsel %vm6938, %v9243, 0
  %v9838 = vsel %vm6938, %v9249, 0
  %v9841 = vsel %vm6938, %v9255, 0
  %v9844 = vsel %vm6938, %v9261, 0
  %v9847 = vsel %vm6938, %v9267, 0
  %v9850 = vsel %vm6938, %v9273, 0
  %v9853 = vsel %vm6938, %v9279, 0
  %v9856 = vsel %vm6938, %v9285, 0
  %9858 = vmatprep.subr.bf16.mxu0 0
  %9859 = vmatpush1.bf16.msra.mxu0 %v9662
  %9860 = vmatprep.subr.bf16.mxu0 0
  %9861 = vmatpush1.bf16.msra.mxu0 %v9663
  %9862 = vmatprep.subr.bf16.mxu0 0
  %9863 = vmatpush1.bf16.msra.mxu0 %v9664
  %9864 = vmatprep.subr.bf16.mxu0 0
  %9865 = vmatpush1.bf16.msra.mxu0 %v9665
  %9866 = vmatprep.subr.bf16.mxu0 0
  %9867 = vmatpush1.bf16.msra.mxu0 %v9666
  %9868 = vmatprep.subr.bf16.mxu0 0
  %9869 = vmatpush1.bf16.msra.mxu0 %v9667
  %9870 = vmatprep.subr.bf16.mxu0 0
  %9871 = vmatpush1.bf16.msra.mxu0 %v9668
  %9872 = vmatprep.subr.bf16.mxu0 0
  %9873 = vmatpush1.bf16.msra.mxu0 %v9669
  %9874 = vmatprep.subr.bf16.mxu0 0
  %9875 = vmatpush1.bf16.msra.mxu0 %v9670
  %9876 = vmatprep.subr.bf16.mxu0 0
  %9877 = vmatpush1.bf16.msra.mxu0 %v9671
  %9878 = vmatprep.subr.bf16.mxu0 0
  %9879 = vmatpush1.bf16.msra.mxu0 %v9672
  %9880 = vmatprep.subr.bf16.mxu0 0
  %9881 = vmatpush1.bf16.msra.mxu0 %v9673
  %9882 = vmatprep.subr.bf16.mxu0 0
  %9883 = vmatpush1.bf16.msra.mxu0 %v9674
  %9884 = vmatprep.subr.bf16.mxu0 0
  %9885 = vmatpush1.bf16.msra.mxu0 %v9675
  %9886 = vmatprep.subr.bf16.mxu0 0
  %9887 = vmatpush1.bf16.msra.mxu0 %v9676
  %9888 = vmatprep.subr.bf16.mxu0 0
  %9889 = vmatpush1.bf16.msra.mxu0 %v9677
  %9890 = vmatprep.mubr.bf16.mxu0 %v9079
  %9891 = vmatmul.mubr.bf16.gmra.mrb[0].mxu0 %v9078
  %v9892 = vpop.f32.mrb[0].mxu0
  %v9893 = vadd.f32 0.0, %v9892
  %v9894 = vpop.f32.mrb[0].mxu0
  %v9895 = vpop.f32.mrb[0].mxu0
  %v9896 = vadd.f32 0.0, %v9895
  %v9897 = vpop.f32.mrb[0].mxu0
  %9898 = vmatprep.mubr.bf16.mxu0 %v9086
  %9899 = vmatmul.mubr.bf16.gmra.mrb[0].mxu0 %v9085
  %v9900 = vpop.f32.mrb[0].mxu0
  %v9901 = vadd.f32 0.0, %v9900
  %v9902 = vpop.f32.mrb[0].mxu0
  %v9903 = vpop.f32.mrb[0].mxu0
  %v9904 = vadd.f32 0.0, %v9903
  %v9905 = vpop.f32.mrb[0].mxu0
  %9906 = vmatprep.mubr.bf16.mxu0 %v9093
  %9907 = vmatmul.mubr.bf16.gmra.mrb[0].mxu0 %v9092
  %v9908 = vpop.f32.mrb[0].mxu0
  %v9909 = vadd.f32 0.0, %v9908
  %v9910 = vpop.f32.mrb[0].mxu0
  %v9911 = vpop.f32.mrb[0].mxu0
  %v9912 = vadd.f32 0.0, %v9911
  %v9913 = vpop.f32.mrb[0].mxu0
  %9914 = vmatprep.mubr.bf16.mxu0 %v9100
  %9915 = vmatmul.mubr.bf16.gmra.mrb[0].mxu0 %v9099
  %v9916 = vpop.f32.mrb[0].mxu0
  %v9917 = vadd.f32 0.0, %v9916
  %v9918 = vpop.f32.mrb[0].mxu0
  %v9919 = vpop.f32.mrb[0].mxu0
  %v9920 = vadd.f32 0.0, %v9919
  %v9921 = vpop.f32.mrb[0].mxu0
  %9922 = vmatprep.mubr.bf16.mxu0 %v9107
  %9923 = vmatmul.mubr.bf16.gmra.mrb[0].mxu0 %v9106
  %v9924 = vpop.f32.mrb[0].mxu0
  %v9925 = vadd.f32 0.0, %v9924
  %v9926 = vpop.f32.mrb[0].mxu0
  %v9927 = vpop.f32.mrb[0].mxu0
  %v9928 = vadd.f32 0.0, %v9927
  %v9929 = vpop.f32.mrb[0].mxu0
  %9930 = vmatprep.mubr.bf16.mxu0 %v9114
  %9931 = vmatmul.mubr.bf16.gmra.mrb[0].mxu0 %v9113
  %v9932 = vpop.f32.mrb[0].mxu0
  %v9933 = vadd.f32 0.0, %v9932
  %v9934 = vpop.f32.mrb[0].mxu0
  %v9935 = vpop.f32.mrb[0].mxu0
  %v9936 = vadd.f32 0.0, %v9935
  %v9937 = vpop.f32.mrb[0].mxu0
  %9938 = vmatprep.mubr.bf16.mxu0 %v9121
  %9939 = vmatmul.mubr.bf16.gmra.mrb[0].mxu0 %v9120
  %v9940 = vpop.f32.mrb[0].mxu0
  %v9941 = vadd.f32 0.0, %v9940
  %v9942 = vpop.f32.mrb[0].mxu0
  %v9943 = vpop.f32.mrb[0].mxu0
  %v9944 = vadd.f32 0.0, %v9943
  %v9945 = vpop.f32.mrb[0].mxu0
  %9946 = vmatprep.mubr.bf16.mxu0 %v9128
  %9947 = vmatmul.mubr.bf16.gmra.mrb[0].mxu0 %v9127
  %v9948 = vpop.f32.mrb[0].mxu0
  %v9949 = vadd.f32 0.0, %v9948
  %v9950 = vpop.f32.mrb[0].mxu0
  %v9951 = vpop.f32.mrb[0].mxu0
  %v9952 = vadd.f32 0.0, %v9951
  %v9953 = vpop.f32.mrb[0].mxu0
  %9954 = vmatprep.mubr.bf16.mxu0 %v9135
  %9955 = vmatmul.mubr.bf16.gmra.mrb[0].mxu0 %v9134
  %v9956 = vpop.f32.mrb[0].mxu0
  %v9957 = vadd.f32 0.0, %v9956
  %v9958 = vpop.f32.mrb[0].mxu0
  %v9959 = vpop.f32.mrb[0].mxu0
  %v9960 = vadd.f32 0.0, %v9959
  %v9961 = vpop.f32.mrb[0].mxu0
  %9962 = vmatprep.mubr.bf16.mxu0 %v9142
  %9963 = vmatmul.mubr.bf16.gmra.mrb[0].mxu0 %v9141
  %v9964 = vpop.f32.mrb[0].mxu0
  %v9965 = vadd.f32 0.0, %v9964
  %v9966 = vpop.f32.mrb[0].mxu0
  %v9967 = vpop.f32.mrb[0].mxu0
  %v9968 = vadd.f32 0.0, %v9967
  %v9969 = vpop.f32.mrb[0].mxu0
  %9970 = vmatprep.mubr.bf16.mxu0 %v9149
  %9971 = vmatmul.mubr.bf16.gmra.mrb[0].mxu0 %v9148
  %v9972 = vpop.f32.mrb[0].mxu0
  %v9973 = vadd.f32 0.0, %v9972
  %v9974 = vpop.f32.mrb[0].mxu0
  %v9975 = vpop.f32.mrb[0].mxu0
  %v9976 = vadd.f32 0.0, %v9975
  %v9977 = vpop.f32.mrb[0].mxu0
  %9978 = vmatprep.mubr.bf16.mxu0 %v9156
  %9979 = vmatmul.mubr.bf16.gmra.mrb[0].mxu0 %v9155
  %v9980 = vpop.f32.mrb[0].mxu0
  %v9981 = vadd.f32 0.0, %v9980
  %v9982 = vpop.f32.mrb[0].mxu0
  %v9983 = vpop.f32.mrb[0].mxu0
  %v9984 = vadd.f32 0.0, %v9983
  %v9985 = vpop.f32.mrb[0].mxu0
  %9986 = vmatprep.mubr.bf16.mxu0 %v9163
  %9987 = vmatmul.mubr.bf16.gmra.mrb[0].mxu0 %v9162
  %v9988 = vpop.f32.mrb[0].mxu0
  %v9989 = vadd.f32 0.0, %v9988
  %v9990 = vpop.f32.mrb[0].mxu0
  %v9991 = vpop.f32.mrb[0].mxu0
  %v9992 = vadd.f32 0.0, %v9991
  %v9993 = vpop.f32.mrb[0].mxu0
  %9994 = vmatprep.mubr.bf16.mxu0 %v9170
  %9995 = vmatmul.mubr.bf16.gmra.mrb[0].mxu0 %v9169
  %v9996 = vpop.f32.mrb[0].mxu0
  %v9997 = vadd.f32 0.0, %v9996
  %v9998 = vpop.f32.mrb[0].mxu0
  %v9999 = vpop.f32.mrb[0].mxu0
  %v10000 = vadd.f32 0.0, %v9999
  %v10001 = vpop.f32.mrb[0].mxu0
  %10002 = vmatprep.mubr.bf16.mxu0 %v9177
  %10003 = vmatmul.mubr.bf16.gmra.mrb[0].mxu0 %v9176
  %v10004 = vpop.f32.mrb[0].mxu0
  %v10005 = vadd.f32 0.0, %v10004
  %v10006 = vpop.f32.mrb[0].mxu0
  %v10007 = vpop.f32.mrb[0].mxu0
  %v10008 = vadd.f32 0.0, %v10007
  %v10009 = vpop.f32.mrb[0].mxu0
  %10010 = vmatprep.mubr.bf16.mxu0 %v9184
  %10011 = vmatmul.mubr.bf16.gmra.mrb[0].mxu0 %v9183
  %v10012 = vpop.f32.mrb[0].mxu0
  %v10013 = vadd.f32 0.0, %v10012
  %v10014 = vpop.f32.mrb[0].mxu0
  %v10015 = vpop.f32.mrb[0].mxu0
  %v10016 = vadd.f32 0.0, %v10015
  %v10017 = vpop.f32.mrb[0].mxu0
  %10018 = vmatprep.mubr.bf16.mxu0 %v9190
  %10019 = vmatmul.mubr.bf16.gmra.mrb[0].mxu0 %v9083
  %v10020 = vpop.f32.mrb[0].mxu0
  %v10021 = vadd.f32 0.0, %v10020
  %v10022 = vpop.f32.mrb[0].mxu0
  %v10023 = vpop.f32.mrb[0].mxu0
  %v10024 = vadd.f32 0.0, %v10023
  %v10025 = vpop.f32.mrb[0].mxu0
  %10026 = vmatprep.mubr.bf16.mxu0 %v9196
  %10027 = vmatmul.mubr.bf16.gmra.mrb[0].mxu0 %v9090
  %v10028 = vpop.f32.mrb[0].mxu0
  %v10029 = vadd.f32 0.0, %v10028
  %v10030 = vpop.f32.mrb[0].mxu0
  %v10031 = vpop.f32.mrb[0].mxu0
  %v10032 = vadd.f32 0.0, %v10031
  %v10033 = vpop.f32.mrb[0].mxu0
  %10034 = vmatprep.mubr.bf16.mxu0 %v9202
  %10035 = vmatmul.mubr.bf16.gmra.mrb[0].mxu0 %v9097
  %v10036 = vpop.f32.mrb[0].mxu0
  %v10037 = vadd.f32 0.0, %v10036
  %v10038 = vpop.f32.mrb[0].mxu0
  %v10039 = vpop.f32.mrb[0].mxu0
  %v10040 = vadd.f32 0.0, %v10039
  %v10041 = vpop.f32.mrb[0].mxu0
  %10042 = vmatprep.mubr.bf16.mxu0 %v9208
  %10043 = vmatmul.mubr.bf16.gmra.mrb[0].mxu0 %v9104
  %v10044 = vpop.f32.mrb[0].mxu0
  %v10045 = vadd.f32 0.0, %v10044
  %v10046 = vpop.f32.mrb[0].mxu0
  %v10047 = vpop.f32.mrb[0].mxu0
  %v10048 = vadd.f32 0.0, %v10047
  %v10049 = vpop.f32.mrb[0].mxu0
  %10050 = vmatprep.mubr.bf16.mxu0 %v9214
  %10051 = vmatmul.mubr.bf16.gmra.mrb[0].mxu0 %v9111
  %v10052 = vpop.f32.mrb[0].mxu0
  %v10053 = vadd.f32 0.0, %v10052
  %v10054 = vpop.f32.mrb[0].mxu0
  %v10055 = vpop.f32.mrb[0].mxu0
  %v10056 = vadd.f32 0.0, %v10055
  %v10057 = vpop.f32.mrb[0].mxu0
  %10058 = vmatprep.mubr.bf16.mxu0 %v9220
  %10059 = vmatmul.mubr.bf16.gmra.mrb[0].mxu0 %v9118
  %v10060 = vpop.f32.mrb[0].mxu0
  %v10061 = vadd.f32 0.0, %v10060
  %v10062 = vpop.f32.mrb[0].mxu0
  %v10063 = vpop.f32.mrb[0].mxu0
  %v10064 = vadd.f32 0.0, %v10063
  %v10065 = vpop.f32.mrb[0].mxu0
  %10066 = vmatprep.mubr.bf16.mxu0 %v9226
  %10067 = vmatmul.mubr.bf16.gmra.mrb[0].mxu0 %v9125
  %v10068 = vpop.f32.mrb[0].mxu0
  %v10069 = vadd.f32 0.0, %v10068
  %v10070 = vpop.f32.mrb[0].mxu0
  %v10071 = vpop.f32.mrb[0].mxu0
  %v10072 = vadd.f32 0.0, %v10071
  %v10073 = vpop.f32.mrb[0].mxu0
  %10074 = vmatprep.mubr.bf16.mxu0 %v9232
  %10075 = vmatmul.mubr.bf16.gmra.mrb[0].mxu0 %v9132
  %v10076 = vpop.f32.mrb[0].mxu0
  %v10077 = vadd.f32 0.0, %v10076
  %v10078 = vpop.f32.mrb[0].mxu0
  %v10079 = vpop.f32.mrb[0].mxu0
  %v10080 = vadd.f32 0.0, %v10079
  %v10081 = vpop.f32.mrb[0].mxu0
  %10082 = vmatprep.mubr.bf16.mxu0 %v9238
  %10083 = vmatmul.mubr.bf16.gmra.mrb[0].mxu0 %v9139
  %v10084 = vpop.f32.mrb[0].mxu0
  %v10085 = vadd.f32 0.0, %v10084
  %v10086 = vpop.f32.mrb[0].mxu0
  %v10087 = vpop.f32.mrb[0].mxu0
  %v10088 = vadd.f32 0.0, %v10087
  %v10089 = vpop.f32.mrb[0].mxu0
  %10090 = vmatprep.mubr.bf16.mxu0 %v9244
  %10091 = vmatmul.mubr.bf16.gmra.mrb[0].mxu0 %v9146
  %v10092 = vpop.f32.mrb[0].mxu0
  %v10093 = vadd.f32 0.0, %v10092
  %v10094 = vpop.f32.mrb[0].mxu0
  %v10095 = vpop.f32.mrb[0].mxu0
  %v10096 = vadd.f32 0.0, %v10095
  %v10097 = vpop.f32.mrb[0].mxu0
  %10098 = vmatprep.mubr.bf16.mxu0 %v9250
  %10099 = vmatmul.mubr.bf16.gmra.mrb[0].mxu0 %v9153
  %v10100 = vpop.f32.mrb[0].mxu0
  %v10101 = vadd.f32 0.0, %v10100
  %v10102 = vpop.f32.mrb[0].mxu0
  %v10103 = vpop.f32.mrb[0].mxu0
  %v10104 = vadd.f32 0.0, %v10103
  %v10105 = vpop.f32.mrb[0].mxu0
  %10106 = vmatprep.mubr.bf16.mxu0 %v9256
  %10107 = vmatmul.mubr.bf16.gmra.mrb[0].mxu0 %v9160
  %v10108 = vpop.f32.mrb[0].mxu0
  %v10109 = vadd.f32 0.0, %v10108
  %v10110 = vpop.f32.mrb[0].mxu0
  %v10111 = vpop.f32.mrb[0].mxu0
  %v10112 = vadd.f32 0.0, %v10111
  %v10113 = vpop.f32.mrb[0].mxu0
  %10114 = vmatprep.mubr.bf16.mxu0 %v9262
  %10115 = vmatmul.mubr.bf16.gmra.mrb[0].mxu0 %v9167
  %v10116 = vpop.f32.mrb[0].mxu0
  %v10117 = vadd.f32 0.0, %v10116
  %v10118 = vpop.f32.mrb[0].mxu0
  %v10119 = vpop.f32.mrb[0].mxu0
  %v10120 = vadd.f32 0.0, %v10119
  %v10121 = vpop.f32.mrb[0].mxu0
  %10122 = vmatprep.mubr.bf16.mxu0 %v9268
  %10123 = vmatmul.mubr.bf16.gmra.mrb[0].mxu0 %v9174
  %v10124 = vpop.f32.mrb[0].mxu0
  %v10125 = vadd.f32 0.0, %v10124
  %v10126 = vpop.f32.mrb[0].mxu0
  %v10127 = vpop.f32.mrb[0].mxu0
  %v10128 = vadd.f32 0.0, %v10127
  %v10129 = vpop.f32.mrb[0].mxu0
  %10130 = vmatprep.mubr.bf16.mxu0 %v9274
  %10131 = vmatmul.mubr.bf16.gmra.mrb[0].mxu0 %v9181
  %v10132 = vpop.f32.mrb[0].mxu0
  %v10133 = vadd.f32 0.0, %v10132
  %v10134 = vpop.f32.mrb[0].mxu0
  %v10135 = vpop.f32.mrb[0].mxu0
  %v10136 = vadd.f32 0.0, %v10135
  %v10137 = vpop.f32.mrb[0].mxu0
  %10138 = vmatprep.mubr.bf16.mxu0 %v9280
  %10139 = vmatmul.mubr.bf16.gmra.mrb[0].mxu0 %v9188
  %v10140 = vpop.f32.mrb[0].mxu0
  %v10141 = vadd.f32 0.0, %v10140
  %v10142 = vpop.f32.mrb[0].mxu0
  %v10143 = vpop.f32.mrb[0].mxu0
  %v10144 = vadd.f32 0.0, %v10143
  %v10145 = vpop.f32.mrb[0].mxu0
  %10146 = vdwg.mxu0
  %10147 = vmatprep.subr.bf16.mxu0 0
  %10148 = vmatpush1.bf16.msra.mxu0 %v9678
  %10149 = vmatprep.subr.bf16.mxu0 0
  %10150 = vmatpush1.bf16.msra.mxu0 %v9679
  %10151 = vmatprep.subr.bf16.mxu0 0
  %10152 = vmatpush1.bf16.msra.mxu0 %v9680
  %10153 = vmatprep.subr.bf16.mxu0 0
  %10154 = vmatpush1.bf16.msra.mxu0 %v9681
  %10155 = vmatprep.subr.bf16.mxu0 0
  %10156 = vmatpush1.bf16.msra.mxu0 %v9682
  %10157 = vmatprep.subr.bf16.mxu0 0
  %10158 = vmatpush1.bf16.msra.mxu0 %v9683
  %10159 = vmatprep.subr.bf16.mxu0 0
  %10160 = vmatpush1.bf16.msra.mxu0 %v9684
  %10161 = vmatprep.subr.bf16.mxu0 0
  %10162 = vmatpush1.bf16.msra.mxu0 %v9685
  %10163 = vmatprep.subr.bf16.mxu0 0
  %10164 = vmatpush1.bf16.msra.mxu0 %v9686
  %10165 = vmatprep.subr.bf16.mxu0 0
  %10166 = vmatpush1.bf16.msra.mxu0 %v9687
  %10167 = vmatprep.subr.bf16.mxu0 0
  %10168 = vmatpush1.bf16.msra.mxu0 %v9688
  %10169 = vmatprep.subr.bf16.mxu0 0
  %10170 = vmatpush1.bf16.msra.mxu0 %v9689
  %10171 = vmatprep.subr.bf16.mxu0 0
  %10172 = vmatpush1.bf16.msra.mxu0 %v9690
  %10173 = vmatprep.subr.bf16.mxu0 0
  %10174 = vmatpush1.bf16.msra.mxu0 %v9691
  %10175 = vmatprep.subr.bf16.mxu0 0
  %10176 = vmatpush1.bf16.msra.mxu0 %v9692
  %10177 = vmatprep.subr.bf16.mxu0 0
  %10178 = vmatpush1.bf16.msra.mxu0 %v9693
  %10179 = vmatprep.mubr.bf16.mxu0 %v9081
  %10180 = vmatmul.mubr.bf16.gmra.mrb[0].mxu0 %v9080
  %v10181 = vpop.f32.mrb[0].mxu0
  %v10182 = vadd.f32 %v9893, %v10181
  %v10183 = vpop.f32.mrb[0].mxu0
  %v10184 = vpop.f32.mrb[0].mxu0
  %v10185 = vadd.f32 %v9896, %v10184
  %v10186 = vpop.f32.mrb[0].mxu0
  %10187 = vmatprep.mubr.bf16.mxu0 %v9088
  %10188 = vmatmul.mubr.bf16.gmra.mrb[0].mxu0 %v9087
  %v10189 = vpop.f32.mrb[0].mxu0
  %v10190 = vadd.f32 %v9901, %v10189
  %v10191 = vpop.f32.mrb[0].mxu0
  %v10192 = vpop.f32.mrb[0].mxu0
  %v10193 = vadd.f32 %v9904, %v10192
  %v10194 = vpop.f32.mrb[0].mxu0
  %10195 = vmatprep.mubr.bf16.mxu0 %v9095
  %10196 = vmatmul.mubr.bf16.gmra.mrb[0].mxu0 %v9094
  %v10197 = vpop.f32.mrb[0].mxu0
  %v10198 = vadd.f32 %v9909, %v10197
  %v10199 = vpop.f32.mrb[0].mxu0
  %v10200 = vpop.f32.mrb[0].mxu0
  %v10201 = vadd.f32 %v9912, %v10200
  %v10202 = vpop.f32.mrb[0].mxu0
  %10203 = vmatprep.mubr.bf16.mxu0 %v9102
  %10204 = vmatmul.mubr.bf16.gmra.mrb[0].mxu0 %v9101
  %v10205 = vpop.f32.mrb[0].mxu0
  %v10206 = vadd.f32 %v9917, %v10205
  %v10207 = vpop.f32.mrb[0].mxu0
  %v10208 = vpop.f32.mrb[0].mxu0
  %v10209 = vadd.f32 %v9920, %v10208
  %v10210 = vpop.f32.mrb[0].mxu0
  %10211 = vmatprep.mubr.bf16.mxu0 %v9109
  %10212 = vmatmul.mubr.bf16.gmra.mrb[0].mxu0 %v9108
  %v10213 = vpop.f32.mrb[0].mxu0
  %v10214 = vadd.f32 %v9925, %v10213
  %v10215 = vpop.f32.mrb[0].mxu0
  %v10216 = vpop.f32.mrb[0].mxu0
  %v10217 = vadd.f32 %v9928, %v10216
  %v10218 = vpop.f32.mrb[0].mxu0
  %10219 = vmatprep.mubr.bf16.mxu0 %v9116
  %10220 = vmatmul.mubr.bf16.gmra.mrb[0].mxu0 %v9115
  %v10221 = vpop.f32.mrb[0].mxu0
  %v10222 = vadd.f32 %v9933, %v10221
  %v10223 = vpop.f32.mrb[0].mxu0
  %v10224 = vpop.f32.mrb[0].mxu0
  %v10225 = vadd.f32 %v9936, %v10224
  %v10226 = vpop.f32.mrb[0].mxu0
  %10227 = vmatprep.mubr.bf16.mxu0 %v9123
  %10228 = vmatmul.mubr.bf16.gmra.mrb[0].mxu0 %v9122
  %v10229 = vpop.f32.mrb[0].mxu0
  %v10230 = vadd.f32 %v9941, %v10229
  %v10231 = vpop.f32.mrb[0].mxu0
  %v10232 = vpop.f32.mrb[0].mxu0
  %v10233 = vadd.f32 %v9944, %v10232
  %v10234 = vpop.f32.mrb[0].mxu0
  %10235 = vmatprep.mubr.bf16.mxu0 %v9130
  %10236 = vmatmul.mubr.bf16.gmra.mrb[0].mxu0 %v9129
  %v10237 = vpop.f32.mrb[0].mxu0
  %v10238 = vadd.f32 %v9949, %v10237
  %v10239 = vpop.f32.mrb[0].mxu0
  %v10240 = vpop.f32.mrb[0].mxu0
  %v10241 = vadd.f32 %v9952, %v10240
  %v10242 = vpop.f32.mrb[0].mxu0
  %10243 = vmatprep.mubr.bf16.mxu0 %v9137
  %10244 = vmatmul.mubr.bf16.gmra.mrb[0].mxu0 %v9136
  %v10245 = vpop.f32.mrb[0].mxu0
  %v10246 = vadd.f32 %v9957, %v10245
  %v10247 = vpop.f32.mrb[0].mxu0
  %v10248 = vpop.f32.mrb[0].mxu0
  %v10249 = vadd.f32 %v9960, %v10248
  %v10250 = vpop.f32.mrb[0].mxu0
  %10251 = vmatprep.mubr.bf16.mxu0 %v9144
  %10252 = vmatmul.mubr.bf16.gmra.mrb[0].mxu0 %v9143
  %v10253 = vpop.f32.mrb[0].mxu0
  %v10254 = vadd.f32 %v9965, %v10253
  %v10255 = vpop.f32.mrb[0].mxu0
  %v10256 = vpop.f32.mrb[0].mxu0
  %v10257 = vadd.f32 %v9968, %v10256
  %v10258 = vpop.f32.mrb[0].mxu0
  %10259 = vmatprep.mubr.bf16.mxu0 %v9151
  %10260 = vmatmul.mubr.bf16.gmra.mrb[0].mxu0 %v9150
  %v10261 = vpop.f32.mrb[0].mxu0
  %v10262 = vadd.f32 %v9973, %v10261
  %v10263 = vpop.f32.mrb[0].mxu0
  %v10264 = vpop.f32.mrb[0].mxu0
  %v10265 = vadd.f32 %v9976, %v10264
  %v10266 = vpop.f32.mrb[0].mxu0
  %10267 = vmatprep.mubr.bf16.mxu0 %v9158
  %10268 = vmatmul.mubr.bf16.gmra.mrb[0].mxu0 %v9157
  %v10269 = vpop.f32.mrb[0].mxu0
  %v10270 = vadd.f32 %v9981, %v10269
  %v10271 = vpop.f32.mrb[0].mxu0
  %v10272 = vpop.f32.mrb[0].mxu0
  %v10273 = vadd.f32 %v9984, %v10272
  %v10274 = vpop.f32.mrb[0].mxu0
  %10275 = vmatprep.mubr.bf16.mxu0 %v9165
  %10276 = vmatmul.mubr.bf16.gmra.mrb[0].mxu0 %v9164
  %v10277 = vpop.f32.mrb[0].mxu0
  %v10278 = vadd.f32 %v9989, %v10277
  %v10279 = vpop.f32.mrb[0].mxu0
  %v10280 = vpop.f32.mrb[0].mxu0
  %v10281 = vadd.f32 %v9992, %v10280
  %v10282 = vpop.f32.mrb[0].mxu0
  %10283 = vmatprep.mubr.bf16.mxu0 %v9172
  %10284 = vmatmul.mubr.bf16.gmra.mrb[0].mxu0 %v9171
  %v10285 = vpop.f32.mrb[0].mxu0
  %v10286 = vadd.f32 %v9997, %v10285
  %v10287 = vpop.f32.mrb[0].mxu0
  %v10288 = vpop.f32.mrb[0].mxu0
  %v10289 = vadd.f32 %v10000, %v10288
  %v10290 = vpop.f32.mrb[0].mxu0
  %10291 = vmatprep.mubr.bf16.mxu0 %v9179
  %10292 = vmatmul.mubr.bf16.gmra.mrb[0].mxu0 %v9178
  %v10293 = vpop.f32.mrb[0].mxu0
  %v10294 = vadd.f32 %v10005, %v10293
  %v10295 = vpop.f32.mrb[0].mxu0
  %v10296 = vpop.f32.mrb[0].mxu0
  %v10297 = vadd.f32 %v10008, %v10296
  %v10298 = vpop.f32.mrb[0].mxu0
  %10299 = vmatprep.mubr.bf16.mxu0 %v9186
  %10300 = vmatmul.mubr.bf16.gmra.mrb[0].mxu0 %v9185
  %v10301 = vpop.f32.mrb[0].mxu0
  %v10302 = vadd.f32 %v10013, %v10301
  %v10303 = vpop.f32.mrb[0].mxu0
  %v10304 = vpop.f32.mrb[0].mxu0
  %v10305 = vadd.f32 %v10016, %v10304
  %v10306 = vpop.f32.mrb[0].mxu0
  %10307 = vmatprep.mubr.bf16.mxu0 %v9192
  %10308 = vmatmul.mubr.bf16.gmra.mrb[0].mxu0 %v9191
  %v10309 = vpop.f32.mrb[0].mxu0
  %v10310 = vadd.f32 %v10021, %v10309
  %v10311 = vpop.f32.mrb[0].mxu0
  %v10312 = vpop.f32.mrb[0].mxu0
  %v10313 = vadd.f32 %v10024, %v10312
  %v10314 = vpop.f32.mrb[0].mxu0
  %10315 = vmatprep.mubr.bf16.mxu0 %v9198
  %10316 = vmatmul.mubr.bf16.gmra.mrb[0].mxu0 %v9197
  %v10317 = vpop.f32.mrb[0].mxu0
  %v10318 = vadd.f32 %v10029, %v10317
  %v10319 = vpop.f32.mrb[0].mxu0
  %v10320 = vpop.f32.mrb[0].mxu0
  %v10321 = vadd.f32 %v10032, %v10320
  %v10322 = vpop.f32.mrb[0].mxu0
  %10323 = vmatprep.mubr.bf16.mxu0 %v9204
  %10324 = vmatmul.mubr.bf16.gmra.mrb[0].mxu0 %v9203
  %v10325 = vpop.f32.mrb[0].mxu0
  %v10326 = vadd.f32 %v10037, %v10325
  %v10327 = vpop.f32.mrb[0].mxu0
  %v10328 = vpop.f32.mrb[0].mxu0
  %v10329 = vadd.f32 %v10040, %v10328
  %v10330 = vpop.f32.mrb[0].mxu0
  %10331 = vmatprep.mubr.bf16.mxu0 %v9210
  %10332 = vmatmul.mubr.bf16.gmra.mrb[0].mxu0 %v9209
  %v10333 = vpop.f32.mrb[0].mxu0
  %v10334 = vadd.f32 %v10045, %v10333
  %v10335 = vpop.f32.mrb[0].mxu0
  %v10336 = vpop.f32.mrb[0].mxu0
  %v10337 = vadd.f32 %v10048, %v10336
  %v10338 = vpop.f32.mrb[0].mxu0
  %10339 = vmatprep.mubr.bf16.mxu0 %v9216
  %10340 = vmatmul.mubr.bf16.gmra.mrb[0].mxu0 %v9215
  %v10341 = vpop.f32.mrb[0].mxu0
  %v10342 = vadd.f32 %v10053, %v10341
  %v10343 = vpop.f32.mrb[0].mxu0
  %v10344 = vpop.f32.mrb[0].mxu0
  %v10345 = vadd.f32 %v10056, %v10344
  %v10346 = vpop.f32.mrb[0].mxu0
  %10347 = vmatprep.mubr.bf16.mxu0 %v9222
  %10348 = vmatmul.mubr.bf16.gmra.mrb[0].mxu0 %v9221
  %v10349 = vpop.f32.mrb[0].mxu0
  %v10350 = vadd.f32 %v10061, %v10349
  %v10351 = vpop.f32.mrb[0].mxu0
  %v10352 = vpop.f32.mrb[0].mxu0
  %v10353 = vadd.f32 %v10064, %v10352
  %v10354 = vpop.f32.mrb[0].mxu0
  %10355 = vmatprep.mubr.bf16.mxu0 %v9228
  %10356 = vmatmul.mubr.bf16.gmra.mrb[0].mxu0 %v9227
  %v10357 = vpop.f32.mrb[0].mxu0
  %v10358 = vadd.f32 %v10069, %v10357
  %v10359 = vpop.f32.mrb[0].mxu0
  %v10360 = vpop.f32.mrb[0].mxu0
  %v10361 = vadd.f32 %v10072, %v10360
  %v10362 = vpop.f32.mrb[0].mxu0
  %10363 = vmatprep.mubr.bf16.mxu0 %v9234
  %10364 = vmatmul.mubr.bf16.gmra.mrb[0].mxu0 %v9233
  %v10365 = vpop.f32.mrb[0].mxu0
  %v10366 = vadd.f32 %v10077, %v10365
  %v10367 = vpop.f32.mrb[0].mxu0
  %v10368 = vpop.f32.mrb[0].mxu0
  %v10369 = vadd.f32 %v10080, %v10368
  %v10370 = vpop.f32.mrb[0].mxu0
  %10371 = vmatprep.mubr.bf16.mxu0 %v9240
  %10372 = vmatmul.mubr.bf16.gmra.mrb[0].mxu0 %v9239
  %v10373 = vpop.f32.mrb[0].mxu0
  %v10374 = vadd.f32 %v10085, %v10373
  %v10375 = vpop.f32.mrb[0].mxu0
  %v10376 = vpop.f32.mrb[0].mxu0
  %v10377 = vadd.f32 %v10088, %v10376
  %v10378 = vpop.f32.mrb[0].mxu0
  %10379 = vmatprep.mubr.bf16.mxu0 %v9246
  %10380 = vmatmul.mubr.bf16.gmra.mrb[0].mxu0 %v9245
  %v10381 = vpop.f32.mrb[0].mxu0
  %v10382 = vadd.f32 %v10093, %v10381
  %v10383 = vpop.f32.mrb[0].mxu0
  %v10384 = vpop.f32.mrb[0].mxu0
  %v10385 = vadd.f32 %v10096, %v10384
  %v10386 = vpop.f32.mrb[0].mxu0
  %10387 = vmatprep.mubr.bf16.mxu0 %v9252
  %10388 = vmatmul.mubr.bf16.gmra.mrb[0].mxu0 %v9251
  %v10389 = vpop.f32.mrb[0].mxu0
  %v10390 = vadd.f32 %v10101, %v10389
  %v10391 = vpop.f32.mrb[0].mxu0
  %v10392 = vpop.f32.mrb[0].mxu0
  %v10393 = vadd.f32 %v10104, %v10392
  %v10394 = vpop.f32.mrb[0].mxu0
  %10395 = vmatprep.mubr.bf16.mxu0 %v9258
  %10396 = vmatmul.mubr.bf16.gmra.mrb[0].mxu0 %v9257
  %v10397 = vpop.f32.mrb[0].mxu0
  %v10398 = vadd.f32 %v10109, %v10397
  %v10399 = vpop.f32.mrb[0].mxu0
  %v10400 = vpop.f32.mrb[0].mxu0
  %v10401 = vadd.f32 %v10112, %v10400
  %v10402 = vpop.f32.mrb[0].mxu0
  %10403 = vmatprep.mubr.bf16.mxu0 %v9264
  %10404 = vmatmul.mubr.bf16.gmra.mrb[0].mxu0 %v9263
  %v10405 = vpop.f32.mrb[0].mxu0
  %v10406 = vadd.f32 %v10117, %v10405
  %v10407 = vpop.f32.mrb[0].mxu0
  %v10408 = vpop.f32.mrb[0].mxu0
  %v10409 = vadd.f32 %v10120, %v10408
  %v10410 = vpop.f32.mrb[0].mxu0
  %10411 = vmatprep.mubr.bf16.mxu0 %v9270
  %10412 = vmatmul.mubr.bf16.gmra.mrb[0].mxu0 %v9269
  %v10413 = vpop.f32.mrb[0].mxu0
  %v10414 = vadd.f32 %v10125, %v10413
  %v10415 = vpop.f32.mrb[0].mxu0
  %v10416 = vpop.f32.mrb[0].mxu0
  %v10417 = vadd.f32 %v10128, %v10416
  %v10418 = vpop.f32.mrb[0].mxu0
  %10419 = vmatprep.mubr.bf16.mxu0 %v9276
  %10420 = vmatmul.mubr.bf16.gmra.mrb[0].mxu0 %v9275
  %v10421 = vpop.f32.mrb[0].mxu0
  %v10422 = vadd.f32 %v10133, %v10421
  %v10423 = vpop.f32.mrb[0].mxu0
  %v10424 = vpop.f32.mrb[0].mxu0
  %v10425 = vadd.f32 %v10136, %v10424
  %v10426 = vpop.f32.mrb[0].mxu0
  %10427 = vmatprep.mubr.bf16.mxu0 %v9282
  %10428 = vmatmul.mubr.bf16.gmra.mrb[0].mxu0 %v9281
  %v10429 = vpop.f32.mrb[0].mxu0
  %v10430 = vadd.f32 %v10141, %v10429
  %v10431 = vpop.f32.mrb[0].mxu0
  %v10432 = vpop.f32.mrb[0].mxu0
  %v10433 = vadd.f32 %v10144, %v10432
  %v10434 = vpop.f32.mrb[0].mxu0
  %10435 = vdwg.mxu0
  %10436 = vmatprep.subr.bf16.mxu0 0
  %10437 = vmatpush1.bf16.msra.mxu0 %v9694
  %10438 = vmatprep.subr.bf16.mxu0 0
  %10439 = vmatpush1.bf16.msra.mxu0 %v9695
  %10440 = vmatprep.subr.bf16.mxu0 0
  %10441 = vmatpush1.bf16.msra.mxu0 %v9696
  %10442 = vmatprep.subr.bf16.mxu0 0
  %10443 = vmatpush1.bf16.msra.mxu0 %v9697
  %10444 = vmatprep.subr.bf16.mxu0 0
  %10445 = vmatpush1.bf16.msra.mxu0 %v9698
  %10446 = vmatprep.subr.bf16.mxu0 0
  %10447 = vmatpush1.bf16.msra.mxu0 %v9699
  %10448 = vmatprep.subr.bf16.mxu0 0
  %10449 = vmatpush1.bf16.msra.mxu0 %v9700
  %10450 = vmatprep.subr.bf16.mxu0 0
  %10451 = vmatpush1.bf16.msra.mxu0 %v9701
  %10452 = vmatprep.subr.bf16.mxu0 0
  %10453 = vmatpush1.bf16.msra.mxu0 %v9702
  %10454 = vmatprep.subr.bf16.mxu0 0
  %10455 = vmatpush1.bf16.msra.mxu0 %v9703
  %10456 = vmatprep.subr.bf16.mxu0 0
  %10457 = vmatpush1.bf16.msra.mxu0 %v9704
  %10458 = vmatprep.subr.bf16.mxu0 0
  %10459 = vmatpush1.bf16.msra.mxu0 %v9705
  %10460 = vmatprep.subr.bf16.mxu0 0
  %10461 = vmatpush1.bf16.msra.mxu0 %v9706
  %10462 = vmatprep.subr.bf16.mxu0 0
  %10463 = vmatpush1.bf16.msra.mxu0 %v9707
  %10464 = vmatprep.subr.bf16.mxu0 0
  %10465 = vmatpush1.bf16.msra.mxu0 %v9708
  %10466 = vmatprep.subr.bf16.mxu0 0
  %10467 = vmatpush1.bf16.msra.mxu0 %v9709
  %10468 = vmatprep.mubr.bf16.mxu0 %v9083
  %10469 = vmatmul.mubr.bf16.gmra.mrb[0].mxu0 %v9082
  %v10470 = vpop.f32.mrb[0].mxu0
  %v10471 = vadd.f32 %v10182, %v10470
  %v10472 = vpop.f32.mrb[0].mxu0
  %v10473 = vpop.f32.mrb[0].mxu0
  %v10474 = vadd.f32 %v10185, %v10473
  %v10475 = vpop.f32.mrb[0].mxu0
  %10476 = vmatprep.mubr.bf16.mxu0 %v9090
  %10477 = vmatmul.mubr.bf16.gmra.mrb[0].mxu0 %v9089
  %v10478 = vpop.f32.mrb[0].mxu0
  %v10479 = vadd.f32 %v10190, %v10478
  %v10480 = vpop.f32.mrb[0].mxu0
  %v10481 = vpop.f32.mrb[0].mxu0
  %v10482 = vadd.f32 %v10193, %v10481
  %v10483 = vpop.f32.mrb[0].mxu0
  %10484 = vmatprep.mubr.bf16.mxu0 %v9097
  %10485 = vmatmul.mubr.bf16.gmra.mrb[0].mxu0 %v9096
  %v10486 = vpop.f32.mrb[0].mxu0
  %v10487 = vadd.f32 %v10198, %v10486
  %v10488 = vpop.f32.mrb[0].mxu0
  %v10489 = vpop.f32.mrb[0].mxu0
  %v10490 = vadd.f32 %v10201, %v10489
  %v10491 = vpop.f32.mrb[0].mxu0
  %10492 = vmatprep.mubr.bf16.mxu0 %v9104
  %10493 = vmatmul.mubr.bf16.gmra.mrb[0].mxu0 %v9103
  %v10494 = vpop.f32.mrb[0].mxu0
  %v10495 = vadd.f32 %v10206, %v10494
  %v10496 = vpop.f32.mrb[0].mxu0
  %v10497 = vpop.f32.mrb[0].mxu0
  %v10498 = vadd.f32 %v10209, %v10497
  %v10499 = vpop.f32.mrb[0].mxu0
  %10500 = vmatprep.mubr.bf16.mxu0 %v9111
  %10501 = vmatmul.mubr.bf16.gmra.mrb[0].mxu0 %v9110
  %v10502 = vpop.f32.mrb[0].mxu0
  %v10503 = vadd.f32 %v10214, %v10502
  %v10504 = vpop.f32.mrb[0].mxu0
  %v10505 = vpop.f32.mrb[0].mxu0
  %v10506 = vadd.f32 %v10217, %v10505
  %v10507 = vpop.f32.mrb[0].mxu0
  %10508 = vmatprep.mubr.bf16.mxu0 %v9118
  %10509 = vmatmul.mubr.bf16.gmra.mrb[0].mxu0 %v9117
  %v10510 = vpop.f32.mrb[0].mxu0
  %v10511 = vadd.f32 %v10222, %v10510
  %v10512 = vpop.f32.mrb[0].mxu0
  %v10513 = vpop.f32.mrb[0].mxu0
  %v10514 = vadd.f32 %v10225, %v10513
  %v10515 = vpop.f32.mrb[0].mxu0
  %10516 = vmatprep.mubr.bf16.mxu0 %v9125
  %10517 = vmatmul.mubr.bf16.gmra.mrb[0].mxu0 %v9124
  %v10518 = vpop.f32.mrb[0].mxu0
  %v10519 = vadd.f32 %v10230, %v10518
  %v10520 = vpop.f32.mrb[0].mxu0
  %v10521 = vpop.f32.mrb[0].mxu0
  %v10522 = vadd.f32 %v10233, %v10521
  %v10523 = vpop.f32.mrb[0].mxu0
  %10524 = vmatprep.mubr.bf16.mxu0 %v9132
  %10525 = vmatmul.mubr.bf16.gmra.mrb[0].mxu0 %v9131
  %v10526 = vpop.f32.mrb[0].mxu0
  %v10527 = vadd.f32 %v10238, %v10526
  %v10528 = vpop.f32.mrb[0].mxu0
  %v10529 = vpop.f32.mrb[0].mxu0
  %v10530 = vadd.f32 %v10241, %v10529
  %v10531 = vpop.f32.mrb[0].mxu0
  %10532 = vmatprep.mubr.bf16.mxu0 %v9139
  %10533 = vmatmul.mubr.bf16.gmra.mrb[0].mxu0 %v9138
  %v10534 = vpop.f32.mrb[0].mxu0
  %v10535 = vadd.f32 %v10246, %v10534
  %v10536 = vpop.f32.mrb[0].mxu0
  %v10537 = vpop.f32.mrb[0].mxu0
  %v10538 = vadd.f32 %v10249, %v10537
  %v10539 = vpop.f32.mrb[0].mxu0
  %10540 = vmatprep.mubr.bf16.mxu0 %v9146
  %10541 = vmatmul.mubr.bf16.gmra.mrb[0].mxu0 %v9145
  %v10542 = vpop.f32.mrb[0].mxu0
  %v10543 = vadd.f32 %v10254, %v10542
  %v10544 = vpop.f32.mrb[0].mxu0
  %v10545 = vpop.f32.mrb[0].mxu0
  %v10546 = vadd.f32 %v10257, %v10545
  %v10547 = vpop.f32.mrb[0].mxu0
  %10548 = vmatprep.mubr.bf16.mxu0 %v9153
  %10549 = vmatmul.mubr.bf16.gmra.mrb[0].mxu0 %v9152
  %v10550 = vpop.f32.mrb[0].mxu0
  %v10551 = vadd.f32 %v10262, %v10550
  %v10552 = vpop.f32.mrb[0].mxu0
  %v10553 = vpop.f32.mrb[0].mxu0
  %v10554 = vadd.f32 %v10265, %v10553
  %v10555 = vpop.f32.mrb[0].mxu0
  %10556 = vmatprep.mubr.bf16.mxu0 %v9160
  %10557 = vmatmul.mubr.bf16.gmra.mrb[0].mxu0 %v9159
  %v10558 = vpop.f32.mrb[0].mxu0
  %v10559 = vadd.f32 %v10270, %v10558
  %v10560 = vpop.f32.mrb[0].mxu0
  %v10561 = vpop.f32.mrb[0].mxu0
  %v10562 = vadd.f32 %v10273, %v10561
  %v10563 = vpop.f32.mrb[0].mxu0
  %10564 = vmatprep.mubr.bf16.mxu0 %v9167
  %10565 = vmatmul.mubr.bf16.gmra.mrb[0].mxu0 %v9166
  %v10566 = vpop.f32.mrb[0].mxu0
  %v10567 = vadd.f32 %v10278, %v10566
  %v10568 = vpop.f32.mrb[0].mxu0
  %v10569 = vpop.f32.mrb[0].mxu0
  %v10570 = vadd.f32 %v10281, %v10569
  %v10571 = vpop.f32.mrb[0].mxu0
  %10572 = vmatprep.mubr.bf16.mxu0 %v9174
  %10573 = vmatmul.mubr.bf16.gmra.mrb[0].mxu0 %v9173
  %v10574 = vpop.f32.mrb[0].mxu0
  %v10575 = vadd.f32 %v10286, %v10574
  %v10576 = vpop.f32.mrb[0].mxu0
  %v10577 = vpop.f32.mrb[0].mxu0
  %v10578 = vadd.f32 %v10289, %v10577
  %v10579 = vpop.f32.mrb[0].mxu0
  %10580 = vmatprep.mubr.bf16.mxu0 %v9181
  %10581 = vmatmul.mubr.bf16.gmra.mrb[0].mxu0 %v9180
  %v10582 = vpop.f32.mrb[0].mxu0
  %v10583 = vadd.f32 %v10294, %v10582
  %v10584 = vpop.f32.mrb[0].mxu0
  %v10585 = vpop.f32.mrb[0].mxu0
  %v10586 = vadd.f32 %v10297, %v10585
  %v10587 = vpop.f32.mrb[0].mxu0
  %10588 = vmatprep.mubr.bf16.mxu0 %v9188
  %10589 = vmatmul.mubr.bf16.gmra.mrb[0].mxu0 %v9187
  %v10590 = vpop.f32.mrb[0].mxu0
  %v10591 = vadd.f32 %v10302, %v10590
  %v10592 = vpop.f32.mrb[0].mxu0
  %v10593 = vpop.f32.mrb[0].mxu0
  %v10594 = vadd.f32 %v10305, %v10593
  %v10595 = vpop.f32.mrb[0].mxu0
  %10596 = vmatprep.mubr.bf16.mxu0 %v9194
  %10597 = vmatmul.mubr.bf16.gmra.mrb[0].mxu0 %v9193
  %v10598 = vpop.f32.mrb[0].mxu0
  %v10599 = vadd.f32 %v10310, %v10598
  %v10600 = vpop.f32.mrb[0].mxu0
  %v10601 = vpop.f32.mrb[0].mxu0
  %v10602 = vadd.f32 %v10313, %v10601
  %v10603 = vpop.f32.mrb[0].mxu0
  %10604 = vmatprep.mubr.bf16.mxu0 %v9200
  %10605 = vmatmul.mubr.bf16.gmra.mrb[0].mxu0 %v9199
  %v10606 = vpop.f32.mrb[0].mxu0
  %v10607 = vadd.f32 %v10318, %v10606
  %v10608 = vpop.f32.mrb[0].mxu0
  %v10609 = vpop.f32.mrb[0].mxu0
  %v10610 = vadd.f32 %v10321, %v10609
  %v10611 = vpop.f32.mrb[0].mxu0
  %10612 = vmatprep.mubr.bf16.mxu0 %v9206
  %10613 = vmatmul.mubr.bf16.gmra.mrb[0].mxu0 %v9205
  %v10614 = vpop.f32.mrb[0].mxu0
  %v10615 = vadd.f32 %v10326, %v10614
  %v10616 = vpop.f32.mrb[0].mxu0
  %v10617 = vpop.f32.mrb[0].mxu0
  %v10618 = vadd.f32 %v10329, %v10617
  %v10619 = vpop.f32.mrb[0].mxu0
  %10620 = vmatprep.mubr.bf16.mxu0 %v9212
  %10621 = vmatmul.mubr.bf16.gmra.mrb[0].mxu0 %v9211
  %v10622 = vpop.f32.mrb[0].mxu0
  %v10623 = vadd.f32 %v10334, %v10622
  %v10624 = vpop.f32.mrb[0].mxu0
  %v10625 = vpop.f32.mrb[0].mxu0
  %v10626 = vadd.f32 %v10337, %v10625
  %v10627 = vpop.f32.mrb[0].mxu0
  %10628 = vmatprep.mubr.bf16.mxu0 %v9218
  %10629 = vmatmul.mubr.bf16.gmra.mrb[0].mxu0 %v9217
  %v10630 = vpop.f32.mrb[0].mxu0
  %v10631 = vadd.f32 %v10342, %v10630
  %v10632 = vpop.f32.mrb[0].mxu0
  %v10633 = vpop.f32.mrb[0].mxu0
  %v10634 = vadd.f32 %v10345, %v10633
  %v10635 = vpop.f32.mrb[0].mxu0
  %10636 = vmatprep.mubr.bf16.mxu0 %v9224
  %10637 = vmatmul.mubr.bf16.gmra.mrb[0].mxu0 %v9223
  %v10638 = vpop.f32.mrb[0].mxu0
  %v10639 = vadd.f32 %v10350, %v10638
  %v10640 = vpop.f32.mrb[0].mxu0
  %v10641 = vpop.f32.mrb[0].mxu0
  %v10642 = vadd.f32 %v10353, %v10641
  %v10643 = vpop.f32.mrb[0].mxu0
  %10644 = vmatprep.mubr.bf16.mxu0 %v9230
  %10645 = vmatmul.mubr.bf16.gmra.mrb[0].mxu0 %v9229
  %v10646 = vpop.f32.mrb[0].mxu0
  %v10647 = vadd.f32 %v10358, %v10646
  %v10648 = vpop.f32.mrb[0].mxu0
  %v10649 = vpop.f32.mrb[0].mxu0
  %v10650 = vadd.f32 %v10361, %v10649
  %v10651 = vpop.f32.mrb[0].mxu0
  %10652 = vmatprep.mubr.bf16.mxu0 %v9236
  %10653 = vmatmul.mubr.bf16.gmra.mrb[0].mxu0 %v9235
  %v10654 = vpop.f32.mrb[0].mxu0
  %v10655 = vadd.f32 %v10366, %v10654
  %v10656 = vpop.f32.mrb[0].mxu0
  %v10657 = vpop.f32.mrb[0].mxu0
  %v10658 = vadd.f32 %v10369, %v10657
  %v10659 = vpop.f32.mrb[0].mxu0
  %10660 = vmatprep.mubr.bf16.mxu0 %v9242
  %10661 = vmatmul.mubr.bf16.gmra.mrb[0].mxu0 %v9241
  %v10662 = vpop.f32.mrb[0].mxu0
  %v10663 = vadd.f32 %v10374, %v10662
  %v10664 = vpop.f32.mrb[0].mxu0
  %v10665 = vpop.f32.mrb[0].mxu0
  %v10666 = vadd.f32 %v10377, %v10665
  %v10667 = vpop.f32.mrb[0].mxu0
  %10668 = vmatprep.mubr.bf16.mxu0 %v9248
  %10669 = vmatmul.mubr.bf16.gmra.mrb[0].mxu0 %v9247
  %v10670 = vpop.f32.mrb[0].mxu0
  %v10671 = vadd.f32 %v10382, %v10670
  %v10672 = vpop.f32.mrb[0].mxu0
  %v10673 = vpop.f32.mrb[0].mxu0
  %v10674 = vadd.f32 %v10385, %v10673
  %v10675 = vpop.f32.mrb[0].mxu0
  %10676 = vmatprep.mubr.bf16.mxu0 %v9254
  %10677 = vmatmul.mubr.bf16.gmra.mrb[0].mxu0 %v9253
  %v10678 = vpop.f32.mrb[0].mxu0
  %v10679 = vadd.f32 %v10390, %v10678
  %v10680 = vpop.f32.mrb[0].mxu0
  %v10681 = vpop.f32.mrb[0].mxu0
  %v10682 = vadd.f32 %v10393, %v10681
  %v10683 = vpop.f32.mrb[0].mxu0
  %10684 = vmatprep.mubr.bf16.mxu0 %v9260
  %10685 = vmatmul.mubr.bf16.gmra.mrb[0].mxu0 %v9259
  %v10686 = vpop.f32.mrb[0].mxu0
  %v10687 = vadd.f32 %v10398, %v10686
  %v10688 = vpop.f32.mrb[0].mxu0
  %v10689 = vpop.f32.mrb[0].mxu0
  %v10690 = vadd.f32 %v10401, %v10689
  %v10691 = vpop.f32.mrb[0].mxu0
  %10692 = vmatprep.mubr.bf16.mxu0 %v9266
  %10693 = vmatmul.mubr.bf16.gmra.mrb[0].mxu0 %v9265
  %v10694 = vpop.f32.mrb[0].mxu0
  %v10695 = vadd.f32 %v10406, %v10694
  %v10696 = vpop.f32.mrb[0].mxu0
  %v10697 = vpop.f32.mrb[0].mxu0
  %v10698 = vadd.f32 %v10409, %v10697
  %v10699 = vpop.f32.mrb[0].mxu0
  %10700 = vmatprep.mubr.bf16.mxu0 %v9272
  %10701 = vmatmul.mubr.bf16.gmra.mrb[0].mxu0 %v9271
  %v10702 = vpop.f32.mrb[0].mxu0
  %v10703 = vadd.f32 %v10414, %v10702
  %v10704 = vpop.f32.mrb[0].mxu0
  %v10705 = vpop.f32.mrb[0].mxu0
  %v10706 = vadd.f32 %v10417, %v10705
  %v10707 = vpop.f32.mrb[0].mxu0
  %10708 = vmatprep.mubr.bf16.mxu0 %v9278
  %10709 = vmatmul.mubr.bf16.gmra.mrb[0].mxu0 %v9277
  %v10710 = vpop.f32.mrb[0].mxu0
  %v10711 = vadd.f32 %v10422, %v10710
  %v10712 = vpop.f32.mrb[0].mxu0
  %v10713 = vpop.f32.mrb[0].mxu0
  %v10714 = vadd.f32 %v10425, %v10713
  %v10715 = vpop.f32.mrb[0].mxu0
  %10716 = vmatprep.mubr.bf16.mxu0 %v9284
  %10717 = vmatmul.mubr.bf16.gmra.mrb[0].mxu0 %v9283
  %v10718 = vpop.f32.mrb[0].mxu0
  %v10719 = vadd.f32 %v10430, %v10718
  %v10720 = vpop.f32.mrb[0].mxu0
  %v10721 = vpop.f32.mrb[0].mxu0
  %v10722 = vadd.f32 %v10433, %v10721
  %v10723 = vpop.f32.mrb[0].mxu0
  %10724 = vdwg.mxu0
  %10725 = vmatprep.subr.bf16.mxu0 0
  %10726 = vmatpush1.bf16.msra.mxu0 %v9710
  %10727 = vmatprep.subr.bf16.mxu0 0
  %10728 = vmatpush1.bf16.msra.mxu0 %v9711
  %10729 = vmatprep.subr.bf16.mxu0 0
  %10730 = vmatpush1.bf16.msra.mxu0 0
  %10731 = vmatprep.subr.bf16.mxu0 0
  %10732 = vmatpush1.bf16.msra.mxu0 0
  %10733 = vmatprep.subr.bf16.mxu0 0
  %10734 = vmatpush1.bf16.msra.mxu0 0
  %10735 = vmatprep.subr.bf16.mxu0 0
  %10736 = vmatpush1.bf16.msra.mxu0 0
  %10737 = vmatprep.subr.bf16.mxu0 0
  %10738 = vmatpush1.bf16.msra.mxu0 0
  %10739 = vmatprep.subr.bf16.mxu0 0
  %10740 = vmatpush1.bf16.msra.mxu0 0
  %10741 = vmatprep.subr.bf16.mxu0 0
  %10742 = vmatpush1.bf16.msra.mxu0 0
  %10743 = vmatprep.subr.bf16.mxu0 0
  %10744 = vmatpush1.bf16.msra.mxu0 0
  %10745 = vmatprep.subr.bf16.mxu0 0
  %10746 = vmatpush1.bf16.msra.mxu0 0
  %10747 = vmatprep.subr.bf16.mxu0 0
  %10748 = vmatpush1.bf16.msra.mxu0 0
  %10749 = vmatprep.subr.bf16.mxu0 0
  %10750 = vmatpush1.bf16.msra.mxu0 0
  %10751 = vmatprep.subr.bf16.mxu0 0
  %10752 = vmatpush1.bf16.msra.mxu0 0
  %10753 = vmatprep.subr.bf16.mxu0 0
  %10754 = vmatpush1.bf16.msra.mxu0 0
  %10755 = vmatprep.subr.bf16.mxu0 0
  %10756 = vmatpush1.bf16.msra.mxu0 0
  %10757 = vmatprep.mubr.bf16.mxu0 0
  %10758 = vmatmul.mubr.bf16.gmra.mrb[0].mxu0 %v9763
  %v10759 = vpop.f32.mrb[0].mxu0
  %v10760 = vadd.f32 %v10471, %v10759
  %v10761 = vpop.f32.mrb[0].mxu0
  %v10762 = vpop.f32.mrb[0].mxu0
  %v10763 = vadd.f32 %v10474, %v10762
  %v10764 = vpop.f32.mrb[0].mxu0
  %10765 = vmatprep.mubr.bf16.mxu0 0
  %10766 = vmatmul.mubr.bf16.gmra.mrb[0].mxu0 %v9766
  %v10767 = vpop.f32.mrb[0].mxu0
  %v10768 = vadd.f32 %v10479, %v10767
  %v10769 = vpop.f32.mrb[0].mxu0
  %v10770 = vpop.f32.mrb[0].mxu0
  %v10771 = vadd.f32 %v10482, %v10770
  %v10772 = vpop.f32.mrb[0].mxu0
  %10773 = vmatprep.mubr.bf16.mxu0 0
  %10774 = vmatmul.mubr.bf16.gmra.mrb[0].mxu0 %v9769
  %v10775 = vpop.f32.mrb[0].mxu0
  %v10776 = vadd.f32 %v10487, %v10775
  %v10777 = vpop.f32.mrb[0].mxu0
  %v10778 = vpop.f32.mrb[0].mxu0
  %v10779 = vadd.f32 %v10490, %v10778
  %v10780 = vpop.f32.mrb[0].mxu0
  %10781 = vmatprep.mubr.bf16.mxu0 0
  %10782 = vmatmul.mubr.bf16.gmra.mrb[0].mxu0 %v9772
  %v10783 = vpop.f32.mrb[0].mxu0
  %v10784 = vadd.f32 %v10495, %v10783
  %v10785 = vpop.f32.mrb[0].mxu0
  %v10786 = vpop.f32.mrb[0].mxu0
  %v10787 = vadd.f32 %v10498, %v10786
  %v10788 = vpop.f32.mrb[0].mxu0
  %10789 = vmatprep.mubr.bf16.mxu0 0
  %10790 = vmatmul.mubr.bf16.gmra.mrb[0].mxu0 %v9775
  %v10791 = vpop.f32.mrb[0].mxu0
  %v10792 = vadd.f32 %v10503, %v10791
  %v10793 = vpop.f32.mrb[0].mxu0
  %v10794 = vpop.f32.mrb[0].mxu0
  %v10795 = vadd.f32 %v10506, %v10794
  %v10796 = vpop.f32.mrb[0].mxu0
  %10797 = vmatprep.mubr.bf16.mxu0 0
  %10798 = vmatmul.mubr.bf16.gmra.mrb[0].mxu0 %v9778
  %v10799 = vpop.f32.mrb[0].mxu0
  %v10800 = vadd.f32 %v10511, %v10799
  %v10801 = vpop.f32.mrb[0].mxu0
  %v10802 = vpop.f32.mrb[0].mxu0
  %v10803 = vadd.f32 %v10514, %v10802
  %v10804 = vpop.f32.mrb[0].mxu0
  %10805 = vmatprep.mubr.bf16.mxu0 0
  %10806 = vmatmul.mubr.bf16.gmra.mrb[0].mxu0 %v9781
  %v10807 = vpop.f32.mrb[0].mxu0
  %v10808 = vadd.f32 %v10519, %v10807
  %v10809 = vpop.f32.mrb[0].mxu0
  %v10810 = vpop.f32.mrb[0].mxu0
  %v10811 = vadd.f32 %v10522, %v10810
  %v10812 = vpop.f32.mrb[0].mxu0
  %10813 = vmatprep.mubr.bf16.mxu0 0
  %10814 = vmatmul.mubr.bf16.gmra.mrb[0].mxu0 %v9784
  %v10815 = vpop.f32.mrb[0].mxu0
  %v10816 = vadd.f32 %v10527, %v10815
  %v10817 = vpop.f32.mrb[0].mxu0
  %v10818 = vpop.f32.mrb[0].mxu0
  %v10819 = vadd.f32 %v10530, %v10818
  %v10820 = vpop.f32.mrb[0].mxu0
  %10821 = vmatprep.mubr.bf16.mxu0 0
  %10822 = vmatmul.mubr.bf16.gmra.mrb[0].mxu0 %v9787
  %v10823 = vpop.f32.mrb[0].mxu0
  %v10824 = vadd.f32 %v10535, %v10823
  %v10825 = vpop.f32.mrb[0].mxu0
  %v10826 = vpop.f32.mrb[0].mxu0
  %v10827 = vadd.f32 %v10538, %v10826
  %v10828 = vpop.f32.mrb[0].mxu0
  %10829 = vmatprep.mubr.bf16.mxu0 0
  %10830 = vmatmul.mubr.bf16.gmra.mrb[0].mxu0 %v9790
  %v10831 = vpop.f32.mrb[0].mxu0
  %v10832 = vadd.f32 %v10543, %v10831
  %v10833 = vpop.f32.mrb[0].mxu0
  %v10834 = vpop.f32.mrb[0].mxu0
  %v10835 = vadd.f32 %v10546, %v10834
  %v10836 = vpop.f32.mrb[0].mxu0
  %10837 = vmatprep.mubr.bf16.mxu0 0
  %10838 = vmatmul.mubr.bf16.gmra.mrb[0].mxu0 %v9793
  %v10839 = vpop.f32.mrb[0].mxu0
  %v10840 = vadd.f32 %v10551, %v10839
  %v10841 = vpop.f32.mrb[0].mxu0
  %v10842 = vpop.f32.mrb[0].mxu0
  %v10843 = vadd.f32 %v10554, %v10842
  %v10844 = vpop.f32.mrb[0].mxu0
  %10845 = vmatprep.mubr.bf16.mxu0 0
  %10846 = vmatmul.mubr.bf16.gmra.mrb[0].mxu0 %v9796
  %v10847 = vpop.f32.mrb[0].mxu0
  %v10848 = vadd.f32 %v10559, %v10847
  %v10849 = vpop.f32.mrb[0].mxu0
  %v10850 = vpop.f32.mrb[0].mxu0
  %v10851 = vadd.f32 %v10562, %v10850
  %v10852 = vpop.f32.mrb[0].mxu0
  %10853 = vmatprep.mubr.bf16.mxu0 0
  %10854 = vmatmul.mubr.bf16.gmra.mrb[0].mxu0 %v9799
  %v10855 = vpop.f32.mrb[0].mxu0
  %v10856 = vadd.f32 %v10567, %v10855
  %v10857 = vpop.f32.mrb[0].mxu0
  %v10858 = vpop.f32.mrb[0].mxu0
  %v10859 = vadd.f32 %v10570, %v10858
  %v10860 = vpop.f32.mrb[0].mxu0
  %10861 = vmatprep.mubr.bf16.mxu0 0
  %10862 = vmatmul.mubr.bf16.gmra.mrb[0].mxu0 %v9802
  %v10863 = vpop.f32.mrb[0].mxu0
  %v10864 = vadd.f32 %v10575, %v10863
  %v10865 = vpop.f32.mrb[0].mxu0
  %v10866 = vpop.f32.mrb[0].mxu0
  %v10867 = vadd.f32 %v10578, %v10866
  %v10868 = vpop.f32.mrb[0].mxu0
  %10869 = vmatprep.mubr.bf16.mxu0 0
  %10870 = vmatmul.mubr.bf16.gmra.mrb[0].mxu0 %v9805
  %v10871 = vpop.f32.mrb[0].mxu0
  %v10872 = vadd.f32 %v10583, %v10871
  %v10873 = vpop.f32.mrb[0].mxu0
  %v10874 = vpop.f32.mrb[0].mxu0
  %v10875 = vadd.f32 %v10586, %v10874
  %v10876 = vpop.f32.mrb[0].mxu0
  %10877 = vmatprep.mubr.bf16.mxu0 0
  %10878 = vmatmul.mubr.bf16.gmra.mrb[0].mxu0 %v9808
  %v10879 = vpop.f32.mrb[0].mxu0
  %v10880 = vadd.f32 %v10591, %v10879
  %v10881 = vpop.f32.mrb[0].mxu0
  %v10882 = vpop.f32.mrb[0].mxu0
  %v10883 = vadd.f32 %v10594, %v10882
  %v10884 = vpop.f32.mrb[0].mxu0
  %10885 = vmatprep.mubr.bf16.mxu0 0
  %10886 = vmatmul.mubr.bf16.gmra.mrb[0].mxu0 %v9811
  %v10887 = vpop.f32.mrb[0].mxu0
  %v10888 = vadd.f32 %v10599, %v10887
  %v10889 = vpop.f32.mrb[0].mxu0
  %v10890 = vpop.f32.mrb[0].mxu0
  %v10891 = vadd.f32 %v10602, %v10890
  %v10892 = vpop.f32.mrb[0].mxu0
  %10893 = vmatprep.mubr.bf16.mxu0 0
  %10894 = vmatmul.mubr.bf16.gmra.mrb[0].mxu0 %v9814
  %v10895 = vpop.f32.mrb[0].mxu0
  %v10896 = vadd.f32 %v10607, %v10895
  %v10897 = vpop.f32.mrb[0].mxu0
  %v10898 = vpop.f32.mrb[0].mxu0
  %v10899 = vadd.f32 %v10610, %v10898
  %v10900 = vpop.f32.mrb[0].mxu0
  %10901 = vmatprep.mubr.bf16.mxu0 0
  %10902 = vmatmul.mubr.bf16.gmra.mrb[0].mxu0 %v9817
  %v10903 = vpop.f32.mrb[0].mxu0
  %v10904 = vadd.f32 %v10615, %v10903
  %v10905 = vpop.f32.mrb[0].mxu0
  %v10906 = vpop.f32.mrb[0].mxu0
  %v10907 = vadd.f32 %v10618, %v10906
  %v10908 = vpop.f32.mrb[0].mxu0
  %10909 = vmatprep.mubr.bf16.mxu0 0
  %10910 = vmatmul.mubr.bf16.gmra.mrb[0].mxu0 %v9820
  %v10911 = vpop.f32.mrb[0].mxu0
  %v10912 = vadd.f32 %v10623, %v10911
  %v10913 = vpop.f32.mrb[0].mxu0
  %v10914 = vpop.f32.mrb[0].mxu0
  %v10915 = vadd.f32 %v10626, %v10914
  %v10916 = vpop.f32.mrb[0].mxu0
  %10917 = vmatprep.mubr.bf16.mxu0 0
  %10918 = vmatmul.mubr.bf16.gmra.mrb[0].mxu0 %v9823
  %v10919 = vpop.f32.mrb[0].mxu0
  %v10920 = vadd.f32 %v10631, %v10919
  %v10921 = vpop.f32.mrb[0].mxu0
  %v10922 = vpop.f32.mrb[0].mxu0
  %v10923 = vadd.f32 %v10634, %v10922
  %v10924 = vpop.f32.mrb[0].mxu0
  %10925 = vmatprep.mubr.bf16.mxu0 0
  %10926 = vmatmul.mubr.bf16.gmra.mrb[0].mxu0 %v9826
  %v10927 = vpop.f32.mrb[0].mxu0
  %v10928 = vadd.f32 %v10639, %v10927
  %v10929 = vpop.f32.mrb[0].mxu0
  %v10930 = vpop.f32.mrb[0].mxu0
  %v10931 = vadd.f32 %v10642, %v10930
  %v10932 = vpop.f32.mrb[0].mxu0
  %10933 = vmatprep.mubr.bf16.mxu0 0
  %10934 = vmatmul.mubr.bf16.gmra.mrb[0].mxu0 %v9829
  %v10935 = vpop.f32.mrb[0].mxu0
  %v10936 = vadd.f32 %v10647, %v10935
  %v10937 = vpop.f32.mrb[0].mxu0
  %v10938 = vpop.f32.mrb[0].mxu0
  %v10939 = vadd.f32 %v10650, %v10938
  %v10940 = vpop.f32.mrb[0].mxu0
  %10941 = vmatprep.mubr.bf16.mxu0 0
  %10942 = vmatmul.mubr.bf16.gmra.mrb[0].mxu0 %v9832
  %v10943 = vpop.f32.mrb[0].mxu0
  %v10944 = vadd.f32 %v10655, %v10943
  %v10945 = vpop.f32.mrb[0].mxu0
  %v10946 = vpop.f32.mrb[0].mxu0
  %v10947 = vadd.f32 %v10658, %v10946
  %v10948 = vpop.f32.mrb[0].mxu0
  %10949 = vmatprep.mubr.bf16.mxu0 0
  %10950 = vmatmul.mubr.bf16.gmra.mrb[0].mxu0 %v9835
  %v10951 = vpop.f32.mrb[0].mxu0
  %v10952 = vadd.f32 %v10663, %v10951
  %v10953 = vpop.f32.mrb[0].mxu0
  %v10954 = vpop.f32.mrb[0].mxu0
  %v10955 = vadd.f32 %v10666, %v10954
  %v10956 = vpop.f32.mrb[0].mxu0
  %10957 = vmatprep.mubr.bf16.mxu0 0
  %10958 = vmatmul.mubr.bf16.gmra.mrb[0].mxu0 %v9838
  %v10959 = vpop.f32.mrb[0].mxu0
  %v10960 = vadd.f32 %v10671, %v10959
  %v10961 = vpop.f32.mrb[0].mxu0
  %v10962 = vpop.f32.mrb[0].mxu0
  %v10963 = vadd.f32 %v10674, %v10962
  %v10964 = vpop.f32.mrb[0].mxu0
  %10965 = vmatprep.mubr.bf16.mxu0 0
  %10966 = vmatmul.mubr.bf16.gmra.mrb[0].mxu0 %v9841
  %v10967 = vpop.f32.mrb[0].mxu0
  %v10968 = vadd.f32 %v10679, %v10967
  %v10969 = vpop.f32.mrb[0].mxu0
  %v10970 = vpop.f32.mrb[0].mxu0
  %v10971 = vadd.f32 %v10682, %v10970
  %v10972 = vpop.f32.mrb[0].mxu0
  %10973 = vmatprep.mubr.bf16.mxu0 0
  %10974 = vmatmul.mubr.bf16.gmra.mrb[0].mxu0 %v9844
  %v10975 = vpop.f32.mrb[0].mxu0
  %v10976 = vadd.f32 %v10687, %v10975
  %v10977 = vpop.f32.mrb[0].mxu0
  %v10978 = vpop.f32.mrb[0].mxu0
  %v10979 = vadd.f32 %v10690, %v10978
  %v10980 = vpop.f32.mrb[0].mxu0
  %10981 = vmatprep.mubr.bf16.mxu0 0
  %10982 = vmatmul.mubr.bf16.gmra.mrb[0].mxu0 %v9847
  %v10983 = vpop.f32.mrb[0].mxu0
  %v10984 = vadd.f32 %v10695, %v10983
  %v10985 = vpop.f32.mrb[0].mxu0
  %v10986 = vpop.f32.mrb[0].mxu0
  %v10987 = vadd.f32 %v10698, %v10986
  %v10988 = vpop.f32.mrb[0].mxu0
  %10989 = vmatprep.mubr.bf16.mxu0 0
  %10990 = vmatmul.mubr.bf16.gmra.mrb[0].mxu0 %v9850
  %v10991 = vpop.f32.mrb[0].mxu0
  %v10992 = vadd.f32 %v10703, %v10991
  %v10993 = vpop.f32.mrb[0].mxu0
  %v10994 = vpop.f32.mrb[0].mxu0
  %v10995 = vadd.f32 %v10706, %v10994
  %v10996 = vpop.f32.mrb[0].mxu0
  %10997 = vmatprep.mubr.bf16.mxu0 0
  %10998 = vmatmul.mubr.bf16.gmra.mrb[0].mxu0 %v9853
  %v10999 = vpop.f32.mrb[0].mxu0
  %v11000 = vadd.f32 %v10711, %v10999
  %v11001 = vpop.f32.mrb[0].mxu0
  %v11002 = vpop.f32.mrb[0].mxu0
  %v11003 = vadd.f32 %v10714, %v11002
  %v11004 = vpop.f32.mrb[0].mxu0
  %11005 = vmatprep.mubr.bf16.mxu0 0
  %11006 = vmatmul.mubr.bf16.gmra.mrb[0].mxu0 %v9856
  %v11007 = vpop.f32.mrb[0].mxu0
  %v11008 = vadd.f32 %v10719, %v11007
  %v11009 = vpop.f32.mrb[0].mxu0
  %v11010 = vpop.f32.mrb[0].mxu0
  %v11011 = vadd.f32 %v10722, %v11010
  %v11012 = vpop.f32.mrb[0].mxu0
  %11013 = vdwg.mxu0
  %v11014 = vmax.f32 %v10760, %v10792
  %v11015 = vmax.f32 %v10763, %v10795
  %v11016 = vmax.f32 %v10768, %v10800
  %v11017 = vmax.f32 %v10771, %v10803
  %v11018 = vmax.f32 %v10776, %v10808
  %v11019 = vmax.f32 %v10779, %v10811
  %v11020 = vmax.f32 %v10784, %v10816
  %v11021 = vmax.f32 %v10787, %v10819
  %v11022 = vmax.f32 %v10824, %v10856
  %v11023 = vmax.f32 %v10827, %v10859
  %v11024 = vmax.f32 %v10832, %v10864
  %v11025 = vmax.f32 %v10835, %v10867
  %v11026 = vmax.f32 %v10840, %v10872
  %v11027 = vmax.f32 %v10843, %v10875
  %v11028 = vmax.f32 %v10848, %v10880
  %v11029 = vmax.f32 %v10851, %v10883
  %v11030 = vmax.f32 %v10888, %v10920
  %v11031 = vmax.f32 %v10891, %v10923
  %v11032 = vmax.f32 %v10896, %v10928
  %v11033 = vmax.f32 %v10899, %v10931
  %v11034 = vmax.f32 %v10904, %v10936
  %v11035 = vmax.f32 %v10907, %v10939
  %v11036 = vmax.f32 %v10912, %v10944
  %v11037 = vmax.f32 %v10915, %v10947
  %v11038 = vmax.f32 %v10952, %v10984
  %v11039 = vmax.f32 %v10955, %v10987
  %v11040 = vmax.f32 %v10960, %v10992
  %v11041 = vmax.f32 %v10963, %v10995
  %v11042 = vmax.f32 %v10968, %v11000
  %v11043 = vmax.f32 %v10971, %v11003
  %v11044 = vmax.f32 %v10976, %v11008
  %v11045 = vmax.f32 %v10979, %v11011
  %v11046 = vmax.f32 %v11014, %v11015
  %v11047 = vmax.f32 %v11016, %v11017
  %v11048 = vmax.f32 %v11018, %v11019
  %v11049 = vmax.f32 %v11020, %v11021
  %v11050 = vmax.f32 %v11022, %v11023
  %v11051 = vmax.f32 %v11024, %v11025
  %v11052 = vmax.f32 %v11026, %v11027
  %v11053 = vmax.f32 %v11028, %v11029
  %v11054 = vmax.f32 %v11030, %v11031
  %v11055 = vmax.f32 %v11032, %v11033
  %v11056 = vmax.f32 %v11034, %v11035
  %v11057 = vmax.f32 %v11036, %v11037
  %v11058 = vmax.f32 %v11038, %v11039
  %v11059 = vmax.f32 %v11040, %v11041
  %v11060 = vmax.f32 %v11042, %v11043
  %v11061 = vmax.f32 %v11044, %v11045
  %v11062 = vld [vmem:[%s4] sm:$0x1]
  %v11064 = vlaneseq
  %v11065 = vshrl.u32 %v11064, 7
  %v11066 = vsub.s32 0, %v11065
  %v11067 = vrot.slane %v11062, %v11066
  %v11069 = vadd.f32 %v11046, %v11067
  %v11070 = vadd.f32 %v11047, %v11067
  %v11071 = vadd.f32 %v11048, %v11067
  %v11072 = vadd.f32 %v11049, %v11067
  %v11073 = vadd.f32 %v11050, %v11067
  %v11074 = vadd.f32 %v11051, %v11067
  %v11075 = vadd.f32 %v11052, %v11067
  %v11076 = vadd.f32 %v11053, %v11067
  %v11077 = vadd.f32 %v11054, %v11067
  %v11078 = vadd.f32 %v11055, %v11067
  %v11079 = vadd.f32 %v11056, %v11067
  %v11080 = vadd.f32 %v11057, %v11067
  %v11081 = vadd.f32 %v11058, %v11067
  %v11082 = vadd.f32 %v11059, %v11067
  %v11083 = vadd.f32 %v11060, %v11067
  %v11084 = vadd.f32 %v11061, %v11067
  %v11085 = vmax.f32 %v11069, 0.0
  %v11086 = vmax.f32 %v11070, 0.0
  %v11087 = vmax.f32 %v11071, 0.0
  %v11088 = vmax.f32 %v11072, 0.0
  %v11089 = vmax.f32 %v11073, 0.0
  %v11090 = vmax.f32 %v11074, 0.0
  %v11091 = vmax.f32 %v11075, 0.0
  %v11092 = vmax.f32 %v11076, 0.0
  %v11093 = vmax.f32 %v11077, 0.0
  %v11094 = vmax.f32 %v11078, 0.0
  %v11095 = vmax.f32 %v11079, 0.0
  %v11096 = vmax.f32 %v11080, 0.0
  %v11097 = vmax.f32 %v11081, 0.0
  %v11098 = vmax.f32 %v11082, 0.0
  %v11099 = vmax.f32 %v11083, 0.0
  %v11100 = vmax.f32 %v11084, 0.0
  %v11101 = vpack.c.bf16 %v11085, %v11085
  %v11102 = vpack.c.bf16 %v11086, %v11086
  %v11103 = vpack.c.bf16 %v11087, %v11087
  %v11104 = vpack.c.bf16 %v11088, %v11088
  %v11105 = vpack.c.bf16 %v11089, %v11089
  %v11106 = vpack.c.bf16 %v11090, %v11090
  %v11107 = vpack.c.bf16 %v11091, %v11091
  %v11108 = vpack.c.bf16 %v11092, %v11092
  %v11109 = vpack.c.bf16 %v11093, %v11093
  %v11110 = vpack.c.bf16 %v11094, %v11094
  %v11111 = vpack.c.bf16 %v11095, %v11095
  %v11112 = vpack.c.bf16 %v11096, %v11096
  %v11113 = vpack.c.bf16 %v11097, %v11097
  %v11114 = vpack.c.bf16 %v11098, %v11098
  %v11115 = vpack.c.bf16 %v11099, %v11099
  %v11116 = vpack.c.bf16 %v11100, %v11100
  %v11117 = vld [vmem:[%s5] sm:$0xff]
  %v11118 = vld [vmem:[%s5 + $0x8] sm:$0xff]
  %v11119 = vld [vmem:[%s5 + $0x10] sm:$0xff]
  %v11120 = vld [vmem:[%s5 + $0x18] sm:$0xff]
  %v11121 = vld [vmem:[%s5 + $0x20] sm:$0xff]
  %v11122 = vld [vmem:[%s5 + $0x28] sm:$0xff]
  %v11123 = vld [vmem:[%s5 + $0x30] sm:$0xff]
  %v11124 = vld [vmem:[%s5 + $0x38] sm:$0xff]
  %v11125 = vld [vmem:[%s5 + $0x40] sm:$0xff]
  %v11126 = vld [vmem:[%s5 + $0x48] sm:$0xff]
  %v11127 = vld [vmem:[%s5 + $0x50] sm:$0xff]
  %v11128 = vld [vmem:[%s5 + $0x58] sm:$0xff]
  %v11129 = vld [vmem:[%s5 + $0x60] sm:$0xff]
  %v11130 = vld [vmem:[%s5 + $0x68] sm:$0xff]
  %v11131 = vld [vmem:[%s5 + $0x70] sm:$0xff]
  %v11132 = vld [vmem:[%s5 + $0x78] sm:$0xff]
  %s11133 = scalar_lea.vmem %s5, 128
  %v11134 = vld [vmem:[%s11133] sm:$0xff]
  %v11135 = vld [vmem:[%s11133 + $0x8] sm:$0xff]
  %v11136 = vld [vmem:[%s11133 + $0x10] sm:$0xff]
  %v11137 = vld [vmem:[%s11133 + $0x18] sm:$0xff]
  %v11138 = vld [vmem:[%s11133 + $0x20] sm:$0xff]
  %v11139 = vld [vmem:[%s11133 + $0x28] sm:$0xff]
  %v11140 = vld [vmem:[%s11133 + $0x30] sm:$0xff]
  %v11141 = vld [vmem:[%s11133 + $0x38] sm:$0xff]
  %v11142 = vld [vmem:[%s11133 + $0x40] sm:$0xff]
  %v11143 = vld [vmem:[%s11133 + $0x48] sm:$0xff]
  %v11144 = vld [vmem:[%s11133 + $0x50] sm:$0xff]
  %v11145 = vld [vmem:[%s11133 + $0x58] sm:$0xff]
  %v11146 = vld [vmem:[%s11133 + $0x60] sm:$0xff]
  %v11147 = vld [vmem:[%s11133 + $0x68] sm:$0xff]
  %v11148 = vld [vmem:[%s11133 + $0x70] sm:$0xff]
  %v11149 = vld [vmem:[%s11133 + $0x78] sm:$0xff]
  %v11166 = vunpack.c.l.b16 %v11134
  %v11167 = vunpack.c.h.b16 %v11134
  %v11168 = vunpack.c.l.b16 %v11135
  %v11169 = vunpack.c.h.b16 %v11135
  %v11170 = vunpack.c.l.b16 %v11136
  %v11171 = vunpack.c.h.b16 %v11136
  %v11172 = vunpack.c.l.b16 %v11137
  %v11173 = vunpack.c.h.b16 %v11137
  %v11174 = vunpack.c.l.b16 %v11138
  %v11175 = vunpack.c.h.b16 %v11138
  %v11176 = vunpack.c.l.b16 %v11139
  %v11177 = vunpack.c.h.b16 %v11139
  %v11178 = vunpack.c.l.b16 %v11140
  %v11179 = vunpack.c.h.b16 %v11140
  %v11180 = vunpack.c.l.b16 %v11141
  %v11181 = vunpack.c.h.b16 %v11141
  %v11182 = vunpack.c.l.b16 %v11142
  %v11183 = vunpack.c.h.b16 %v11142
  %v11184 = vunpack.c.l.b16 %v11143
  %v11185 = vunpack.c.h.b16 %v11143
  %v11186 = vunpack.c.l.b16 %v11144
  %v11187 = vunpack.c.h.b16 %v11144
  %v11188 = vunpack.c.l.b16 %v11145
  %v11189 = vunpack.c.h.b16 %v11145
  %v11190 = vunpack.c.l.b16 %v11146
  %v11191 = vunpack.c.h.b16 %v11146
  %v11192 = vunpack.c.l.b16 %v11147
  %v11193 = vunpack.c.h.b16 %v11147
  %v11194 = vunpack.c.l.b16 %v11148
  %v11195 = vunpack.c.h.b16 %v11148
  %v11196 = vunpack.c.l.b16 %v11149
  %v11197 = vunpack.c.h.b16 %v11149
  %v11198 = vpack.c.b16 %v11170, %v11166
  %v11199 = vpack.c.b16 %v11171, %v11167
  %v11200 = vpack.c.b16 %v11172, %v11168
  %v11201 = vpack.c.b16 %v11173, %v11169
  %v11202 = vpack.c.b16 %v11178, %v11174
  %v11203 = vpack.c.b16 %v11179, %v11175
  %v11204 = vpack.c.b16 %v11180, %v11176
  %v11205 = vpack.c.b16 %v11181, %v11177
  %v11206 = vpack.c.b16 %v11186, %v11182
  %v11207 = vpack.c.b16 %v11187, %v11183
  %v11208 = vpack.c.b16 %v11188, %v11184
  %v11209 = vpack.c.b16 %v11189, %v11185
  %v11210 = vpack.c.b16 %v11194, %v11190
  %v11211 = vpack.c.b16 %v11195, %v11191
  %v11212 = vpack.c.b16 %v11196, %v11192
  %v11213 = vpack.c.b16 %v11197, %v11193
  %v11231 = vsel %vm7131, %v11102, 0
  %11233 = vmatprep.subr.bf16.mxu0 %v11199
  %11234 = vmatpush1.bf16.msra.mxu0 %v11198
  %11235 = vmatprep.subr.bf16.mxu0 %v11203
  %11236 = vmatpush1.bf16.msra.mxu0 %v11202
  %11237 = vmatprep.subr.bf16.mxu0 %v11207
  %11238 = vmatpush1.bf16.msra.mxu0 %v11206
  %11239 = vmatprep.subr.bf16.mxu0 %v11211
  %11240 = vmatpush1.bf16.msra.mxu0 %v11210
  %11241 = vmatprep.subr.bf16.mxu0 0
  %11242 = vmatpush1.bf16.msra.mxu0 0
  %11243 = vmatprep.subr.bf16.mxu0 0
  %11244 = vmatpush1.bf16.msra.mxu0 0
  %11245 = vmatprep.subr.bf16.mxu0 0
  %11246 = vmatpush1.bf16.msra.mxu0 0
  %11247 = vmatprep.subr.bf16.mxu0 0
  %11248 = vmatpush1.bf16.msra.mxu0 0
  %11249 = vmatprep.subr.bf16.mxu0 0
  %11250 = vmatpush1.bf16.msra.mxu0 0
  %11251 = vmatprep.subr.bf16.mxu0 0
  %11252 = vmatpush1.bf16.msra.mxu0 0
  %11253 = vmatprep.subr.bf16.mxu0 0
  %11254 = vmatpush1.bf16.msra.mxu0 0
  %11255 = vmatprep.subr.bf16.mxu0 0
  %11256 = vmatpush1.bf16.msra.mxu0 0
  %11257 = vmatprep.subr.bf16.mxu0 0
  %11258 = vmatpush1.bf16.msra.mxu0 0
  %11259 = vmatprep.subr.bf16.mxu0 0
  %11260 = vmatpush1.bf16.msra.mxu0 0
  %11261 = vmatprep.subr.bf16.mxu0 0
  %11262 = vmatpush1.bf16.msra.mxu0 0
  %11263 = vmatprep.subr.bf16.mxu0 0
  %11264 = vmatpush1.bf16.msra.mxu0 0
  %11265 = vmatprep.mubr.bf16.mxu0 0
  %11266 = vmatmul.mubr.bf16.gmra.mrb[0].mxu0 %v11231
  %v11267 = vpop.f32.mrb[0].mxu0
  %v11268 = vadd.f32 0.0, %v11267
  %v11269 = vpop.f32.mrb[0].mxu0
  %v11270 = vadd.f32 0.0, %v11269
  %v11271 = vpop.f32.mrb[0].mxu0
  %v11272 = vpop.f32.mrb[0].mxu0
  %11273 = vdwg.mxu0
  %11274 = vmatprep.subr.bf16.mxu0 %v11201
  %11275 = vmatpush1.bf16.msra.mxu0 %v11200
  %11276 = vmatprep.subr.bf16.mxu0 %v11205
  %11277 = vmatpush1.bf16.msra.mxu0 %v11204
  %11278 = vmatprep.subr.bf16.mxu0 %v11209
  %11279 = vmatpush1.bf16.msra.mxu0 %v11208
  %11280 = vmatprep.subr.bf16.mxu0 %v11213
  %11281 = vmatpush1.bf16.msra.mxu0 %v11212
  %11282 = vmatprep.subr.bf16.mxu0 0
  %11283 = vmatpush1.bf16.msra.mxu0 0
  %11284 = vmatprep.subr.bf16.mxu0 0
  %11285 = vmatpush1.bf16.msra.mxu0 0
  %11286 = vmatprep.subr.bf16.mxu0 0
  %11287 = vmatpush1.bf16.msra.mxu0 0
  %11288 = vmatprep.subr.bf16.mxu0 0
  %11289 = vmatpush1.bf16.msra.mxu0 0
  %11290 = vmatprep.subr.bf16.mxu0 0
  %11291 = vmatpush1.bf16.msra.mxu0 0
  %11292 = vmatprep.subr.bf16.mxu0 0
  %11293 = vmatpush1.bf16.msra.mxu0 0
  %11294 = vmatprep.subr.bf16.mxu0 0
  %11295 = vmatpush1.bf16.msra.mxu0 0
  %11296 = vmatprep.subr.bf16.mxu0 0
  %11297 = vmatpush1.bf16.msra.mxu0 0
  %11298 = vmatprep.subr.bf16.mxu0 0
  %11299 = vmatpush1.bf16.msra.mxu0 0
  %11300 = vmatprep.subr.bf16.mxu0 0
  %11301 = vmatpush1.bf16.msra.mxu0 0
  %11302 = vmatprep.subr.bf16.mxu0 0
  %11303 = vmatpush1.bf16.msra.mxu0 0
  %11304 = vmatprep.subr.bf16.mxu0 0
  %11305 = vmatpush1.bf16.msra.mxu0 0
  %11306 = vmatprep.mubr.bf16.mxu0 0
  %11307 = vmatmul.mubr.bf16.gmra.mrb[0].mxu0 %v11231
  %v11308 = vpop.f32.mrb[0].mxu0
  %v11309 = vadd.f32 0.0, %v11308
  %v11310 = vpop.f32.mrb[0].mxu0
  %v11311 = vadd.f32 0.0, %v11310
  %v11312 = vpop.f32.mrb[0].mxu0
  %v11313 = vpop.f32.mrb[0].mxu0
  %11314 = vdwg.mxu0
  %v11331 = vunpack.c.l.b16 %v11117
  %v11332 = vunpack.c.h.b16 %v11117
  %v11333 = vunpack.c.l.b16 %v11118
  %v11334 = vunpack.c.h.b16 %v11118
  %v11335 = vunpack.c.l.b16 %v11119
  %v11336 = vunpack.c.h.b16 %v11119
  %v11337 = vunpack.c.l.b16 %v11120
  %v11338 = vunpack.c.h.b16 %v11120
  %v11339 = vunpack.c.l.b16 %v11121
  %v11340 = vunpack.c.h.b16 %v11121
  %v11341 = vunpack.c.l.b16 %v11122
  %v11342 = vunpack.c.h.b16 %v11122
  %v11343 = vunpack.c.l.b16 %v11123
  %v11344 = vunpack.c.h.b16 %v11123
  %v11345 = vunpack.c.l.b16 %v11124
  %v11346 = vunpack.c.h.b16 %v11124
  %v11347 = vunpack.c.l.b16 %v11125
  %v11348 = vunpack.c.h.b16 %v11125
  %v11349 = vunpack.c.l.b16 %v11126
  %v11350 = vunpack.c.h.b16 %v11126
  %v11351 = vunpack.c.l.b16 %v11127
  %v11352 = vunpack.c.h.b16 %v11127
  %v11353 = vunpack.c.l.b16 %v11128
  %v11354 = vunpack.c.h.b16 %v11128
  %v11355 = vunpack.c.l.b16 %v11129
  %v11356 = vunpack.c.h.b16 %v11129
  %v11357 = vunpack.c.l.b16 %v11130
  %v11358 = vunpack.c.h.b16 %v11130
  %v11359 = vunpack.c.l.b16 %v11131
  %v11360 = vunpack.c.h.b16 %v11131
  %v11361 = vunpack.c.l.b16 %v11132
  %v11362 = vunpack.c.h.b16 %v11132
  %v11363 = vpack.c.b16 %v11335, %v11331
  %v11364 = vpack.c.b16 %v11336, %v11332
  %v11365 = vpack.c.b16 %v11337, %v11333
  %v11366 = vpack.c.b16 %v11338, %v11334
  %v11367 = vpack.c.b16 %v11343, %v11339
  %v11368 = vpack.c.b16 %v11344, %v11340
  %v11369 = vpack.c.b16 %v11345, %v11341
  %v11370 = vpack.c.b16 %v11346, %v11342
  %v11371 = vpack.c.b16 %v11351, %v11347
  %v11372 = vpack.c.b16 %v11352, %v11348
  %v11373 = vpack.c.b16 %v11353, %v11349
  %v11374 = vpack.c.b16 %v11354, %v11350
  %v11375 = vpack.c.b16 %v11359, %v11355
  %v11376 = vpack.c.b16 %v11360, %v11356
  %v11377 = vpack.c.b16 %v11361, %v11357
  %v11378 = vpack.c.b16 %v11362, %v11358
  %v11396 = vsel %vm7131, %v11101, 0
  %11398 = vmatprep.subr.bf16.mxu0 %v11364
  %11399 = vmatpush1.bf16.msra.mxu0 %v11363
  %11400 = vmatprep.subr.bf16.mxu0 %v11368
  %11401 = vmatpush1.bf16.msra.mxu0 %v11367
  %11402 = vmatprep.subr.bf16.mxu0 %v11372
  %11403 = vmatpush1.bf16.msra.mxu0 %v11371
  %11404 = vmatprep.subr.bf16.mxu0 %v11376
  %11405 = vmatpush1.bf16.msra.mxu0 %v11375
  %11406 = vmatprep.subr.bf16.mxu0 0
  %11407 = vmatpush1.bf16.msra.mxu0 0
  %11408 = vmatprep.subr.bf16.mxu0 0
  %11409 = vmatpush1.bf16.msra.mxu0 0
  %11410 = vmatprep.subr.bf16.mxu0 0
  %11411 = vmatpush1.bf16.msra.mxu0 0
  %11412 = vmatprep.subr.bf16.mxu0 0
  %11413 = vmatpush1.bf16.msra.mxu0 0
  %11414 = vmatprep.subr.bf16.mxu0 0
  %11415 = vmatpush1.bf16.msra.mxu0 0
  %11416 = vmatprep.subr.bf16.mxu0 0
  %11417 = vmatpush1.bf16.msra.mxu0 0
  %11418 = vmatprep.subr.bf16.mxu0 0
  %11419 = vmatpush1.bf16.msra.mxu0 0
  %11420 = vmatprep.subr.bf16.mxu0 0
  %11421 = vmatpush1.bf16.msra.mxu0 0
  %11422 = vmatprep.subr.bf16.mxu0 0
  %11423 = vmatpush1.bf16.msra.mxu0 0
  %11424 = vmatprep.subr.bf16.mxu0 0
  %11425 = vmatpush1.bf16.msra.mxu0 0
  %11426 = vmatprep.subr.bf16.mxu0 0
  %11427 = vmatpush1.bf16.msra.mxu0 0
  %11428 = vmatprep.subr.bf16.mxu0 0
  %11429 = vmatpush1.bf16.msra.mxu0 0
  %11430 = vmatprep.mubr.bf16.mxu0 0
  %11431 = vmatmul.mubr.bf16.gmra.mrb[0].mxu0 %v11396
  %v11432 = vpop.f32.mrb[0].mxu0
  %v11433 = vadd.f32 %v11268, %v11432
  %v11434 = vpop.f32.mrb[0].mxu0
  %v11435 = vadd.f32 %v11270, %v11434
  %v11436 = vpop.f32.mrb[0].mxu0
  %v11437 = vpop.f32.mrb[0].mxu0
  %11438 = vdwg.mxu0
  %11439 = vmatprep.subr.bf16.mxu0 %v11366
  %11440 = vmatpush1.bf16.msra.mxu0 %v11365
  %11441 = vmatprep.subr.bf16.mxu0 %v11370
  %11442 = vmatpush1.bf16.msra.mxu0 %v11369
  %11443 = vmatprep.subr.bf16.mxu0 %v11374
  %11444 = vmatpush1.bf16.msra.mxu0 %v11373
  %11445 = vmatprep.subr.bf16.mxu0 %v11378
  %11446 = vmatpush1.bf16.msra.mxu0 %v11377
  %11447 = vmatprep.subr.bf16.mxu0 0
  %11448 = vmatpush1.bf16.msra.mxu0 0
  %11449 = vmatprep.subr.bf16.mxu0 0
  %11450 = vmatpush1.bf16.msra.mxu0 0
  %11451 = vmatprep.subr.bf16.mxu0 0
  %11452 = vmatpush1.bf16.msra.mxu0 0
  %11453 = vmatprep.subr.bf16.mxu0 0
  %11454 = vmatpush1.bf16.msra.mxu0 0
  %11455 = vmatprep.subr.bf16.mxu0 0
  %11456 = vmatpush1.bf16.msra.mxu0 0
  %11457 = vmatprep.subr.bf16.mxu0 0
  %11458 = vmatpush1.bf16.msra.mxu0 0
  %11459 = vmatprep.subr.bf16.mxu0 0
  %11460 = vmatpush1.bf16.msra.mxu0 0
  %11461 = vmatprep.subr.bf16.mxu0 0
  %11462 = vmatpush1.bf16.msra.mxu0 0
  %11463 = vmatprep.subr.bf16.mxu0 0
  %11464 = vmatpush1.bf16.msra.mxu0 0
  %11465 = vmatprep.subr.bf16.mxu0 0
  %11466 = vmatpush1.bf16.msra.mxu0 0
  %11467 = vmatprep.subr.bf16.mxu0 0
  %11468 = vmatpush1.bf16.msra.mxu0 0
  %11469 = vmatprep.subr.bf16.mxu0 0
  %11470 = vmatpush1.bf16.msra.mxu0 0
  %11471 = vmatprep.mubr.bf16.mxu0 0
  %11472 = vmatmul.mubr.bf16.gmra.mrb[0].mxu0 %v11396
  %v11473 = vpop.f32.mrb[0].mxu0
  %v11474 = vadd.f32 %v11309, %v11473
  %v11475 = vpop.f32.mrb[0].mxu0
  %v11476 = vadd.f32 %v11311, %v11475
  %v11477 = vpop.f32.mrb[0].mxu0
  %v11478 = vpop.f32.mrb[0].mxu0
  %11479 = vdwg.mxu0
  %s11480 = scalar_lea.vmem %s5, 256
  %v11481 = vld [vmem:[%s11480] sm:$0xff]
  %v11482 = vld [vmem:[%s11480 + $0x8] sm:$0xff]
  %v11483 = vld [vmem:[%s11480 + $0x10] sm:$0xff]
  %v11484 = vld [vmem:[%s11480 + $0x18] sm:$0xff]
  %v11485 = vld [vmem:[%s11480 + $0x20] sm:$0xff]
  %v11486 = vld [vmem:[%s11480 + $0x28] sm:$0xff]
  %v11487 = vld [vmem:[%s11480 + $0x30] sm:$0xff]
  %v11488 = vld [vmem:[%s11480 + $0x38] sm:$0xff]
  %v11489 = vld [vmem:[%s11480 + $0x40] sm:$0xff]
  %v11490 = vld [vmem:[%s11480 + $0x48] sm:$0xff]
  %v11491 = vld [vmem:[%s11480 + $0x50] sm:$0xff]
  %v11492 = vld [vmem:[%s11480 + $0x58] sm:$0xff]
  %v11493 = vld [vmem:[%s11480 + $0x60] sm:$0xff]
  %v11494 = vld [vmem:[%s11480 + $0x68] sm:$0xff]
  %v11495 = vld [vmem:[%s11480 + $0x70] sm:$0xff]
  %v11496 = vld [vmem:[%s11480 + $0x78] sm:$0xff]
  %v11513 = vunpack.c.l.b16 %v11481
  %v11514 = vunpack.c.h.b16 %v11481
  %v11515 = vunpack.c.l.b16 %v11482
  %v11516 = vunpack.c.h.b16 %v11482
  %v11517 = vunpack.c.l.b16 %v11483
  %v11518 = vunpack.c.h.b16 %v11483
  %v11519 = vunpack.c.l.b16 %v11484
  %v11520 = vunpack.c.h.b16 %v11484
  %v11521 = vunpack.c.l.b16 %v11485
  %v11522 = vunpack.c.h.b16 %v11485
  %v11523 = vunpack.c.l.b16 %v11486
  %v11524 = vunpack.c.h.b16 %v11486
  %v11525 = vunpack.c.l.b16 %v11487
  %v11526 = vunpack.c.h.b16 %v11487
  %v11527 = vunpack.c.l.b16 %v11488
  %v11528 = vunpack.c.h.b16 %v11488
  %v11529 = vunpack.c.l.b16 %v11489
  %v11530 = vunpack.c.h.b16 %v11489
  %v11531 = vunpack.c.l.b16 %v11490
  %v11532 = vunpack.c.h.b16 %v11490
  %v11533 = vunpack.c.l.b16 %v11491
  %v11534 = vunpack.c.h.b16 %v11491
  %v11535 = vunpack.c.l.b16 %v11492
  %v11536 = vunpack.c.h.b16 %v11492
  %v11537 = vunpack.c.l.b16 %v11493
  %v11538 = vunpack.c.h.b16 %v11493
  %v11539 = vunpack.c.l.b16 %v11494
  %v11540 = vunpack.c.h.b16 %v11494
  %v11541 = vunpack.c.l.b16 %v11495
  %v11542 = vunpack.c.h.b16 %v11495
  %v11543 = vunpack.c.l.b16 %v11496
  %v11544 = vunpack.c.h.b16 %v11496
  %v11545 = vpack.c.b16 %v11517, %v11513
  %v11546 = vpack.c.b16 %v11518, %v11514
  %v11547 = vpack.c.b16 %v11519, %v11515
  %v11548 = vpack.c.b16 %v11520, %v11516
  %v11549 = vpack.c.b16 %v11525, %v11521
  %v11550 = vpack.c.b16 %v11526, %v11522
  %v11551 = vpack.c.b16 %v11527, %v11523
  %v11552 = vpack.c.b16 %v11528, %v11524
  %v11553 = vpack.c.b16 %v11533, %v11529
  %v11554 = vpack.c.b16 %v11534, %v11530
  %v11555 = vpack.c.b16 %v11535, %v11531
  %v11556 = vpack.c.b16 %v11536, %v11532
  %v11557 = vpack.c.b16 %v11541, %v11537
  %v11558 = vpack.c.b16 %v11542, %v11538
  %v11559 = vpack.c.b16 %v11543, %v11539
  %v11560 = vpack.c.b16 %v11544, %v11540
  %v11578 = vsel %vm7131, %v11103, 0
  %11580 = vmatprep.subr.bf16.mxu0 %v11546
  %11581 = vmatpush1.bf16.msra.mxu0 %v11545
  %11582 = vmatprep.subr.bf16.mxu0 %v11550
  %11583 = vmatpush1.bf16.msra.mxu0 %v11549
  %11584 = vmatprep.subr.bf16.mxu0 %v11554
  %11585 = vmatpush1.bf16.msra.mxu0 %v11553
  %11586 = vmatprep.subr.bf16.mxu0 %v11558
  %11587 = vmatpush1.bf16.msra.mxu0 %v11557
  %11588 = vmatprep.subr.bf16.mxu0 0
  %11589 = vmatpush1.bf16.msra.mxu0 0
  %11590 = vmatprep.subr.bf16.mxu0 0
  %11591 = vmatpush1.bf16.msra.mxu0 0
  %11592 = vmatprep.subr.bf16.mxu0 0
  %11593 = vmatpush1.bf16.msra.mxu0 0
  %11594 = vmatprep.subr.bf16.mxu0 0
  %11595 = vmatpush1.bf16.msra.mxu0 0
  %11596 = vmatprep.subr.bf16.mxu0 0
  %11597 = vmatpush1.bf16.msra.mxu0 0
  %11598 = vmatprep.subr.bf16.mxu0 0
  %11599 = vmatpush1.bf16.msra.mxu0 0
  %11600 = vmatprep.subr.bf16.mxu0 0
  %11601 = vmatpush1.bf16.msra.mxu0 0
  %11602 = vmatprep.subr.bf16.mxu0 0
  %11603 = vmatpush1.bf16.msra.mxu0 0
  %11604 = vmatprep.subr.bf16.mxu0 0
  %11605 = vmatpush1.bf16.msra.mxu0 0
  %11606 = vmatprep.subr.bf16.mxu0 0
  %11607 = vmatpush1.bf16.msra.mxu0 0
  %11608 = vmatprep.subr.bf16.mxu0 0
  %11609 = vmatpush1.bf16.msra.mxu0 0
  %11610 = vmatprep.subr.bf16.mxu0 0
  %11611 = vmatpush1.bf16.msra.mxu0 0
  %11612 = vmatprep.mubr.bf16.mxu0 0
  %11613 = vmatmul.mubr.bf16.gmra.mrb[0].mxu0 %v11578
  %v11614 = vpop.f32.mrb[0].mxu0
  %v11615 = vadd.f32 0.0, %v11614
  %v11616 = vpop.f32.mrb[0].mxu0
  %v11617 = vadd.f32 0.0, %v11616
  %v11618 = vpop.f32.mrb[0].mxu0
  %v11619 = vpop.f32.mrb[0].mxu0
  %11620 = vdwg.mxu0
  %11621 = vmatprep.subr.bf16.mxu0 %v11548
  %11622 = vmatpush1.bf16.msra.mxu0 %v11547
  %11623 = vmatprep.subr.bf16.mxu0 %v11552
  %11624 = vmatpush1.bf16.msra.mxu0 %v11551
  %11625 = vmatprep.subr.bf16.mxu0 %v11556
  %11626 = vmatpush1.bf16.msra.mxu0 %v11555
  %11627 = vmatprep.subr.bf16.mxu0 %v11560
  %11628 = vmatpush1.bf16.msra.mxu0 %v11559
  %11629 = vmatprep.subr.bf16.mxu0 0
  %11630 = vmatpush1.bf16.msra.mxu0 0
  %11631 = vmatprep.subr.bf16.mxu0 0
  %11632 = vmatpush1.bf16.msra.mxu0 0
  %11633 = vmatprep.subr.bf16.mxu0 0
  %11634 = vmatpush1.bf16.msra.mxu0 0
  %11635 = vmatprep.subr.bf16.mxu0 0
  %11636 = vmatpush1.bf16.msra.mxu0 0
  %11637 = vmatprep.subr.bf16.mxu0 0
  %11638 = vmatpush1.bf16.msra.mxu0 0
  %11639 = vmatprep.subr.bf16.mxu0 0
  %11640 = vmatpush1.bf16.msra.mxu0 0
  %11641 = vmatprep.subr.bf16.mxu0 0
  %11642 = vmatpush1.bf16.msra.mxu0 0
  %11643 = vmatprep.subr.bf16.mxu0 0
  %11644 = vmatpush1.bf16.msra.mxu0 0
  %11645 = vmatprep.subr.bf16.mxu0 0
  %11646 = vmatpush1.bf16.msra.mxu0 0
  %11647 = vmatprep.subr.bf16.mxu0 0
  %11648 = vmatpush1.bf16.msra.mxu0 0
  %11649 = vmatprep.subr.bf16.mxu0 0
  %11650 = vmatpush1.bf16.msra.mxu0 0
  %11651 = vmatprep.subr.bf16.mxu0 0
  %11652 = vmatpush1.bf16.msra.mxu0 0
  %11653 = vmatprep.mubr.bf16.mxu0 0
  %11654 = vmatmul.mubr.bf16.gmra.mrb[0].mxu0 %v11578
  %v11655 = vpop.f32.mrb[0].mxu0
  %v11656 = vadd.f32 0.0, %v11655
  %v11657 = vpop.f32.mrb[0].mxu0
  %v11658 = vadd.f32 0.0, %v11657
  %v11659 = vpop.f32.mrb[0].mxu0
  %v11660 = vpop.f32.mrb[0].mxu0
  %11661 = vdwg.mxu0
  %v11662 = vadd.f32 %v11433, %v11615
  %v11663 = vadd.f32 %v11435, %v11617
  %v11664 = vadd.f32 %v11474, %v11656
  %v11665 = vadd.f32 %v11476, %v11658
  %s11666 = scalar_lea.vmem %s5, 384
  %v11667 = vld [vmem:[%s11666] sm:$0xff]
  %v11668 = vld [vmem:[%s11666 + $0x8] sm:$0xff]
  %v11669 = vld [vmem:[%s11666 + $0x10] sm:$0xff]
  %v11670 = vld [vmem:[%s11666 + $0x18] sm:$0xff]
  %v11671 = vld [vmem:[%s11666 + $0x20] sm:$0xff]
  %v11672 = vld [vmem:[%s11666 + $0x28] sm:$0xff]
  %v11673 = vld [vmem:[%s11666 + $0x30] sm:$0xff]
  %v11674 = vld [vmem:[%s11666 + $0x38] sm:$0xff]
  %v11675 = vld [vmem:[%s11666 + $0x40] sm:$0xff]
  %v11676 = vld [vmem:[%s11666 + $0x48] sm:$0xff]
  %v11677 = vld [vmem:[%s11666 + $0x50] sm:$0xff]
  %v11678 = vld [vmem:[%s11666 + $0x58] sm:$0xff]
  %v11679 = vld [vmem:[%s11666 + $0x60] sm:$0xff]
  %v11680 = vld [vmem:[%s11666 + $0x68] sm:$0xff]
  %v11681 = vld [vmem:[%s11666 + $0x70] sm:$0xff]
  %v11682 = vld [vmem:[%s11666 + $0x78] sm:$0xff]
  %v11699 = vunpack.c.l.b16 %v11667
  %v11700 = vunpack.c.h.b16 %v11667
  %v11701 = vunpack.c.l.b16 %v11668
  %v11702 = vunpack.c.h.b16 %v11668
  %v11703 = vunpack.c.l.b16 %v11669
  %v11704 = vunpack.c.h.b16 %v11669
  %v11705 = vunpack.c.l.b16 %v11670
  %v11706 = vunpack.c.h.b16 %v11670
  %v11707 = vunpack.c.l.b16 %v11671
  %v11708 = vunpack.c.h.b16 %v11671
  %v11709 = vunpack.c.l.b16 %v11672
  %v11710 = vunpack.c.h.b16 %v11672
  %v11711 = vunpack.c.l.b16 %v11673
  %v11712 = vunpack.c.h.b16 %v11673
  %v11713 = vunpack.c.l.b16 %v11674
  %v11714 = vunpack.c.h.b16 %v11674
  %v11715 = vunpack.c.l.b16 %v11675
  %v11716 = vunpack.c.h.b16 %v11675
  %v11717 = vunpack.c.l.b16 %v11676
  %v11718 = vunpack.c.h.b16 %v11676
  %v11719 = vunpack.c.l.b16 %v11677
  %v11720 = vunpack.c.h.b16 %v11677
  %v11721 = vunpack.c.l.b16 %v11678
  %v11722 = vunpack.c.h.b16 %v11678
  %v11723 = vunpack.c.l.b16 %v11679
  %v11724 = vunpack.c.h.b16 %v11679
  %v11725 = vunpack.c.l.b16 %v11680
  %v11726 = vunpack.c.h.b16 %v11680
  %v11727 = vunpack.c.l.b16 %v11681
  %v11728 = vunpack.c.h.b16 %v11681
  %v11729 = vunpack.c.l.b16 %v11682
  %v11730 = vunpack.c.h.b16 %v11682
  %v11731 = vpack.c.b16 %v11703, %v11699
  %v11732 = vpack.c.b16 %v11704, %v11700
  %v11733 = vpack.c.b16 %v11705, %v11701
  %v11734 = vpack.c.b16 %v11706, %v11702
  %v11735 = vpack.c.b16 %v11711, %v11707
  %v11736 = vpack.c.b16 %v11712, %v11708
  %v11737 = vpack.c.b16 %v11713, %v11709
  %v11738 = vpack.c.b16 %v11714, %v11710
  %v11739 = vpack.c.b16 %v11719, %v11715
  %v11740 = vpack.c.b16 %v11720, %v11716
  %v11741 = vpack.c.b16 %v11721, %v11717
  %v11742 = vpack.c.b16 %v11722, %v11718
  %v11743 = vpack.c.b16 %v11727, %v11723
  %v11744 = vpack.c.b16 %v11728, %v11724
  %v11745 = vpack.c.b16 %v11729, %v11725
  %v11746 = vpack.c.b16 %v11730, %v11726
  %v11764 = vsel %vm7131, %v11104, 0
  %11766 = vmatprep.subr.bf16.mxu0 %v11732
  %11767 = vmatpush1.bf16.msra.mxu0 %v11731
  %11768 = vmatprep.subr.bf16.mxu0 %v11736
  %11769 = vmatpush1.bf16.msra.mxu0 %v11735
  %11770 = vmatprep.subr.bf16.mxu0 %v11740
  %11771 = vmatpush1.bf16.msra.mxu0 %v11739
  %11772 = vmatprep.subr.bf16.mxu0 %v11744
  %11773 = vmatpush1.bf16.msra.mxu0 %v11743
  %11774 = vmatprep.subr.bf16.mxu0 0
  %11775 = vmatpush1.bf16.msra.mxu0 0
  %11776 = vmatprep.subr.bf16.mxu0 0
  %11777 = vmatpush1.bf16.msra.mxu0 0
  %11778 = vmatprep.subr.bf16.mxu0 0
  %11779 = vmatpush1.bf16.msra.mxu0 0
  %11780 = vmatprep.subr.bf16.mxu0 0
  %11781 = vmatpush1.bf16.msra.mxu0 0
  %11782 = vmatprep.subr.bf16.mxu0 0
  %11783 = vmatpush1.bf16.msra.mxu0 0
  %11784 = vmatprep.subr.bf16.mxu0 0
  %11785 = vmatpush1.bf16.msra.mxu0 0
  %11786 = vmatprep.subr.bf16.mxu0 0
  %11787 = vmatpush1.bf16.msra.mxu0 0
  %11788 = vmatprep.subr.bf16.mxu0 0
  %11789 = vmatpush1.bf16.msra.mxu0 0
  %11790 = vmatprep.subr.bf16.mxu0 0
  %11791 = vmatpush1.bf16.msra.mxu0 0
  %11792 = vmatprep.subr.bf16.mxu0 0
  %11793 = vmatpush1.bf16.msra.mxu0 0
  %11794 = vmatprep.subr.bf16.mxu0 0
  %11795 = vmatpush1.bf16.msra.mxu0 0
  %11796 = vmatprep.subr.bf16.mxu0 0
  %11797 = vmatpush1.bf16.msra.mxu0 0
  %11798 = vmatprep.mubr.bf16.mxu0 0
  %11799 = vmatmul.mubr.bf16.gmra.mrb[0].mxu0 %v11764
  %v11800 = vpop.f32.mrb[0].mxu0
  %v11801 = vadd.f32 0.0, %v11800
  %v11802 = vpop.f32.mrb[0].mxu0
  %v11803 = vadd.f32 0.0, %v11802
  %v11804 = vpop.f32.mrb[0].mxu0
  %v11805 = vpop.f32.mrb[0].mxu0
  %11806 = vdwg.mxu0
  %11807 = vmatprep.subr.bf16.mxu0 %v11734
  %11808 = vmatpush1.bf16.msra.mxu0 %v11733
  %11809 = vmatprep.subr.bf16.mxu0 %v11738
  %11810 = vmatpush1.bf16.msra.mxu0 %v11737
  %11811 = vmatprep.subr.bf16.mxu0 %v11742
  %11812 = vmatpush1.bf16.msra.mxu0 %v11741
  %11813 = vmatprep.subr.bf16.mxu0 %v11746
  %11814 = vmatpush1.bf16.msra.mxu0 %v11745
  %11815 = vmatprep.subr.bf16.mxu0 0
  %11816 = vmatpush1.bf16.msra.mxu0 0
  %11817 = vmatprep.subr.bf16.mxu0 0
  %11818 = vmatpush1.bf16.msra.mxu0 0
  %11819 = vmatprep.subr.bf16.mxu0 0
  %11820 = vmatpush1.bf16.msra.mxu0 0
  %11821 = vmatprep.subr.bf16.mxu0 0
  %11822 = vmatpush1.bf16.msra.mxu0 0
  %11823 = vmatprep.subr.bf16.mxu0 0
  %11824 = vmatpush1.bf16.msra.mxu0 0
  %11825 = vmatprep.subr.bf16.mxu0 0
  %11826 = vmatpush1.bf16.msra.mxu0 0
  %11827 = vmatprep.subr.bf16.mxu0 0
  %11828 = vmatpush1.bf16.msra.mxu0 0
  %11829 = vmatprep.subr.bf16.mxu0 0
  %11830 = vmatpush1.bf16.msra.mxu0 0
  %11831 = vmatprep.subr.bf16.mxu0 0
  %11832 = vmatpush1.bf16.msra.mxu0 0
  %11833 = vmatprep.subr.bf16.mxu0 0
  %11834 = vmatpush1.bf16.msra.mxu0 0
  %11835 = vmatprep.subr.bf16.mxu0 0
  %11836 = vmatpush1.bf16.msra.mxu0 0
  %11837 = vmatprep.subr.bf16.mxu0 0
  %11838 = vmatpush1.bf16.msra.mxu0 0
  %11839 = vmatprep.mubr.bf16.mxu0 0
  %11840 = vmatmul.mubr.bf16.gmra.mrb[0].mxu0 %v11764
  %v11841 = vpop.f32.mrb[0].mxu0
  %v11842 = vadd.f32 0.0, %v11841
  %v11843 = vpop.f32.mrb[0].mxu0
  %v11844 = vadd.f32 0.0, %v11843
  %v11845 = vpop.f32.mrb[0].mxu0
  %v11846 = vpop.f32.mrb[0].mxu0
  %11847 = vdwg.mxu0
  %v11848 = vadd.f32 %v11662, %v11801
  %v11849 = vadd.f32 %v11663, %v11803
  %v11850 = vadd.f32 %v11664, %v11842
  %v11851 = vadd.f32 %v11665, %v11844
  %s11852 = scalar_lea.vmem %s5, 512
  %v11853 = vld [vmem:[%s11852] sm:$0xff]
  %v11854 = vld [vmem:[%s11852 + $0x8] sm:$0xff]
  %v11855 = vld [vmem:[%s11852 + $0x10] sm:$0xff]
  %v11856 = vld [vmem:[%s11852 + $0x18] sm:$0xff]
  %v11857 = vld [vmem:[%s11852 + $0x20] sm:$0xff]
  %v11858 = vld [vmem:[%s11852 + $0x28] sm:$0xff]
  %v11859 = vld [vmem:[%s11852 + $0x30] sm:$0xff]
  %v11860 = vld [vmem:[%s11852 + $0x38] sm:$0xff]
  %v11861 = vld [vmem:[%s11852 + $0x40] sm:$0xff]
  %v11862 = vld [vmem:[%s11852 + $0x48] sm:$0xff]
  %v11863 = vld [vmem:[%s11852 + $0x50] sm:$0xff]
  %v11864 = vld [vmem:[%s11852 + $0x58] sm:$0xff]
  %v11865 = vld [vmem:[%s11852 + $0x60] sm:$0xff]
  %v11866 = vld [vmem:[%s11852 + $0x68] sm:$0xff]
  %v11867 = vld [vmem:[%s11852 + $0x70] sm:$0xff]
  %v11868 = vld [vmem:[%s11852 + $0x78] sm:$0xff]
  %v11885 = vunpack.c.l.b16 %v11853
  %v11886 = vunpack.c.h.b16 %v11853
  %v11887 = vunpack.c.l.b16 %v11854
  %v11888 = vunpack.c.h.b16 %v11854
  %v11889 = vunpack.c.l.b16 %v11855
  %v11890 = vunpack.c.h.b16 %v11855
  %v11891 = vunpack.c.l.b16 %v11856
  %v11892 = vunpack.c.h.b16 %v11856
  %v11893 = vunpack.c.l.b16 %v11857
  %v11894 = vunpack.c.h.b16 %v11857
  %v11895 = vunpack.c.l.b16 %v11858
  %v11896 = vunpack.c.h.b16 %v11858
  %v11897 = vunpack.c.l.b16 %v11859
  %v11898 = vunpack.c.h.b16 %v11859
  %v11899 = vunpack.c.l.b16 %v11860
  %v11900 = vunpack.c.h.b16 %v11860
  %v11901 = vunpack.c.l.b16 %v11861
  %v11902 = vunpack.c.h.b16 %v11861
  %v11903 = vunpack.c.l.b16 %v11862
  %v11904 = vunpack.c.h.b16 %v11862
  %v11905 = vunpack.c.l.b16 %v11863
  %v11906 = vunpack.c.h.b16 %v11863
  %v11907 = vunpack.c.l.b16 %v11864
  %v11908 = vunpack.c.h.b16 %v11864
  %v11909 = vunpack.c.l.b16 %v11865
  %v11910 = vunpack.c.h.b16 %v11865
  %v11911 = vunpack.c.l.b16 %v11866
  %v11912 = vunpack.c.h.b16 %v11866
  %v11913 = vunpack.c.l.b16 %v11867
  %v11914 = vunpack.c.h.b16 %v11867
  %v11915 = vunpack.c.l.b16 %v11868
  %v11916 = vunpack.c.h.b16 %v11868
  %v11917 = vpack.c.b16 %v11889, %v11885
  %v11918 = vpack.c.b16 %v11890, %v11886
  %v11919 = vpack.c.b16 %v11891, %v11887
  %v11920 = vpack.c.b16 %v11892, %v11888
  %v11921 = vpack.c.b16 %v11897, %v11893
  %v11922 = vpack.c.b16 %v11898, %v11894
  %v11923 = vpack.c.b16 %v11899, %v11895
  %v11924 = vpack.c.b16 %v11900, %v11896
  %v11925 = vpack.c.b16 %v11905, %v11901
  %v11926 = vpack.c.b16 %v11906, %v11902
  %v11927 = vpack.c.b16 %v11907, %v11903
  %v11928 = vpack.c.b16 %v11908, %v11904
  %v11929 = vpack.c.b16 %v11913, %v11909
  %v11930 = vpack.c.b16 %v11914, %v11910
  %v11931 = vpack.c.b16 %v11915, %v11911
  %v11932 = vpack.c.b16 %v11916, %v11912
  %v11950 = vsel %vm7131, %v11105, 0
  %11952 = vmatprep.subr.bf16.mxu0 %v11918
  %11953 = vmatpush1.bf16.msra.mxu0 %v11917
  %11954 = vmatprep.subr.bf16.mxu0 %v11922
  %11955 = vmatpush1.bf16.msra.mxu0 %v11921
  %11956 = vmatprep.subr.bf16.mxu0 %v11926
  %11957 = vmatpush1.bf16.msra.mxu0 %v11925
  %11958 = vmatprep.subr.bf16.mxu0 %v11930
  %11959 = vmatpush1.bf16.msra.mxu0 %v11929
  %11960 = vmatprep.subr.bf16.mxu0 0
  %11961 = vmatpush1.bf16.msra.mxu0 0
  %11962 = vmatprep.subr.bf16.mxu0 0
  %11963 = vmatpush1.bf16.msra.mxu0 0
  %11964 = vmatprep.subr.bf16.mxu0 0
  %11965 = vmatpush1.bf16.msra.mxu0 0
  %11966 = vmatprep.subr.bf16.mxu0 0
  %11967 = vmatpush1.bf16.msra.mxu0 0
  %11968 = vmatprep.subr.bf16.mxu0 0
  %11969 = vmatpush1.bf16.msra.mxu0 0
  %11970 = vmatprep.subr.bf16.mxu0 0
  %11971 = vmatpush1.bf16.msra.mxu0 0
  %11972 = vmatprep.subr.bf16.mxu0 0
  %11973 = vmatpush1.bf16.msra.mxu0 0
  %11974 = vmatprep.subr.bf16.mxu0 0
  %11975 = vmatpush1.bf16.msra.mxu0 0
  %11976 = vmatprep.subr.bf16.mxu0 0
  %11977 = vmatpush1.bf16.msra.mxu0 0
  %11978 = vmatprep.subr.bf16.mxu0 0
  %11979 = vmatpush1.bf16.msra.mxu0 0
  %11980 = vmatprep.subr.bf16.mxu0 0
  %11981 = vmatpush1.bf16.msra.mxu0 0
  %11982 = vmatprep.subr.bf16.mxu0 0
  %11983 = vmatpush1.bf16.msra.mxu0 0
  %11984 = vmatprep.mubr.bf16.mxu0 0
  %11985 = vmatmul.mubr.bf16.gmra.mrb[0].mxu0 %v11950
  %v11986 = vpop.f32.mrb[0].mxu0
  %v11987 = vadd.f32 0.0, %v11986
  %v11988 = vpop.f32.mrb[0].mxu0
  %v11989 = vadd.f32 0.0, %v11988
  %v11990 = vpop.f32.mrb[0].mxu0
  %v11991 = vpop.f32.mrb[0].mxu0
  %11992 = vdwg.mxu0
  %11993 = vmatprep.subr.bf16.mxu0 %v11920
  %11994 = vmatpush1.bf16.msra.mxu0 %v11919
  %11995 = vmatprep.subr.bf16.mxu0 %v11924
  %11996 = vmatpush1.bf16.msra.mxu0 %v11923
  %11997 = vmatprep.subr.bf16.mxu0 %v11928
  %11998 = vmatpush1.bf16.msra.mxu0 %v11927
  %11999 = vmatprep.subr.bf16.mxu0 %v11932
  %12000 = vmatpush1.bf16.msra.mxu0 %v11931
  %12001 = vmatprep.subr.bf16.mxu0 0
  %12002 = vmatpush1.bf16.msra.mxu0 0
  %12003 = vmatprep.subr.bf16.mxu0 0
  %12004 = vmatpush1.bf16.msra.mxu0 0
  %12005 = vmatprep.subr.bf16.mxu0 0
  %12006 = vmatpush1.bf16.msra.mxu0 0
  %12007 = vmatprep.subr.bf16.mxu0 0
  %12008 = vmatpush1.bf16.msra.mxu0 0
  %12009 = vmatprep.subr.bf16.mxu0 0
  %12010 = vmatpush1.bf16.msra.mxu0 0
  %12011 = vmatprep.subr.bf16.mxu0 0
  %12012 = vmatpush1.bf16.msra.mxu0 0
  %12013 = vmatprep.subr.bf16.mxu0 0
  %12014 = vmatpush1.bf16.msra.mxu0 0
  %12015 = vmatprep.subr.bf16.mxu0 0
  %12016 = vmatpush1.bf16.msra.mxu0 0
  %12017 = vmatprep.subr.bf16.mxu0 0
  %12018 = vmatpush1.bf16.msra.mxu0 0
  %12019 = vmatprep.subr.bf16.mxu0 0
  %12020 = vmatpush1.bf16.msra.mxu0 0
  %12021 = vmatprep.subr.bf16.mxu0 0
  %12022 = vmatpush1.bf16.msra.mxu0 0
  %12023 = vmatprep.subr.bf16.mxu0 0
  %12024 = vmatpush1.bf16.msra.mxu0 0
  %12025 = vmatprep.mubr.bf16.mxu0 0
  %12026 = vmatmul.mubr.bf16.gmra.mrb[0].mxu0 %v11950
  %v12027 = vpop.f32.mrb[0].mxu0
  %v12028 = vadd.f32 0.0, %v12027
  %v12029 = vpop.f32.mrb[0].mxu0
  %v12030 = vadd.f32 0.0, %v12029
  %v12031 = vpop.f32.mrb[0].mxu0
  %v12032 = vpop.f32.mrb[0].mxu0
  %12033 = vdwg.mxu0
  %v12034 = vadd.f32 %v11848, %v11987
  %v12035 = vadd.f32 %v11849, %v11989
  %v12036 = vadd.f32 %v11850, %v12028
  %v12037 = vadd.f32 %v11851, %v12030
  %s12038 = scalar_lea.vmem %s5, 640
  %v12039 = vld [vmem:[%s12038] sm:$0xff]
  %v12040 = vld [vmem:[%s12038 + $0x8] sm:$0xff]
  %v12041 = vld [vmem:[%s12038 + $0x10] sm:$0xff]
  %v12042 = vld [vmem:[%s12038 + $0x18] sm:$0xff]
  %v12043 = vld [vmem:[%s12038 + $0x20] sm:$0xff]
  %v12044 = vld [vmem:[%s12038 + $0x28] sm:$0xff]
  %v12045 = vld [vmem:[%s12038 + $0x30] sm:$0xff]
  %v12046 = vld [vmem:[%s12038 + $0x38] sm:$0xff]
  %v12047 = vld [vmem:[%s12038 + $0x40] sm:$0xff]
  %v12048 = vld [vmem:[%s12038 + $0x48] sm:$0xff]
  %v12049 = vld [vmem:[%s12038 + $0x50] sm:$0xff]
  %v12050 = vld [vmem:[%s12038 + $0x58] sm:$0xff]
  %v12051 = vld [vmem:[%s12038 + $0x60] sm:$0xff]
  %v12052 = vld [vmem:[%s12038 + $0x68] sm:$0xff]
  %v12053 = vld [vmem:[%s12038 + $0x70] sm:$0xff]
  %v12054 = vld [vmem:[%s12038 + $0x78] sm:$0xff]
  %v12071 = vunpack.c.l.b16 %v12039
  %v12072 = vunpack.c.h.b16 %v12039
  %v12073 = vunpack.c.l.b16 %v12040
  %v12074 = vunpack.c.h.b16 %v12040
  %v12075 = vunpack.c.l.b16 %v12041
  %v12076 = vunpack.c.h.b16 %v12041
  %v12077 = vunpack.c.l.b16 %v12042
  %v12078 = vunpack.c.h.b16 %v12042
  %v12079 = vunpack.c.l.b16 %v12043
  %v12080 = vunpack.c.h.b16 %v12043
  %v12081 = vunpack.c.l.b16 %v12044
  %v12082 = vunpack.c.h.b16 %v12044
  %v12083 = vunpack.c.l.b16 %v12045
  %v12084 = vunpack.c.h.b16 %v12045
  %v12085 = vunpack.c.l.b16 %v12046
  %v12086 = vunpack.c.h.b16 %v12046
  %v12087 = vunpack.c.l.b16 %v12047
  %v12088 = vunpack.c.h.b16 %v12047
  %v12089 = vunpack.c.l.b16 %v12048
  %v12090 = vunpack.c.h.b16 %v12048
  %v12091 = vunpack.c.l.b16 %v12049
  %v12092 = vunpack.c.h.b16 %v12049
  %v12093 = vunpack.c.l.b16 %v12050
  %v12094 = vunpack.c.h.b16 %v12050
  %v12095 = vunpack.c.l.b16 %v12051
  %v12096 = vunpack.c.h.b16 %v12051
  %v12097 = vunpack.c.l.b16 %v12052
  %v12098 = vunpack.c.h.b16 %v12052
  %v12099 = vunpack.c.l.b16 %v12053
  %v12100 = vunpack.c.h.b16 %v12053
  %v12101 = vunpack.c.l.b16 %v12054
  %v12102 = vunpack.c.h.b16 %v12054
  %v12103 = vpack.c.b16 %v12075, %v12071
  %v12104 = vpack.c.b16 %v12076, %v12072
  %v12105 = vpack.c.b16 %v12077, %v12073
  %v12106 = vpack.c.b16 %v12078, %v12074
  %v12107 = vpack.c.b16 %v12083, %v12079
  %v12108 = vpack.c.b16 %v12084, %v12080
  %v12109 = vpack.c.b16 %v12085, %v12081
  %v12110 = vpack.c.b16 %v12086, %v12082
  %v12111 = vpack.c.b16 %v12091, %v12087
  %v12112 = vpack.c.b16 %v12092, %v12088
  %v12113 = vpack.c.b16 %v12093, %v12089
  %v12114 = vpack.c.b16 %v12094, %v12090
  %v12115 = vpack.c.b16 %v12099, %v12095
  %v12116 = vpack.c.b16 %v12100, %v12096
  %v12117 = vpack.c.b16 %v12101, %v12097
  %v12118 = vpack.c.b16 %v12102, %v12098
  %v12136 = vsel %vm7131, %v11106, 0
  %12138 = vmatprep.subr.bf16.mxu0 %v12104
  %12139 = vmatpush1.bf16.msra.mxu0 %v12103
  %12140 = vmatprep.subr.bf16.mxu0 %v12108
  %12141 = vmatpush1.bf16.msra.mxu0 %v12107
  %12142 = vmatprep.subr.bf16.mxu0 %v12112
  %12143 = vmatpush1.bf16.msra.mxu0 %v12111
  %12144 = vmatprep.subr.bf16.mxu0 %v12116
  %12145 = vmatpush1.bf16.msra.mxu0 %v12115
  %12146 = vmatprep.subr.bf16.mxu0 0
  %12147 = vmatpush1.bf16.msra.mxu0 0
  %12148 = vmatprep.subr.bf16.mxu0 0
  %12149 = vmatpush1.bf16.msra.mxu0 0
  %12150 = vmatprep.subr.bf16.mxu0 0
  %12151 = vmatpush1.bf16.msra.mxu0 0
  %12152 = vmatprep.subr.bf16.mxu0 0
  %12153 = vmatpush1.bf16.msra.mxu0 0
  %12154 = vmatprep.subr.bf16.mxu0 0
  %12155 = vmatpush1.bf16.msra.mxu0 0
  %12156 = vmatprep.subr.bf16.mxu0 0
  %12157 = vmatpush1.bf16.msra.mxu0 0
  %12158 = vmatprep.subr.bf16.mxu0 0
  %12159 = vmatpush1.bf16.msra.mxu0 0
  %12160 = vmatprep.subr.bf16.mxu0 0
  %12161 = vmatpush1.bf16.msra.mxu0 0
  %12162 = vmatprep.subr.bf16.mxu0 0
  %12163 = vmatpush1.bf16.msra.mxu0 0
  %12164 = vmatprep.subr.bf16.mxu0 0
  %12165 = vmatpush1.bf16.msra.mxu0 0
  %12166 = vmatprep.subr.bf16.mxu0 0
  %12167 = vmatpush1.bf16.msra.mxu0 0
  %12168 = vmatprep.subr.bf16.mxu0 0
  %12169 = vmatpush1.bf16.msra.mxu0 0
  %12170 = vmatprep.mubr.bf16.mxu0 0
  %12171 = vmatmul.mubr.bf16.gmra.mrb[0].mxu0 %v12136
  %v12172 = vpop.f32.mrb[0].mxu0
  %v12173 = vadd.f32 0.0, %v12172
  %v12174 = vpop.f32.mrb[0].mxu0
  %v12175 = vadd.f32 0.0, %v12174
  %v12176 = vpop.f32.mrb[0].mxu0
  %v12177 = vpop.f32.mrb[0].mxu0
  %12178 = vdwg.mxu0
  %12179 = vmatprep.subr.bf16.mxu0 %v12106
  %12180 = vmatpush1.bf16.msra.mxu0 %v12105
  %12181 = vmatprep.subr.bf16.mxu0 %v12110
  %12182 = vmatpush1.bf16.msra.mxu0 %v12109
  %12183 = vmatprep.subr.bf16.mxu0 %v12114
  %12184 = vmatpush1.bf16.msra.mxu0 %v12113
  %12185 = vmatprep.subr.bf16.mxu0 %v12118
  %12186 = vmatpush1.bf16.msra.mxu0 %v12117
  %12187 = vmatprep.subr.bf16.mxu0 0
  %12188 = vmatpush1.bf16.msra.mxu0 0
  %12189 = vmatprep.subr.bf16.mxu0 0
  %12190 = vmatpush1.bf16.msra.mxu0 0
  %12191 = vmatprep.subr.bf16.mxu0 0
  %12192 = vmatpush1.bf16.msra.mxu0 0
  %12193 = vmatprep.subr.bf16.mxu0 0
  %12194 = vmatpush1.bf16.msra.mxu0 0
  %12195 = vmatprep.subr.bf16.mxu0 0
  %12196 = vmatpush1.bf16.msra.mxu0 0
  %12197 = vmatprep.subr.bf16.mxu0 0
  %12198 = vmatpush1.bf16.msra.mxu0 0
  %12199 = vmatprep.subr.bf16.mxu0 0
  %12200 = vmatpush1.bf16.msra.mxu0 0
  %12201 = vmatprep.subr.bf16.mxu0 0
  %12202 = vmatpush1.bf16.msra.mxu0 0
  %12203 = vmatprep.subr.bf16.mxu0 0
  %12204 = vmatpush1.bf16.msra.mxu0 0
  %12205 = vmatprep.subr.bf16.mxu0 0
  %12206 = vmatpush1.bf16.msra.mxu0 0
  %12207 = vmatprep.subr.bf16.mxu0 0
  %12208 = vmatpush1.bf16.msra.mxu0 0
  %12209 = vmatprep.subr.bf16.mxu0 0
  %12210 = vmatpush1.bf16.msra.mxu0 0
  %12211 = vmatprep.mubr.bf16.mxu0 0
  %12212 = vmatmul.mubr.bf16.gmra.mrb[0].mxu0 %v12136
  %v12213 = vpop.f32.mrb[0].mxu0
  %v12214 = vadd.f32 0.0, %v12213
  %v12215 = vpop.f32.mrb[0].mxu0
  %v12216 = vadd.f32 0.0, %v12215
  %v12217 = vpop.f32.mrb[0].mxu0
  %v12218 = vpop.f32.mrb[0].mxu0
  %12219 = vdwg.mxu0
  %v12220 = vadd.f32 %v12034, %v12173
  %v12221 = vadd.f32 %v12035, %v12175
  %v12222 = vadd.f32 %v12036, %v12214
  %v12223 = vadd.f32 %v12037, %v12216
  %s12224 = scalar_lea.vmem %s5, 768
  %v12225 = vld [vmem:[%s12224] sm:$0xff]
  %v12226 = vld [vmem:[%s12224 + $0x8] sm:$0xff]
  %v12227 = vld [vmem:[%s12224 + $0x10] sm:$0xff]
  %v12228 = vld [vmem:[%s12224 + $0x18] sm:$0xff]
  %v12229 = vld [vmem:[%s12224 + $0x20] sm:$0xff]
  %v12230 = vld [vmem:[%s12224 + $0x28] sm:$0xff]
  %v12231 = vld [vmem:[%s12224 + $0x30] sm:$0xff]
  %v12232 = vld [vmem:[%s12224 + $0x38] sm:$0xff]
  %v12233 = vld [vmem:[%s12224 + $0x40] sm:$0xff]
  %v12234 = vld [vmem:[%s12224 + $0x48] sm:$0xff]
  %v12235 = vld [vmem:[%s12224 + $0x50] sm:$0xff]
  %v12236 = vld [vmem:[%s12224 + $0x58] sm:$0xff]
  %v12237 = vld [vmem:[%s12224 + $0x60] sm:$0xff]
  %v12238 = vld [vmem:[%s12224 + $0x68] sm:$0xff]
  %v12239 = vld [vmem:[%s12224 + $0x70] sm:$0xff]
  %v12240 = vld [vmem:[%s12224 + $0x78] sm:$0xff]
  %v12257 = vunpack.c.l.b16 %v12225
  %v12258 = vunpack.c.h.b16 %v12225
  %v12259 = vunpack.c.l.b16 %v12226
  %v12260 = vunpack.c.h.b16 %v12226
  %v12261 = vunpack.c.l.b16 %v12227
  %v12262 = vunpack.c.h.b16 %v12227
  %v12263 = vunpack.c.l.b16 %v12228
  %v12264 = vunpack.c.h.b16 %v12228
  %v12265 = vunpack.c.l.b16 %v12229
  %v12266 = vunpack.c.h.b16 %v12229
  %v12267 = vunpack.c.l.b16 %v12230
  %v12268 = vunpack.c.h.b16 %v12230
  %v12269 = vunpack.c.l.b16 %v12231
  %v12270 = vunpack.c.h.b16 %v12231
  %v12271 = vunpack.c.l.b16 %v12232
  %v12272 = vunpack.c.h.b16 %v12232
  %v12273 = vunpack.c.l.b16 %v12233
  %v12274 = vunpack.c.h.b16 %v12233
  %v12275 = vunpack.c.l.b16 %v12234
  %v12276 = vunpack.c.h.b16 %v12234
  %v12277 = vunpack.c.l.b16 %v12235
  %v12278 = vunpack.c.h.b16 %v12235
  %v12279 = vunpack.c.l.b16 %v12236
  %v12280 = vunpack.c.h.b16 %v12236
  %v12281 = vunpack.c.l.b16 %v12237
  %v12282 = vunpack.c.h.b16 %v12237
  %v12283 = vunpack.c.l.b16 %v12238
  %v12284 = vunpack.c.h.b16 %v12238
  %v12285 = vunpack.c.l.b16 %v12239
  %v12286 = vunpack.c.h.b16 %v12239
  %v12287 = vunpack.c.l.b16 %v12240
  %v12288 = vunpack.c.h.b16 %v12240
  %v12289 = vpack.c.b16 %v12261, %v12257
  %v12290 = vpack.c.b16 %v12262, %v12258
  %v12291 = vpack.c.b16 %v12263, %v12259
  %v12292 = vpack.c.b16 %v12264, %v12260
  %v12293 = vpack.c.b16 %v12269, %v12265
  %v12294 = vpack.c.b16 %v12270, %v12266
  %v12295 = vpack.c.b16 %v12271, %v12267
  %v12296 = vpack.c.b16 %v12272, %v12268
  %v12297 = vpack.c.b16 %v12277, %v12273
  %v12298 = vpack.c.b16 %v12278, %v12274
  %v12299 = vpack.c.b16 %v12279, %v12275
  %v12300 = vpack.c.b16 %v12280, %v12276
  %v12301 = vpack.c.b16 %v12285, %v12281
  %v12302 = vpack.c.b16 %v12286, %v12282
  %v12303 = vpack.c.b16 %v12287, %v12283
  %v12304 = vpack.c.b16 %v12288, %v12284
  %v12322 = vsel %vm7131, %v11107, 0
  %12324 = vmatprep.subr.bf16.mxu0 %v12290
  %12325 = vmatpush1.bf16.msra.mxu0 %v12289
  %12326 = vmatprep.subr.bf16.mxu0 %v12294
  %12327 = vmatpush1.bf16.msra.mxu0 %v12293
  %12328 = vmatprep.subr.bf16.mxu0 %v12298
  %12329 = vmatpush1.bf16.msra.mxu0 %v12297
  %12330 = vmatprep.subr.bf16.mxu0 %v12302
  %12331 = vmatpush1.bf16.msra.mxu0 %v12301
  %12332 = vmatprep.subr.bf16.mxu0 0
  %12333 = vmatpush1.bf16.msra.mxu0 0
  %12334 = vmatprep.subr.bf16.mxu0 0
  %12335 = vmatpush1.bf16.msra.mxu0 0
  %12336 = vmatprep.subr.bf16.mxu0 0
  %12337 = vmatpush1.bf16.msra.mxu0 0
  %12338 = vmatprep.subr.bf16.mxu0 0
  %12339 = vmatpush1.bf16.msra.mxu0 0
  %12340 = vmatprep.subr.bf16.mxu0 0
  %12341 = vmatpush1.bf16.msra.mxu0 0
  %12342 = vmatprep.subr.bf16.mxu0 0
  %12343 = vmatpush1.bf16.msra.mxu0 0
  %12344 = vmatprep.subr.bf16.mxu0 0
  %12345 = vmatpush1.bf16.msra.mxu0 0
  %12346 = vmatprep.subr.bf16.mxu0 0
  %12347 = vmatpush1.bf16.msra.mxu0 0
  %12348 = vmatprep.subr.bf16.mxu0 0
  %12349 = vmatpush1.bf16.msra.mxu0 0
  %12350 = vmatprep.subr.bf16.mxu0 0
  %12351 = vmatpush1.bf16.msra.mxu0 0
  %12352 = vmatprep.subr.bf16.mxu0 0
  %12353 = vmatpush1.bf16.msra.mxu0 0
  %12354 = vmatprep.subr.bf16.mxu0 0
  %12355 = vmatpush1.bf16.msra.mxu0 0
  %12356 = vmatprep.mubr.bf16.mxu0 0
  %12357 = vmatmul.mubr.bf16.gmra.mrb[0].mxu0 %v12322
  %v12358 = vpop.f32.mrb[0].mxu0
  %v12359 = vadd.f32 0.0, %v12358
  %v12360 = vpop.f32.mrb[0].mxu0
  %v12361 = vadd.f32 0.0, %v12360
  %v12362 = vpop.f32.mrb[0].mxu0
  %v12363 = vpop.f32.mrb[0].mxu0
  %12364 = vdwg.mxu0
  %12365 = vmatprep.subr.bf16.mxu0 %v12292
  %12366 = vmatpush1.bf16.msra.mxu0 %v12291
  %12367 = vmatprep.subr.bf16.mxu0 %v12296
  %12368 = vmatpush1.bf16.msra.mxu0 %v12295
  %12369 = vmatprep.subr.bf16.mxu0 %v12300
  %12370 = vmatpush1.bf16.msra.mxu0 %v12299
  %12371 = vmatprep.subr.bf16.mxu0 %v12304
  %12372 = vmatpush1.bf16.msra.mxu0 %v12303
  %12373 = vmatprep.subr.bf16.mxu0 0
  %12374 = vmatpush1.bf16.msra.mxu0 0
  %12375 = vmatprep.subr.bf16.mxu0 0
  %12376 = vmatpush1.bf16.msra.mxu0 0
  %12377 = vmatprep.subr.bf16.mxu0 0
  %12378 = vmatpush1.bf16.msra.mxu0 0
  %12379 = vmatprep.subr.bf16.mxu0 0
  %12380 = vmatpush1.bf16.msra.mxu0 0
  %12381 = vmatprep.subr.bf16.mxu0 0
  %12382 = vmatpush1.bf16.msra.mxu0 0
  %12383 = vmatprep.subr.bf16.mxu0 0
  %12384 = vmatpush1.bf16.msra.mxu0 0
  %12385 = vmatprep.subr.bf16.mxu0 0
  %12386 = vmatpush1.bf16.msra.mxu0 0
  %12387 = vmatprep.subr.bf16.mxu0 0
  %12388 = vmatpush1.bf16.msra.mxu0 0
  %12389 = vmatprep.subr.bf16.mxu0 0
  %12390 = vmatpush1.bf16.msra.mxu0 0
  %12391 = vmatprep.subr.bf16.mxu0 0
  %12392 = vmatpush1.bf16.msra.mxu0 0
  %12393 = vmatprep.subr.bf16.mxu0 0
  %12394 = vmatpush1.bf16.msra.mxu0 0
  %12395 = vmatprep.subr.bf16.mxu0 0
  %12396 = vmatpush1.bf16.msra.mxu0 0
  %12397 = vmatprep.mubr.bf16.mxu0 0
  %12398 = vmatmul.mubr.bf16.gmra.mrb[0].mxu0 %v12322
  %v12399 = vpop.f32.mrb[0].mxu0
  %v12400 = vadd.f32 0.0, %v12399
  %v12401 = vpop.f32.mrb[0].mxu0
  %v12402 = vadd.f32 0.0, %v12401
  %v12403 = vpop.f32.mrb[0].mxu0
  %v12404 = vpop.f32.mrb[0].mxu0
  %12405 = vdwg.mxu0
  %v12406 = vadd.f32 %v12220, %v12359
  %v12407 = vadd.f32 %v12221, %v12361
  %v12408 = vadd.f32 %v12222, %v12400
  %v12409 = vadd.f32 %v12223, %v12402
  %s12410 = scalar_lea.vmem %s5, 896
  %v12411 = vld [vmem:[%s12410] sm:$0xff]
  %v12412 = vld [vmem:[%s12410 + $0x8] sm:$0xff]
  %v12413 = vld [vmem:[%s12410 + $0x10] sm:$0xff]
  %v12414 = vld [vmem:[%s12410 + $0x18] sm:$0xff]
  %v12415 = vld [vmem:[%s12410 + $0x20] sm:$0xff]
  %v12416 = vld [vmem:[%s12410 + $0x28] sm:$0xff]
  %v12417 = vld [vmem:[%s12410 + $0x30] sm:$0xff]
  %v12418 = vld [vmem:[%s12410 + $0x38] sm:$0xff]
  %v12419 = vld [vmem:[%s12410 + $0x40] sm:$0xff]
  %v12420 = vld [vmem:[%s12410 + $0x48] sm:$0xff]
  %v12421 = vld [vmem:[%s12410 + $0x50] sm:$0xff]
  %v12422 = vld [vmem:[%s12410 + $0x58] sm:$0xff]
  %v12423 = vld [vmem:[%s12410 + $0x60] sm:$0xff]
  %v12424 = vld [vmem:[%s12410 + $0x68] sm:$0xff]
  %v12425 = vld [vmem:[%s12410 + $0x70] sm:$0xff]
  %v12426 = vld [vmem:[%s12410 + $0x78] sm:$0xff]
  %v12443 = vunpack.c.l.b16 %v12411
  %v12444 = vunpack.c.h.b16 %v12411
  %v12445 = vunpack.c.l.b16 %v12412
  %v12446 = vunpack.c.h.b16 %v12412
  %v12447 = vunpack.c.l.b16 %v12413
  %v12448 = vunpack.c.h.b16 %v12413
  %v12449 = vunpack.c.l.b16 %v12414
  %v12450 = vunpack.c.h.b16 %v12414
  %v12451 = vunpack.c.l.b16 %v12415
  %v12452 = vunpack.c.h.b16 %v12415
  %v12453 = vunpack.c.l.b16 %v12416
  %v12454 = vunpack.c.h.b16 %v12416
  %v12455 = vunpack.c.l.b16 %v12417
  %v12456 = vunpack.c.h.b16 %v12417
  %v12457 = vunpack.c.l.b16 %v12418
  %v12458 = vunpack.c.h.b16 %v12418
  %v12459 = vunpack.c.l.b16 %v12419
  %v12460 = vunpack.c.h.b16 %v12419
  %v12461 = vunpack.c.l.b16 %v12420
  %v12462 = vunpack.c.h.b16 %v12420
  %v12463 = vunpack.c.l.b16 %v12421
  %v12464 = vunpack.c.h.b16 %v12421
  %v12465 = vunpack.c.l.b16 %v12422
  %v12466 = vunpack.c.h.b16 %v12422
  %v12467 = vunpack.c.l.b16 %v12423
  %v12468 = vunpack.c.h.b16 %v12423
  %v12469 = vunpack.c.l.b16 %v12424
  %v12470 = vunpack.c.h.b16 %v12424
  %v12471 = vunpack.c.l.b16 %v12425
  %v12472 = vunpack.c.h.b16 %v12425
  %v12473 = vunpack.c.l.b16 %v12426
  %v12474 = vunpack.c.h.b16 %v12426
  %v12475 = vpack.c.b16 %v12447, %v12443
  %v12476 = vpack.c.b16 %v12448, %v12444
  %v12477 = vpack.c.b16 %v12449, %v12445
  %v12478 = vpack.c.b16 %v12450, %v12446
  %v12479 = vpack.c.b16 %v12455, %v12451
  %v12480 = vpack.c.b16 %v12456, %v12452
  %v12481 = vpack.c.b16 %v12457, %v12453
  %v12482 = vpack.c.b16 %v12458, %v12454
  %v12483 = vpack.c.b16 %v12463, %v12459
  %v12484 = vpack.c.b16 %v12464, %v12460
  %v12485 = vpack.c.b16 %v12465, %v12461
  %v12486 = vpack.c.b16 %v12466, %v12462
  %v12487 = vpack.c.b16 %v12471, %v12467
  %v12488 = vpack.c.b16 %v12472, %v12468
  %v12489 = vpack.c.b16 %v12473, %v12469
  %v12490 = vpack.c.b16 %v12474, %v12470
  %v12508 = vsel %vm7131, %v11108, 0
  %12510 = vmatprep.subr.bf16.mxu0 %v12476
  %12511 = vmatpush1.bf16.msra.mxu0 %v12475
  %12512 = vmatprep.subr.bf16.mxu0 %v12480
  %12513 = vmatpush1.bf16.msra.mxu0 %v12479
  %12514 = vmatprep.subr.bf16.mxu0 %v12484
  %12515 = vmatpush1.bf16.msra.mxu0 %v12483
  %12516 = vmatprep.subr.bf16.mxu0 %v12488
  %12517 = vmatpush1.bf16.msra.mxu0 %v12487
  %12518 = vmatprep.subr.bf16.mxu0 0
  %12519 = vmatpush1.bf16.msra.mxu0 0
  %12520 = vmatprep.subr.bf16.mxu0 0
  %12521 = vmatpush1.bf16.msra.mxu0 0
  %12522 = vmatprep.subr.bf16.mxu0 0
  %12523 = vmatpush1.bf16.msra.mxu0 0
  %12524 = vmatprep.subr.bf16.mxu0 0
  %12525 = vmatpush1.bf16.msra.mxu0 0
  %12526 = vmatprep.subr.bf16.mxu0 0
  %12527 = vmatpush1.bf16.msra.mxu0 0
  %12528 = vmatprep.subr.bf16.mxu0 0
  %12529 = vmatpush1.bf16.msra.mxu0 0
  %12530 = vmatprep.subr.bf16.mxu0 0
  %12531 = vmatpush1.bf16.msra.mxu0 0
  %12532 = vmatprep.subr.bf16.mxu0 0
  %12533 = vmatpush1.bf16.msra.mxu0 0
  %12534 = vmatprep.subr.bf16.mxu0 0
  %12535 = vmatpush1.bf16.msra.mxu0 0
  %12536 = vmatprep.subr.bf16.mxu0 0
  %12537 = vmatpush1.bf16.msra.mxu0 0
  %12538 = vmatprep.subr.bf16.mxu0 0
  %12539 = vmatpush1.bf16.msra.mxu0 0
  %12540 = vmatprep.subr.bf16.mxu0 0
  %12541 = vmatpush1.bf16.msra.mxu0 0
  %12542 = vmatprep.mubr.bf16.mxu0 0
  %12543 = vmatmul.mubr.bf16.gmra.mrb[0].mxu0 %v12508
  %v12544 = vpop.f32.mrb[0].mxu0
  %v12545 = vadd.f32 0.0, %v12544
  %v12546 = vpop.f32.mrb[0].mxu0
  %v12547 = vadd.f32 0.0, %v12546
  %v12548 = vpop.f32.mrb[0].mxu0
  %v12549 = vpop.f32.mrb[0].mxu0
  %12550 = vdwg.mxu0
  %12551 = vmatprep.subr.bf16.mxu0 %v12478
  %12552 = vmatpush1.bf16.msra.mxu0 %v12477
  %12553 = vmatprep.subr.bf16.mxu0 %v12482
  %12554 = vmatpush1.bf16.msra.mxu0 %v12481
  %12555 = vmatprep.subr.bf16.mxu0 %v12486
  %12556 = vmatpush1.bf16.msra.mxu0 %v12485
  %12557 = vmatprep.subr.bf16.mxu0 %v12490
  %12558 = vmatpush1.bf16.msra.mxu0 %v12489
  %12559 = vmatprep.subr.bf16.mxu0 0
  %12560 = vmatpush1.bf16.msra.mxu0 0
  %12561 = vmatprep.subr.bf16.mxu0 0
  %12562 = vmatpush1.bf16.msra.mxu0 0
  %12563 = vmatprep.subr.bf16.mxu0 0
  %12564 = vmatpush1.bf16.msra.mxu0 0
  %12565 = vmatprep.subr.bf16.mxu0 0
  %12566 = vmatpush1.bf16.msra.mxu0 0
  %12567 = vmatprep.subr.bf16.mxu0 0
  %12568 = vmatpush1.bf16.msra.mxu0 0
  %12569 = vmatprep.subr.bf16.mxu0 0
  %12570 = vmatpush1.bf16.msra.mxu0 0
  %12571 = vmatprep.subr.bf16.mxu0 0
  %12572 = vmatpush1.bf16.msra.mxu0 0
  %12573 = vmatprep.subr.bf16.mxu0 0
  %12574 = vmatpush1.bf16.msra.mxu0 0
  %12575 = vmatprep.subr.bf16.mxu0 0
  %12576 = vmatpush1.bf16.msra.mxu0 0
  %12577 = vmatprep.subr.bf16.mxu0 0
  %12578 = vmatpush1.bf16.msra.mxu0 0
  %12579 = vmatprep.subr.bf16.mxu0 0
  %12580 = vmatpush1.bf16.msra.mxu0 0
  %12581 = vmatprep.subr.bf16.mxu0 0
  %12582 = vmatpush1.bf16.msra.mxu0 0
  %12583 = vmatprep.mubr.bf16.mxu0 0
  %12584 = vmatmul.mubr.bf16.gmra.mrb[0].mxu0 %v12508
  %v12585 = vpop.f32.mrb[0].mxu0
  %v12586 = vadd.f32 0.0, %v12585
  %v12587 = vpop.f32.mrb[0].mxu0
  %v12588 = vadd.f32 0.0, %v12587
  %v12589 = vpop.f32.mrb[0].mxu0
  %v12590 = vpop.f32.mrb[0].mxu0
  %12591 = vdwg.mxu0
  %v12592 = vadd.f32 %v12406, %v12545
  %v12593 = vadd.f32 %v12407, %v12547
  %v12594 = vadd.f32 %v12408, %v12586
  %v12595 = vadd.f32 %v12409, %v12588
  %s12596 = scalar_lea.vmem %s5, 1024
  %v12597 = vld [vmem:[%s12596] sm:$0xff]
  %v12598 = vld [vmem:[%s12596 + $0x8] sm:$0xff]
  %v12599 = vld [vmem:[%s12596 + $0x10] sm:$0xff]
  %v12600 = vld [vmem:[%s12596 + $0x18] sm:$0xff]
  %v12601 = vld [vmem:[%s12596 + $0x20] sm:$0xff]
  %v12602 = vld [vmem:[%s12596 + $0x28] sm:$0xff]
  %v12603 = vld [vmem:[%s12596 + $0x30] sm:$0xff]
  %v12604 = vld [vmem:[%s12596 + $0x38] sm:$0xff]
  %v12605 = vld [vmem:[%s12596 + $0x40] sm:$0xff]
  %v12606 = vld [vmem:[%s12596 + $0x48] sm:$0xff]
  %v12607 = vld [vmem:[%s12596 + $0x50] sm:$0xff]
  %v12608 = vld [vmem:[%s12596 + $0x58] sm:$0xff]
  %v12609 = vld [vmem:[%s12596 + $0x60] sm:$0xff]
  %v12610 = vld [vmem:[%s12596 + $0x68] sm:$0xff]
  %v12611 = vld [vmem:[%s12596 + $0x70] sm:$0xff]
  %v12612 = vld [vmem:[%s12596 + $0x78] sm:$0xff]
  %v12629 = vunpack.c.l.b16 %v12597
  %v12630 = vunpack.c.h.b16 %v12597
  %v12631 = vunpack.c.l.b16 %v12598
  %v12632 = vunpack.c.h.b16 %v12598
  %v12633 = vunpack.c.l.b16 %v12599
  %v12634 = vunpack.c.h.b16 %v12599
  %v12635 = vunpack.c.l.b16 %v12600
  %v12636 = vunpack.c.h.b16 %v12600
  %v12637 = vunpack.c.l.b16 %v12601
  %v12638 = vunpack.c.h.b16 %v12601
  %v12639 = vunpack.c.l.b16 %v12602
  %v12640 = vunpack.c.h.b16 %v12602
  %v12641 = vunpack.c.l.b16 %v12603
  %v12642 = vunpack.c.h.b16 %v12603
  %v12643 = vunpack.c.l.b16 %v12604
  %v12644 = vunpack.c.h.b16 %v12604
  %v12645 = vunpack.c.l.b16 %v12605
  %v12646 = vunpack.c.h.b16 %v12605
  %v12647 = vunpack.c.l.b16 %v12606
  %v12648 = vunpack.c.h.b16 %v12606
  %v12649 = vunpack.c.l.b16 %v12607
  %v12650 = vunpack.c.h.b16 %v12607
  %v12651 = vunpack.c.l.b16 %v12608
  %v12652 = vunpack.c.h.b16 %v12608
  %v12653 = vunpack.c.l.b16 %v12609
  %v12654 = vunpack.c.h.b16 %v12609
  %v12655 = vunpack.c.l.b16 %v12610
  %v12656 = vunpack.c.h.b16 %v12610
  %v12657 = vunpack.c.l.b16 %v12611
  %v12658 = vunpack.c.h.b16 %v12611
  %v12659 = vunpack.c.l.b16 %v12612
  %v12660 = vunpack.c.h.b16 %v12612
  %v12661 = vpack.c.b16 %v12633, %v12629
  %v12662 = vpack.c.b16 %v12634, %v12630
  %v12663 = vpack.c.b16 %v12635, %v12631
  %v12664 = vpack.c.b16 %v12636, %v12632
  %v12665 = vpack.c.b16 %v12641, %v12637
  %v12666 = vpack.c.b16 %v12642, %v12638
  %v12667 = vpack.c.b16 %v12643, %v12639
  %v12668 = vpack.c.b16 %v12644, %v12640
  %v12669 = vpack.c.b16 %v12649, %v12645
  %v12670 = vpack.c.b16 %v12650, %v12646
  %v12671 = vpack.c.b16 %v12651, %v12647
  %v12672 = vpack.c.b16 %v12652, %v12648
  %v12673 = vpack.c.b16 %v12657, %v12653
  %v12674 = vpack.c.b16 %v12658, %v12654
  %v12675 = vpack.c.b16 %v12659, %v12655
  %v12676 = vpack.c.b16 %v12660, %v12656
  %v12694 = vsel %vm7131, %v11109, 0
  %12696 = vmatprep.subr.bf16.mxu0 %v12662
  %12697 = vmatpush1.bf16.msra.mxu0 %v12661
  %12698 = vmatprep.subr.bf16.mxu0 %v12666
  %12699 = vmatpush1.bf16.msra.mxu0 %v12665
  %12700 = vmatprep.subr.bf16.mxu0 %v12670
  %12701 = vmatpush1.bf16.msra.mxu0 %v12669
  %12702 = vmatprep.subr.bf16.mxu0 %v12674
  %12703 = vmatpush1.bf16.msra.mxu0 %v12673
  %12704 = vmatprep.subr.bf16.mxu0 0
  %12705 = vmatpush1.bf16.msra.mxu0 0
  %12706 = vmatprep.subr.bf16.mxu0 0
  %12707 = vmatpush1.bf16.msra.mxu0 0
  %12708 = vmatprep.subr.bf16.mxu0 0
  %12709 = vmatpush1.bf16.msra.mxu0 0
  %12710 = vmatprep.subr.bf16.mxu0 0
  %12711 = vmatpush1.bf16.msra.mxu0 0
  %12712 = vmatprep.subr.bf16.mxu0 0
  %12713 = vmatpush1.bf16.msra.mxu0 0
  %12714 = vmatprep.subr.bf16.mxu0 0
  %12715 = vmatpush1.bf16.msra.mxu0 0
  %12716 = vmatprep.subr.bf16.mxu0 0
  %12717 = vmatpush1.bf16.msra.mxu0 0
  %12718 = vmatprep.subr.bf16.mxu0 0
  %12719 = vmatpush1.bf16.msra.mxu0 0
  %12720 = vmatprep.subr.bf16.mxu0 0
  %12721 = vmatpush1.bf16.msra.mxu0 0
  %12722 = vmatprep.subr.bf16.mxu0 0
  %12723 = vmatpush1.bf16.msra.mxu0 0
  %12724 = vmatprep.subr.bf16.mxu0 0
  %12725 = vmatpush1.bf16.msra.mxu0 0
  %12726 = vmatprep.subr.bf16.mxu0 0
  %12727 = vmatpush1.bf16.msra.mxu0 0
  %12728 = vmatprep.mubr.bf16.mxu0 0
  %12729 = vmatmul.mubr.bf16.gmra.mrb[0].mxu0 %v12694
  %v12730 = vpop.f32.mrb[0].mxu0
  %v12731 = vadd.f32 0.0, %v12730
  %v12732 = vpop.f32.mrb[0].mxu0
  %v12733 = vadd.f32 0.0, %v12732
  %v12734 = vpop.f32.mrb[0].mxu0
  %v12735 = vpop.f32.mrb[0].mxu0
  %12736 = vdwg.mxu0
  %12737 = vmatprep.subr.bf16.mxu0 %v12664
  %12738 = vmatpush1.bf16.msra.mxu0 %v12663
  %12739 = vmatprep.subr.bf16.mxu0 %v12668
  %12740 = vmatpush1.bf16.msra.mxu0 %v12667
  %12741 = vmatprep.subr.bf16.mxu0 %v12672
  %12742 = vmatpush1.bf16.msra.mxu0 %v12671
  %12743 = vmatprep.subr.bf16.mxu0 %v12676
  %12744 = vmatpush1.bf16.msra.mxu0 %v12675
  %12745 = vmatprep.subr.bf16.mxu0 0
  %12746 = vmatpush1.bf16.msra.mxu0 0
  %12747 = vmatprep.subr.bf16.mxu0 0
  %12748 = vmatpush1.bf16.msra.mxu0 0
  %12749 = vmatprep.subr.bf16.mxu0 0
  %12750 = vmatpush1.bf16.msra.mxu0 0
  %12751 = vmatprep.subr.bf16.mxu0 0
  %12752 = vmatpush1.bf16.msra.mxu0 0
  %12753 = vmatprep.subr.bf16.mxu0 0
  %12754 = vmatpush1.bf16.msra.mxu0 0
  %12755 = vmatprep.subr.bf16.mxu0 0
  %12756 = vmatpush1.bf16.msra.mxu0 0
  %12757 = vmatprep.subr.bf16.mxu0 0
  %12758 = vmatpush1.bf16.msra.mxu0 0
  %12759 = vmatprep.subr.bf16.mxu0 0
  %12760 = vmatpush1.bf16.msra.mxu0 0
  %12761 = vmatprep.subr.bf16.mxu0 0
  %12762 = vmatpush1.bf16.msra.mxu0 0
  %12763 = vmatprep.subr.bf16.mxu0 0
  %12764 = vmatpush1.bf16.msra.mxu0 0
  %12765 = vmatprep.subr.bf16.mxu0 0
  %12766 = vmatpush1.bf16.msra.mxu0 0
  %12767 = vmatprep.subr.bf16.mxu0 0
  %12768 = vmatpush1.bf16.msra.mxu0 0
  %12769 = vmatprep.mubr.bf16.mxu0 0
  %12770 = vmatmul.mubr.bf16.gmra.mrb[0].mxu0 %v12694
  %v12771 = vpop.f32.mrb[0].mxu0
  %v12772 = vadd.f32 0.0, %v12771
  %v12773 = vpop.f32.mrb[0].mxu0
  %v12774 = vadd.f32 0.0, %v12773
  %v12775 = vpop.f32.mrb[0].mxu0
  %v12776 = vpop.f32.mrb[0].mxu0
  %12777 = vdwg.mxu0
  %v12778 = vadd.f32 %v12592, %v12731
  %v12779 = vadd.f32 %v12593, %v12733
  %v12780 = vadd.f32 %v12594, %v12772
  %v12781 = vadd.f32 %v12595, %v12774
  %s12782 = scalar_lea.vmem %s5, 1152
  %v12783 = vld [vmem:[%s12782] sm:$0xff]
  %v12784 = vld [vmem:[%s12782 + $0x8] sm:$0xff]
  %v12785 = vld [vmem:[%s12782 + $0x10] sm:$0xff]
  %v12786 = vld [vmem:[%s12782 + $0x18] sm:$0xff]
  %v12787 = vld [vmem:[%s12782 + $0x20] sm:$0xff]
  %v12788 = vld [vmem:[%s12782 + $0x28] sm:$0xff]
  %v12789 = vld [vmem:[%s12782 + $0x30] sm:$0xff]
  %v12790 = vld [vmem:[%s12782 + $0x38] sm:$0xff]
  %v12791 = vld [vmem:[%s12782 + $0x40] sm:$0xff]
  %v12792 = vld [vmem:[%s12782 + $0x48] sm:$0xff]
  %v12793 = vld [vmem:[%s12782 + $0x50] sm:$0xff]
  %v12794 = vld [vmem:[%s12782 + $0x58] sm:$0xff]
  %v12795 = vld [vmem:[%s12782 + $0x60] sm:$0xff]
  %v12796 = vld [vmem:[%s12782 + $0x68] sm:$0xff]
  %v12797 = vld [vmem:[%s12782 + $0x70] sm:$0xff]
  %v12798 = vld [vmem:[%s12782 + $0x78] sm:$0xff]
  %v12815 = vunpack.c.l.b16 %v12783
  %v12816 = vunpack.c.h.b16 %v12783
  %v12817 = vunpack.c.l.b16 %v12784
  %v12818 = vunpack.c.h.b16 %v12784
  %v12819 = vunpack.c.l.b16 %v12785
  %v12820 = vunpack.c.h.b16 %v12785
  %v12821 = vunpack.c.l.b16 %v12786
  %v12822 = vunpack.c.h.b16 %v12786
  %v12823 = vunpack.c.l.b16 %v12787
  %v12824 = vunpack.c.h.b16 %v12787
  %v12825 = vunpack.c.l.b16 %v12788
  %v12826 = vunpack.c.h.b16 %v12788
  %v12827 = vunpack.c.l.b16 %v12789
  %v12828 = vunpack.c.h.b16 %v12789
  %v12829 = vunpack.c.l.b16 %v12790
  %v12830 = vunpack.c.h.b16 %v12790
  %v12831 = vunpack.c.l.b16 %v12791
  %v12832 = vunpack.c.h.b16 %v12791
  %v12833 = vunpack.c.l.b16 %v12792
  %v12834 = vunpack.c.h.b16 %v12792
  %v12835 = vunpack.c.l.b16 %v12793
  %v12836 = vunpack.c.h.b16 %v12793
  %v12837 = vunpack.c.l.b16 %v12794
  %v12838 = vunpack.c.h.b16 %v12794
  %v12839 = vunpack.c.l.b16 %v12795
  %v12840 = vunpack.c.h.b16 %v12795
  %v12841 = vunpack.c.l.b16 %v12796
  %v12842 = vunpack.c.h.b16 %v12796
  %v12843 = vunpack.c.l.b16 %v12797
  %v12844 = vunpack.c.h.b16 %v12797
  %v12845 = vunpack.c.l.b16 %v12798
  %v12846 = vunpack.c.h.b16 %v12798
  %v12847 = vpack.c.b16 %v12819, %v12815
  %v12848 = vpack.c.b16 %v12820, %v12816
  %v12849 = vpack.c.b16 %v12821, %v12817
  %v12850 = vpack.c.b16 %v12822, %v12818
  %v12851 = vpack.c.b16 %v12827, %v12823
  %v12852 = vpack.c.b16 %v12828, %v12824
  %v12853 = vpack.c.b16 %v12829, %v12825
  %v12854 = vpack.c.b16 %v12830, %v12826
  %v12855 = vpack.c.b16 %v12835, %v12831
  %v12856 = vpack.c.b16 %v12836, %v12832
  %v12857 = vpack.c.b16 %v12837, %v12833
  %v12858 = vpack.c.b16 %v12838, %v12834
  %v12859 = vpack.c.b16 %v12843, %v12839
  %v12860 = vpack.c.b16 %v12844, %v12840
  %v12861 = vpack.c.b16 %v12845, %v12841
  %v12862 = vpack.c.b16 %v12846, %v12842
  %v12880 = vsel %vm7131, %v11110, 0
  %12882 = vmatprep.subr.bf16.mxu0 %v12848
  %12883 = vmatpush1.bf16.msra.mxu0 %v12847
  %12884 = vmatprep.subr.bf16.mxu0 %v12852
  %12885 = vmatpush1.bf16.msra.mxu0 %v12851
  %12886 = vmatprep.subr.bf16.mxu0 %v12856
  %12887 = vmatpush1.bf16.msra.mxu0 %v12855
  %12888 = vmatprep.subr.bf16.mxu0 %v12860
  %12889 = vmatpush1.bf16.msra.mxu0 %v12859
  %12890 = vmatprep.subr.bf16.mxu0 0
  %12891 = vmatpush1.bf16.msra.mxu0 0
  %12892 = vmatprep.subr.bf16.mxu0 0
  %12893 = vmatpush1.bf16.msra.mxu0 0
  %12894 = vmatprep.subr.bf16.mxu0 0
  %12895 = vmatpush1.bf16.msra.mxu0 0
  %12896 = vmatprep.subr.bf16.mxu0 0
  %12897 = vmatpush1.bf16.msra.mxu0 0
  %12898 = vmatprep.subr.bf16.mxu0 0
  %12899 = vmatpush1.bf16.msra.mxu0 0
  %12900 = vmatprep.subr.bf16.mxu0 0
  %12901 = vmatpush1.bf16.msra.mxu0 0
  %12902 = vmatprep.subr.bf16.mxu0 0
  %12903 = vmatpush1.bf16.msra.mxu0 0
  %12904 = vmatprep.subr.bf16.mxu0 0
  %12905 = vmatpush1.bf16.msra.mxu0 0
  %12906 = vmatprep.subr.bf16.mxu0 0
  %12907 = vmatpush1.bf16.msra.mxu0 0
  %12908 = vmatprep.subr.bf16.mxu0 0
  %12909 = vmatpush1.bf16.msra.mxu0 0
  %12910 = vmatprep.subr.bf16.mxu0 0
  %12911 = vmatpush1.bf16.msra.mxu0 0
  %12912 = vmatprep.subr.bf16.mxu0 0
  %12913 = vmatpush1.bf16.msra.mxu0 0
  %12914 = vmatprep.mubr.bf16.mxu0 0
  %12915 = vmatmul.mubr.bf16.gmra.mrb[0].mxu0 %v12880
  %v12916 = vpop.f32.mrb[0].mxu0
  %v12917 = vadd.f32 0.0, %v12916
  %v12918 = vpop.f32.mrb[0].mxu0
  %v12919 = vadd.f32 0.0, %v12918
  %v12920 = vpop.f32.mrb[0].mxu0
  %v12921 = vpop.f32.mrb[0].mxu0
  %12922 = vdwg.mxu0
  %12923 = vmatprep.subr.bf16.mxu0 %v12850
  %12924 = vmatpush1.bf16.msra.mxu0 %v12849
  %12925 = vmatprep.subr.bf16.mxu0 %v12854
  %12926 = vmatpush1.bf16.msra.mxu0 %v12853
  %12927 = vmatprep.subr.bf16.mxu0 %v12858
  %12928 = vmatpush1.bf16.msra.mxu0 %v12857
  %12929 = vmatprep.subr.bf16.mxu0 %v12862
  %12930 = vmatpush1.bf16.msra.mxu0 %v12861
  %12931 = vmatprep.subr.bf16.mxu0 0
  %12932 = vmatpush1.bf16.msra.mxu0 0
  %12933 = vmatprep.subr.bf16.mxu0 0
  %12934 = vmatpush1.bf16.msra.mxu0 0
  %12935 = vmatprep.subr.bf16.mxu0 0
  %12936 = vmatpush1.bf16.msra.mxu0 0
  %12937 = vmatprep.subr.bf16.mxu0 0
  %12938 = vmatpush1.bf16.msra.mxu0 0
  %12939 = vmatprep.subr.bf16.mxu0 0
  %12940 = vmatpush1.bf16.msra.mxu0 0
  %12941 = vmatprep.subr.bf16.mxu0 0
  %12942 = vmatpush1.bf16.msra.mxu0 0
  %12943 = vmatprep.subr.bf16.mxu0 0
  %12944 = vmatpush1.bf16.msra.mxu0 0
  %12945 = vmatprep.subr.bf16.mxu0 0
  %12946 = vmatpush1.bf16.msra.mxu0 0
  %12947 = vmatprep.subr.bf16.mxu0 0
  %12948 = vmatpush1.bf16.msra.mxu0 0
  %12949 = vmatprep.subr.bf16.mxu0 0
  %12950 = vmatpush1.bf16.msra.mxu0 0
  %12951 = vmatprep.subr.bf16.mxu0 0
  %12952 = vmatpush1.bf16.msra.mxu0 0
  %12953 = vmatprep.subr.bf16.mxu0 0
  %12954 = vmatpush1.bf16.msra.mxu0 0
  %12955 = vmatprep.mubr.bf16.mxu0 0
  %12956 = vmatmul.mubr.bf16.gmra.mrb[0].mxu0 %v12880
  %v12957 = vpop.f32.mrb[0].mxu0
  %v12958 = vadd.f32 0.0, %v12957
  %v12959 = vpop.f32.mrb[0].mxu0
  %v12960 = vadd.f32 0.0, %v12959
  %v12961 = vpop.f32.mrb[0].mxu0
  %v12962 = vpop.f32.mrb[0].mxu0
  %12963 = vdwg.mxu0
  %v12964 = vadd.f32 %v12778, %v12917
  %v12965 = vadd.f32 %v12779, %v12919
  %v12966 = vadd.f32 %v12780, %v12958
  %v12967 = vadd.f32 %v12781, %v12960
  %s12968 = scalar_lea.vmem %s5, 1280
  %v12969 = vld [vmem:[%s12968] sm:$0xff]
  %v12970 = vld [vmem:[%s12968 + $0x8] sm:$0xff]
  %v12971 = vld [vmem:[%s12968 + $0x10] sm:$0xff]
  %v12972 = vld [vmem:[%s12968 + $0x18] sm:$0xff]
  %v12973 = vld [vmem:[%s12968 + $0x20] sm:$0xff]
  %v12974 = vld [vmem:[%s12968 + $0x28] sm:$0xff]
  %v12975 = vld [vmem:[%s12968 + $0x30] sm:$0xff]
  %v12976 = vld [vmem:[%s12968 + $0x38] sm:$0xff]
  %v12977 = vld [vmem:[%s12968 + $0x40] sm:$0xff]
  %v12978 = vld [vmem:[%s12968 + $0x48] sm:$0xff]
  %v12979 = vld [vmem:[%s12968 + $0x50] sm:$0xff]
  %v12980 = vld [vmem:[%s12968 + $0x58] sm:$0xff]
  %v12981 = vld [vmem:[%s12968 + $0x60] sm:$0xff]
  %v12982 = vld [vmem:[%s12968 + $0x68] sm:$0xff]
  %v12983 = vld [vmem:[%s12968 + $0x70] sm:$0xff]
  %v12984 = vld [vmem:[%s12968 + $0x78] sm:$0xff]
  %v13001 = vunpack.c.l.b16 %v12969
  %v13002 = vunpack.c.h.b16 %v12969
  %v13003 = vunpack.c.l.b16 %v12970
  %v13004 = vunpack.c.h.b16 %v12970
  %v13005 = vunpack.c.l.b16 %v12971
  %v13006 = vunpack.c.h.b16 %v12971
  %v13007 = vunpack.c.l.b16 %v12972
  %v13008 = vunpack.c.h.b16 %v12972
  %v13009 = vunpack.c.l.b16 %v12973
  %v13010 = vunpack.c.h.b16 %v12973
  %v13011 = vunpack.c.l.b16 %v12974
  %v13012 = vunpack.c.h.b16 %v12974
  %v13013 = vunpack.c.l.b16 %v12975
  %v13014 = vunpack.c.h.b16 %v12975
  %v13015 = vunpack.c.l.b16 %v12976
  %v13016 = vunpack.c.h.b16 %v12976
  %v13017 = vunpack.c.l.b16 %v12977
  %v13018 = vunpack.c.h.b16 %v12977
  %v13019 = vunpack.c.l.b16 %v12978
  %v13020 = vunpack.c.h.b16 %v12978
  %v13021 = vunpack.c.l.b16 %v12979
  %v13022 = vunpack.c.h.b16 %v12979
  %v13023 = vunpack.c.l.b16 %v12980
  %v13024 = vunpack.c.h.b16 %v12980
  %v13025 = vunpack.c.l.b16 %v12981
  %v13026 = vunpack.c.h.b16 %v12981
  %v13027 = vunpack.c.l.b16 %v12982
  %v13028 = vunpack.c.h.b16 %v12982
  %v13029 = vunpack.c.l.b16 %v12983
  %v13030 = vunpack.c.h.b16 %v12983
  %v13031 = vunpack.c.l.b16 %v12984
  %v13032 = vunpack.c.h.b16 %v12984
  %v13033 = vpack.c.b16 %v13005, %v13001
  %v13034 = vpack.c.b16 %v13006, %v13002
  %v13035 = vpack.c.b16 %v13007, %v13003
  %v13036 = vpack.c.b16 %v13008, %v13004
  %v13037 = vpack.c.b16 %v13013, %v13009
  %v13038 = vpack.c.b16 %v13014, %v13010
  %v13039 = vpack.c.b16 %v13015, %v13011
  %v13040 = vpack.c.b16 %v13016, %v13012
  %v13041 = vpack.c.b16 %v13021, %v13017
  %v13042 = vpack.c.b16 %v13022, %v13018
  %v13043 = vpack.c.b16 %v13023, %v13019
  %v13044 = vpack.c.b16 %v13024, %v13020
  %v13045 = vpack.c.b16 %v13029, %v13025
  %v13046 = vpack.c.b16 %v13030, %v13026
  %v13047 = vpack.c.b16 %v13031, %v13027
  %v13048 = vpack.c.b16 %v13032, %v13028
  %v13066 = vsel %vm7131, %v11111, 0
  %13068 = vmatprep.subr.bf16.mxu0 %v13034
  %13069 = vmatpush1.bf16.msra.mxu0 %v13033
  %13070 = vmatprep.subr.bf16.mxu0 %v13038
  %13071 = vmatpush1.bf16.msra.mxu0 %v13037
  %13072 = vmatprep.subr.bf16.mxu0 %v13042
  %13073 = vmatpush1.bf16.msra.mxu0 %v13041
  %13074 = vmatprep.subr.bf16.mxu0 %v13046
  %13075 = vmatpush1.bf16.msra.mxu0 %v13045
  %13076 = vmatprep.subr.bf16.mxu0 0
  %13077 = vmatpush1.bf16.msra.mxu0 0
  %13078 = vmatprep.subr.bf16.mxu0 0
  %13079 = vmatpush1.bf16.msra.mxu0 0
  %13080 = vmatprep.subr.bf16.mxu0 0
  %13081 = vmatpush1.bf16.msra.mxu0 0
  %13082 = vmatprep.subr.bf16.mxu0 0
  %13083 = vmatpush1.bf16.msra.mxu0 0
  %13084 = vmatprep.subr.bf16.mxu0 0
  %13085 = vmatpush1.bf16.msra.mxu0 0
  %13086 = vmatprep.subr.bf16.mxu0 0
  %13087 = vmatpush1.bf16.msra.mxu0 0
  %13088 = vmatprep.subr.bf16.mxu0 0
  %13089 = vmatpush1.bf16.msra.mxu0 0
  %13090 = vmatprep.subr.bf16.mxu0 0
  %13091 = vmatpush1.bf16.msra.mxu0 0
  %13092 = vmatprep.subr.bf16.mxu0 0
  %13093 = vmatpush1.bf16.msra.mxu0 0
  %13094 = vmatprep.subr.bf16.mxu0 0
  %13095 = vmatpush1.bf16.msra.mxu0 0
  %13096 = vmatprep.subr.bf16.mxu0 0
  %13097 = vmatpush1.bf16.msra.mxu0 0
  %13098 = vmatprep.subr.bf16.mxu0 0
  %13099 = vmatpush1.bf16.msra.mxu0 0
  %13100 = vmatprep.mubr.bf16.mxu0 0
  %13101 = vmatmul.mubr.bf16.gmra.mrb[0].mxu0 %v13066
  %v13102 = vpop.f32.mrb[0].mxu0
  %v13103 = vadd.f32 0.0, %v13102
  %v13104 = vpop.f32.mrb[0].mxu0
  %v13105 = vadd.f32 0.0, %v13104
  %v13106 = vpop.f32.mrb[0].mxu0
  %v13107 = vpop.f32.mrb[0].mxu0
  %13108 = vdwg.mxu0
  %13109 = vmatprep.subr.bf16.mxu0 %v13036
  %13110 = vmatpush1.bf16.msra.mxu0 %v13035
  %13111 = vmatprep.subr.bf16.mxu0 %v13040
  %13112 = vmatpush1.bf16.msra.mxu0 %v13039
  %13113 = vmatprep.subr.bf16.mxu0 %v13044
  %13114 = vmatpush1.bf16.msra.mxu0 %v13043
  %13115 = vmatprep.subr.bf16.mxu0 %v13048
  %13116 = vmatpush1.bf16.msra.mxu0 %v13047
  %13117 = vmatprep.subr.bf16.mxu0 0
  %13118 = vmatpush1.bf16.msra.mxu0 0
  %13119 = vmatprep.subr.bf16.mxu0 0
  %13120 = vmatpush1.bf16.msra.mxu0 0
  %13121 = vmatprep.subr.bf16.mxu0 0
  %13122 = vmatpush1.bf16.msra.mxu0 0
  %13123 = vmatprep.subr.bf16.mxu0 0
  %13124 = vmatpush1.bf16.msra.mxu0 0
  %13125 = vmatprep.subr.bf16.mxu0 0
  %13126 = vmatpush1.bf16.msra.mxu0 0
  %13127 = vmatprep.subr.bf16.mxu0 0
  %13128 = vmatpush1.bf16.msra.mxu0 0
  %13129 = vmatprep.subr.bf16.mxu0 0
  %13130 = vmatpush1.bf16.msra.mxu0 0
  %13131 = vmatprep.subr.bf16.mxu0 0
  %13132 = vmatpush1.bf16.msra.mxu0 0
  %13133 = vmatprep.subr.bf16.mxu0 0
  %13134 = vmatpush1.bf16.msra.mxu0 0
  %13135 = vmatprep.subr.bf16.mxu0 0
  %13136 = vmatpush1.bf16.msra.mxu0 0
  %13137 = vmatprep.subr.bf16.mxu0 0
  %13138 = vmatpush1.bf16.msra.mxu0 0
  %13139 = vmatprep.subr.bf16.mxu0 0
  %13140 = vmatpush1.bf16.msra.mxu0 0
  %13141 = vmatprep.mubr.bf16.mxu0 0
  %13142 = vmatmul.mubr.bf16.gmra.mrb[0].mxu0 %v13066
  %v13143 = vpop.f32.mrb[0].mxu0
  %v13144 = vadd.f32 0.0, %v13143
  %v13145 = vpop.f32.mrb[0].mxu0
  %v13146 = vadd.f32 0.0, %v13145
  %v13147 = vpop.f32.mrb[0].mxu0
  %v13148 = vpop.f32.mrb[0].mxu0
  %13149 = vdwg.mxu0
  %v13150 = vadd.f32 %v12964, %v13103
  %v13151 = vadd.f32 %v12965, %v13105
  %v13152 = vadd.f32 %v12966, %v13144
  %v13153 = vadd.f32 %v12967, %v13146
  %s13154 = scalar_lea.vmem %s5, 1408
  %v13155 = vld [vmem:[%s13154] sm:$0xff]
  %v13156 = vld [vmem:[%s13154 + $0x8] sm:$0xff]
  %v13157 = vld [vmem:[%s13154 + $0x10] sm:$0xff]
  %v13158 = vld [vmem:[%s13154 + $0x18] sm:$0xff]
  %v13159 = vld [vmem:[%s13154 + $0x20] sm:$0xff]
  %v13160 = vld [vmem:[%s13154 + $0x28] sm:$0xff]
  %v13161 = vld [vmem:[%s13154 + $0x30] sm:$0xff]
  %v13162 = vld [vmem:[%s13154 + $0x38] sm:$0xff]
  %v13163 = vld [vmem:[%s13154 + $0x40] sm:$0xff]
  %v13164 = vld [vmem:[%s13154 + $0x48] sm:$0xff]
  %v13165 = vld [vmem:[%s13154 + $0x50] sm:$0xff]
  %v13166 = vld [vmem:[%s13154 + $0x58] sm:$0xff]
  %v13167 = vld [vmem:[%s13154 + $0x60] sm:$0xff]
  %v13168 = vld [vmem:[%s13154 + $0x68] sm:$0xff]
  %v13169 = vld [vmem:[%s13154 + $0x70] sm:$0xff]
  %v13170 = vld [vmem:[%s13154 + $0x78] sm:$0xff]
  %v13187 = vunpack.c.l.b16 %v13155
  %v13188 = vunpack.c.h.b16 %v13155
  %v13189 = vunpack.c.l.b16 %v13156
  %v13190 = vunpack.c.h.b16 %v13156
  %v13191 = vunpack.c.l.b16 %v13157
  %v13192 = vunpack.c.h.b16 %v13157
  %v13193 = vunpack.c.l.b16 %v13158
  %v13194 = vunpack.c.h.b16 %v13158
  %v13195 = vunpack.c.l.b16 %v13159
  %v13196 = vunpack.c.h.b16 %v13159
  %v13197 = vunpack.c.l.b16 %v13160
  %v13198 = vunpack.c.h.b16 %v13160
  %v13199 = vunpack.c.l.b16 %v13161
  %v13200 = vunpack.c.h.b16 %v13161
  %v13201 = vunpack.c.l.b16 %v13162
  %v13202 = vunpack.c.h.b16 %v13162
  %v13203 = vunpack.c.l.b16 %v13163
  %v13204 = vunpack.c.h.b16 %v13163
  %v13205 = vunpack.c.l.b16 %v13164
  %v13206 = vunpack.c.h.b16 %v13164
  %v13207 = vunpack.c.l.b16 %v13165
  %v13208 = vunpack.c.h.b16 %v13165
  %v13209 = vunpack.c.l.b16 %v13166
  %v13210 = vunpack.c.h.b16 %v13166
  %v13211 = vunpack.c.l.b16 %v13167
  %v13212 = vunpack.c.h.b16 %v13167
  %v13213 = vunpack.c.l.b16 %v13168
  %v13214 = vunpack.c.h.b16 %v13168
  %v13215 = vunpack.c.l.b16 %v13169
  %v13216 = vunpack.c.h.b16 %v13169
  %v13217 = vunpack.c.l.b16 %v13170
  %v13218 = vunpack.c.h.b16 %v13170
  %v13219 = vpack.c.b16 %v13191, %v13187
  %v13220 = vpack.c.b16 %v13192, %v13188
  %v13221 = vpack.c.b16 %v13193, %v13189
  %v13222 = vpack.c.b16 %v13194, %v13190
  %v13223 = vpack.c.b16 %v13199, %v13195
  %v13224 = vpack.c.b16 %v13200, %v13196
  %v13225 = vpack.c.b16 %v13201, %v13197
  %v13226 = vpack.c.b16 %v13202, %v13198
  %v13227 = vpack.c.b16 %v13207, %v13203
  %v13228 = vpack.c.b16 %v13208, %v13204
  %v13229 = vpack.c.b16 %v13209, %v13205
  %v13230 = vpack.c.b16 %v13210, %v13206
  %v13231 = vpack.c.b16 %v13215, %v13211
  %v13232 = vpack.c.b16 %v13216, %v13212
  %v13233 = vpack.c.b16 %v13217, %v13213
  %v13234 = vpack.c.b16 %v13218, %v13214
  %v13252 = vsel %vm7131, %v11112, 0
  %13254 = vmatprep.subr.bf16.mxu0 %v13220
  %13255 = vmatpush1.bf16.msra.mxu0 %v13219
  %13256 = vmatprep.subr.bf16.mxu0 %v13224
  %13257 = vmatpush1.bf16.msra.mxu0 %v13223
  %13258 = vmatprep.subr.bf16.mxu0 %v13228
  %13259 = vmatpush1.bf16.msra.mxu0 %v13227
  %13260 = vmatprep.subr.bf16.mxu0 %v13232
  %13261 = vmatpush1.bf16.msra.mxu0 %v13231
  %13262 = vmatprep.subr.bf16.mxu0 0
  %13263 = vmatpush1.bf16.msra.mxu0 0
  %13264 = vmatprep.subr.bf16.mxu0 0
  %13265 = vmatpush1.bf16.msra.mxu0 0
  %13266 = vmatprep.subr.bf16.mxu0 0
  %13267 = vmatpush1.bf16.msra.mxu0 0
  %13268 = vmatprep.subr.bf16.mxu0 0
  %13269 = vmatpush1.bf16.msra.mxu0 0
  %13270 = vmatprep.subr.bf16.mxu0 0
  %13271 = vmatpush1.bf16.msra.mxu0 0
  %13272 = vmatprep.subr.bf16.mxu0 0
  %13273 = vmatpush1.bf16.msra.mxu0 0
  %13274 = vmatprep.subr.bf16.mxu0 0
  %13275 = vmatpush1.bf16.msra.mxu0 0
  %13276 = vmatprep.subr.bf16.mxu0 0
  %13277 = vmatpush1.bf16.msra.mxu0 0
  %13278 = vmatprep.subr.bf16.mxu0 0
  %13279 = vmatpush1.bf16.msra.mxu0 0
  %13280 = vmatprep.subr.bf16.mxu0 0
  %13281 = vmatpush1.bf16.msra.mxu0 0
  %13282 = vmatprep.subr.bf16.mxu0 0
  %13283 = vmatpush1.bf16.msra.mxu0 0
  %13284 = vmatprep.subr.bf16.mxu0 0
  %13285 = vmatpush1.bf16.msra.mxu0 0
  %13286 = vmatprep.mubr.bf16.mxu0 0
  %13287 = vmatmul.mubr.bf16.gmra.mrb[0].mxu0 %v13252
  %v13288 = vpop.f32.mrb[0].mxu0
  %v13289 = vadd.f32 0.0, %v13288
  %v13290 = vpop.f32.mrb[0].mxu0
  %v13291 = vadd.f32 0.0, %v13290
  %v13292 = vpop.f32.mrb[0].mxu0
  %v13293 = vpop.f32.mrb[0].mxu0
  %13294 = vdwg.mxu0
  %13295 = vmatprep.subr.bf16.mxu0 %v13222
  %13296 = vmatpush1.bf16.msra.mxu0 %v13221
  %13297 = vmatprep.subr.bf16.mxu0 %v13226
  %13298 = vmatpush1.bf16.msra.mxu0 %v13225
  %13299 = vmatprep.subr.bf16.mxu0 %v13230
  %13300 = vmatpush1.bf16.msra.mxu0 %v13229
  %13301 = vmatprep.subr.bf16.mxu0 %v13234
  %13302 = vmatpush1.bf16.msra.mxu0 %v13233
  %13303 = vmatprep.subr.bf16.mxu0 0
  %13304 = vmatpush1.bf16.msra.mxu0 0
  %13305 = vmatprep.subr.bf16.mxu0 0
  %13306 = vmatpush1.bf16.msra.mxu0 0
  %13307 = vmatprep.subr.bf16.mxu0 0
  %13308 = vmatpush1.bf16.msra.mxu0 0
  %13309 = vmatprep.subr.bf16.mxu0 0
  %13310 = vmatpush1.bf16.msra.mxu0 0
  %13311 = vmatprep.subr.bf16.mxu0 0
  %13312 = vmatpush1.bf16.msra.mxu0 0
  %13313 = vmatprep.subr.bf16.mxu0 0
  %13314 = vmatpush1.bf16.msra.mxu0 0
  %13315 = vmatprep.subr.bf16.mxu0 0
  %13316 = vmatpush1.bf16.msra.mxu0 0
  %13317 = vmatprep.subr.bf16.mxu0 0
  %13318 = vmatpush1.bf16.msra.mxu0 0
  %13319 = vmatprep.subr.bf16.mxu0 0
  %13320 = vmatpush1.bf16.msra.mxu0 0
  %13321 = vmatprep.subr.bf16.mxu0 0
  %13322 = vmatpush1.bf16.msra.mxu0 0
  %13323 = vmatprep.subr.bf16.mxu0 0
  %13324 = vmatpush1.bf16.msra.mxu0 0
  %13325 = vmatprep.subr.bf16.mxu0 0
  %13326 = vmatpush1.bf16.msra.mxu0 0
  %13327 = vmatprep.mubr.bf16.mxu0 0
  %13328 = vmatmul.mubr.bf16.gmra.mrb[0].mxu0 %v13252
  %v13329 = vpop.f32.mrb[0].mxu0
  %v13330 = vadd.f32 0.0, %v13329
  %v13331 = vpop.f32.mrb[0].mxu0
  %v13332 = vadd.f32 0.0, %v13331
  %v13333 = vpop.f32.mrb[0].mxu0
  %v13334 = vpop.f32.mrb[0].mxu0
  %13335 = vdwg.mxu0
  %v13336 = vadd.f32 %v13150, %v13289
  %v13337 = vadd.f32 %v13151, %v13291
  %v13338 = vadd.f32 %v13152, %v13330
  %v13339 = vadd.f32 %v13153, %v13332
  %s13340 = scalar_lea.vmem %s5, 1536
  %v13341 = vld [vmem:[%s13340] sm:$0xff]
  %v13342 = vld [vmem:[%s13340 + $0x8] sm:$0xff]
  %v13343 = vld [vmem:[%s13340 + $0x10] sm:$0xff]
  %v13344 = vld [vmem:[%s13340 + $0x18] sm:$0xff]
  %v13345 = vld [vmem:[%s13340 + $0x20] sm:$0xff]
  %v13346 = vld [vmem:[%s13340 + $0x28] sm:$0xff]
  %v13347 = vld [vmem:[%s13340 + $0x30] sm:$0xff]
  %v13348 = vld [vmem:[%s13340 + $0x38] sm:$0xff]
  %v13349 = vld [vmem:[%s13340 + $0x40] sm:$0xff]
  %v13350 = vld [vmem:[%s13340 + $0x48] sm:$0xff]
  %v13351 = vld [vmem:[%s13340 + $0x50] sm:$0xff]
  %v13352 = vld [vmem:[%s13340 + $0x58] sm:$0xff]
  %v13353 = vld [vmem:[%s13340 + $0x60] sm:$0xff]
  %v13354 = vld [vmem:[%s13340 + $0x68] sm:$0xff]
  %v13355 = vld [vmem:[%s13340 + $0x70] sm:$0xff]
  %v13356 = vld [vmem:[%s13340 + $0x78] sm:$0xff]
  %v13373 = vunpack.c.l.b16 %v13341
  %v13374 = vunpack.c.h.b16 %v13341
  %v13375 = vunpack.c.l.b16 %v13342
  %v13376 = vunpack.c.h.b16 %v13342
  %v13377 = vunpack.c.l.b16 %v13343
  %v13378 = vunpack.c.h.b16 %v13343
  %v13379 = vunpack.c.l.b16 %v13344
  %v13380 = vunpack.c.h.b16 %v13344
  %v13381 = vunpack.c.l.b16 %v13345
  %v13382 = vunpack.c.h.b16 %v13345
  %v13383 = vunpack.c.l.b16 %v13346
  %v13384 = vunpack.c.h.b16 %v13346
  %v13385 = vunpack.c.l.b16 %v13347
  %v13386 = vunpack.c.h.b16 %v13347
  %v13387 = vunpack.c.l.b16 %v13348
  %v13388 = vunpack.c.h.b16 %v13348
  %v13389 = vunpack.c.l.b16 %v13349
  %v13390 = vunpack.c.h.b16 %v13349
  %v13391 = vunpack.c.l.b16 %v13350
  %v13392 = vunpack.c.h.b16 %v13350
  %v13393 = vunpack.c.l.b16 %v13351
  %v13394 = vunpack.c.h.b16 %v13351
  %v13395 = vunpack.c.l.b16 %v13352
  %v13396 = vunpack.c.h.b16 %v13352
  %v13397 = vunpack.c.l.b16 %v13353
  %v13398 = vunpack.c.h.b16 %v13353
  %v13399 = vunpack.c.l.b16 %v13354
  %v13400 = vunpack.c.h.b16 %v13354
  %v13401 = vunpack.c.l.b16 %v13355
  %v13402 = vunpack.c.h.b16 %v13355
  %v13403 = vunpack.c.l.b16 %v13356
  %v13404 = vunpack.c.h.b16 %v13356
  %v13405 = vpack.c.b16 %v13377, %v13373
  %v13406 = vpack.c.b16 %v13378, %v13374
  %v13407 = vpack.c.b16 %v13379, %v13375
  %v13408 = vpack.c.b16 %v13380, %v13376
  %v13409 = vpack.c.b16 %v13385, %v13381
  %v13410 = vpack.c.b16 %v13386, %v13382
  %v13411 = vpack.c.b16 %v13387, %v13383
  %v13412 = vpack.c.b16 %v13388, %v13384
  %v13413 = vpack.c.b16 %v13393, %v13389
  %v13414 = vpack.c.b16 %v13394, %v13390
  %v13415 = vpack.c.b16 %v13395, %v13391
  %v13416 = vpack.c.b16 %v13396, %v13392
  %v13417 = vpack.c.b16 %v13401, %v13397
  %v13418 = vpack.c.b16 %v13402, %v13398
  %v13419 = vpack.c.b16 %v13403, %v13399
  %v13420 = vpack.c.b16 %v13404, %v13400
  %v13438 = vsel %vm7131, %v11113, 0
  %13440 = vmatprep.subr.bf16.mxu0 %v13406
  %13441 = vmatpush1.bf16.msra.mxu0 %v13405
  %13442 = vmatprep.subr.bf16.mxu0 %v13410
  %13443 = vmatpush1.bf16.msra.mxu0 %v13409
  %13444 = vmatprep.subr.bf16.mxu0 %v13414
  %13445 = vmatpush1.bf16.msra.mxu0 %v13413
  %13446 = vmatprep.subr.bf16.mxu0 %v13418
  %13447 = vmatpush1.bf16.msra.mxu0 %v13417
  %13448 = vmatprep.subr.bf16.mxu0 0
  %13449 = vmatpush1.bf16.msra.mxu0 0
  %13450 = vmatprep.subr.bf16.mxu0 0
  %13451 = vmatpush1.bf16.msra.mxu0 0
  %13452 = vmatprep.subr.bf16.mxu0 0
  %13453 = vmatpush1.bf16.msra.mxu0 0
  %13454 = vmatprep.subr.bf16.mxu0 0
  %13455 = vmatpush1.bf16.msra.mxu0 0
  %13456 = vmatprep.subr.bf16.mxu0 0
  %13457 = vmatpush1.bf16.msra.mxu0 0
  %13458 = vmatprep.subr.bf16.mxu0 0
  %13459 = vmatpush1.bf16.msra.mxu0 0
  %13460 = vmatprep.subr.bf16.mxu0 0
  %13461 = vmatpush1.bf16.msra.mxu0 0
  %13462 = vmatprep.subr.bf16.mxu0 0
  %13463 = vmatpush1.bf16.msra.mxu0 0
  %13464 = vmatprep.subr.bf16.mxu0 0
  %13465 = vmatpush1.bf16.msra.mxu0 0
  %13466 = vmatprep.subr.bf16.mxu0 0
  %13467 = vmatpush1.bf16.msra.mxu0 0
  %13468 = vmatprep.subr.bf16.mxu0 0
  %13469 = vmatpush1.bf16.msra.mxu0 0
  %13470 = vmatprep.subr.bf16.mxu0 0
  %13471 = vmatpush1.bf16.msra.mxu0 0
  %13472 = vmatprep.mubr.bf16.mxu0 0
  %13473 = vmatmul.mubr.bf16.gmra.mrb[0].mxu0 %v13438
  %v13474 = vpop.f32.mrb[0].mxu0
  %v13475 = vadd.f32 0.0, %v13474
  %v13476 = vpop.f32.mrb[0].mxu0
  %v13477 = vadd.f32 0.0, %v13476
  %v13478 = vpop.f32.mrb[0].mxu0
  %v13479 = vpop.f32.mrb[0].mxu0
  %13480 = vdwg.mxu0
  %13481 = vmatprep.subr.bf16.mxu0 %v13408
  %13482 = vmatpush1.bf16.msra.mxu0 %v13407
  %13483 = vmatprep.subr.bf16.mxu0 %v13412
  %13484 = vmatpush1.bf16.msra.mxu0 %v13411
  %13485 = vmatprep.subr.bf16.mxu0 %v13416
  %13486 = vmatpush1.bf16.msra.mxu0 %v13415
  %13487 = vmatprep.subr.bf16.mxu0 %v13420
  %13488 = vmatpush1.bf16.msra.mxu0 %v13419
  %13489 = vmatprep.subr.bf16.mxu0 0
  %13490 = vmatpush1.bf16.msra.mxu0 0
  %13491 = vmatprep.subr.bf16.mxu0 0
  %13492 = vmatpush1.bf16.msra.mxu0 0
  %13493 = vmatprep.subr.bf16.mxu0 0
  %13494 = vmatpush1.bf16.msra.mxu0 0
  %13495 = vmatprep.subr.bf16.mxu0 0
  %13496 = vmatpush1.bf16.msra.mxu0 0
  %13497 = vmatprep.subr.bf16.mxu0 0
  %13498 = vmatpush1.bf16.msra.mxu0 0
  %13499 = vmatprep.subr.bf16.mxu0 0
  %13500 = vmatpush1.bf16.msra.mxu0 0
  %13501 = vmatprep.subr.bf16.mxu0 0
  %13502 = vmatpush1.bf16.msra.mxu0 0
  %13503 = vmatprep.subr.bf16.mxu0 0
  %13504 = vmatpush1.bf16.msra.mxu0 0
  %13505 = vmatprep.subr.bf16.mxu0 0
  %13506 = vmatpush1.bf16.msra.mxu0 0
  %13507 = vmatprep.subr.bf16.mxu0 0
  %13508 = vmatpush1.bf16.msra.mxu0 0
  %13509 = vmatprep.subr.bf16.mxu0 0
  %13510 = vmatpush1.bf16.msra.mxu0 0
  %13511 = vmatprep.subr.bf16.mxu0 0
  %13512 = vmatpush1.bf16.msra.mxu0 0
  %13513 = vmatprep.mubr.bf16.mxu0 0
  %13514 = vmatmul.mubr.bf16.gmra.mrb[0].mxu0 %v13438
  %v13515 = vpop.f32.mrb[0].mxu0
  %v13516 = vadd.f32 0.0, %v13515
  %v13517 = vpop.f32.mrb[0].mxu0
  %v13518 = vadd.f32 0.0, %v13517
  %v13519 = vpop.f32.mrb[0].mxu0
  %v13520 = vpop.f32.mrb[0].mxu0
  %13521 = vdwg.mxu0
  %v13522 = vadd.f32 %v13336, %v13475
  %v13523 = vadd.f32 %v13337, %v13477
  %v13524 = vadd.f32 %v13338, %v13516
  %v13525 = vadd.f32 %v13339, %v13518
  %s13526 = scalar_lea.vmem %s5, 1664
  %v13527 = vld [vmem:[%s13526] sm:$0xff]
  %v13528 = vld [vmem:[%s13526 + $0x8] sm:$0xff]
  %v13529 = vld [vmem:[%s13526 + $0x10] sm:$0xff]
  %v13530 = vld [vmem:[%s13526 + $0x18] sm:$0xff]
  %v13531 = vld [vmem:[%s13526 + $0x20] sm:$0xff]
  %v13532 = vld [vmem:[%s13526 + $0x28] sm:$0xff]
  %v13533 = vld [vmem:[%s13526 + $0x30] sm:$0xff]
  %v13534 = vld [vmem:[%s13526 + $0x38] sm:$0xff]
  %v13535 = vld [vmem:[%s13526 + $0x40] sm:$0xff]
  %v13536 = vld [vmem:[%s13526 + $0x48] sm:$0xff]
  %v13537 = vld [vmem:[%s13526 + $0x50] sm:$0xff]
  %v13538 = vld [vmem:[%s13526 + $0x58] sm:$0xff]
  %v13539 = vld [vmem:[%s13526 + $0x60] sm:$0xff]
  %v13540 = vld [vmem:[%s13526 + $0x68] sm:$0xff]
  %v13541 = vld [vmem:[%s13526 + $0x70] sm:$0xff]
  %v13542 = vld [vmem:[%s13526 + $0x78] sm:$0xff]
  %v13559 = vunpack.c.l.b16 %v13527
  %v13560 = vunpack.c.h.b16 %v13527
  %v13561 = vunpack.c.l.b16 %v13528
  %v13562 = vunpack.c.h.b16 %v13528
  %v13563 = vunpack.c.l.b16 %v13529
  %v13564 = vunpack.c.h.b16 %v13529
  %v13565 = vunpack.c.l.b16 %v13530
  %v13566 = vunpack.c.h.b16 %v13530
  %v13567 = vunpack.c.l.b16 %v13531
  %v13568 = vunpack.c.h.b16 %v13531
  %v13569 = vunpack.c.l.b16 %v13532
  %v13570 = vunpack.c.h.b16 %v13532
  %v13571 = vunpack.c.l.b16 %v13533
  %v13572 = vunpack.c.h.b16 %v13533
  %v13573 = vunpack.c.l.b16 %v13534
  %v13574 = vunpack.c.h.b16 %v13534
  %v13575 = vunpack.c.l.b16 %v13535
  %v13576 = vunpack.c.h.b16 %v13535
  %v13577 = vunpack.c.l.b16 %v13536
  %v13578 = vunpack.c.h.b16 %v13536
  %v13579 = vunpack.c.l.b16 %v13537
  %v13580 = vunpack.c.h.b16 %v13537
  %v13581 = vunpack.c.l.b16 %v13538
  %v13582 = vunpack.c.h.b16 %v13538
  %v13583 = vunpack.c.l.b16 %v13539
  %v13584 = vunpack.c.h.b16 %v13539
  %v13585 = vunpack.c.l.b16 %v13540
  %v13586 = vunpack.c.h.b16 %v13540
  %v13587 = vunpack.c.l.b16 %v13541
  %v13588 = vunpack.c.h.b16 %v13541
  %v13589 = vunpack.c.l.b16 %v13542
  %v13590 = vunpack.c.h.b16 %v13542
  %v13591 = vpack.c.b16 %v13563, %v13559
  %v13592 = vpack.c.b16 %v13564, %v13560
  %v13593 = vpack.c.b16 %v13565, %v13561
  %v13594 = vpack.c.b16 %v13566, %v13562
  %v13595 = vpack.c.b16 %v13571, %v13567
  %v13596 = vpack.c.b16 %v13572, %v13568
  %v13597 = vpack.c.b16 %v13573, %v13569
  %v13598 = vpack.c.b16 %v13574, %v13570
  %v13599 = vpack.c.b16 %v13579, %v13575
  %v13600 = vpack.c.b16 %v13580, %v13576
  %v13601 = vpack.c.b16 %v13581, %v13577
  %v13602 = vpack.c.b16 %v13582, %v13578
  %v13603 = vpack.c.b16 %v13587, %v13583
  %v13604 = vpack.c.b16 %v13588, %v13584
  %v13605 = vpack.c.b16 %v13589, %v13585
  %v13606 = vpack.c.b16 %v13590, %v13586
  %v13624 = vsel %vm7131, %v11114, 0
  %13626 = vmatprep.subr.bf16.mxu0 %v13592
  %13627 = vmatpush1.bf16.msra.mxu0 %v13591
  %13628 = vmatprep.subr.bf16.mxu0 %v13596
  %13629 = vmatpush1.bf16.msra.mxu0 %v13595
  %13630 = vmatprep.subr.bf16.mxu0 %v13600
  %13631 = vmatpush1.bf16.msra.mxu0 %v13599
  %13632 = vmatprep.subr.bf16.mxu0 %v13604
  %13633 = vmatpush1.bf16.msra.mxu0 %v13603
  %13634 = vmatprep.subr.bf16.mxu0 0
  %13635 = vmatpush1.bf16.msra.mxu0 0
  %13636 = vmatprep.subr.bf16.mxu0 0
  %13637 = vmatpush1.bf16.msra.mxu0 0
  %13638 = vmatprep.subr.bf16.mxu0 0
  %13639 = vmatpush1.bf16.msra.mxu0 0
  %13640 = vmatprep.subr.bf16.mxu0 0
  %13641 = vmatpush1.bf16.msra.mxu0 0
  %13642 = vmatprep.subr.bf16.mxu0 0
  %13643 = vmatpush1.bf16.msra.mxu0 0
  %13644 = vmatprep.subr.bf16.mxu0 0
  %13645 = vmatpush1.bf16.msra.mxu0 0
  %13646 = vmatprep.subr.bf16.mxu0 0
  %13647 = vmatpush1.bf16.msra.mxu0 0
  %13648 = vmatprep.subr.bf16.mxu0 0
  %13649 = vmatpush1.bf16.msra.mxu0 0
  %13650 = vmatprep.subr.bf16.mxu0 0
  %13651 = vmatpush1.bf16.msra.mxu0 0
  %13652 = vmatprep.subr.bf16.mxu0 0
  %13653 = vmatpush1.bf16.msra.mxu0 0
  %13654 = vmatprep.subr.bf16.mxu0 0
  %13655 = vmatpush1.bf16.msra.mxu0 0
  %13656 = vmatprep.subr.bf16.mxu0 0
  %13657 = vmatpush1.bf16.msra.mxu0 0
  %13658 = vmatprep.mubr.bf16.mxu0 0
  %13659 = vmatmul.mubr.bf16.gmra.mrb[0].mxu0 %v13624
  %v13660 = vpop.f32.mrb[0].mxu0
  %v13661 = vadd.f32 0.0, %v13660
  %v13662 = vpop.f32.mrb[0].mxu0
  %v13663 = vadd.f32 0.0, %v13662
  %v13664 = vpop.f32.mrb[0].mxu0
  %v13665 = vpop.f32.mrb[0].mxu0
  %13666 = vdwg.mxu0
  %13667 = vmatprep.subr.bf16.mxu0 %v13594
  %13668 = vmatpush1.bf16.msra.mxu0 %v13593
  %13669 = vmatprep.subr.bf16.mxu0 %v13598
  %13670 = vmatpush1.bf16.msra.mxu0 %v13597
  %13671 = vmatprep.subr.bf16.mxu0 %v13602
  %13672 = vmatpush1.bf16.msra.mxu0 %v13601
  %13673 = vmatprep.subr.bf16.mxu0 %v13606
  %13674 = vmatpush1.bf16.msra.mxu0 %v13605
  %13675 = vmatprep.subr.bf16.mxu0 0
  %13676 = vmatpush1.bf16.msra.mxu0 0
  %13677 = vmatprep.subr.bf16.mxu0 0
  %13678 = vmatpush1.bf16.msra.mxu0 0
  %13679 = vmatprep.subr.bf16.mxu0 0
  %13680 = vmatpush1.bf16.msra.mxu0 0
  %13681 = vmatprep.subr.bf16.mxu0 0
  %13682 = vmatpush1.bf16.msra.mxu0 0
  %13683 = vmatprep.subr.bf16.mxu0 0
  %13684 = vmatpush1.bf16.msra.mxu0 0
  %13685 = vmatprep.subr.bf16.mxu0 0
  %13686 = vmatpush1.bf16.msra.mxu0 0
  %13687 = vmatprep.subr.bf16.mxu0 0
  %13688 = vmatpush1.bf16.msra.mxu0 0
  %13689 = vmatprep.subr.bf16.mxu0 0
  %13690 = vmatpush1.bf16.msra.mxu0 0
  %13691 = vmatprep.subr.bf16.mxu0 0
  %13692 = vmatpush1.bf16.msra.mxu0 0
  %13693 = vmatprep.subr.bf16.mxu0 0
  %13694 = vmatpush1.bf16.msra.mxu0 0
  %13695 = vmatprep.subr.bf16.mxu0 0
  %13696 = vmatpush1.bf16.msra.mxu0 0
  %13697 = vmatprep.subr.bf16.mxu0 0
  %13698 = vmatpush1.bf16.msra.mxu0 0
  %13699 = vmatprep.mubr.bf16.mxu0 0
  %13700 = vmatmul.mubr.bf16.gmra.mrb[0].mxu0 %v13624
  %v13701 = vpop.f32.mrb[0].mxu0
  %v13702 = vadd.f32 0.0, %v13701
  %v13703 = vpop.f32.mrb[0].mxu0
  %v13704 = vadd.f32 0.0, %v13703
  %v13705 = vpop.f32.mrb[0].mxu0
  %v13706 = vpop.f32.mrb[0].mxu0
  %13707 = vdwg.mxu0
  %v13708 = vadd.f32 %v13522, %v13661
  %v13709 = vadd.f32 %v13523, %v13663
  %v13710 = vadd.f32 %v13524, %v13702
  %v13711 = vadd.f32 %v13525, %v13704
  %s13712 = scalar_lea.vmem %s5, 1792
  %v13713 = vld [vmem:[%s13712] sm:$0xff]
  %v13714 = vld [vmem:[%s13712 + $0x8] sm:$0xff]
  %v13715 = vld [vmem:[%s13712 + $0x10] sm:$0xff]
  %v13716 = vld [vmem:[%s13712 + $0x18] sm:$0xff]
  %v13717 = vld [vmem:[%s13712 + $0x20] sm:$0xff]
  %v13718 = vld [vmem:[%s13712 + $0x28] sm:$0xff]
  %v13719 = vld [vmem:[%s13712 + $0x30] sm:$0xff]
  %v13720 = vld [vmem:[%s13712 + $0x38] sm:$0xff]
  %v13721 = vld [vmem:[%s13712 + $0x40] sm:$0xff]
  %v13722 = vld [vmem:[%s13712 + $0x48] sm:$0xff]
  %v13723 = vld [vmem:[%s13712 + $0x50] sm:$0xff]
  %v13724 = vld [vmem:[%s13712 + $0x58] sm:$0xff]
  %v13725 = vld [vmem:[%s13712 + $0x60] sm:$0xff]
  %v13726 = vld [vmem:[%s13712 + $0x68] sm:$0xff]
  %v13727 = vld [vmem:[%s13712 + $0x70] sm:$0xff]
  %v13728 = vld [vmem:[%s13712 + $0x78] sm:$0xff]
  %v13745 = vunpack.c.l.b16 %v13713
  %v13746 = vunpack.c.h.b16 %v13713
  %v13747 = vunpack.c.l.b16 %v13714
  %v13748 = vunpack.c.h.b16 %v13714
  %v13749 = vunpack.c.l.b16 %v13715
  %v13750 = vunpack.c.h.b16 %v13715
  %v13751 = vunpack.c.l.b16 %v13716
  %v13752 = vunpack.c.h.b16 %v13716
  %v13753 = vunpack.c.l.b16 %v13717
  %v13754 = vunpack.c.h.b16 %v13717
  %v13755 = vunpack.c.l.b16 %v13718
  %v13756 = vunpack.c.h.b16 %v13718
  %v13757 = vunpack.c.l.b16 %v13719
  %v13758 = vunpack.c.h.b16 %v13719
  %v13759 = vunpack.c.l.b16 %v13720
  %v13760 = vunpack.c.h.b16 %v13720
  %v13761 = vunpack.c.l.b16 %v13721
  %v13762 = vunpack.c.h.b16 %v13721
  %v13763 = vunpack.c.l.b16 %v13722
  %v13764 = vunpack.c.h.b16 %v13722
  %v13765 = vunpack.c.l.b16 %v13723
  %v13766 = vunpack.c.h.b16 %v13723
  %v13767 = vunpack.c.l.b16 %v13724
  %v13768 = vunpack.c.h.b16 %v13724
  %v13769 = vunpack.c.l.b16 %v13725
  %v13770 = vunpack.c.h.b16 %v13725
  %v13771 = vunpack.c.l.b16 %v13726
  %v13772 = vunpack.c.h.b16 %v13726
  %v13773 = vunpack.c.l.b16 %v13727
  %v13774 = vunpack.c.h.b16 %v13727
  %v13775 = vunpack.c.l.b16 %v13728
  %v13776 = vunpack.c.h.b16 %v13728
  %v13777 = vpack.c.b16 %v13749, %v13745
  %v13778 = vpack.c.b16 %v13750, %v13746
  %v13779 = vpack.c.b16 %v13751, %v13747
  %v13780 = vpack.c.b16 %v13752, %v13748
  %v13781 = vpack.c.b16 %v13757, %v13753
  %v13782 = vpack.c.b16 %v13758, %v13754
  %v13783 = vpack.c.b16 %v13759, %v13755
  %v13784 = vpack.c.b16 %v13760, %v13756
  %v13785 = vpack.c.b16 %v13765, %v13761
  %v13786 = vpack.c.b16 %v13766, %v13762
  %v13787 = vpack.c.b16 %v13767, %v13763
  %v13788 = vpack.c.b16 %v13768, %v13764
  %v13789 = vpack.c.b16 %v13773, %v13769
  %v13790 = vpack.c.b16 %v13774, %v13770
  %v13791 = vpack.c.b16 %v13775, %v13771
  %v13792 = vpack.c.b16 %v13776, %v13772
  %v13810 = vsel %vm7131, %v11115, 0
  %13812 = vmatprep.subr.bf16.mxu0 %v13778
  %13813 = vmatpush1.bf16.msra.mxu0 %v13777
  %13814 = vmatprep.subr.bf16.mxu0 %v13782
  %13815 = vmatpush1.bf16.msra.mxu0 %v13781
  %13816 = vmatprep.subr.bf16.mxu0 %v13786
  %13817 = vmatpush1.bf16.msra.mxu0 %v13785
  %13818 = vmatprep.subr.bf16.mxu0 %v13790
  %13819 = vmatpush1.bf16.msra.mxu0 %v13789
  %13820 = vmatprep.subr.bf16.mxu0 0
  %13821 = vmatpush1.bf16.msra.mxu0 0
  %13822 = vmatprep.subr.bf16.mxu0 0
  %13823 = vmatpush1.bf16.msra.mxu0 0
  %13824 = vmatprep.subr.bf16.mxu0 0
  %13825 = vmatpush1.bf16.msra.mxu0 0
  %13826 = vmatprep.subr.bf16.mxu0 0
  %13827 = vmatpush1.bf16.msra.mxu0 0
  %13828 = vmatprep.subr.bf16.mxu0 0
  %13829 = vmatpush1.bf16.msra.mxu0 0
  %13830 = vmatprep.subr.bf16.mxu0 0
  %13831 = vmatpush1.bf16.msra.mxu0 0
  %13832 = vmatprep.subr.bf16.mxu0 0
  %13833 = vmatpush1.bf16.msra.mxu0 0
  %13834 = vmatprep.subr.bf16.mxu0 0
  %13835 = vmatpush1.bf16.msra.mxu0 0
  %13836 = vmatprep.subr.bf16.mxu0 0
  %13837 = vmatpush1.bf16.msra.mxu0 0
  %13838 = vmatprep.subr.bf16.mxu0 0
  %13839 = vmatpush1.bf16.msra.mxu0 0
  %13840 = vmatprep.subr.bf16.mxu0 0
  %13841 = vmatpush1.bf16.msra.mxu0 0
  %13842 = vmatprep.subr.bf16.mxu0 0
  %13843 = vmatpush1.bf16.msra.mxu0 0
  %13844 = vmatprep.mubr.bf16.mxu0 0
  %13845 = vmatmul.mubr.bf16.gmra.mrb[0].mxu0 %v13810
  %v13846 = vpop.f32.mrb[0].mxu0
  %v13847 = vadd.f32 0.0, %v13846
  %v13848 = vpop.f32.mrb[0].mxu0
  %v13849 = vadd.f32 0.0, %v13848
  %v13850 = vpop.f32.mrb[0].mxu0
  %v13851 = vpop.f32.mrb[0].mxu0
  %13852 = vdwg.mxu0
  %13853 = vmatprep.subr.bf16.mxu0 %v13780
  %13854 = vmatpush1.bf16.msra.mxu0 %v13779
  %13855 = vmatprep.subr.bf16.mxu0 %v13784
  %13856 = vmatpush1.bf16.msra.mxu0 %v13783
  %13857 = vmatprep.subr.bf16.mxu0 %v13788
  %13858 = vmatpush1.bf16.msra.mxu0 %v13787
  %13859 = vmatprep.subr.bf16.mxu0 %v13792
  %13860 = vmatpush1.bf16.msra.mxu0 %v13791
  %13861 = vmatprep.subr.bf16.mxu0 0
  %13862 = vmatpush1.bf16.msra.mxu0 0
  %13863 = vmatprep.subr.bf16.mxu0 0
  %13864 = vmatpush1.bf16.msra.mxu0 0
  %13865 = vmatprep.subr.bf16.mxu0 0
  %13866 = vmatpush1.bf16.msra.mxu0 0
  %13867 = vmatprep.subr.bf16.mxu0 0
  %13868 = vmatpush1.bf16.msra.mxu0 0
  %13869 = vmatprep.subr.bf16.mxu0 0
  %13870 = vmatpush1.bf16.msra.mxu0 0
  %13871 = vmatprep.subr.bf16.mxu0 0
  %13872 = vmatpush1.bf16.msra.mxu0 0
  %13873 = vmatprep.subr.bf16.mxu0 0
  %13874 = vmatpush1.bf16.msra.mxu0 0
  %13875 = vmatprep.subr.bf16.mxu0 0
  %13876 = vmatpush1.bf16.msra.mxu0 0
  %13877 = vmatprep.subr.bf16.mxu0 0
  %13878 = vmatpush1.bf16.msra.mxu0 0
  %13879 = vmatprep.subr.bf16.mxu0 0
  %13880 = vmatpush1.bf16.msra.mxu0 0
  %13881 = vmatprep.subr.bf16.mxu0 0
  %13882 = vmatpush1.bf16.msra.mxu0 0
  %13883 = vmatprep.subr.bf16.mxu0 0
  %13884 = vmatpush1.bf16.msra.mxu0 0
  %13885 = vmatprep.mubr.bf16.mxu0 0
  %13886 = vmatmul.mubr.bf16.gmra.mrb[0].mxu0 %v13810
  %v13887 = vpop.f32.mrb[0].mxu0
  %v13888 = vadd.f32 0.0, %v13887
  %v13889 = vpop.f32.mrb[0].mxu0
  %v13890 = vadd.f32 0.0, %v13889
  %v13891 = vpop.f32.mrb[0].mxu0
  %v13892 = vpop.f32.mrb[0].mxu0
  %13893 = vdwg.mxu0
  %v13894 = vadd.f32 %v13708, %v13847
  %v13895 = vadd.f32 %v13709, %v13849
  %v13896 = vadd.f32 %v13710, %v13888
  %v13897 = vadd.f32 %v13711, %v13890
  %s13898 = scalar_lea.vmem %s5, 1920
  %v13899 = vld [vmem:[%s13898] sm:$0xff]
  %v13900 = vld [vmem:[%s13898 + $0x8] sm:$0xff]
  %v13901 = vld [vmem:[%s13898 + $0x10] sm:$0xff]
  %v13902 = vld [vmem:[%s13898 + $0x18] sm:$0xff]
  %v13903 = vld [vmem:[%s13898 + $0x20] sm:$0xff]
  %v13904 = vld [vmem:[%s13898 + $0x28] sm:$0xff]
  %v13905 = vld [vmem:[%s13898 + $0x30] sm:$0xff]
  %v13906 = vld [vmem:[%s13898 + $0x38] sm:$0xff]
  %v13907 = vld [vmem:[%s13898 + $0x40] sm:$0xff]
  %v13908 = vld [vmem:[%s13898 + $0x48] sm:$0xff]
  %v13909 = vld [vmem:[%s13898 + $0x50] sm:$0xff]
  %v13910 = vld [vmem:[%s13898 + $0x58] sm:$0xff]
  %v13911 = vld [vmem:[%s13898 + $0x60] sm:$0xff]
  %v13912 = vld [vmem:[%s13898 + $0x68] sm:$0xff]
  %v13913 = vld [vmem:[%s13898 + $0x70] sm:$0xff]
  %v13914 = vld [vmem:[%s13898 + $0x78] sm:$0xff]
  %v13931 = vunpack.c.l.b16 %v13899
  %v13932 = vunpack.c.h.b16 %v13899
  %v13933 = vunpack.c.l.b16 %v13900
  %v13934 = vunpack.c.h.b16 %v13900
  %v13935 = vunpack.c.l.b16 %v13901
  %v13936 = vunpack.c.h.b16 %v13901
  %v13937 = vunpack.c.l.b16 %v13902
  %v13938 = vunpack.c.h.b16 %v13902
  %v13939 = vunpack.c.l.b16 %v13903
  %v13940 = vunpack.c.h.b16 %v13903
  %v13941 = vunpack.c.l.b16 %v13904
  %v13942 = vunpack.c.h.b16 %v13904
  %v13943 = vunpack.c.l.b16 %v13905
  %v13944 = vunpack.c.h.b16 %v13905
  %v13945 = vunpack.c.l.b16 %v13906
  %v13946 = vunpack.c.h.b16 %v13906
  %v13947 = vunpack.c.l.b16 %v13907
  %v13948 = vunpack.c.h.b16 %v13907
  %v13949 = vunpack.c.l.b16 %v13908
  %v13950 = vunpack.c.h.b16 %v13908
  %v13951 = vunpack.c.l.b16 %v13909
  %v13952 = vunpack.c.h.b16 %v13909
  %v13953 = vunpack.c.l.b16 %v13910
  %v13954 = vunpack.c.h.b16 %v13910
  %v13955 = vunpack.c.l.b16 %v13911
  %v13956 = vunpack.c.h.b16 %v13911
  %v13957 = vunpack.c.l.b16 %v13912
  %v13958 = vunpack.c.h.b16 %v13912
  %v13959 = vunpack.c.l.b16 %v13913
  %v13960 = vunpack.c.h.b16 %v13913
  %v13961 = vunpack.c.l.b16 %v13914
  %v13962 = vunpack.c.h.b16 %v13914
  %v13963 = vpack.c.b16 %v13935, %v13931
  %v13964 = vpack.c.b16 %v13936, %v13932
  %v13965 = vpack.c.b16 %v13937, %v13933
  %v13966 = vpack.c.b16 %v13938, %v13934
  %v13967 = vpack.c.b16 %v13943, %v13939
  %v13968 = vpack.c.b16 %v13944, %v13940
  %v13969 = vpack.c.b16 %v13945, %v13941
  %v13970 = vpack.c.b16 %v13946, %v13942
  %v13971 = vpack.c.b16 %v13951, %v13947
  %v13972 = vpack.c.b16 %v13952, %v13948
  %v13973 = vpack.c.b16 %v13953, %v13949
  %v13974 = vpack.c.b16 %v13954, %v13950
  %v13975 = vpack.c.b16 %v13959, %v13955
  %v13976 = vpack.c.b16 %v13960, %v13956
  %v13977 = vpack.c.b16 %v13961, %v13957
  %v13978 = vpack.c.b16 %v13962, %v13958
  %v13996 = vsel %vm7131, %v11116, 0
  %13998 = vmatprep.subr.bf16.mxu0 %v13964
  %13999 = vmatpush1.bf16.msra.mxu0 %v13963
  %14000 = vmatprep.subr.bf16.mxu0 %v13968
  %14001 = vmatpush1.bf16.msra.mxu0 %v13967
  %14002 = vmatprep.subr.bf16.mxu0 %v13972
  %14003 = vmatpush1.bf16.msra.mxu0 %v13971
  %14004 = vmatprep.subr.bf16.mxu0 %v13976
  %14005 = vmatpush1.bf16.msra.mxu0 %v13975
  %14006 = vmatprep.subr.bf16.mxu0 0
  %14007 = vmatpush1.bf16.msra.mxu0 0
  %14008 = vmatprep.subr.bf16.mxu0 0
  %14009 = vmatpush1.bf16.msra.mxu0 0
  %14010 = vmatprep.subr.bf16.mxu0 0
  %14011 = vmatpush1.bf16.msra.mxu0 0
  %14012 = vmatprep.subr.bf16.mxu0 0
  %14013 = vmatpush1.bf16.msra.mxu0 0
  %14014 = vmatprep.subr.bf16.mxu0 0
  %14015 = vmatpush1.bf16.msra.mxu0 0
  %14016 = vmatprep.subr.bf16.mxu0 0
  %14017 = vmatpush1.bf16.msra.mxu0 0
  %14018 = vmatprep.subr.bf16.mxu0 0
  %14019 = vmatpush1.bf16.msra.mxu0 0
  %14020 = vmatprep.subr.bf16.mxu0 0
  %14021 = vmatpush1.bf16.msra.mxu0 0
  %14022 = vmatprep.subr.bf16.mxu0 0
  %14023 = vmatpush1.bf16.msra.mxu0 0
  %14024 = vmatprep.subr.bf16.mxu0 0
  %14025 = vmatpush1.bf16.msra.mxu0 0
  %14026 = vmatprep.subr.bf16.mxu0 0
  %14027 = vmatpush1.bf16.msra.mxu0 0
  %14028 = vmatprep.subr.bf16.mxu0 0
  %14029 = vmatpush1.bf16.msra.mxu0 0
  %14030 = vmatprep.mubr.bf16.mxu0 0
  %14031 = vmatmul.mubr.bf16.gmra.mrb[0].mxu0 %v13996
  %v14032 = vpop.f32.mrb[0].mxu0
  %v14033 = vadd.f32 0.0, %v14032
  %v14034 = vpop.f32.mrb[0].mxu0
  %v14035 = vadd.f32 0.0, %v14034
  %v14036 = vpop.f32.mrb[0].mxu0
  %v14037 = vpop.f32.mrb[0].mxu0
  %14038 = vdwg.mxu0
  %14039 = vmatprep.subr.bf16.mxu0 %v13966
  %14040 = vmatpush1.bf16.msra.mxu0 %v13965
  %14041 = vmatprep.subr.bf16.mxu0 %v13970
  %14042 = vmatpush1.bf16.msra.mxu0 %v13969
  %14043 = vmatprep.subr.bf16.mxu0 %v13974
  %14044 = vmatpush1.bf16.msra.mxu0 %v13973
  %14045 = vmatprep.subr.bf16.mxu0 %v13978
  %14046 = vmatpush1.bf16.msra.mxu0 %v13977
  %14047 = vmatprep.subr.bf16.mxu0 0
  %14048 = vmatpush1.bf16.msra.mxu0 0
  %14049 = vmatprep.subr.bf16.mxu0 0
  %14050 = vmatpush1.bf16.msra.mxu0 0
  %14051 = vmatprep.subr.bf16.mxu0 0
  %14052 = vmatpush1.bf16.msra.mxu0 0
  %14053 = vmatprep.subr.bf16.mxu0 0
  %14054 = vmatpush1.bf16.msra.mxu0 0
  %14055 = vmatprep.subr.bf16.mxu0 0
  %14056 = vmatpush1.bf16.msra.mxu0 0
  %14057 = vmatprep.subr.bf16.mxu0 0
  %14058 = vmatpush1.bf16.msra.mxu0 0
  %14059 = vmatprep.subr.bf16.mxu0 0
  %14060 = vmatpush1.bf16.msra.mxu0 0
  %14061 = vmatprep.subr.bf16.mxu0 0
  %14062 = vmatpush1.bf16.msra.mxu0 0
  %14063 = vmatprep.subr.bf16.mxu0 0
  %14064 = vmatpush1.bf16.msra.mxu0 0
  %14065 = vmatprep.subr.bf16.mxu0 0
  %14066 = vmatpush1.bf16.msra.mxu0 0
  %14067 = vmatprep.subr.bf16.mxu0 0
  %14068 = vmatpush1.bf16.msra.mxu0 0
  %14069 = vmatprep.subr.bf16.mxu0 0
  %14070 = vmatpush1.bf16.msra.mxu0 0
  %14071 = vmatprep.mubr.bf16.mxu0 0
  %14072 = vmatmul.mubr.bf16.gmra.mrb[0].mxu0 %v13996
  %v14073 = vpop.f32.mrb[0].mxu0
  %v14074 = vadd.f32 0.0, %v14073
  %v14075 = vpop.f32.mrb[0].mxu0
  %v14076 = vadd.f32 0.0, %v14075
  %v14077 = vpop.f32.mrb[0].mxu0
  %v14078 = vpop.f32.mrb[0].mxu0
  %14079 = vdwg.mxu0
  %v14080 = vadd.f32 %v13894, %v14033
  %v14081 = vadd.f32 %v13895, %v14035
  %v14082 = vadd.f32 %v13896, %v14074
  %v14083 = vadd.f32 %v13897, %v14076
  %v14084 = vld [vmem:[%s6] sm:$0xf]
  %v14086 = vlaneseq
  %v14087 = vshrl.u32 %v14086, 7
  %v14088 = vsub.s32 0, %v14087
  %v14089 = vrot.slane %v14084, %v14088
  %v14090 = vlaneseq
  %v14091 = vshrl.u32 %v14090, 7
  %v14092 = vsub.s32 1, %v14091
  %v14093 = vrot.slane %v14084, %v14092
  %v14094 = vlaneseq
  %v14095 = vshrl.u32 %v14094, 7
  %v14096 = vsub.s32 2, %v14095
  %v14097 = vrot.slane %v14084, %v14096
  %v14098 = vlaneseq
  %v14099 = vshrl.u32 %v14098, 7
  %v14100 = vsub.s32 3, %v14099
  %v14101 = vrot.slane %v14084, %v14100
  %v14106 = vadd.f32 %v14080, %v14089
  %v14107 = vadd.f32 %v14081, %v14093
  %v14108 = vadd.f32 %v14082, %v14097
  %v14109 = vadd.f32 %v14083, %v14101
  %v14110 = vmax.f32 %v14106, 0.0
  %v14111 = vmax.f32 %v14107, 0.0
  %v14112 = vmax.f32 %v14108, 0.0
  %v14113 = vmax.f32 %v14109, 0.0
  %v14114 = vpack.c.bf16 %v14110, %v14110
  %v14115 = vpack.c.bf16 %v14111, %v14111
  %v14116 = vpack.c.bf16 %v14112, %v14112
  %v14117 = vpack.c.bf16 %v14113, %v14113
  %v14118 = vld [vmem:[%s7] sm:$0xf]
  %v14119 = vld [vmem:[%s7 + $0x4] sm:$0xf]
  %v14120 = vld [vmem:[%s7 + $0x8] sm:$0xf]
  %v14121 = vld [vmem:[%s7 + $0xc] sm:$0xf]
  %v14122 = vld [vmem:[%s7 + $0x10] sm:$0xf]
  %v14123 = vld [vmem:[%s7 + $0x14] sm:$0xf]
  %v14124 = vld [vmem:[%s7 + $0x18] sm:$0xf]
  %v14125 = vld [vmem:[%s7 + $0x1c] sm:$0xf]
  %v14126 = vld [vmem:[%s7 + $0x20] sm:$0xf]
  %v14127 = vld [vmem:[%s7 + $0x24] sm:$0xf]
  %v14128 = vld [vmem:[%s7 + $0x28] sm:$0xf]
  %v14129 = vld [vmem:[%s7 + $0x2c] sm:$0xf]
  %v14130 = vld [vmem:[%s7 + $0x30] sm:$0xf]
  %v14131 = vld [vmem:[%s7 + $0x34] sm:$0xf]
  %v14132 = vld [vmem:[%s7 + $0x38] sm:$0xf]
  %v14133 = vld [vmem:[%s7 + $0x3c] sm:$0xf]
  %v14134 = vld [vmem:[%s7 + $0x40] sm:$0xf]
  %v14135 = vld [vmem:[%s7 + $0x44] sm:$0xf]
  %v14136 = vld [vmem:[%s7 + $0x48] sm:$0xf]
  %v14137 = vld [vmem:[%s7 + $0x4c] sm:$0xf]
  %v14138 = vld [vmem:[%s7 + $0x50] sm:$0xf]
  %v14139 = vld [vmem:[%s7 + $0x54] sm:$0xf]
  %v14140 = vld [vmem:[%s7 + $0x58] sm:$0xf]
  %v14141 = vld [vmem:[%s7 + $0x5c] sm:$0xf]
  %v14142 = vld [vmem:[%s7 + $0x60] sm:$0xf]
  %v14143 = vld [vmem:[%s7 + $0x64] sm:$0xf]
  %v14144 = vld [vmem:[%s7 + $0x68] sm:$0xf]
  %v14145 = vld [vmem:[%s7 + $0x6c] sm:$0xf]
  %v14146 = vld [vmem:[%s7 + $0x70] sm:$0xf]
  %v14147 = vld [vmem:[%s7 + $0x74] sm:$0xf]
  %v14148 = vld [vmem:[%s7 + $0x78] sm:$0xf]
  %v14149 = vld [vmem:[%s7 + $0x7c] sm:$0xf]
  %v14150 = vld [vmem:[%s7 + $0x80] sm:$0xf]
  %v14151 = vld [vmem:[%s7 + $0x84] sm:$0xf]
  %v14152 = vld [vmem:[%s7 + $0x88] sm:$0xf]
  %v14153 = vld [vmem:[%s7 + $0x8c] sm:$0xf]
  %v14154 = vld [vmem:[%s7 + $0x90] sm:$0xf]
  %v14155 = vld [vmem:[%s7 + $0x94] sm:$0xf]
  %v14156 = vld [vmem:[%s7 + $0x98] sm:$0xf]
  %v14157 = vld [vmem:[%s7 + $0x9c] sm:$0xf]
  %v14158 = vld [vmem:[%s7 + $0xa0] sm:$0xf]
  %v14159 = vld [vmem:[%s7 + $0xa4] sm:$0xf]
  %v14160 = vld [vmem:[%s7 + $0xa8] sm:$0xf]
  %v14161 = vld [vmem:[%s7 + $0xac] sm:$0xf]
  %v14162 = vld [vmem:[%s7 + $0xb0] sm:$0xf]
  %v14163 = vld [vmem:[%s7 + $0xb4] sm:$0xf]
  %v14164 = vld [vmem:[%s7 + $0xb8] sm:$0xf]
  %v14165 = vld [vmem:[%s7 + $0xbc] sm:$0xf]
  %v14166 = vld [vmem:[%s7 + $0xc0] sm:$0xf]
  %v14167 = vld [vmem:[%s7 + $0xc4] sm:$0xf]
  %v14168 = vld [vmem:[%s7 + $0xc8] sm:$0xf]
  %v14169 = vld [vmem:[%s7 + $0xcc] sm:$0xf]
  %v14170 = vld [vmem:[%s7 + $0xd0] sm:$0xf]
  %v14171 = vld [vmem:[%s7 + $0xd4] sm:$0xf]
  %v14172 = vld [vmem:[%s7 + $0xd8] sm:$0xf]
  %v14173 = vld [vmem:[%s7 + $0xdc] sm:$0xf]
  %v14174 = vld [vmem:[%s7 + $0xe0] sm:$0xf]
  %v14175 = vld [vmem:[%s7 + $0xe4] sm:$0xf]
  %v14176 = vld [vmem:[%s7 + $0xe8] sm:$0xf]
  %v14177 = vld [vmem:[%s7 + $0xec] sm:$0xf]
  %v14178 = vld [vmem:[%s7 + $0xf0] sm:$0xf]
  %v14179 = vld [vmem:[%s7 + $0xf4] sm:$0xf]
  %v14180 = vld [vmem:[%s7 + $0xf8] sm:$0xf]
  %v14181 = vld [vmem:[%s7 + $0xfc] sm:$0xf]
  %v14182 = vld [vmem:[%s8] sm:$0x1]
  %v14184 = vlaneseq
  %v14185 = vshrl.u32 %v14184, 7
  %v14186 = vsub.s32 0, %v14185
  %v14187 = vrot.slane %v14182, %v14186
  %v14253 = vunpack.c.l.b16 %v14118
  %v14254 = vunpack.c.l.b16 %v14119
  %v14255 = vunpack.c.l.b16 %v14120
  %v14256 = vunpack.c.l.b16 %v14121
  %v14257 = vunpack.c.l.b16 %v14122
  %v14258 = vunpack.c.l.b16 %v14123
  %v14259 = vunpack.c.l.b16 %v14124
  %v14260 = vunpack.c.l.b16 %v14125
  %v14261 = vunpack.c.l.b16 %v14126
  %v14262 = vunpack.c.l.b16 %v14127
  %v14263 = vunpack.c.l.b16 %v14128
  %v14264 = vunpack.c.l.b16 %v14129
  %v14265 = vunpack.c.l.b16 %v14130
  %v14266 = vunpack.c.l.b16 %v14131
  %v14267 = vunpack.c.l.b16 %v14132
  %v14268 = vunpack.c.l.b16 %v14133
  %v14269 = vunpack.c.l.b16 %v14134
  %v14270 = vunpack.c.l.b16 %v14135
  %v14271 = vunpack.c.l.b16 %v14136
  %v14272 = vunpack.c.l.b16 %v14137
  %v14273 = vunpack.c.l.b16 %v14138
  %v14274 = vunpack.c.l.b16 %v14139
  %v14275 = vunpack.c.l.b16 %v14140
  %v14276 = vunpack.c.l.b16 %v14141
  %v14277 = vunpack.c.l.b16 %v14142
  %v14278 = vunpack.c.l.b16 %v14143
  %v14279 = vunpack.c.l.b16 %v14144
  %v14280 = vunpack.c.l.b16 %v14145
  %v14281 = vunpack.c.l.b16 %v14146
  %v14282 = vunpack.c.l.b16 %v14147
  %v14283 = vunpack.c.l.b16 %v14148
  %v14284 = vunpack.c.l.b16 %v14149
  %v14285 = vunpack.c.l.b16 %v14150
  %v14286 = vunpack.c.l.b16 %v14151
  %v14287 = vunpack.c.l.b16 %v14152
  %v14288 = vunpack.c.l.b16 %v14153
  %v14289 = vunpack.c.l.b16 %v14154
  %v14290 = vunpack.c.l.b16 %v14155
  %v14291 = vunpack.c.l.b16 %v14156
  %v14292 = vunpack.c.l.b16 %v14157
  %v14293 = vunpack.c.l.b16 %v14158
  %v14294 = vunpack.c.l.b16 %v14159
  %v14295 = vunpack.c.l.b16 %v14160
  %v14296 = vunpack.c.l.b16 %v14161
  %v14297 = vunpack.c.l.b16 %v14162
  %v14298 = vunpack.c.l.b16 %v14163
  %v14299 = vunpack.c.l.b16 %v14164
  %v14300 = vunpack.c.l.b16 %v14165
  %v14301 = vunpack.c.l.b16 %v14166
  %v14302 = vunpack.c.l.b16 %v14167
  %v14303 = vunpack.c.l.b16 %v14168
  %v14304 = vunpack.c.l.b16 %v14169
  %v14305 = vunpack.c.l.b16 %v14170
  %v14306 = vunpack.c.l.b16 %v14171
  %v14307 = vunpack.c.l.b16 %v14172
  %v14308 = vunpack.c.l.b16 %v14173
  %v14309 = vunpack.c.l.b16 %v14174
  %v14310 = vunpack.c.l.b16 %v14175
  %v14311 = vunpack.c.l.b16 %v14176
  %v14312 = vunpack.c.l.b16 %v14177
  %v14313 = vunpack.c.l.b16 %v14178
  %v14314 = vunpack.c.l.b16 %v14179
  %v14315 = vunpack.c.l.b16 %v14180
  %v14316 = vunpack.c.l.b16 %v14181
  %v14317 = vpack.c.b16 %v14254, %v14253
  %v14318 = vpack.c.b16 %v14256, %v14255
  %v14319 = vpack.c.b16 %v14258, %v14257
  %v14320 = vpack.c.b16 %v14260, %v14259
  %v14321 = vpack.c.b16 %v14262, %v14261
  %v14322 = vpack.c.b16 %v14264, %v14263
  %v14323 = vpack.c.b16 %v14266, %v14265
  %v14324 = vpack.c.b16 %v14268, %v14267
  %v14325 = vpack.c.b16 %v14270, %v14269
  %v14326 = vpack.c.b16 %v14272, %v14271
  %v14327 = vpack.c.b16 %v14274, %v14273
  %v14328 = vpack.c.b16 %v14276, %v14275
  %v14329 = vpack.c.b16 %v14278, %v14277
  %v14330 = vpack.c.b16 %v14280, %v14279
  %v14331 = vpack.c.b16 %v14282, %v14281
  %v14332 = vpack.c.b16 %v14284, %v14283
  %v14333 = vpack.c.b16 %v14286, %v14285
  %v14334 = vpack.c.b16 %v14288, %v14287
  %v14335 = vpack.c.b16 %v14290, %v14289
  %v14336 = vpack.c.b16 %v14292, %v14291
  %v14337 = vpack.c.b16 %v14294, %v14293
  %v14338 = vpack.c.b16 %v14296, %v14295
  %v14339 = vpack.c.b16 %v14298, %v14297
  %v14340 = vpack.c.b16 %v14300, %v14299
  %v14341 = vpack.c.b16 %v14302, %v14301
  %v14342 = vpack.c.b16 %v14304, %v14303
  %v14343 = vpack.c.b16 %v14306, %v14305
  %v14344 = vpack.c.b16 %v14308, %v14307
  %v14345 = vpack.c.b16 %v14310, %v14309
  %v14346 = vpack.c.b16 %v14312, %v14311
  %v14347 = vpack.c.b16 %v14314, %v14313
  %v14348 = vpack.c.b16 %v14316, %v14315
  %14381 = vmatprep.subr.bf16.mxu0 0
  %14382 = vmatpush1.bf16.msra.mxu0 %v14317
  %14383 = vmatprep.subr.bf16.mxu0 0
  %14384 = vmatpush1.bf16.msra.mxu0 %v14318
  %14385 = vmatprep.subr.bf16.mxu0 0
  %14386 = vmatpush1.bf16.msra.mxu0 %v14319
  %14387 = vmatprep.subr.bf16.mxu0 0
  %14388 = vmatpush1.bf16.msra.mxu0 %v14320
  %14389 = vmatprep.subr.bf16.mxu0 0
  %14390 = vmatpush1.bf16.msra.mxu0 %v14321
  %14391 = vmatprep.subr.bf16.mxu0 0
  %14392 = vmatpush1.bf16.msra.mxu0 %v14322
  %14393 = vmatprep.subr.bf16.mxu0 0
  %14394 = vmatpush1.bf16.msra.mxu0 %v14323
  %14395 = vmatprep.subr.bf16.mxu0 0
  %14396 = vmatpush1.bf16.msra.mxu0 %v14324
  %14397 = vmatprep.subr.bf16.mxu0 0
  %14398 = vmatpush1.bf16.msra.mxu0 %v14325
  %14399 = vmatprep.subr.bf16.mxu0 0
  %14400 = vmatpush1.bf16.msra.mxu0 %v14326
  %14401 = vmatprep.subr.bf16.mxu0 0
  %14402 = vmatpush1.bf16.msra.mxu0 %v14327
  %14403 = vmatprep.subr.bf16.mxu0 0
  %14404 = vmatpush1.bf16.msra.mxu0 %v14328
  %14405 = vmatprep.subr.bf16.mxu0 0
  %14406 = vmatpush1.bf16.msra.mxu0 %v14329
  %14407 = vmatprep.subr.bf16.mxu0 0
  %14408 = vmatpush1.bf16.msra.mxu0 %v14330
  %14409 = vmatprep.subr.bf16.mxu0 0
  %14410 = vmatpush1.bf16.msra.mxu0 %v14331
  %14411 = vmatprep.subr.bf16.mxu0 0
  %14412 = vmatpush1.bf16.msra.mxu0 %v14332
  %14413 = vmatprep.mubr.bf16.mxu0 %v14115
  %14414 = vmatmul.mubr.bf16.gmra.mrb[0].mxu0 %v14114
  %v14415 = vpop.f32.mrb[0].mxu0
  %v14416 = vadd.f32 %v14187, %v14415
  %v14417 = vpop.f32.mrb[0].mxu0
  %v14418 = vpop.f32.mrb[0].mxu0
  %v14419 = vpop.f32.mrb[0].mxu0
  %14420 = vdwg.mxu0
  %14421 = vmatprep.subr.bf16.mxu0 0
  %14422 = vmatpush1.bf16.msra.mxu0 %v14333
  %14423 = vmatprep.subr.bf16.mxu0 0
  %14424 = vmatpush1.bf16.msra.mxu0 %v14334
  %14425 = vmatprep.subr.bf16.mxu0 0
  %14426 = vmatpush1.bf16.msra.mxu0 %v14335
  %14427 = vmatprep.subr.bf16.mxu0 0
  %14428 = vmatpush1.bf16.msra.mxu0 %v14336
  %14429 = vmatprep.subr.bf16.mxu0 0
  %14430 = vmatpush1.bf16.msra.mxu0 %v14337
  %14431 = vmatprep.subr.bf16.mxu0 0
  %14432 = vmatpush1.bf16.msra.mxu0 %v14338
  %14433 = vmatprep.subr.bf16.mxu0 0
  %14434 = vmatpush1.bf16.msra.mxu0 %v14339
  %14435 = vmatprep.subr.bf16.mxu0 0
  %14436 = vmatpush1.bf16.msra.mxu0 %v14340
  %14437 = vmatprep.subr.bf16.mxu0 0
  %14438 = vmatpush1.bf16.msra.mxu0 %v14341
  %14439 = vmatprep.subr.bf16.mxu0 0
  %14440 = vmatpush1.bf16.msra.mxu0 %v14342
  %14441 = vmatprep.subr.bf16.mxu0 0
  %14442 = vmatpush1.bf16.msra.mxu0 %v14343
  %14443 = vmatprep.subr.bf16.mxu0 0
  %14444 = vmatpush1.bf16.msra.mxu0 %v14344
  %14445 = vmatprep.subr.bf16.mxu0 0
  %14446 = vmatpush1.bf16.msra.mxu0 %v14345
  %14447 = vmatprep.subr.bf16.mxu0 0
  %14448 = vmatpush1.bf16.msra.mxu0 %v14346
  %14449 = vmatprep.subr.bf16.mxu0 0
  %14450 = vmatpush1.bf16.msra.mxu0 %v14347
  %14451 = vmatprep.subr.bf16.mxu0 0
  %14452 = vmatpush1.bf16.msra.mxu0 %v14348
  %14453 = vmatprep.mubr.bf16.mxu0 %v14117
  %14454 = vmatmul.mubr.bf16.gmra.mrb[0].mxu0 %v14116
  %v14455 = vpop.f32.mrb[0].mxu0
  %v14456 = vadd.f32 %v14416, %v14455
  %v14457 = vpop.f32.mrb[0].mxu0
  %v14458 = vpop.f32.mrb[0].mxu0
  %v14459 = vpop.f32.mrb[0].mxu0
  %14460 = vdwg.mxu0
  %14461 = vmax.xlane.f32.xlu0 %v14456
  %v14462 = vpop.xlane.xlu0 %14461
  %v14463 = vsub.f32 %v14456, %v14462
  %v14464 = vmul.f32 %v14463, 1.442695
  %v14465 = vpow.pop %v14464
  %14466 = vadd.xlane.f32.xlu0 %v14465
  %v14467 = vpop.xlane.xlu0 %14466
  %v14468 = vlog2.pop %v14467
  %v14469 = vmul.f32 %v14468, 0.6931472
  %v14470 = vsub.f32 %v14463, %v14469
  %14471 = vst [vmem:[%s9] sm:$0xff] %v14470
  // Predicated region
  $region38: #{lenet5caffe_forward.1} parent=0 // pred_check
    _
  $region39: #{lenet5caffe_forward.1} parent=0 // pred_check_branch
    %14473 = sbr.rel (0) target = $region41
  $region40: #{lenet5caffe_forward.1} parent=0 // pred_region
    _
  $region41: #{lenet5caffe_forward.1} parent=0 // pred_fallthru
    _
  // Predicated region
  $region42: #{lenet5caffe_forward.1} parent=0 // pred_check
    _
  $region43: #{lenet5caffe_forward.1} parent=0 // pred_check_branch
    %14475 = sbr.rel (0) target = $region45
  $region44: #{lenet5caffe_forward.1} parent=0 // pred_region
    _
  $region45: #{lenet5caffe_forward.1} parent=0 // pred_fallthru
    _

</llo_original>
